<compile_context>
chip_gen: v5e
topology: v5e:2x2
jax: 0.10.0
libtpu: 0.0.40
codegen_flags: <defaults>
</compile_context>

<pallas_src>
import jax
import jax.numpy as jnp
import numpy as np
from jax import lax
from jax.experimental import pallas as pl
from jax.experimental.pallas import tpu as pltpu

H = W = 28
KH = KW = 5
PAD = 2
WP = W + 2 * PAD             # 32  padded image width
C_OUT = 32
POOL = 2
HP = H // POOL               # 14  pooled spatial size
WPP = HP + 2                 # 16  pooled cols padded (sublane-friendly zero lanes)
HALF = WPP * C_OUT           # 512 lanes per x-parity half (lane = pool_col*32 + chan)
LANES = POOL * HALF          # 1024 conv output lanes: [even-x 512 | odd-x 512]
K_CONV = KH * WP             # 160 contraction dim of the banded conv matmul
FC_OUT = 10
FC_PAD = 128                 # lane-dense padded logits
BN_EPS = 1e-5


def _round_up(a, b):
    return ((a + b - 1) // b) * b


def _cnn_fused_kernel(top_ref, bot_ref, wconv_ref, shift_ref, wfc_ref, bfc_ref,
                      o_ref, pooled_ref):
    # top_ref/bot_ref : (HP, b_tile, 160) bf16  receptive-field rows, pool-row-major
    # wconv_ref       : (160, 1024)       bf16  banded conv weight, BN scale folded in
    # shift_ref       : (1, 512)          f32   folded BN shift (applied after the max)
    # wfc_ref         : (HP, 512, 128)    bf16  FC weight, flatten-permutation folded in
    # bfc_ref         : (1, 128)          f32   FC bias (zero-padded to 128 lanes)
    # o_ref           : (b_tile, 128)     f32   logits (first 10 lanes real)
    # pooled_ref      : (HP, b_tile, 512) bf16  VMEM scratch, never touches HBM
    wconv = wconv_ref[...]
    bt = o_ref.shape[0]
    shift_b = jnp.broadcast_to(shift_ref[...], (bt, HALF))      # hoisted broadcast

    # Phase 1: banded conv matmul; 2x2 max-pool == 4-way max over
    # {top,bot} x {even-x half, odd-x half}; BN shift + ReLU deferred past the max.
    for i in range(HP):
        at = jnp.dot(top_ref[i], wconv, preferred_element_type=jnp.float32)
        ab = jnp.dot(bot_ref[i], wconv, preferred_element_type=jnp.float32)
        raw = jnp.maximum(jnp.maximum(at[:, :HALF], at[:, HALF:]),
                          jnp.maximum(ab[:, :HALF], ab[:, HALF:]))
        pooled_ref[i] = jnp.maximum(raw + shift_b, 0.0).astype(pooled_ref.dtype)

    # Phase 2: FC accumulated over pool rows; pooled slabs are contiguous views.
    acc = jnp.zeros(o_ref.shape, jnp.float32)
    for i in range(HP):
        acc = acc + jnp.dot(pooled_ref[i], wfc_ref[i],
                            preferred_element_type=jnp.float32)
    o_ref[...] = acc + bfc_ref[...]


def _prepare_params(params):
    """Fold BN into the conv weights; build the banded conv matrix and the
    permuted/padded FC weight (host-side, once)."""
    scale = params["bn_gamma"] / jnp.sqrt(params["bn_var"] + BN_EPS)          # (32,)
    shift = (params["conv_b"] - params["bn_mean"]) * scale + params["bn_beta"]
    w_s = params["conv_w"][:, 0] * scale[:, None, None]                       # (32, 5, 5)

    # Band selector: sel[p, h, j, dx] = 1 iff padded col p == 2*j + h + dx
    sel = np.zeros((WP, POOL, HP, KW), np.float32)
    for p in range(WP):
        for h in range(POOL):
            for j in range(HP):
                dx = p - (2 * j + h)
                if 0 <= dx < KW:
                    sel[p, h, j, dx] = 1.0
    sel = jnp.asarray(sel)
    wb = jnp.einsum("cdk,phjk->dphjc", w_s, sel)                 # (5, 32, 2, 14, 32)
    wb = jnp.pad(wb, ((0, 0), (0, 0), (0, 0), (0, WPP - HP), (0, 0)))
    w_conv = wb.reshape(K_CONV, LANES).astype(jnp.bfloat16)      # (160, 1024)
    # Shift applied AFTER the 4-way max -> only one 512-lane copy needed.
    shift_row = jnp.tile(shift, HALF // C_OUT).reshape(1, HALF).astype(jnp.float32)

    # FC weight in (pool_row, lane=j*32+c, out) order; fold PyTorch (C,H,W)
    # flatten order, pool-col zero padding and 128-lane output padding.
    w_fc = params["fc_w"].reshape(FC_OUT, C_OUT, HP, HP)         # [o, c, i, j]
    w_fc = jnp.transpose(w_fc, (2, 3, 1, 0))                     # [i, j, c, o]
    w_fc = jnp.pad(w_fc, ((0, 0), (0, WPP - HP), (0, 0), (0, FC_PAD - FC_OUT)))
    w_fc = w_fc.reshape(HP, HALF, FC_PAD).astype(jnp.bfloat16)   # (14, 512, 128)
    b_fc = jnp.pad(params["fc_b"], (0, FC_PAD - FC_OUT)
                   ).reshape(1, FC_PAD).astype(jnp.float32)
    return w_conv, shift_row, w_fc, b_fc


def cnn_forward(x, params, b_tile=None):
    """Forward pass of the PyTorch `CNN` module.  x: (N, 1, 28, 28) float32."""
    # TODO(synk): BatchNorm uses inference-mode running statistics (model.eval());
    # train-mode per-batch statistics are not implemented.
    n = x.shape[0]
    if b_tile is None:
        # Big tiles amortize per-step overhead; keep >=2 grid steps when the batch
        # allows (v7x megacore), tiles a multiple of 8 sublanes, cap at 128 so the
        # per-step working set stays well inside default scoped VMEM everywhere.
        b_tile = min(128, max(8, _round_up(n, 16) // 2))
    n_pad = _round_up(n, b_tile)
    w_conv, shift_row, w_fc3, b_fc = _prepare_params(params)

    # --- XLA glue: zero-pad, build the two bf16 row-pair operands, pool-row-major.
    xp = jnp.pad(x[:, 0], ((0, n_pad - n), (PAD, PAD), (PAD, PAD))).astype(jnp.bfloat16)
    top = jnp.concatenate(
        [xp[:, d:d + POOL * HP:POOL, :] for d in range(KH)], axis=-1)       # (n_pad,14,160)
    bot = jnp.concatenate(
        [xp[:, d + 1:d + 1 + POOL * HP:POOL, :] for d in range(KH)], axis=-1)
    top = jnp.transpose(top, (1, 0, 2))                                      # (14, n_pad, 160)
    bot = jnp.transpose(bot, (1, 0, 2))

    out = pl.pallas_call(
        _cnn_fused_kernel,
        out_shape=jax.ShapeDtypeStruct((n_pad, FC_PAD), jnp.float32),
        grid=(n_pad // b_tile,),
        in_specs=[
            pl.BlockSpec((HP, b_tile, K_CONV), lambda g: (0, g, 0)),
            pl.BlockSpec((HP, b_tile, K_CONV), lambda g: (0, g, 0)),
            pl.BlockSpec((K_CONV, LANES), lambda g: (0, 0)),        # weights stay resident
            pl.BlockSpec((1, HALF), lambda g: (0, 0)),
            pl.BlockSpec((HP, HALF, FC_PAD), lambda g: (0, 0, 0)),
            pl.BlockSpec((1, FC_PAD), lambda g: (0, 0)),
        ],
        out_specs=pl.BlockSpec((b_tile, FC_PAD), lambda g: (g, 0)),
        scratch_shapes=[pltpu.VMEM((HP, b_tile, HALF), jnp.bfloat16)],
        compiler_params=pltpu.CompilerParams(
            dimension_semantics=("parallel",)),
    )(top, bot, w_conv, shift_row, w_fc3, b_fc)
    return out[:n, :FC_OUT]


def _reference(x, params):
    """Pure-JAX f32 reference matching the PyTorch module (eval-mode BN)."""
    y = lax.conv_general_dilated(
        x, params["conv_w"], window_strides=(1, 1),
        padding=((PAD, PAD), (PAD, PAD)),
        dimension_numbers=("NCHW", "OIHW", "NCHW"),
        precision=lax.Precision.HIGHEST)
    y = y + params["conv_b"][None, :, None, None]
    scale = params["bn_gamma"] / jnp.sqrt(params["bn_var"] + BN_EPS)
    y = (y - params["bn_mean"][None, :, None, None]) * scale[None, :, None, None] \
        + params["bn_beta"][None, :, None, None]
    y = jnp.maximum(y, 0.0)
    n = x.shape[0]
    y = y.reshape(n, C_OUT, HP, POOL, HP, POOL).max(axis=(3, 5))
    y = y.reshape(n, C_OUT * HP * HP)
    return y @ params["fc_w"].T + params["fc_b"]


if __name__ == "__main__":
    key = jax.random.PRNGKey(0)
    ks = jax.random.split(key, 9)
    n = 2
    x = jax.random.normal(ks[0], (n, 1, H, W), jnp.float32)
    params = dict(
        conv_w=0.1 * jax.random.normal(ks[1], (C_OUT, 1, KH, KW), jnp.float32),
        conv_b=0.1 * jax.random.normal(ks[2], (C_OUT,), jnp.float32),
        bn_gamma=1.0 + 0.1 * jax.random.normal(ks[3], (C_OUT,), jnp.float32),
        bn_beta=0.1 * jax.random.normal(ks[4], (C_OUT,), jnp.float32),
        bn_mean=0.1 * jax.random.normal(ks[5], (C_OUT,), jnp.float32),
        bn_var=jax.random.uniform(ks[6], (C_OUT,), jnp.float32, 0.5, 1.5),
        fc_w=0.05 * jax.random.normal(ks[7], (FC_OUT, C_OUT * HP * HP), jnp.float32),
        fc_b=0.05 * jax.random.normal(ks[8], (FC_OUT,), jnp.float32),
    )

    fwd = jax.jit(cnn_forward)
    out = jax.block_until_ready(fwd(x, params))
    assert out.shape == (n, FC_OUT), out.shape

    ref = jax.block_until_ready(_reference(x, params))
    # bf16 MXU inputs with f32 accumulation: compare at a bf16-appropriate tolerance.
    if not np.allclose(np.asarray(out), np.asarray(ref), rtol=2e-2, atol=2e-2):
        raise AssertionError("Pallas CNN output does not match JAX reference")
    print("KERNEL_OK")
</pallas_src>

<mosaic_0001>
module attributes {stable_mosaic.version = 11 : i64} {
  func.func @_cnn_fused_kernel(%arg0: i32, %arg1: memref<14x8x160xbf16, #tpu.memory_space<vmem>>, %arg2: memref<14x8x160xbf16, #tpu.memory_space<vmem>>, %arg3: memref<160x1024xbf16, #tpu.memory_space<vmem>>, %arg4: memref<1x512xf32, #tpu.memory_space<vmem>>, %arg5: memref<14x512x128xbf16, #tpu.memory_space<vmem>>, %arg6: memref<1x128xf32, #tpu.memory_space<vmem>>, %arg7: memref<8x128xf32, #tpu.memory_space<vmem>>, %arg8: memref<14x8x512xbf16, #tpu.memory_space<vmem>>) attributes {dimension_semantics = [#tpu.dimension_semantics<parallel>], iteration_bounds = array<i64: 1>, scalar_prefetch = 0 : i64, scratch_operands = 1 : i64, tpu.core_type = #tpu.core_type<tc>, window_params = [{transform_indices = @transform_0, window_bounds = array<i64: 14, 8, 160>}, {transform_indices = @transform_1, window_bounds = array<i64: 14, 8, 160>}, {pipeline_mode = #tpu.pipeline_mode<synchronous>, transform_indices = @transform_2, window_bounds = array<i64: 160, 1024>}, {pipeline_mode = #tpu.pipeline_mode<synchronous>, transform_indices = @transform_3, window_bounds = array<i64: 1, 512>}, {pipeline_mode = #tpu.pipeline_mode<synchronous>, transform_indices = @transform_4, window_bounds = array<i64: 14, 512, 128>}, {pipeline_mode = #tpu.pipeline_mode<synchronous>, transform_indices = @transform_5, window_bounds = array<i64: 1, 128>}, {transform_indices = @transform_6, window_bounds = array<i64: 8, 128>}]} {
    %c0 = arith.constant 0 : index
    %c0_0 = arith.constant 0 : index
    %0 = vector.load %arg3[%c0, %c0_0] : memref<160x1024xbf16, #tpu.memory_space<vmem>>, vector<160x1024xbf16>
    %c0_1 = arith.constant 0 : index
    %c0_2 = arith.constant 0 : index
    %1 = vector.load %arg4[%c0_1, %c0_2] : memref<1x512xf32, #tpu.memory_space<vmem>>, vector<1x512xf32>
    %2 = vector.shape_cast %1 : vector<1x512xf32> to vector<1x512xf32>
    %3 = vector.broadcast %2 : vector<1x512xf32> to vector<8x512xf32>
    %c0_3 = arith.constant 0 : index
    %c0_4 = arith.constant 0 : index
    %c0_5 = arith.constant 0 : index
    %4 = vector.load %arg1[%c0_3, %c0_4, %c0_5] : memref<14x8x160xbf16, #tpu.memory_space<vmem>>, vector<1x8x160xbf16>
    %5 = vector.shape_cast %4 : vector<1x8x160xbf16> to vector<8x160xbf16>
    %cst = arith.constant dense<0.000000e+00> : vector<8x1024xf32>
    %6 = tpu.matmul %5, %0, %cst {dimension_numbers = #tpu.dot_dimension_numbers<[1], [0], [0], [1], [0, 0, 1, 1], [], []>} : vector<8x160xbf16>, vector<160x1024xbf16>, vector<8x1024xf32> -> vector<8x1024xf32>
    %c0_6 = arith.constant 0 : index
    %c0_7 = arith.constant 0 : index
    %c0_8 = arith.constant 0 : index
    %7 = vector.load %arg2[%c0_6, %c0_7, %c0_8] : memref<14x8x160xbf16, #tpu.memory_space<vmem>>, vector<1x8x160xbf16>
    %8 = vector.shape_cast %7 : vector<1x8x160xbf16> to vector<8x160xbf16>
    %cst_9 = arith.constant dense<0.000000e+00> : vector<8x1024xf32>
    %9 = tpu.matmul %8, %0, %cst_9 {dimension_numbers = #tpu.dot_dimension_numbers<[1], [0], [0], [1], [0, 0, 1, 1], [], []>} : vector<8x160xbf16>, vector<160x1024xbf16>, vector<8x1024xf32> -> vector<8x1024xf32>
    %10 = vector.extract_strided_slice %6 {offsets = [0, 0], sizes = [8, 512], strides = [1, 1]} : vector<8x1024xf32> to vector<8x512xf32>
    %11 = vector.extract_strided_slice %6 {offsets = [0, 512], sizes = [8, 512], strides = [1, 1]} : vector<8x1024xf32> to vector<8x512xf32>
    %12 = arith.maximumf %10, %11 : vector<8x512xf32>
    %13 = vector.extract_strided_slice %9 {offsets = [0, 0], sizes = [8, 512], strides = [1, 1]} : vector<8x1024xf32> to vector<8x512xf32>
    %14 = vector.extract_strided_slice %9 {offsets = [0, 512], sizes = [8, 512], strides = [1, 1]} : vector<8x1024xf32> to vector<8x512xf32>
    %15 = arith.maximumf %13, %14 : vector<8x512xf32>
    %16 = arith.maximumf %12, %15 : vector<8x512xf32>
    %17 = arith.addf %16, %3 : vector<8x512xf32>
    %cst_10 = arith.constant 0.000000e+00 : f32
    %18 = vector.broadcast %cst_10 : f32 to vector<8x512xf32>
    %19 = arith.maximumf %17, %18 : vector<8x512xf32>
    %20 = arith.truncf %19 : vector<8x512xf32> to vector<8x512xbf16>
    %c0_11 = arith.constant 0 : index
    %c0_12 = arith.constant 0 : index
    %c0_13 = arith.constant 0 : index
    %21 = vector.load %arg8[%c0_11, %c0_12, %c0_13] : memref<14x8x512xbf16, #tpu.memory_space<vmem>>, vector<1x8x512xbf16>
    %22 = vector.shape_cast %21 : vector<1x8x512xbf16> to vector<8x512xbf16>
    %23 = vector.shape_cast %20 : vector<8x512xbf16> to vector<1x8x512xbf16>
    tpu.vector_store %arg8[%c0_11, %c0_12, %c0_13], %23 {strides = array<i32>} : memref<14x8x512xbf16, #tpu.memory_space<vmem>>, vector<1x8x512xbf16>,
    %c1 = arith.constant 1 : index
    %c0_14 = arith.constant 0 : index
    %c0_15 = arith.constant 0 : index
    %24 = vector.load %arg1[%c1, %c0_14, %c0_15] : memref<14x8x160xbf16, #tpu.memory_space<vmem>>, vector<1x8x160xbf16>
    %25 = vector.shape_cast %24 : vector<1x8x160xbf16> to vector<8x160xbf16>
    %cst_16 = arith.constant dense<0.000000e+00> : vector<8x1024xf32>
    %26 = tpu.matmul %25, %0, %cst_16 {dimension_numbers = #tpu.dot_dimension_numbers<[1], [0], [0], [1], [0, 0, 1, 1], [], []>} : vector<8x160xbf16>, vector<160x1024xbf16>, vector<8x1024xf32> -> vector<8x1024xf32>
    %c1_17 = arith.constant 1 : index
    %c0_18 = arith.constant 0 : index
    %c0_19 = arith.constant 0 : index
    %27 = vector.load %arg2[%c1_17, %c0_18, %c0_19] : memref<14x8x160xbf16, #tpu.memory_space<vmem>>, vector<1x8x160xbf16>
    %28 = vector.shape_cast %27 : vector<1x8x160xbf16> to vector<8x160xbf16>
    %cst_20 = arith.constant dense<0.000000e+00> : vector<8x1024xf32>
    %29 = tpu.matmul %28, %0, %cst_20 {dimension_numbers = #tpu.dot_dimension_numbers<[1], [0], [0], [1], [0, 0, 1, 1], [], []>} : vector<8x160xbf16>, vector<160x1024xbf16>, vector<8x1024xf32> -> vector<8x1024xf32>
    %30 = vector.extract_strided_slice %26 {offsets = [0, 0], sizes = [8, 512], strides = [1, 1]} : vector<8x1024xf32> to vector<8x512xf32>
    %31 = vector.extract_strided_slice %26 {offsets = [0, 512], sizes = [8, 512], strides = [1, 1]} : vector<8x1024xf32> to vector<8x512xf32>
    %32 = arith.maximumf %30, %31 : vector<8x512xf32>
    %33 = vector.extract_strided_slice %29 {offsets = [0, 0], sizes = [8, 512], strides = [1, 1]} : vector<8x1024xf32> to vector<8x512xf32>
    %34 = vector.extract_strided_slice %29 {offsets = [0, 512], sizes = [8, 512], strides = [1, 1]} : vector<8x1024xf32> to vector<8x512xf32>
    %35 = arith.maximumf %33, %34 : vector<8x512xf32>
    %36 = arith.maximumf %32, %35 : vector<8x512xf32>
    %37 = arith.addf %36, %3 : vector<8x512xf32>
    %cst_21 = arith.constant 0.000000e+00 : f32
    %38 = vector.broadcast %cst_21 : f32 to vector<8x512xf32>
    %39 = arith.maximumf %37, %38 : vector<8x512xf32>
    %40 = arith.truncf %39 : vector<8x512xf32> to vector<8x512xbf16>
    %c1_22 = arith.constant 1 : index
    %c0_23 = arith.constant 0 : index
    %c0_24 = arith.constant 0 : index
    %41 = vector.load %arg8[%c1_22, %c0_23, %c0_24] : memref<14x8x512xbf16, #tpu.memory_space<vmem>>, vector<1x8x512xbf16>
    %42 = vector.shape_cast %41 : vector<1x8x512xbf16> to vector<8x512xbf16>
    %43 = vector.shape_cast %40 : vector<8x512xbf16> to vector<1x8x512xbf16>
    tpu.vector_store %arg8[%c1_22, %c0_23, %c0_24], %43 {strides = array<i32>} : memref<14x8x512xbf16, #tpu.memory_space<vmem>>, vector<1x8x512xbf16>,
    %c2 = arith.constant 2 : index
    %c0_25 = arith.constant 0 : index
    %c0_26 = arith.constant 0 : index
    %44 = vector.load %arg1[%c2, %c0_25, %c0_26] : memref<14x8x160xbf16, #tpu.memory_space<vmem>>, vector<1x8x160xbf16>
    %45 = vector.shape_cast %44 : vector<1x8x160xbf16> to vector<8x160xbf16>
    %cst_27 = arith.constant dense<0.000000e+00> : vector<8x1024xf32>
    %46 = tpu.matmul %45, %0, %cst_27 {dimension_numbers = #tpu.dot_dimension_numbers<[1], [0], [0], [1], [0, 0, 1, 1], [], []>} : vector<8x160xbf16>, vector<160x1024xbf16>, vector<8x1024xf32> -> vector<8x1024xf32>
    %c2_28 = arith.constant 2 : index
    %c0_29 = arith.constant 0 : index
    %c0_30 = arith.constant 0 : index
    %47 = vector.load %arg2[%c2_28, %c0_29, %c0_30] : memref<14x8x160xbf16, #tpu.memory_space<vmem>>, vector<1x8x160xbf16>
    %48 = vector.shape_cast %47 : vector<1x8x160xbf16> to vector<8x160xbf16>
    %cst_31 = arith.constant dense<0.000000e+00> : vector<8x1024xf32>
    %49 = tpu.matmul %48, %0, %cst_31 {dimension_numbers = #tpu.dot_dimension_numbers<[1], [0], [0], [1], [0, 0, 1, 1], [], []>} : vector<8x160xbf16>, vector<160x1024xbf16>, vector<8x1024xf32> -> vector<8x1024xf32>
    %50 = vector.extract_strided_slice %46 {offsets = [0, 0], sizes = [8, 512], strides = [1, 1]} : vector<8x1024xf32> to vector<8x512xf32>
    %51 = vector.extract_strided_slice %46 {offsets = [0, 512], sizes = [8, 512], strides = [1, 1]} : vector<8x1024xf32> to vector<8x512xf32>
    %52 = arith.maximumf %50, %51 : vector<8x512xf32>
    %53 = vector.extract_strided_slice %49 {offsets = [0, 0], sizes = [8, 512], strides = [1, 1]} : vector<8x1024xf32> to vector<8x512xf32>
    %54 = vector.extract_strided_slice %49 {offsets = [0, 512], sizes = [8, 512], strides = [1, 1]} : vector<8x1024xf32> to vector<8x512xf32>
    %55 = arith.maximumf %53, %54 : vector<8x512xf32>
    %56 = arith.maximumf %52, %55 : vector<8x512xf32>
    %57 = arith.addf %56, %3 : vector<8x512xf32>
    %cst_32 = arith.constant 0.000000e+00 : f32
    %58 = vector.broadcast %cst_32 : f32 to vector<8x512xf32>
    %59 = arith.maximumf %57, %58 : vector<8x512xf32>
    %60 = arith.truncf %59 : vector<8x512xf32> to vector<8x512xbf16>
    %c2_33 = arith.constant 2 : index
    %c0_34 = arith.constant 0 : index
    %c0_35 = arith.constant 0 : index
    %61 = vector.load %arg8[%c2_33, %c0_34, %c0_35] : memref<14x8x512xbf16, #tpu.memory_space<vmem>>, vector<1x8x512xbf16>
    %62 = vector.shape_cast %61 : vector<1x8x512xbf16> to vector<8x512xbf16>
    %63 = vector.shape_cast %60 : vector<8x512xbf16> to vector<1x8x512xbf16>
    tpu.vector_store %arg8[%c2_33, %c0_34, %c0_35], %63 {strides = array<i32>} : memref<14x8x512xbf16, #tpu.memory_space<vmem>>, vector<1x8x512xbf16>,
    %c3 = arith.constant 3 : index
    %c0_36 = arith.constant 0 : index
    %c0_37 = arith.constant 0 : index
    %64 = vector.load %arg1[%c3, %c0_36, %c0_37] : memref<14x8x160xbf16, #tpu.memory_space<vmem>>, vector<1x8x160xbf16>
    %65 = vector.shape_cast %64 : vector<1x8x160xbf16> to vector<8x160xbf16>
    %cst_38 = arith.constant dense<0.000000e+00> : vector<8x1024xf32>
    %66 = tpu.matmul %65, %0, %cst_38 {dimension_numbers = #tpu.dot_dimension_numbers<[1], [0], [0], [1], [0, 0, 1, 1], [], []>} : vector<8x160xbf16>, vector<160x1024xbf16>, vector<8x1024xf32> -> vector<8x1024xf32>
    %c3_39 = arith.constant 3 : index
    %c0_40 = arith.constant 0 : index
    %c0_41 = arith.constant 0 : index
    %67 = vector.load %arg2[%c3_39, %c0_40, %c0_41] : memref<14x8x160xbf16, #tpu.memory_space<vmem>>, vector<1x8x160xbf16>
    %68 = vector.shape_cast %67 : vector<1x8x160xbf16> to vector<8x160xbf16>
    %cst_42 = arith.constant dense<0.000000e+00> : vector<8x1024xf32>
    %69 = tpu.matmul %68, %0, %cst_42 {dimension_numbers = #tpu.dot_dimension_numbers<[1], [0], [0], [1], [0, 0, 1, 1], [], []>} : vector<8x160xbf16>, vector<160x1024xbf16>, vector<8x1024xf32> -> vector<8x1024xf32>
    %70 = vector.extract_strided_slice %66 {offsets = [0, 0], sizes = [8, 512], strides = [1, 1]} : vector<8x1024xf32> to vector<8x512xf32>
    %71 = vector.extract_strided_slice %66 {offsets = [0, 512], sizes = [8, 512], strides = [1, 1]} : vector<8x1024xf32> to vector<8x512xf32>
    %72 = arith.maximumf %70, %71 : vector<8x512xf32>
    %73 = vector.extract_strided_slice %69 {offsets = [0, 0], sizes = [8, 512], strides = [1, 1]} : vector<8x1024xf32> to vector<8x512xf32>
    %74 = vector.extract_strided_slice %69 {offsets = [0, 512], sizes = [8, 512], strides = [1, 1]} : vector<8x1024xf32> to vector<8x512xf32>
    %75 = arith.maximumf %73, %74 : vector<8x512xf32>
    %76 = arith.maximumf %72, %75 : vector<8x512xf32>
    %77 = arith.addf %76, %3 : vector<8x512xf32>
    %cst_43 = arith.constant 0.000000e+00 : f32
    %78 = vector.broadcast %cst_43 : f32 to vector<8x512xf32>
    %79 = arith.maximumf %77, %78 : vector<8x512xf32>
    %80 = arith.truncf %79 : vector<8x512xf32> to vector<8x512xbf16>
    %c3_44 = arith.constant 3 : index
    %c0_45 = arith.constant 0 : index
    %c0_46 = arith.constant 0 : index
    %81 = vector.load %arg8[%c3_44, %c0_45, %c0_46] : memref<14x8x512xbf16, #tpu.memory_space<vmem>>, vector<1x8x512xbf16>
    %82 = vector.shape_cast %81 : vector<1x8x512xbf16> to vector<8x512xbf16>
    %83 = vector.shape_cast %80 : vector<8x512xbf16> to vector<1x8x512xbf16>
    tpu.vector_store %arg8[%c3_44, %c0_45, %c0_46], %83 {strides = array<i32>} : memref<14x8x512xbf16, #tpu.memory_space<vmem>>, vector<1x8x512xbf16>,
    %c4 = arith.constant 4 : index
    %c0_47 = arith.constant 0 : index
    %c0_48 = arith.constant 0 : index
    %84 = vector.load %arg1[%c4, %c0_47, %c0_48] : memref<14x8x160xbf16, #tpu.memory_space<vmem>>, vector<1x8x160xbf16>
    %85 = vector.shape_cast %84 : vector<1x8x160xbf16> to vector<8x160xbf16>
    %cst_49 = arith.constant dense<0.000000e+00> : vector<8x1024xf32>
    %86 = tpu.matmul %85, %0, %cst_49 {dimension_numbers = #tpu.dot_dimension_numbers<[1], [0], [0], [1], [0, 0, 1, 1], [], []>} : vector<8x160xbf16>, vector<160x1024xbf16>, vector<8x1024xf32> -> vector<8x1024xf32>
    %c4_50 = arith.constant 4 : index
    %c0_51 = arith.constant 0 : index
    %c0_52 = arith.constant 0 : index
    %87 = vector.load %arg2[%c4_50, %c0_51, %c0_52] : memref<14x8x160xbf16, #tpu.memory_space<vmem>>, vector<1x8x160xbf16>
    %88 = vector.shape_cast %87 : vector<1x8x160xbf16> to vector<8x160xbf16>
    %cst_53 = arith.constant dense<0.000000e+00> : vector<8x1024xf32>
    %89 = tpu.matmul %88, %0, %cst_53 {dimension_numbers = #tpu.dot_dimension_numbers<[1], [0], [0], [1], [0, 0, 1, 1], [], []>} : vector<8x160xbf16>, vector<160x1024xbf16>, vector<8x1024xf32> -> vector<8x1024xf32>
    %90 = vector.extract_strided_slice %86 {offsets = [0, 0], sizes = [8, 512], strides = [1, 1]} : vector<8x1024xf32> to vector<8x512xf32>
    %91 = vector.extract_strided_slice %86 {offsets = [0, 512], sizes = [8, 512], strides = [1, 1]} : vector<8x1024xf32> to vector<8x512xf32>
    %92 = arith.maximumf %90, %91 : vector<8x512xf32>
    %93 = vector.extract_strided_slice %89 {offsets = [0, 0], sizes = [8, 512], strides = [1, 1]} : vector<8x1024xf32> to vector<8x512xf32>
    %94 = vector.extract_strided_slice %89 {offsets = [0, 512], sizes = [8, 512], strides = [1, 1]} : vector<8x1024xf32> to vector<8x512xf32>
    %95 = arith.maximumf %93, %94 : vector<8x512xf32>
    %96 = arith.maximumf %92, %95 : vector<8x512xf32>
    %97 = arith.addf %96, %3 : vector<8x512xf32>
    %cst_54 = arith.constant 0.000000e+00 : f32
    %98 = vector.broadcast %cst_54 : f32 to vector<8x512xf32>
    %99 = arith.maximumf %97, %98 : vector<8x512xf32>
    %100 = arith.truncf %99 : vector<8x512xf32> to vector<8x512xbf16>
    %c4_55 = arith.constant 4 : index
    %c0_56 = arith.constant 0 : index
    %c0_57 = arith.constant 0 : index
    %101 = vector.load %arg8[%c4_55, %c0_56, %c0_57] : memref<14x8x512xbf16, #tpu.memory_space<vmem>>, vector<1x8x512xbf16>
    %102 = vector.shape_cast %101 : vector<1x8x512xbf16> to vector<8x512xbf16>
    %103 = vector.shape_cast %100 : vector<8x512xbf16> to vector<1x8x512xbf16>
    tpu.vector_store %arg8[%c4_55, %c0_56, %c0_57], %103 {strides = array<i32>} : memref<14x8x512xbf16, #tpu.memory_space<vmem>>, vector<1x8x512xbf16>,
    %c5 = arith.constant 5 : index
    %c0_58 = arith.constant 0 : index
    %c0_59 = arith.constant 0 : index
    %104 = vector.load %arg1[%c5, %c0_58, %c0_59] : memref<14x8x160xbf16, #tpu.memory_space<vmem>>, vector<1x8x160xbf16>
    %105 = vector.shape_cast %104 : vector<1x8x160xbf16> to vector<8x160xbf16>
    %cst_60 = arith.constant dense<0.000000e+00> : vector<8x1024xf32>
    %106 = tpu.matmul %105, %0, %cst_60 {dimension_numbers = #tpu.dot_dimension_numbers<[1], [0], [0], [1], [0, 0, 1, 1], [], []>} : vector<8x160xbf16>, vector<160x1024xbf16>, vector<8x1024xf32> -> vector<8x1024xf32>
    %c5_61 = arith.constant 5 : index
    %c0_62 = arith.constant 0 : index
    %c0_63 = arith.constant 0 : index
    %107 = vector.load %arg2[%c5_61, %c0_62, %c0_63] : memref<14x8x160xbf16, #tpu.memory_space<vmem>>, vector<1x8x160xbf16>
    %108 = vector.shape_cast %107 : vector<1x8x160xbf16> to vector<8x160xbf16>
    %cst_64 = arith.constant dense<0.000000e+00> : vector<8x1024xf32>
    %109 = tpu.matmul %108, %0, %cst_64 {dimension_numbers = #tpu.dot_dimension_numbers<[1], [0], [0], [1], [0, 0, 1, 1], [], []>} : vector<8x160xbf16>, vector<160x1024xbf16>, vector<8x1024xf32> -> vector<8x1024xf32>
    %110 = vector.extract_strided_slice %106 {offsets = [0, 0], sizes = [8, 512], strides = [1, 1]} : vector<8x1024xf32> to vector<8x512xf32>
    %111 = vector.extract_strided_slice %106 {offsets = [0, 512], sizes = [8, 512], strides = [1, 1]} : vector<8x1024xf32> to vector<8x512xf32>
    %112 = arith.maximumf %110, %111 : vector<8x512xf32>
    %113 = vector.extract_strided_slice %109 {offsets = [0, 0], sizes = [8, 512], strides = [1, 1]} : vector<8x1024xf32> to vector<8x512xf32>
    %114 = vector.extract_strided_slice %109 {offsets = [0, 512], sizes = [8, 512], strides = [1, 1]} : vector<8x1024xf32> to vector<8x512xf32>
    %115 = arith.maximumf %113, %114 : vector<8x512xf32>
    %116 = arith.maximumf %112, %115 : vector<8x512xf32>
    %117 = arith.addf %116, %3 : vector<8x512xf32>
    %cst_65 = arith.constant 0.000000e+00 : f32
    %118 = vector.broadcast %cst_65 : f32 to vector<8x512xf32>
    %119 = arith.maximumf %117, %118 : vector<8x512xf32>
    %120 = arith.truncf %119 : vector<8x512xf32> to vector<8x512xbf16>
    %c5_66 = arith.constant 5 : index
    %c0_67 = arith.constant 0 : index
    %c0_68 = arith.constant 0 : index
    %121 = vector.load %arg8[%c5_66, %c0_67, %c0_68] : memref<14x8x512xbf16, #tpu.memory_space<vmem>>, vector<1x8x512xbf16>
    %122 = vector.shape_cast %121 : vector<1x8x512xbf16> to vector<8x512xbf16>
    %123 = vector.shape_cast %120 : vector<8x512xbf16> to vector<1x8x512xbf16>
    tpu.vector_store %arg8[%c5_66, %c0_67, %c0_68], %123 {strides = array<i32>} : memref<14x8x512xbf16, #tpu.memory_space<vmem>>, vector<1x8x512xbf16>,
    %c6 = arith.constant 6 : index
    %c0_69 = arith.constant 0 : index
    %c0_70 = arith.constant 0 : index
    %124 = vector.load %arg1[%c6, %c0_69, %c0_70] : memref<14x8x160xbf16, #tpu.memory_space<vmem>>, vector<1x8x160xbf16>
    %125 = vector.shape_cast %124 : vector<1x8x160xbf16> to vector<8x160xbf16>
    %cst_71 = arith.constant dense<0.000000e+00> : vector<8x1024xf32>
    %126 = tpu.matmul %125, %0, %cst_71 {dimension_numbers = #tpu.dot_dimension_numbers<[1], [0], [0], [1], [0, 0, 1, 1], [], []>} : vector<8x160xbf16>, vector<160x1024xbf16>, vector<8x1024xf32> -> vector<8x1024xf32>
    %c6_72 = arith.constant 6 : index
    %c0_73 = arith.constant 0 : index
    %c0_74 = arith.constant 0 : index
    %127 = vector.load %arg2[%c6_72, %c0_73, %c0_74] : memref<14x8x160xbf16, #tpu.memory_space<vmem>>, vector<1x8x160xbf16>
    %128 = vector.shape_cast %127 : vector<1x8x160xbf16> to vector<8x160xbf16>
    %cst_75 = arith.constant dense<0.000000e+00> : vector<8x1024xf32>
    %129 = tpu.matmul %128, %0, %cst_75 {dimension_numbers = #tpu.dot_dimension_numbers<[1], [0], [0], [1], [0, 0, 1, 1], [], []>} : vector<8x160xbf16>, vector<160x1024xbf16>, vector<8x1024xf32> -> vector<8x1024xf32>
    %130 = vector.extract_strided_slice %126 {offsets = [0, 0], sizes = [8, 512], strides = [1, 1]} : vector<8x1024xf32> to vector<8x512xf32>
    %131 = vector.extract_strided_slice %126 {offsets = [0, 512], sizes = [8, 512], strides = [1, 1]} : vector<8x1024xf32> to vector<8x512xf32>
    %132 = arith.maximumf %130, %131 : vector<8x512xf32>
    %133 = vector.extract_strided_slice %129 {offsets = [0, 0], sizes = [8, 512], strides = [1, 1]} : vector<8x1024xf32> to vector<8x512xf32>
    %134 = vector.extract_strided_slice %129 {offsets = [0, 512], sizes = [8, 512], strides = [1, 1]} : vector<8x1024xf32> to vector<8x512xf32>
    %135 = arith.maximumf %133, %134 : vector<8x512xf32>
    %136 = arith.maximumf %132, %135 : vector<8x512xf32>
    %137 = arith.addf %136, %3 : vector<8x512xf32>
    %cst_76 = arith.constant 0.000000e+00 : f32
    %138 = vector.broadcast %cst_76 : f32 to vector<8x512xf32>
    %139 = arith.maximumf %137, %138 : vector<8x512xf32>
    %140 = arith.truncf %139 : vector<8x512xf32> to vector<8x512xbf16>
    %c6_77 = arith.constant 6 : index
    %c0_78 = arith.constant 0 : index
    %c0_79 = arith.constant 0 : index
    %141 = vector.load %arg8[%c6_77, %c0_78, %c0_79] : memref<14x8x512xbf16, #tpu.memory_space<vmem>>, vector<1x8x512xbf16>
    %142 = vector.shape_cast %141 : vector<1x8x512xbf16> to vector<8x512xbf16>
    %143 = vector.shape_cast %140 : vector<8x512xbf16> to vector<1x8x512xbf16>
    tpu.vector_store %arg8[%c6_77, %c0_78, %c0_79], %143 {strides = array<i32>} : memref<14x8x512xbf16, #tpu.memory_space<vmem>>, vector<1x8x512xbf16>,
    %c7 = arith.constant 7 : index
    %c0_80 = arith.constant 0 : index
    %c0_81 = arith.constant 0 : index
    %144 = vector.load %arg1[%c7, %c0_80, %c0_81] : memref<14x8x160xbf16, #tpu.memory_space<vmem>>, vector<1x8x160xbf16>
    %145 = vector.shape_cast %144 : vector<1x8x160xbf16> to vector<8x160xbf16>
    %cst_82 = arith.constant dense<0.000000e+00> : vector<8x1024xf32>
    %146 = tpu.matmul %145, %0, %cst_82 {dimension_numbers = #tpu.dot_dimension_numbers<[1], [0], [0], [1], [0, 0, 1, 1], [], []>} : vector<8x160xbf16>, vector<160x1024xbf16>, vector<8x1024xf32> -> vector<8x1024xf32>
    %c7_83 = arith.constant 7 : index
    %c0_84 = arith.constant 0 : index
    %c0_85 = arith.constant 0 : index
    %147 = vector.load %arg2[%c7_83, %c0_84, %c0_85] : memref<14x8x160xbf16, #tpu.memory_space<vmem>>, vector<1x8x160xbf16>
    %148 = vector.shape_cast %147 : vector<1x8x160xbf16> to vector<8x160xbf16>
    %cst_86 = arith.constant dense<0.000000e+00> : vector<8x1024xf32>
    %149 = tpu.matmul %148, %0, %cst_86 {dimension_numbers = #tpu.dot_dimension_numbers<[1], [0], [0], [1], [0, 0, 1, 1], [], []>} : vector<8x160xbf16>, vector<160x1024xbf16>, vector<8x1024xf32> -> vector<8x1024xf32>
    %150 = vector.extract_strided_slice %146 {offsets = [0, 0], sizes = [8, 512], strides = [1, 1]} : vector<8x1024xf32> to vector<8x512xf32>
    %151 = vector.extract_strided_slice %146 {offsets = [0, 512], sizes = [8, 512], strides = [1, 1]} : vector<8x1024xf32> to vector<8x512xf32>
    %152 = arith.maximumf %150, %151 : vector<8x512xf32>
    %153 = vector.extract_strided_slice %149 {offsets = [0, 0], sizes = [8, 512], strides = [1, 1]} : vector<8x1024xf32> to vector<8x512xf32>
    %154 = vector.extract_strided_slice %149 {offsets = [0, 512], sizes = [8, 512], strides = [1, 1]} : vector<8x1024xf32> to vector<8x512xf32>
    %155 = arith.maximumf %153, %154 : vector<8x512xf32>
    %156 = arith.maximumf %152, %155 : vector<8x512xf32>
    %157 = arith.addf %156, %3 : vector<8x512xf32>
    %cst_87 = arith.constant 0.000000e+00 : f32
    %158 = vector.broadcast %cst_87 : f32 to vector<8x512xf32>
    %159 = arith.maximumf %157, %158 : vector<8x512xf32>
    %160 = arith.truncf %159 : vector<8x512xf32> to vector<8x512xbf16>
    %c7_88 = arith.constant 7 : index
    %c0_89 = arith.constant 0 : index
    %c0_90 = arith.constant 0 : index
    %161 = vector.load %arg8[%c7_88, %c0_89, %c0_90] : memref<14x8x512xbf16, #tpu.memory_space<vmem>>, vector<1x8x512xbf16>
    %162 = vector.shape_cast %161 : vector<1x8x512xbf16> to vector<8x512xbf16>
    %163 = vector.shape_cast %160 : vector<8x512xbf16> to vector<1x8x512xbf16>
    tpu.vector_store %arg8[%c7_88, %c0_89, %c0_90], %163 {strides = array<i32>} : memref<14x8x512xbf16, #tpu.memory_space<vmem>>, vector<1x8x512xbf16>,
    %c8 = arith.constant 8 : index
    %c0_91 = arith.constant 0 : index
    %c0_92 = arith.constant 0 : index
    %164 = vector.load %arg1[%c8, %c0_91, %c0_92] : memref<14x8x160xbf16, #tpu.memory_space<vmem>>, vector<1x8x160xbf16>
    %165 = vector.shape_cast %164 : vector<1x8x160xbf16> to vector<8x160xbf16>
    %cst_93 = arith.constant dense<0.000000e+00> : vector<8x1024xf32>
    %166 = tpu.matmul %165, %0, %cst_93 {dimension_numbers = #tpu.dot_dimension_numbers<[1], [0], [0], [1], [0, 0, 1, 1], [], []>} : vector<8x160xbf16>, vector<160x1024xbf16>, vector<8x1024xf32> -> vector<8x1024xf32>
    %c8_94 = arith.constant 8 : index
    %c0_95 = arith.constant 0 : index
    %c0_96 = arith.constant 0 : index
    %167 = vector.load %arg2[%c8_94, %c0_95, %c0_96] : memref<14x8x160xbf16, #tpu.memory_space<vmem>>, vector<1x8x160xbf16>
    %168 = vector.shape_cast %167 : vector<1x8x160xbf16> to vector<8x160xbf16>
    %cst_97 = arith.constant dense<0.000000e+00> : vector<8x1024xf32>
    %169 = tpu.matmul %168, %0, %cst_97 {dimension_numbers = #tpu.dot_dimension_numbers<[1], [0], [0], [1], [0, 0, 1, 1], [], []>} : vector<8x160xbf16>, vector<160x1024xbf16>, vector<8x1024xf32> -> vector<8x1024xf32>
    %170 = vector.extract_strided_slice %166 {offsets = [0, 0], sizes = [8, 512], strides = [1, 1]} : vector<8x1024xf32> to vector<8x512xf32>
    %171 = vector.extract_strided_slice %166 {offsets = [0, 512], sizes = [8, 512], strides = [1, 1]} : vector<8x1024xf32> to vector<8x512xf32>
    %172 = arith.maximumf %170, %171 : vector<8x512xf32>
    %173 = vector.extract_strided_slice %169 {offsets = [0, 0], sizes = [8, 512], strides = [1, 1]} : vector<8x1024xf32> to vector<8x512xf32>
    %174 = vector.extract_strided_slice %169 {offsets = [0, 512], sizes = [8, 512], strides = [1, 1]} : vector<8x1024xf32> to vector<8x512xf32>
    %175 = arith.maximumf %173, %174 : vector<8x512xf32>
    %176 = arith.maximumf %172, %175 : vector<8x512xf32>
    %177 = arith.addf %176, %3 : vector<8x512xf32>
    %cst_98 = arith.constant 0.000000e+00 : f32
    %178 = vector.broadcast %cst_98 : f32 to vector<8x512xf32>
    %179 = arith.maximumf %177, %178 : vector<8x512xf32>
    %180 = arith.truncf %179 : vector<8x512xf32> to vector<8x512xbf16>
    %c8_99 = arith.constant 8 : index
    %c0_100 = arith.constant 0 : index
    %c0_101 = arith.constant 0 : index
    %181 = vector.load %arg8[%c8_99, %c0_100, %c0_101] : memref<14x8x512xbf16, #tpu.memory_space<vmem>>, vector<1x8x512xbf16>
    %182 = vector.shape_cast %181 : vector<1x8x512xbf16> to vector<8x512xbf16>
    %183 = vector.shape_cast %180 : vector<8x512xbf16> to vector<1x8x512xbf16>
    tpu.vector_store %arg8[%c8_99, %c0_100, %c0_101], %183 {strides = array<i32>} : memref<14x8x512xbf16, #tpu.memory_space<vmem>>, vector<1x8x512xbf16>,
    %c9 = arith.constant 9 : index
    %c0_102 = arith.constant 0 : index
    %c0_103 = arith.constant 0 : index
    %184 = vector.load %arg1[%c9, %c0_102, %c0_103] : memref<14x8x160xbf16, #tpu.memory_space<vmem>>, vector<1x8x160xbf16>
    %185 = vector.shape_cast %184 : vector<1x8x160xbf16> to vector<8x160xbf16>
    %cst_104 = arith.constant dense<0.000000e+00> : vector<8x1024xf32>
    %186 = tpu.matmul %185, %0, %cst_104 {dimension_numbers = #tpu.dot_dimension_numbers<[1], [0], [0], [1], [0, 0, 1, 1], [], []>} : vector<8x160xbf16>, vector<160x1024xbf16>, vector<8x1024xf32> -> vector<8x1024xf32>
    %c9_105 = arith.constant 9 : index
    %c0_106 = arith.constant 0 : index
    %c0_107 = arith.constant 0 : index
    %187 = vector.load %arg2[%c9_105, %c0_106, %c0_107] : memref<14x8x160xbf16, #tpu.memory_space<vmem>>, vector<1x8x160xbf16>
    %188 = vector.shape_cast %187 : vector<1x8x160xbf16> to vector<8x160xbf16>
    %cst_108 = arith.constant dense<0.000000e+00> : vector<8x1024xf32>
    %189 = tpu.matmul %188, %0, %cst_108 {dimension_numbers = #tpu.dot_dimension_numbers<[1], [0], [0], [1], [0, 0, 1, 1], [], []>} : vector<8x160xbf16>, vector<160x1024xbf16>, vector<8x1024xf32> -> vector<8x1024xf32>
    %190 = vector.extract_strided_slice %186 {offsets = [0, 0], sizes = [8, 512], strides = [1, 1]} : vector<8x1024xf32> to vector<8x512xf32>
    %191 = vector.extract_strided_slice %186 {offsets = [0, 512], sizes = [8, 512], strides = [1, 1]} : vector<8x1024xf32> to vector<8x512xf32>
    %192 = arith.maximumf %190, %191 : vector<8x512xf32>
    %193 = vector.extract_strided_slice %189 {offsets = [0, 0], sizes = [8, 512], strides = [1, 1]} : vector<8x1024xf32> to vector<8x512xf32>
    %194 = vector.extract_strided_slice %189 {offsets = [0, 512], sizes = [8, 512], strides = [1, 1]} : vector<8x1024xf32> to vector<8x512xf32>
    %195 = arith.maximumf %193, %194 : vector<8x512xf32>
    %196 = arith.maximumf %192, %195 : vector<8x512xf32>
    %197 = arith.addf %196, %3 : vector<8x512xf32>
    %cst_109 = arith.constant 0.000000e+00 : f32
    %198 = vector.broadcast %cst_109 : f32 to vector<8x512xf32>
    %199 = arith.maximumf %197, %198 : vector<8x512xf32>
    %200 = arith.truncf %199 : vector<8x512xf32> to vector<8x512xbf16>
    %c9_110 = arith.constant 9 : index
    %c0_111 = arith.constant 0 : index
    %c0_112 = arith.constant 0 : index
    %201 = vector.load %arg8[%c9_110, %c0_111, %c0_112] : memref<14x8x512xbf16, #tpu.memory_space<vmem>>, vector<1x8x512xbf16>
    %202 = vector.shape_cast %201 : vector<1x8x512xbf16> to vector<8x512xbf16>
    %203 = vector.shape_cast %200 : vector<8x512xbf16> to vector<1x8x512xbf16>
    tpu.vector_store %arg8[%c9_110, %c0_111, %c0_112], %203 {strides = array<i32>} : memref<14x8x512xbf16, #tpu.memory_space<vmem>>, vector<1x8x512xbf16>,
    %c10 = arith.constant 10 : index
    %c0_113 = arith.constant 0 : index
    %c0_114 = arith.constant 0 : index
    %204 = vector.load %arg1[%c10, %c0_113, %c0_114] : memref<14x8x160xbf16, #tpu.memory_space<vmem>>, vector<1x8x160xbf16>
    %205 = vector.shape_cast %204 : vector<1x8x160xbf16> to vector<8x160xbf16>
    %cst_115 = arith.constant dense<0.000000e+00> : vector<8x1024xf32>
    %206 = tpu.matmul %205, %0, %cst_115 {dimension_numbers = #tpu.dot_dimension_numbers<[1], [0], [0], [1], [0, 0, 1, 1], [], []>} : vector<8x160xbf16>, vector<160x1024xbf16>, vector<8x1024xf32> -> vector<8x1024xf32>
    %c10_116 = arith.constant 10 : index
    %c0_117 = arith.constant 0 : index
    %c0_118 = arith.constant 0 : index
    %207 = vector.load %arg2[%c10_116, %c0_117, %c0_118] : memref<14x8x160xbf16, #tpu.memory_space<vmem>>, vector<1x8x160xbf16>
    %208 = vector.shape_cast %207 : vector<1x8x160xbf16> to vector<8x160xbf16>
    %cst_119 = arith.constant dense<0.000000e+00> : vector<8x1024xf32>
    %209 = tpu.matmul %208, %0, %cst_119 {dimension_numbers = #tpu.dot_dimension_numbers<[1], [0], [0], [1], [0, 0, 1, 1], [], []>} : vector<8x160xbf16>, vector<160x1024xbf16>, vector<8x1024xf32> -> vector<8x1024xf32>
    %210 = vector.extract_strided_slice %206 {offsets = [0, 0], sizes = [8, 512], strides = [1, 1]} : vector<8x1024xf32> to vector<8x512xf32>
    %211 = vector.extract_strided_slice %206 {offsets = [0, 512], sizes = [8, 512], strides = [1, 1]} : vector<8x1024xf32> to vector<8x512xf32>
    %212 = arith.maximumf %210, %211 : vector<8x512xf32>
    %213 = vector.extract_strided_slice %209 {offsets = [0, 0], sizes = [8, 512], strides = [1, 1]} : vector<8x1024xf32> to vector<8x512xf32>
    %214 = vector.extract_strided_slice %209 {offsets = [0, 512], sizes = [8, 512], strides = [1, 1]} : vector<8x1024xf32> to vector<8x512xf32>
    %215 = arith.maximumf %213, %214 : vector<8x512xf32>
    %216 = arith.maximumf %212, %215 : vector<8x512xf32>
    %217 = arith.addf %216, %3 : vector<8x512xf32>
    %cst_120 = arith.constant 0.000000e+00 : f32
    %218 = vector.broadcast %cst_120 : f32 to vector<8x512xf32>
    %219 = arith.maximumf %217, %218 : vector<8x512xf32>
    %220 = arith.truncf %219 : vector<8x512xf32> to vector<8x512xbf16>
    %c10_121 = arith.constant 10 : index
    %c0_122 = arith.constant 0 : index
    %c0_123 = arith.constant 0 : index
    %221 = vector.load %arg8[%c10_121, %c0_122, %c0_123] : memref<14x8x512xbf16, #tpu.memory_space<vmem>>, vector<1x8x512xbf16>
    %222 = vector.shape_cast %221 : vector<1x8x512xbf16> to vector<8x512xbf16>
    %223 = vector.shape_cast %220 : vector<8x512xbf16> to vector<1x8x512xbf16>
    tpu.vector_store %arg8[%c10_121, %c0_122, %c0_123], %223 {strides = array<i32>} : memref<14x8x512xbf16, #tpu.memory_space<vmem>>, vector<1x8x512xbf16>,
    %c11 = arith.constant 11 : index
    %c0_124 = arith.constant 0 : index
    %c0_125 = arith.constant 0 : index
    %224 = vector.load %arg1[%c11, %c0_124, %c0_125] : memref<14x8x160xbf16, #tpu.memory_space<vmem>>, vector<1x8x160xbf16>
    %225 = vector.shape_cast %224 : vector<1x8x160xbf16> to vector<8x160xbf16>
    %cst_126 = arith.constant dense<0.000000e+00> : vector<8x1024xf32>
    %226 = tpu.matmul %225, %0, %cst_126 {dimension_numbers = #tpu.dot_dimension_numbers<[1], [0], [0], [1], [0, 0, 1, 1], [], []>} : vector<8x160xbf16>, vector<160x1024xbf16>, vector<8x1024xf32> -> vector<8x1024xf32>
    %c11_127 = arith.constant 11 : index
    %c0_128 = arith.constant 0 : index
    %c0_129 = arith.constant 0 : index
    %227 = vector.load %arg2[%c11_127, %c0_128, %c0_129] : memref<14x8x160xbf16, #tpu.memory_space<vmem>>, vector<1x8x160xbf16>
    %228 = vector.shape_cast %227 : vector<1x8x160xbf16> to vector<8x160xbf16>
    %cst_130 = arith.constant dense<0.000000e+00> : vector<8x1024xf32>
    %229 = tpu.matmul %228, %0, %cst_130 {dimension_numbers = #tpu.dot_dimension_numbers<[1], [0], [0], [1], [0, 0, 1, 1], [], []>} : vector<8x160xbf16>, vector<160x1024xbf16>, vector<8x1024xf32> -> vector<8x1024xf32>
    %230 = vector.extract_strided_slice %226 {offsets = [0, 0], sizes = [8, 512], strides = [1, 1]} : vector<8x1024xf32> to vector<8x512xf32>
    %231 = vector.extract_strided_slice %226 {offsets = [0, 512], sizes = [8, 512], strides = [1, 1]} : vector<8x1024xf32> to vector<8x512xf32>
    %232 = arith.maximumf %230, %231 : vector<8x512xf32>
    %233 = vector.extract_strided_slice %229 {offsets = [0, 0], sizes = [8, 512], strides = [1, 1]} : vector<8x1024xf32> to vector<8x512xf32>
    %234 = vector.extract_strided_slice %229 {offsets = [0, 512], sizes = [8, 512], strides = [1, 1]} : vector<8x1024xf32> to vector<8x512xf32>
    %235 = arith.maximumf %233, %234 : vector<8x512xf32>
    %236 = arith.maximumf %232, %235 : vector<8x512xf32>
    %237 = arith.addf %236, %3 : vector<8x512xf32>
    %cst_131 = arith.constant 0.000000e+00 : f32
    %238 = vector.broadcast %cst_131 : f32 to vector<8x512xf32>
    %239 = arith.maximumf %237, %238 : vector<8x512xf32>
    %240 = arith.truncf %239 : vector<8x512xf32> to vector<8x512xbf16>
    %c11_132 = arith.constant 11 : index
    %c0_133 = arith.constant 0 : index
    %c0_134 = arith.constant 0 : index
    %241 = vector.load %arg8[%c11_132, %c0_133, %c0_134] : memref<14x8x512xbf16, #tpu.memory_space<vmem>>, vector<1x8x512xbf16>
    %242 = vector.shape_cast %241 : vector<1x8x512xbf16> to vector<8x512xbf16>
    %243 = vector.shape_cast %240 : vector<8x512xbf16> to vector<1x8x512xbf16>
    tpu.vector_store %arg8[%c11_132, %c0_133, %c0_134], %243 {strides = array<i32>} : memref<14x8x512xbf16, #tpu.memory_space<vmem>>, vector<1x8x512xbf16>,
    %c12 = arith.constant 12 : index
    %c0_135 = arith.constant 0 : index
    %c0_136 = arith.constant 0 : index
    %244 = vector.load %arg1[%c12, %c0_135, %c0_136] : memref<14x8x160xbf16, #tpu.memory_space<vmem>>, vector<1x8x160xbf16>
    %245 = vector.shape_cast %244 : vector<1x8x160xbf16> to vector<8x160xbf16>
    %cst_137 = arith.constant dense<0.000000e+00> : vector<8x1024xf32>
    %246 = tpu.matmul %245, %0, %cst_137 {dimension_numbers = #tpu.dot_dimension_numbers<[1], [0], [0], [1], [0, 0, 1, 1], [], []>} : vector<8x160xbf16>, vector<160x1024xbf16>, vector<8x1024xf32> -> vector<8x1024xf32>
    %c12_138 = arith.constant 12 : index
    %c0_139 = arith.constant 0 : index
    %c0_140 = arith.constant 0 : index
    %247 = vector.load %arg2[%c12_138, %c0_139, %c0_140] : memref<14x8x160xbf16, #tpu.memory_space<vmem>>, vector<1x8x160xbf16>
    %248 = vector.shape_cast %247 : vector<1x8x160xbf16> to vector<8x160xbf16>
    %cst_141 = arith.constant dense<0.000000e+00> : vector<8x1024xf32>
    %249 = tpu.matmul %248, %0, %cst_141 {dimension_numbers = #tpu.dot_dimension_numbers<[1], [0], [0], [1], [0, 0, 1, 1], [], []>} : vector<8x160xbf16>, vector<160x1024xbf16>, vector<8x1024xf32> -> vector<8x1024xf32>
    %250 = vector.extract_strided_slice %246 {offsets = [0, 0], sizes = [8, 512], strides = [1, 1]} : vector<8x1024xf32> to vector<8x512xf32>
    %251 = vector.extract_strided_slice %246 {offsets = [0, 512], sizes = [8, 512], strides = [1, 1]} : vector<8x1024xf32> to vector<8x512xf32>
    %252 = arith.maximumf %250, %251 : vector<8x512xf32>
    %253 = vector.extract_strided_slice %249 {offsets = [0, 0], sizes = [8, 512], strides = [1, 1]} : vector<8x1024xf32> to vector<8x512xf32>
    %254 = vector.extract_strided_slice %249 {offsets = [0, 512], sizes = [8, 512], strides = [1, 1]} : vector<8x1024xf32> to vector<8x512xf32>
    %255 = arith.maximumf %253, %254 : vector<8x512xf32>
    %256 = arith.maximumf %252, %255 : vector<8x512xf32>
    %257 = arith.addf %256, %3 : vector<8x512xf32>
    %cst_142 = arith.constant 0.000000e+00 : f32
    %258 = vector.broadcast %cst_142 : f32 to vector<8x512xf32>
    %259 = arith.maximumf %257, %258 : vector<8x512xf32>
    %260 = arith.truncf %259 : vector<8x512xf32> to vector<8x512xbf16>
    %c12_143 = arith.constant 12 : index
    %c0_144 = arith.constant 0 : index
    %c0_145 = arith.constant 0 : index
    %261 = vector.load %arg8[%c12_143, %c0_144, %c0_145] : memref<14x8x512xbf16, #tpu.memory_space<vmem>>, vector<1x8x512xbf16>
    %262 = vector.shape_cast %261 : vector<1x8x512xbf16> to vector<8x512xbf16>
    %263 = vector.shape_cast %260 : vector<8x512xbf16> to vector<1x8x512xbf16>
    tpu.vector_store %arg8[%c12_143, %c0_144, %c0_145], %263 {strides = array<i32>} : memref<14x8x512xbf16, #tpu.memory_space<vmem>>, vector<1x8x512xbf16>,
    %c13 = arith.constant 13 : index
    %c0_146 = arith.constant 0 : index
    %c0_147 = arith.constant 0 : index
    %264 = vector.load %arg1[%c13, %c0_146, %c0_147] : memref<14x8x160xbf16, #tpu.memory_space<vmem>>, vector<1x8x160xbf16>
    %265 = vector.shape_cast %264 : vector<1x8x160xbf16> to vector<8x160xbf16>
    %cst_148 = arith.constant dense<0.000000e+00> : vector<8x1024xf32>
    %266 = tpu.matmul %265, %0, %cst_148 {dimension_numbers = #tpu.dot_dimension_numbers<[1], [0], [0], [1], [0, 0, 1, 1], [], []>} : vector<8x160xbf16>, vector<160x1024xbf16>, vector<8x1024xf32> -> vector<8x1024xf32>
    %c13_149 = arith.constant 13 : index
    %c0_150 = arith.constant 0 : index
    %c0_151 = arith.constant 0 : index
    %267 = vector.load %arg2[%c13_149, %c0_150, %c0_151] : memref<14x8x160xbf16, #tpu.memory_space<vmem>>, vector<1x8x160xbf16>
    %268 = vector.shape_cast %267 : vector<1x8x160xbf16> to vector<8x160xbf16>
    %cst_152 = arith.constant dense<0.000000e+00> : vector<8x1024xf32>
    %269 = tpu.matmul %268, %0, %cst_152 {dimension_numbers = #tpu.dot_dimension_numbers<[1], [0], [0], [1], [0, 0, 1, 1], [], []>} : vector<8x160xbf16>, vector<160x1024xbf16>, vector<8x1024xf32> -> vector<8x1024xf32>
    %270 = vector.extract_strided_slice %266 {offsets = [0, 0], sizes = [8, 512], strides = [1, 1]} : vector<8x1024xf32> to vector<8x512xf32>
    %271 = vector.extract_strided_slice %266 {offsets = [0, 512], sizes = [8, 512], strides = [1, 1]} : vector<8x1024xf32> to vector<8x512xf32>
    %272 = arith.maximumf %270, %271 : vector<8x512xf32>
    %273 = vector.extract_strided_slice %269 {offsets = [0, 0], sizes = [8, 512], strides = [1, 1]} : vector<8x1024xf32> to vector<8x512xf32>
    %274 = vector.extract_strided_slice %269 {offsets = [0, 512], sizes = [8, 512], strides = [1, 1]} : vector<8x1024xf32> to vector<8x512xf32>
    %275 = arith.maximumf %273, %274 : vector<8x512xf32>
    %276 = arith.maximumf %272, %275 : vector<8x512xf32>
    %277 = arith.addf %276, %3 : vector<8x512xf32>
    %cst_153 = arith.constant 0.000000e+00 : f32
    %278 = vector.broadcast %cst_153 : f32 to vector<8x512xf32>
    %279 = arith.maximumf %277, %278 : vector<8x512xf32>
    %280 = arith.truncf %279 : vector<8x512xf32> to vector<8x512xbf16>
    %c13_154 = arith.constant 13 : index
    %c0_155 = arith.constant 0 : index
    %c0_156 = arith.constant 0 : index
    %281 = vector.load %arg8[%c13_154, %c0_155, %c0_156] : memref<14x8x512xbf16, #tpu.memory_space<vmem>>, vector<1x8x512xbf16>
    %282 = vector.shape_cast %281 : vector<1x8x512xbf16> to vector<8x512xbf16>
    %283 = vector.shape_cast %280 : vector<8x512xbf16> to vector<1x8x512xbf16>
    tpu.vector_store %arg8[%c13_154, %c0_155, %c0_156], %283 {strides = array<i32>} : memref<14x8x512xbf16, #tpu.memory_space<vmem>>, vector<1x8x512xbf16>,
    %cst_157 = arith.constant 0.000000e+00 : f32
    %284 = vector.broadcast %cst_157 : f32 to vector<8x128xf32>
    %c0_158 = arith.constant 0 : index
    %c0_159 = arith.constant 0 : index
    %c0_160 = arith.constant 0 : index
    %285 = vector.load %arg8[%c0_158, %c0_159, %c0_160] : memref<14x8x512xbf16, #tpu.memory_space<vmem>>, vector<1x8x512xbf16>
    %286 = vector.shape_cast %285 : vector<1x8x512xbf16> to vector<8x512xbf16>
    %c0_161 = arith.constant 0 : index
    %c0_162 = arith.constant 0 : index
    %c0_163 = arith.constant 0 : index
    %287 = vector.load %arg5[%c0_161, %c0_162, %c0_163] : memref<14x512x128xbf16, #tpu.memory_space<vmem>>, vector<1x512x128xbf16>
    %288 = vector.shape_cast %287 : vector<1x512x128xbf16> to vector<512x128xbf16>
    %cst_164 = arith.constant dense<0.000000e+00> : vector<8x128xf32>
    %289 = tpu.matmul %286, %288, %cst_164 {dimension_numbers = #tpu.dot_dimension_numbers<[1], [0], [0], [1], [0, 0, 1, 1], [], []>} : vector<8x512xbf16>, vector<512x128xbf16>, vector<8x128xf32> -> vector<8x128xf32>
    %290 = arith.addf %284, %289 : vector<8x128xf32>
    %c1_165 = arith.constant 1 : index
    %c0_166 = arith.constant 0 : index
    %c0_167 = arith.constant 0 : index
    %291 = vector.load %arg8[%c1_165, %c0_166, %c0_167] : memref<14x8x512xbf16, #tpu.memory_space<vmem>>, vector<1x8x512xbf16>
    %292 = vector.shape_cast %291 : vector<1x8x512xbf16> to vector<8x512xbf16>
    %c1_168 = arith.constant 1 : index
    %c0_169 = arith.constant 0 : index
    %c0_170 = arith.constant 0 : index
    %293 = vector.load %arg5[%c1_168, %c0_169, %c0_170] : memref<14x512x128xbf16, #tpu.memory_space<vmem>>, vector<1x512x128xbf16>
    %294 = vector.shape_cast %293 : vector<1x512x128xbf16> to vector<512x128xbf16>
    %cst_171 = arith.constant dense<0.000000e+00> : vector<8x128xf32>
    %295 = tpu.matmul %292, %294, %cst_171 {dimension_numbers = #tpu.dot_dimension_numbers<[1], [0], [0], [1], [0, 0, 1, 1], [], []>} : vector<8x512xbf16>, vector<512x128xbf16>, vector<8x128xf32> -> vector<8x128xf32>
    %296 = arith.addf %290, %295 : vector<8x128xf32>
    %c2_172 = arith.constant 2 : index
    %c0_173 = arith.constant 0 : index
    %c0_174 = arith.constant 0 : index
    %297 = vector.load %arg8[%c2_172, %c0_173, %c0_174] : memref<14x8x512xbf16, #tpu.memory_space<vmem>>, vector<1x8x512xbf16>
    %298 = vector.shape_cast %297 : vector<1x8x512xbf16> to vector<8x512xbf16>
    %c2_175 = arith.constant 2 : index
    %c0_176 = arith.constant 0 : index
    %c0_177 = arith.constant 0 : index
    %299 = vector.load %arg5[%c2_175, %c0_176, %c0_177] : memref<14x512x128xbf16, #tpu.memory_space<vmem>>, vector<1x512x128xbf16>
    %300 = vector.shape_cast %299 : vector<1x512x128xbf16> to vector<512x128xbf16>
    %cst_178 = arith.constant dense<0.000000e+00> : vector<8x128xf32>
    %301 = tpu.matmul %298, %300, %cst_178 {dimension_numbers = #tpu.dot_dimension_numbers<[1], [0], [0], [1], [0, 0, 1, 1], [], []>} : vector<8x512xbf16>, vector<512x128xbf16>, vector<8x128xf32> -> vector<8x128xf32>
    %302 = arith.addf %296, %301 : vector<8x128xf32>
    %c3_179 = arith.constant 3 : index
    %c0_180 = arith.constant 0 : index
    %c0_181 = arith.constant 0 : index
    %303 = vector.load %arg8[%c3_179, %c0_180, %c0_181] : memref<14x8x512xbf16, #tpu.memory_space<vmem>>, vector<1x8x512xbf16>
    %304 = vector.shape_cast %303 : vector<1x8x512xbf16> to vector<8x512xbf16>
    %c3_182 = arith.constant 3 : index
    %c0_183 = arith.constant 0 : index
    %c0_184 = arith.constant 0 : index
    %305 = vector.load %arg5[%c3_182, %c0_183, %c0_184] : memref<14x512x128xbf16, #tpu.memory_space<vmem>>, vector<1x512x128xbf16>
    %306 = vector.shape_cast %305 : vector<1x512x128xbf16> to vector<512x128xbf16>
    %cst_185 = arith.constant dense<0.000000e+00> : vector<8x128xf32>
    %307 = tpu.matmul %304, %306, %cst_185 {dimension_numbers = #tpu.dot_dimension_numbers<[1], [0], [0], [1], [0, 0, 1, 1], [], []>} : vector<8x512xbf16>, vector<512x128xbf16>, vector<8x128xf32> -> vector<8x128xf32>
    %308 = arith.addf %302, %307 : vector<8x128xf32>
    %c4_186 = arith.constant 4 : index
    %c0_187 = arith.constant 0 : index
    %c0_188 = arith.constant 0 : index
    %309 = vector.load %arg8[%c4_186, %c0_187, %c0_188] : memref<14x8x512xbf16, #tpu.memory_space<vmem>>, vector<1x8x512xbf16>
    %310 = vector.shape_cast %309 : vector<1x8x512xbf16> to vector<8x512xbf16>
    %c4_189 = arith.constant 4 : index
    %c0_190 = arith.constant 0 : index
    %c0_191 = arith.constant 0 : index
    %311 = vector.load %arg5[%c4_189, %c0_190, %c0_191] : memref<14x512x128xbf16, #tpu.memory_space<vmem>>, vector<1x512x128xbf16>
    %312 = vector.shape_cast %311 : vector<1x512x128xbf16> to vector<512x128xbf16>
    %cst_192 = arith.constant dense<0.000000e+00> : vector<8x128xf32>
    %313 = tpu.matmul %310, %312, %cst_192 {dimension_numbers = #tpu.dot_dimension_numbers<[1], [0], [0], [1], [0, 0, 1, 1], [], []>} : vector<8x512xbf16>, vector<512x128xbf16>, vector<8x128xf32> -> vector<8x128xf32>
    %314 = arith.addf %308, %313 : vector<8x128xf32>
    %c5_193 = arith.constant 5 : index
    %c0_194 = arith.constant 0 : index
    %c0_195 = arith.constant 0 : index
    %315 = vector.load %arg8[%c5_193, %c0_194, %c0_195] : memref<14x8x512xbf16, #tpu.memory_space<vmem>>, vector<1x8x512xbf16>
    %316 = vector.shape_cast %315 : vector<1x8x512xbf16> to vector<8x512xbf16>
    %c5_196 = arith.constant 5 : index
    %c0_197 = arith.constant 0 : index
    %c0_198 = arith.constant 0 : index
    %317 = vector.load %arg5[%c5_196, %c0_197, %c0_198] : memref<14x512x128xbf16, #tpu.memory_space<vmem>>, vector<1x512x128xbf16>
    %318 = vector.shape_cast %317 : vector<1x512x128xbf16> to vector<512x128xbf16>
    %cst_199 = arith.constant dense<0.000000e+00> : vector<8x128xf32>
    %319 = tpu.matmul %316, %318, %cst_199 {dimension_numbers = #tpu.dot_dimension_numbers<[1], [0], [0], [1], [0, 0, 1, 1], [], []>} : vector<8x512xbf16>, vector<512x128xbf16>, vector<8x128xf32> -> vector<8x128xf32>
    %320 = arith.addf %314, %319 : vector<8x128xf32>
    %c6_200 = arith.constant 6 : index
    %c0_201 = arith.constant 0 : index
    %c0_202 = arith.constant 0 : index
    %321 = vector.load %arg8[%c6_200, %c0_201, %c0_202] : memref<14x8x512xbf16, #tpu.memory_space<vmem>>, vector<1x8x512xbf16>
    %322 = vector.shape_cast %321 : vector<1x8x512xbf16> to vector<8x512xbf16>
    %c6_203 = arith.constant 6 : index
    %c0_204 = arith.constant 0 : index
    %c0_205 = arith.constant 0 : index
    %323 = vector.load %arg5[%c6_203, %c0_204, %c0_205] : memref<14x512x128xbf16, #tpu.memory_space<vmem>>, vector<1x512x128xbf16>
    %324 = vector.shape_cast %323 : vector<1x512x128xbf16> to vector<512x128xbf16>
    %cst_206 = arith.constant dense<0.000000e+00> : vector<8x128xf32>
    %325 = tpu.matmul %322, %324, %cst_206 {dimension_numbers = #tpu.dot_dimension_numbers<[1], [0], [0], [1], [0, 0, 1, 1], [], []>} : vector<8x512xbf16>, vector<512x128xbf16>, vector<8x128xf32> -> vector<8x128xf32>
    %326 = arith.addf %320, %325 : vector<8x128xf32>
    %c7_207 = arith.constant 7 : index
    %c0_208 = arith.constant 0 : index
    %c0_209 = arith.constant 0 : index
    %327 = vector.load %arg8[%c7_207, %c0_208, %c0_209] : memref<14x8x512xbf16, #tpu.memory_space<vmem>>, vector<1x8x512xbf16>
    %328 = vector.shape_cast %327 : vector<1x8x512xbf16> to vector<8x512xbf16>
    %c7_210 = arith.constant 7 : index
    %c0_211 = arith.constant 0 : index
    %c0_212 = arith.constant 0 : index
    %329 = vector.load %arg5[%c7_210, %c0_211, %c0_212] : memref<14x512x128xbf16, #tpu.memory_space<vmem>>, vector<1x512x128xbf16>
    %330 = vector.shape_cast %329 : vector<1x512x128xbf16> to vector<512x128xbf16>
    %cst_213 = arith.constant dense<0.000000e+00> : vector<8x128xf32>
    %331 = tpu.matmul %328, %330, %cst_213 {dimension_numbers = #tpu.dot_dimension_numbers<[1], [0], [0], [1], [0, 0, 1, 1], [], []>} : vector<8x512xbf16>, vector<512x128xbf16>, vector<8x128xf32> -> vector<8x128xf32>
    %332 = arith.addf %326, %331 : vector<8x128xf32>
    %c8_214 = arith.constant 8 : index
    %c0_215 = arith.constant 0 : index
    %c0_216 = arith.constant 0 : index
    %333 = vector.load %arg8[%c8_214, %c0_215, %c0_216] : memref<14x8x512xbf16, #tpu.memory_space<vmem>>, vector<1x8x512xbf16>
    %334 = vector.shape_cast %333 : vector<1x8x512xbf16> to vector<8x512xbf16>
    %c8_217 = arith.constant 8 : index
    %c0_218 = arith.constant 0 : index
    %c0_219 = arith.constant 0 : index
    %335 = vector.load %arg5[%c8_217, %c0_218, %c0_219] : memref<14x512x128xbf16, #tpu.memory_space<vmem>>, vector<1x512x128xbf16>
    %336 = vector.shape_cast %335 : vector<1x512x128xbf16> to vector<512x128xbf16>
    %cst_220 = arith.constant dense<0.000000e+00> : vector<8x128xf32>
    %337 = tpu.matmul %334, %336, %cst_220 {dimension_numbers = #tpu.dot_dimension_numbers<[1], [0], [0], [1], [0, 0, 1, 1], [], []>} : vector<8x512xbf16>, vector<512x128xbf16>, vector<8x128xf32> -> vector<8x128xf32>
    %338 = arith.addf %332, %337 : vector<8x128xf32>
    %c9_221 = arith.constant 9 : index
    %c0_222 = arith.constant 0 : index
    %c0_223 = arith.constant 0 : index
    %339 = vector.load %arg8[%c9_221, %c0_222, %c0_223] : memref<14x8x512xbf16, #tpu.memory_space<vmem>>, vector<1x8x512xbf16>
    %340 = vector.shape_cast %339 : vector<1x8x512xbf16> to vector<8x512xbf16>
    %c9_224 = arith.constant 9 : index
    %c0_225 = arith.constant 0 : index
    %c0_226 = arith.constant 0 : index
    %341 = vector.load %arg5[%c9_224, %c0_225, %c0_226] : memref<14x512x128xbf16, #tpu.memory_space<vmem>>, vector<1x512x128xbf16>
    %342 = vector.shape_cast %341 : vector<1x512x128xbf16> to vector<512x128xbf16>
    %cst_227 = arith.constant dense<0.000000e+00> : vector<8x128xf32>
    %343 = tpu.matmul %340, %342, %cst_227 {dimension_numbers = #tpu.dot_dimension_numbers<[1], [0], [0], [1], [0, 0, 1, 1], [], []>} : vector<8x512xbf16>, vector<512x128xbf16>, vector<8x128xf32> -> vector<8x128xf32>
    %344 = arith.addf %338, %343 : vector<8x128xf32>
    %c10_228 = arith.constant 10 : index
    %c0_229 = arith.constant 0 : index
    %c0_230 = arith.constant 0 : index
    %345 = vector.load %arg8[%c10_228, %c0_229, %c0_230] : memref<14x8x512xbf16, #tpu.memory_space<vmem>>, vector<1x8x512xbf16>
    %346 = vector.shape_cast %345 : vector<1x8x512xbf16> to vector<8x512xbf16>
    %c10_231 = arith.constant 10 : index
    %c0_232 = arith.constant 0 : index
    %c0_233 = arith.constant 0 : index
    %347 = vector.load %arg5[%c10_231, %c0_232, %c0_233] : memref<14x512x128xbf16, #tpu.memory_space<vmem>>, vector<1x512x128xbf16>
    %348 = vector.shape_cast %347 : vector<1x512x128xbf16> to vector<512x128xbf16>
    %cst_234 = arith.constant dense<0.000000e+00> : vector<8x128xf32>
    %349 = tpu.matmul %346, %348, %cst_234 {dimension_numbers = #tpu.dot_dimension_numbers<[1], [0], [0], [1], [0, 0, 1, 1], [], []>} : vector<8x512xbf16>, vector<512x128xbf16>, vector<8x128xf32> -> vector<8x128xf32>
    %350 = arith.addf %344, %349 : vector<8x128xf32>
    %c11_235 = arith.constant 11 : index
    %c0_236 = arith.constant 0 : index
    %c0_237 = arith.constant 0 : index
    %351 = vector.load %arg8[%c11_235, %c0_236, %c0_237] : memref<14x8x512xbf16, #tpu.memory_space<vmem>>, vector<1x8x512xbf16>
    %352 = vector.shape_cast %351 : vector<1x8x512xbf16> to vector<8x512xbf16>
    %c11_238 = arith.constant 11 : index
    %c0_239 = arith.constant 0 : index
    %c0_240 = arith.constant 0 : index
    %353 = vector.load %arg5[%c11_238, %c0_239, %c0_240] : memref<14x512x128xbf16, #tpu.memory_space<vmem>>, vector<1x512x128xbf16>
    %354 = vector.shape_cast %353 : vector<1x512x128xbf16> to vector<512x128xbf16>
    %cst_241 = arith.constant dense<0.000000e+00> : vector<8x128xf32>
    %355 = tpu.matmul %352, %354, %cst_241 {dimension_numbers = #tpu.dot_dimension_numbers<[1], [0], [0], [1], [0, 0, 1, 1], [], []>} : vector<8x512xbf16>, vector<512x128xbf16>, vector<8x128xf32> -> vector<8x128xf32>
    %356 = arith.addf %350, %355 : vector<8x128xf32>
    %c12_242 = arith.constant 12 : index
    %c0_243 = arith.constant 0 : index
    %c0_244 = arith.constant 0 : index
    %357 = vector.load %arg8[%c12_242, %c0_243, %c0_244] : memref<14x8x512xbf16, #tpu.memory_space<vmem>>, vector<1x8x512xbf16>
    %358 = vector.shape_cast %357 : vector<1x8x512xbf16> to vector<8x512xbf16>
    %c12_245 = arith.constant 12 : index
    %c0_246 = arith.constant 0 : index
    %c0_247 = arith.constant 0 : index
    %359 = vector.load %arg5[%c12_245, %c0_246, %c0_247] : memref<14x512x128xbf16, #tpu.memory_space<vmem>>, vector<1x512x128xbf16>
    %360 = vector.shape_cast %359 : vector<1x512x128xbf16> to vector<512x128xbf16>
    %cst_248 = arith.constant dense<0.000000e+00> : vector<8x128xf32>
    %361 = tpu.matmul %358, %360, %cst_248 {dimension_numbers = #tpu.dot_dimension_numbers<[1], [0], [0], [1], [0, 0, 1, 1], [], []>} : vector<8x512xbf16>, vector<512x128xbf16>, vector<8x128xf32> -> vector<8x128xf32>
    %362 = arith.addf %356, %361 : vector<8x128xf32>
    %c13_249 = arith.constant 13 : index
    %c0_250 = arith.constant 0 : index
    %c0_251 = arith.constant 0 : index
    %363 = vector.load %arg8[%c13_249, %c0_250, %c0_251] : memref<14x8x512xbf16, #tpu.memory_space<vmem>>, vector<1x8x512xbf16>
    %364 = vector.shape_cast %363 : vector<1x8x512xbf16> to vector<8x512xbf16>
    %c13_252 = arith.constant 13 : index
    %c0_253 = arith.constant 0 : index
    %c0_254 = arith.constant 0 : index
    %365 = vector.load %arg5[%c13_252, %c0_253, %c0_254] : memref<14x512x128xbf16, #tpu.memory_space<vmem>>, vector<1x512x128xbf16>
    %366 = vector.shape_cast %365 : vector<1x512x128xbf16> to vector<512x128xbf16>
    %cst_255 = arith.constant dense<0.000000e+00> : vector<8x128xf32>
    %367 = tpu.matmul %364, %366, %cst_255 {dimension_numbers = #tpu.dot_dimension_numbers<[1], [0], [0], [1], [0, 0, 1, 1], [], []>} : vector<8x512xbf16>, vector<512x128xbf16>, vector<8x128xf32> -> vector<8x128xf32>
    %368 = arith.addf %362, %367 : vector<8x128xf32>
    %c0_256 = arith.constant 0 : index
    %c0_257 = arith.constant 0 : index
    %369 = vector.load %arg6[%c0_256, %c0_257] : memref<1x128xf32, #tpu.memory_space<vmem>>, vector<1x128xf32>
    %370 = vector.broadcast %369 : vector<1x128xf32> to vector<8x128xf32>
    %371 = arith.addf %368, %370 : vector<8x128xf32>
    %c0_258 = arith.constant 0 : index
    %c0_259 = arith.constant 0 : index
    %372 = vector.load %arg7[%c0_258, %c0_259] : memref<8x128xf32, #tpu.memory_space<vmem>>, vector<8x128xf32>
    tpu.vector_store %arg7[%c0_258, %c0_259], %371 {strides = array<i32>} : memref<8x128xf32, #tpu.memory_space<vmem>>, vector<8x128xf32>,
    return
  }
  func.func @transform_0(%arg0: i32) -> (i32, i32, i32) {
    %c0_i32 = arith.constant 0 : i32
    %c0_i32_0 = arith.constant 0 : i32
    %c0_i32_1 = arith.constant 0 : i32
    return %c0_i32, %arg0, %c0_i32_0 : i32, i32, i32
  }
  func.func @transform_1(%arg0: i32) -> (i32, i32, i32) {
    %c0_i32 = arith.constant 0 : i32
    %c0_i32_0 = arith.constant 0 : i32
    %c0_i32_1 = arith.constant 0 : i32
    return %c0_i32, %arg0, %c0_i32_0 : i32, i32, i32
  }
  func.func @transform_2(%arg0: i32) -> (i32, i32) {
    %c0_i32 = arith.constant 0 : i32
    %c0_i32_0 = arith.constant 0 : i32
    %c0_i32_1 = arith.constant 0 : i32
    return %c0_i32, %c0_i32_0 : i32, i32
  }
  func.func @transform_3(%arg0: i32) -> (i32, i32) {
    %c0_i32 = arith.constant 0 : i32
    %c0_i32_0 = arith.constant 0 : i32
    %c0_i32_1 = arith.constant 0 : i32
    return %c0_i32, %c0_i32_0 : i32, i32
  }
  func.func @transform_4(%arg0: i32) -> (i32, i32, i32) {
    %c0_i32 = arith.constant 0 : i32
    %c0_i32_0 = arith.constant 0 : i32
    %c0_i32_1 = arith.constant 0 : i32
    %c0_i32_2 = arith.constant 0 : i32
    return %c0_i32, %c0_i32_0, %c0_i32_1 : i32, i32, i32
  }
  func.func @transform_5(%arg0: i32) -> (i32, i32) {
    %c0_i32 = arith.constant 0 : i32
    %c0_i32_0 = arith.constant 0 : i32
    %c0_i32_1 = arith.constant 0 : i32
    return %c0_i32, %c0_i32_0 : i32, i32
  }
  func.func @transform_6(%arg0: i32) -> (i32, i32) {
    %c0_i32 = arith.constant 0 : i32
    %c0_i32_0 = arith.constant 0 : i32
    return %arg0, %c0_i32 : i32, i32
  }
}

</mosaic_0001>

<llo_original>
// kernel: tile.8
$region0: #{tile.8}
  #allocation0 [shape = 's32[1]{0}', space=sflag, size = 0x4, scoped, tag = 'scoped memory for tile.8']
  %s0 = inlined_call_operand.vmem [shape: f32[32], index: 0, kind: input, shape index: {}]
  %s1 = inlined_call_operand.vmem [shape: f32[16,32], index: 1, kind: output, shape index: {}]
  // Predicated region
  $region2: #{tile.8} parent=0 // pred_check
    _
  $region3: #{tile.8} parent=0 // pred_check_branch
    %3 = sbr.rel (0) target = $region5
  $region4: #{tile.8} parent=0 // pred_region
    _
  $region5: #{tile.8} parent=0 // pred_fallthru
    _
  %v4 = vld [vmem:[%s0] ss:$0 sm:$0xff]
  %5 = vst [vmem:[%s1] sm:$0xff] %v4
  %s6 = scalar_lea.vmem %s1, 8
  %7 = vst [vmem:[%s6] sm:$0xff] %v4

// kernel: tile.9
$region0: #{tile.9}
  %s0 = inlined_call_operand.vmem [shape: f32[16,32], index: 0, kind: input, shape index: {}]
  %s1 = inlined_call_operand.vmem [shape: f32[1,512], index: 1, kind: output, shape index: {}]
  $region1: #{tile.9} parent=0
    #allocation0 [shape = 'u8[16384]{0}', space=vmem, size = 0x4000, scoped, tag = 'scoped mem for output reshape']
    %v2 = vld [vmem:[%s0] ss:$4 sm:$0xf]
    %vm3 = vcmask 261120
    %4 = vst.msk [vmem:[#allocation0] ss:$8 sm:$0xf] %vm3, %v2
    %s5 = scalar_lea.vmem %s0, 3
    %v6 = vld [vmem:[%s5] ss:$4 sm:$0xf]
    %7 = vrot.lane.b32.xlu0 %v6, 96
    %v8 = vpop.permute.xlu0 %7
    %vm9 = vcmask 1048320
    %10 = vst.msk [vmem:[#allocation0] ss:$8 sm:$0xf] %vm9, %v8
    %s11 = scalar_lea.vmem %s0, 2
    %v12 = vld [vmem:[%s11] ss:$4 sm:$0xf]
    %13 = vrot.lane.b32.xlu0 %v12, 64
    %v14 = vpop.permute.xlu0 %13
    %vm15 = vcmask 785920
    %16 = vst.msk [vmem:[#allocation0] ss:$8 sm:$0xf] %vm15, %v14
    %s17 = scalar_lea.vmem %s0, 1
    %v18 = vld [vmem:[%s17] ss:$4 sm:$0xf]
    %19 = vrot.lane.b32.xlu0 %v18, 32
    %v20 = vpop.permute.xlu0 %19
    %vm21 = vcmask 523520
    %22 = vst.msk [vmem:[#allocation0] ss:$8 sm:$0xf] %vm21, %v20
    %s24 = ssub.s32 2, 1
    %v25 = vld [vmem:[#allocation0] sm:%s24]
    %s27 = ssub.s32 2, 1
    %28 = vst [vmem:[%s1] sm:%s27] %v25
    %s29 = scalar_lea.vmem [#allocation0], 8
    %v30 = vld [vmem:[%s29] sm:%s24]
    %s32 = ssub.s32 2, 1
    %s33 = scalar_lea.vmem %s1, 1
    %34 = vst [vmem:[%s33] sm:%s32] %v30
    %s35 = scalar_lea.vmem [#allocation0], 16
    %v36 = vld [vmem:[%s35] sm:%s24]
    %s38 = ssub.s32 2, 1
    %s39 = scalar_lea.vmem %s1, 2
    %40 = vst [vmem:[%s39] sm:%s38] %v36
    %s41 = scalar_lea.vmem [#allocation0], 24
    %v42 = vld [vmem:[%s41] sm:%s24]
    %s44 = ssub.s32 2, 1
    %s45 = scalar_lea.vmem %s1, 3
    %46 = vst [vmem:[%s45] sm:%s44] %v42

// kernel: cnn_forward.1
$region0: #{cnn_forward.1}
  #allocation0 [shape = 'u32[]', space=smem, size = 0x4, offset = 0x4, fixed_abs, tag = 'smem constant byte address 0x4 - core index']
  #allocation1 [shape = 'u32[72,128]{1,0:T(1,128)}', space=vmem, size = 0x9000, scoped, tag = 'internal scratch']
  #allocation2 [shape = 'bf16[14,8,512]{2,1,0:T(8,128)(2,1)}', space=vmem, size = 0x1c000, scoped, tag = 'scratch operand']
  %s0 = inlined_call_operand.vmem [shape: bf16[14,8,160], index: 0, kind: input, shape index: {}]
  %s1 = inlined_call_operand.vmem [shape: bf16[14,8,160], index: 1, kind: input, shape index: {}]
  %s2 = inlined_call_operand.vmem [shape: bf16[160,1024], index: 2, kind: input, shape index: {}]
  %s3 = inlined_call_operand.vmem [shape: f32[1,512], index: 3, kind: input, shape index: {}]
  %s4 = inlined_call_operand.vmem [shape: bf16[14,512,128], index: 4, kind: input, shape index: {}]
  %s5 = inlined_call_operand.vmem [shape: f32[1,128], index: 5, kind: input, shape index: {}]
  %s6 = inlined_call_operand.vmem [shape: f32[8,128], index: 6, kind: output, shape index: {}]
  %s7 = sld [smem:[#allocation0]]
  $region34: #{cnn_forward.1} parent=0
    _
  %s9 = ssub.s32 1, %s7
  %s10 = scalar_select 0, %s9, %s7
  // Predicated region
  $region2: #{cnn_forward.1} parent=0 // pred_check
    _
  $region3: #{cnn_forward.1} parent=0 // pred_check_branch
    %12 = sbr.rel (0) target = $region5
  $region4: #{cnn_forward.1} parent=0 // pred_region
    _
  $region5: #{cnn_forward.1} parent=0 // pred_fallthru
    _
  // Predicated region
  $region6: #{cnn_forward.1} parent=0 // pred_check
    _
  $region7: #{cnn_forward.1} parent=0 // pred_check_branch
    %14 = sbr.rel (0) target = $region9
  $region8: #{cnn_forward.1} parent=0 // pred_region
    _
  $region9: #{cnn_forward.1} parent=0 // pred_fallthru
    _
  // Predicated region
  $region10: #{cnn_forward.1} parent=0 // pred_check
    _
  $region11: #{cnn_forward.1} parent=0 // pred_check_branch
    %16 = sbr.rel (0) target = $region13
  $region12: #{cnn_forward.1} parent=0 // pred_region
    _
  $region13: #{cnn_forward.1} parent=0 // pred_fallthru
    _
  // Predicated region
  $region14: #{cnn_forward.1} parent=0 // pred_check
    _
  $region15: #{cnn_forward.1} parent=0 // pred_check_branch
    %18 = sbr.rel (0) target = $region17
  $region16: #{cnn_forward.1} parent=0 // pred_region
    _
  $region17: #{cnn_forward.1} parent=0 // pred_fallthru
    _
  // Predicated region
  $region18: #{cnn_forward.1} parent=0 // pred_check
    _
  $region19: #{cnn_forward.1} parent=0 // pred_check_branch
    %20 = sbr.rel (0) target = $region21
  $region20: #{cnn_forward.1} parent=0 // pred_region
    _
  $region21: #{cnn_forward.1} parent=0 // pred_fallthru
    _
  // Predicated region
  $region22: #{cnn_forward.1} parent=0 // pred_check
    _
  $region23: #{cnn_forward.1} parent=0 // pred_check_branch
    %22 = sbr.rel (0) target = $region25
  $region24: #{cnn_forward.1} parent=0 // pred_region
    _
  $region25: #{cnn_forward.1} parent=0 // pred_fallthru
    _
  %v24 = vld [vmem:[%s2] sm:$0xff]
  %v25 = vld [vmem:[%s2 + $0x8] sm:$0xff]
  %v26 = vld [vmem:[%s2 + $0x10] sm:$0xff]
  %v27 = vld [vmem:[%s2 + $0x18] sm:$0xff]
  %v28 = vld [vmem:[%s2 + $0x20] sm:$0xff]
  %v29 = vld [vmem:[%s2 + $0x28] sm:$0xff]
  %v30 = vld [vmem:[%s2 + $0x30] sm:$0xff]
  %v31 = vld [vmem:[%s2 + $0x38] sm:$0xff]
  %v32 = vld [vmem:[%s2 + $0x40] sm:$0xff]
  %v33 = vld [vmem:[%s2 + $0x48] sm:$0xff]
  %v34 = vld [vmem:[%s2 + $0x50] sm:$0xff]
  %v35 = vld [vmem:[%s2 + $0x58] sm:$0xff]
  %v36 = vld [vmem:[%s2 + $0x60] sm:$0xff]
  %v37 = vld [vmem:[%s2 + $0x68] sm:$0xff]
  %v38 = vld [vmem:[%s2 + $0x70] sm:$0xff]
  %v39 = vld [vmem:[%s2 + $0x78] sm:$0xff]
  %v40 = vld [vmem:[%s2 + $0x80] sm:$0xff]
  %v41 = vld [vmem:[%s2 + $0x88] sm:$0xff]
  %v42 = vld [vmem:[%s2 + $0x90] sm:$0xff]
  %v43 = vld [vmem:[%s2 + $0x98] sm:$0xff]
  %v44 = vld [vmem:[%s2 + $0xa0] sm:$0xff]
  %v45 = vld [vmem:[%s2 + $0xa8] sm:$0xff]
  %v46 = vld [vmem:[%s2 + $0xb0] sm:$0xff]
  %v47 = vld [vmem:[%s2 + $0xb8] sm:$0xff]
  %v48 = vld [vmem:[%s2 + $0xc0] sm:$0xff]
  %v49 = vld [vmem:[%s2 + $0xc8] sm:$0xff]
  %v50 = vld [vmem:[%s2 + $0xd0] sm:$0xff]
  %v51 = vld [vmem:[%s2 + $0xd8] sm:$0xff]
  %v52 = vld [vmem:[%s2 + $0xe0] sm:$0xff]
  %v53 = vld [vmem:[%s2 + $0xe8] sm:$0xff]
  %v54 = vld [vmem:[%s2 + $0xf0] sm:$0xff]
  %v55 = vld [vmem:[%s2 + $0xf8] sm:$0xff]
  %v56 = vld [vmem:[%s2 + $0x100] sm:$0xff]
  %v57 = vld [vmem:[%s2 + $0x108] sm:$0xff]
  %v58 = vld [vmem:[%s2 + $0x110] sm:$0xff]
  %v59 = vld [vmem:[%s2 + $0x118] sm:$0xff]
  %v60 = vld [vmem:[%s2 + $0x120] sm:$0xff]
  %v61 = vld [vmem:[%s2 + $0x128] sm:$0xff]
  %v62 = vld [vmem:[%s2 + $0x130] sm:$0xff]
  %v63 = vld [vmem:[%s2 + $0x138] sm:$0xff]
  %v64 = vld [vmem:[%s2 + $0x140] sm:$0xff]
  %v65 = vld [vmem:[%s2 + $0x148] sm:$0xff]
  %v66 = vld [vmem:[%s2 + $0x150] sm:$0xff]
  %v67 = vld [vmem:[%s2 + $0x158] sm:$0xff]
  %v68 = vld [vmem:[%s2 + $0x160] sm:$0xff]
  %v69 = vld [vmem:[%s2 + $0x168] sm:$0xff]
  %v70 = vld [vmem:[%s2 + $0x170] sm:$0xff]
  %v71 = vld [vmem:[%s2 + $0x178] sm:$0xff]
  %v72 = vld [vmem:[%s2 + $0x180] sm:$0xff]
  %v73 = vld [vmem:[%s2 + $0x188] sm:$0xff]
  %v74 = vld [vmem:[%s2 + $0x190] sm:$0xff]
  %v75 = vld [vmem:[%s2 + $0x198] sm:$0xff]
  %v76 = vld [vmem:[%s2 + $0x1a0] sm:$0xff]
  %v77 = vld [vmem:[%s2 + $0x1a8] sm:$0xff]
  %v78 = vld [vmem:[%s2 + $0x1b0] sm:$0xff]
  %v79 = vld [vmem:[%s2 + $0x1b8] sm:$0xff]
  %v80 = vld [vmem:[%s2 + $0x1c0] sm:$0xff]
  %v81 = vld [vmem:[%s2 + $0x1c8] sm:$0xff]
  %v82 = vld [vmem:[%s2 + $0x1d0] sm:$0xff]
  %v83 = vld [vmem:[%s2 + $0x1d8] sm:$0xff]
  %v84 = vld [vmem:[%s2 + $0x1e0] sm:$0xff]
  %v85 = vld [vmem:[%s2 + $0x1e8] sm:$0xff]
  %v86 = vld [vmem:[%s2 + $0x1f0] sm:$0xff]
  %v87 = vld [vmem:[%s2 + $0x1f8] sm:$0xff]
  %v88 = vld [vmem:[%s2 + $0x200] sm:$0xff]
  %v89 = vld [vmem:[%s2 + $0x208] sm:$0xff]
  %v90 = vld [vmem:[%s2 + $0x210] sm:$0xff]
  %v91 = vld [vmem:[%s2 + $0x218] sm:$0xff]
  %v92 = vld [vmem:[%s2 + $0x220] sm:$0xff]
  %v93 = vld [vmem:[%s2 + $0x228] sm:$0xff]
  %v94 = vld [vmem:[%s2 + $0x230] sm:$0xff]
  %v95 = vld [vmem:[%s2 + $0x238] sm:$0xff]
  %v96 = vld [vmem:[%s2 + $0x240] sm:$0xff]
  %v97 = vld [vmem:[%s2 + $0x248] sm:$0xff]
  %v98 = vld [vmem:[%s2 + $0x250] sm:$0xff]
  %v99 = vld [vmem:[%s2 + $0x258] sm:$0xff]
  %v100 = vld [vmem:[%s2 + $0x260] sm:$0xff]
  %v101 = vld [vmem:[%s2 + $0x268] sm:$0xff]
  %v102 = vld [vmem:[%s2 + $0x270] sm:$0xff]
  %v103 = vld [vmem:[%s2 + $0x278] sm:$0xff]
  %v104 = vld [vmem:[%s3] sm:$0xf]
  %v106 = vperm.slane %v104, 0
  %v107 = vperm.slane %v104, 1
  %v108 = vperm.slane %v104, 2
  %v109 = vperm.slane %v104, 3
  %v114 = vld [vmem:[%s0] sm:$0xff]
  %v116 = vunpack.c.l.b16 %v114
  %v117 = vunpack.c.h.b16 %v114
  %v118 = vpack.c.b16 %v116, %v116
  %v119 = vpack.c.b16 %v117, %v117
  %v201 = vunpack.c.l.b16 %v24
  %v202 = vunpack.c.h.b16 %v24
  %v203 = vunpack.c.l.b16 %v25
  %v204 = vunpack.c.h.b16 %v25
  %v205 = vunpack.c.l.b16 %v26
  %v206 = vunpack.c.h.b16 %v26
  %v207 = vunpack.c.l.b16 %v27
  %v208 = vunpack.c.h.b16 %v27
  %v209 = vunpack.c.l.b16 %v28
  %v210 = vunpack.c.h.b16 %v28
  %v211 = vunpack.c.l.b16 %v29
  %v212 = vunpack.c.h.b16 %v29
  %v213 = vunpack.c.l.b16 %v30
  %v214 = vunpack.c.h.b16 %v30
  %v215 = vunpack.c.l.b16 %v31
  %v216 = vunpack.c.h.b16 %v31
  %v217 = vunpack.c.l.b16 %v32
  %v218 = vunpack.c.h.b16 %v32
  %v219 = vunpack.c.l.b16 %v33
  %v220 = vunpack.c.h.b16 %v33
  %v221 = vunpack.c.l.b16 %v34
  %v222 = vunpack.c.h.b16 %v34
  %v223 = vunpack.c.l.b16 %v35
  %v224 = vunpack.c.h.b16 %v35
  %v225 = vunpack.c.l.b16 %v36
  %v226 = vunpack.c.h.b16 %v36
  %v227 = vunpack.c.l.b16 %v37
  %v228 = vunpack.c.h.b16 %v37
  %v229 = vunpack.c.l.b16 %v38
  %v230 = vunpack.c.h.b16 %v38
  %v231 = vunpack.c.l.b16 %v39
  %v232 = vunpack.c.h.b16 %v39
  %v233 = vunpack.c.l.b16 %v40
  %v234 = vunpack.c.h.b16 %v40
  %v235 = vunpack.c.l.b16 %v41
  %v236 = vunpack.c.h.b16 %v41
  %v237 = vunpack.c.l.b16 %v42
  %v238 = vunpack.c.h.b16 %v42
  %v239 = vunpack.c.l.b16 %v43
  %v240 = vunpack.c.h.b16 %v43
  %v241 = vunpack.c.l.b16 %v44
  %v242 = vunpack.c.h.b16 %v44
  %v243 = vunpack.c.l.b16 %v45
  %v244 = vunpack.c.h.b16 %v45
  %v245 = vunpack.c.l.b16 %v46
  %v246 = vunpack.c.h.b16 %v46
  %v247 = vunpack.c.l.b16 %v47
  %v248 = vunpack.c.h.b16 %v47
  %v249 = vunpack.c.l.b16 %v48
  %v250 = vunpack.c.h.b16 %v48
  %v251 = vunpack.c.l.b16 %v49
  %v252 = vunpack.c.h.b16 %v49
  %v253 = vunpack.c.l.b16 %v50
  %v254 = vunpack.c.h.b16 %v50
  %v255 = vunpack.c.l.b16 %v51
  %v256 = vunpack.c.h.b16 %v51
  %v257 = vunpack.c.l.b16 %v52
  %v258 = vunpack.c.h.b16 %v52
  %v259 = vunpack.c.l.b16 %v53
  %v260 = vunpack.c.h.b16 %v53
  %v261 = vunpack.c.l.b16 %v54
  %v262 = vunpack.c.h.b16 %v54
  %v263 = vunpack.c.l.b16 %v55
  %v264 = vunpack.c.h.b16 %v55
  %v265 = vunpack.c.l.b16 %v56
  %v266 = vunpack.c.h.b16 %v56
  %v267 = vunpack.c.l.b16 %v57
  %v268 = vunpack.c.h.b16 %v57
  %v269 = vunpack.c.l.b16 %v58
  %v270 = vunpack.c.h.b16 %v58
  %v271 = vunpack.c.l.b16 %v59
  %v272 = vunpack.c.h.b16 %v59
  %v273 = vunpack.c.l.b16 %v60
  %v274 = vunpack.c.h.b16 %v60
  %v275 = vunpack.c.l.b16 %v61
  %v276 = vunpack.c.h.b16 %v61
  %v277 = vunpack.c.l.b16 %v62
  %v278 = vunpack.c.h.b16 %v62
  %v279 = vunpack.c.l.b16 %v63
  %v280 = vunpack.c.h.b16 %v63
  %v281 = vunpack.c.l.b16 %v64
  %v282 = vunpack.c.h.b16 %v64
  %v283 = vunpack.c.l.b16 %v65
  %v284 = vunpack.c.h.b16 %v65
  %v285 = vunpack.c.l.b16 %v66
  %v286 = vunpack.c.h.b16 %v66
  %v287 = vunpack.c.l.b16 %v67
  %v288 = vunpack.c.h.b16 %v67
  %v289 = vunpack.c.l.b16 %v68
  %v290 = vunpack.c.h.b16 %v68
  %v291 = vunpack.c.l.b16 %v69
  %v292 = vunpack.c.h.b16 %v69
  %v293 = vunpack.c.l.b16 %v70
  %v294 = vunpack.c.h.b16 %v70
  %v295 = vunpack.c.l.b16 %v71
  %v296 = vunpack.c.h.b16 %v71
  %v297 = vunpack.c.l.b16 %v72
  %v298 = vunpack.c.h.b16 %v72
  %v299 = vunpack.c.l.b16 %v73
  %v300 = vunpack.c.h.b16 %v73
  %v301 = vunpack.c.l.b16 %v74
  %v302 = vunpack.c.h.b16 %v74
  %v303 = vunpack.c.l.b16 %v75
  %v304 = vunpack.c.h.b16 %v75
  %v305 = vunpack.c.l.b16 %v76
  %v306 = vunpack.c.h.b16 %v76
  %v307 = vunpack.c.l.b16 %v77
  %v308 = vunpack.c.h.b16 %v77
  %v309 = vunpack.c.l.b16 %v78
  %v310 = vunpack.c.h.b16 %v78
  %v311 = vunpack.c.l.b16 %v79
  %v312 = vunpack.c.h.b16 %v79
  %v313 = vunpack.c.l.b16 %v80
  %v314 = vunpack.c.h.b16 %v80
  %v315 = vunpack.c.l.b16 %v81
  %v316 = vunpack.c.h.b16 %v81
  %v317 = vunpack.c.l.b16 %v82
  %v318 = vunpack.c.h.b16 %v82
  %v319 = vunpack.c.l.b16 %v83
  %v320 = vunpack.c.h.b16 %v83
  %v321 = vunpack.c.l.b16 %v84
  %v322 = vunpack.c.h.b16 %v84
  %v323 = vunpack.c.l.b16 %v85
  %v324 = vunpack.c.h.b16 %v85
  %v325 = vunpack.c.l.b16 %v86
  %v326 = vunpack.c.h.b16 %v86
  %v327 = vunpack.c.l.b16 %v87
  %v328 = vunpack.c.h.b16 %v87
  %v329 = vunpack.c.l.b16 %v88
  %v330 = vunpack.c.h.b16 %v88
  %v331 = vunpack.c.l.b16 %v89
  %v332 = vunpack.c.h.b16 %v89
  %v333 = vunpack.c.l.b16 %v90
  %v334 = vunpack.c.h.b16 %v90
  %v335 = vunpack.c.l.b16 %v91
  %v336 = vunpack.c.h.b16 %v91
  %v337 = vunpack.c.l.b16 %v92
  %v338 = vunpack.c.h.b16 %v92
  %v339 = vunpack.c.l.b16 %v93
  %v340 = vunpack.c.h.b16 %v93
  %v341 = vunpack.c.l.b16 %v94
  %v342 = vunpack.c.h.b16 %v94
  %v343 = vunpack.c.l.b16 %v95
  %v344 = vunpack.c.h.b16 %v95
  %v345 = vunpack.c.l.b16 %v96
  %v346 = vunpack.c.h.b16 %v96
  %v347 = vunpack.c.l.b16 %v97
  %v348 = vunpack.c.h.b16 %v97
  %v349 = vunpack.c.l.b16 %v98
  %v350 = vunpack.c.h.b16 %v98
  %v351 = vunpack.c.l.b16 %v99
  %v352 = vunpack.c.h.b16 %v99
  %v353 = vunpack.c.l.b16 %v100
  %v354 = vunpack.c.h.b16 %v100
  %v355 = vunpack.c.l.b16 %v101
  %v356 = vunpack.c.h.b16 %v101
  %v357 = vunpack.c.l.b16 %v102
  %v358 = vunpack.c.h.b16 %v102
  %v359 = vunpack.c.l.b16 %v103
  %v360 = vunpack.c.h.b16 %v103
  %v361 = vpack.c.b16 %v209, %v201
  %v362 = vpack.c.b16 %v210, %v202
  %v363 = vpack.c.b16 %v211, %v203
  %v364 = vpack.c.b16 %v212, %v204
  %v365 = vpack.c.b16 %v213, %v205
  %v366 = vpack.c.b16 %v214, %v206
  %v367 = vpack.c.b16 %v215, %v207
  %v368 = vpack.c.b16 %v216, %v208
  %v369 = vpack.c.b16 %v225, %v217
  %v370 = vpack.c.b16 %v226, %v218
  %v371 = vpack.c.b16 %v227, %v219
  %v372 = vpack.c.b16 %v228, %v220
  %v373 = vpack.c.b16 %v229, %v221
  %v374 = vpack.c.b16 %v230, %v222
  %v375 = vpack.c.b16 %v231, %v223
  %v376 = vpack.c.b16 %v232, %v224
  %v377 = vpack.c.b16 %v241, %v233
  %v378 = vpack.c.b16 %v242, %v234
  %v379 = vpack.c.b16 %v243, %v235
  %v380 = vpack.c.b16 %v244, %v236
  %v381 = vpack.c.b16 %v245, %v237
  %v382 = vpack.c.b16 %v246, %v238
  %v383 = vpack.c.b16 %v247, %v239
  %v384 = vpack.c.b16 %v248, %v240
  %v385 = vpack.c.b16 %v257, %v249
  %v386 = vpack.c.b16 %v258, %v250
  %v387 = vpack.c.b16 %v259, %v251
  %v388 = vpack.c.b16 %v260, %v252
  %v389 = vpack.c.b16 %v261, %v253
  %v390 = vpack.c.b16 %v262, %v254
  %v391 = vpack.c.b16 %v263, %v255
  %v392 = vpack.c.b16 %v264, %v256
  %v393 = vpack.c.b16 %v273, %v265
  %v394 = vpack.c.b16 %v274, %v266
  %v395 = vpack.c.b16 %v275, %v267
  %v396 = vpack.c.b16 %v276, %v268
  %v397 = vpack.c.b16 %v277, %v269
  %v398 = vpack.c.b16 %v278, %v270
  %v399 = vpack.c.b16 %v279, %v271
  %v400 = vpack.c.b16 %v280, %v272
  %v401 = vpack.c.b16 %v289, %v281
  %v402 = vpack.c.b16 %v290, %v282
  %v403 = vpack.c.b16 %v291, %v283
  %v404 = vpack.c.b16 %v292, %v284
  %v405 = vpack.c.b16 %v293, %v285
  %v406 = vpack.c.b16 %v294, %v286
  %v407 = vpack.c.b16 %v295, %v287
  %v408 = vpack.c.b16 %v296, %v288
  %v409 = vpack.c.b16 %v305, %v297
  %v410 = vpack.c.b16 %v306, %v298
  %v411 = vpack.c.b16 %v307, %v299
  %v412 = vpack.c.b16 %v308, %v300
  %v413 = vpack.c.b16 %v309, %v301
  %v414 = vpack.c.b16 %v310, %v302
  %v415 = vpack.c.b16 %v311, %v303
  %v416 = vpack.c.b16 %v312, %v304
  %v417 = vpack.c.b16 %v321, %v313
  %v418 = vpack.c.b16 %v322, %v314
  %v419 = vpack.c.b16 %v323, %v315
  %v420 = vpack.c.b16 %v324, %v316
  %v421 = vpack.c.b16 %v325, %v317
  %v422 = vpack.c.b16 %v326, %v318
  %v423 = vpack.c.b16 %v327, %v319
  %v424 = vpack.c.b16 %v328, %v320
  %v425 = vpack.c.b16 %v337, %v329
  %v426 = vpack.c.b16 %v338, %v330
  %v427 = vpack.c.b16 %v339, %v331
  %v428 = vpack.c.b16 %v340, %v332
  %v429 = vpack.c.b16 %v341, %v333
  %v430 = vpack.c.b16 %v342, %v334
  %v431 = vpack.c.b16 %v343, %v335
  %v432 = vpack.c.b16 %v344, %v336
  %v433 = vpack.c.b16 %v353, %v345
  %v434 = vpack.c.b16 %v354, %v346
  %v435 = vpack.c.b16 %v355, %v347
  %v436 = vpack.c.b16 %v356, %v348
  %v437 = vpack.c.b16 %v357, %v349
  %v438 = vpack.c.b16 %v358, %v350
  %v439 = vpack.c.b16 %v359, %v351
  %v440 = vpack.c.b16 %v360, %v352
  %vm521 = vcmask 261120
  %v523 = vsel %vm521, %v119, 0
  %525 = vmatpush.bf16.msra.mxu0 %v417
  %526 = vmatpush.bf16.msra.mxu0 %v409
  %527 = vmatpush.bf16.msra.mxu0 %v401
  %528 = vmatpush.bf16.msra.mxu0 %v393
  %529 = vmatpush.bf16.msra.mxu0 %v385
  %530 = vmatpush.bf16.msra.mxu0 %v377
  %531 = vmatpush.bf16.msra.mxu0 %v369
  %532 = vmatpush.bf16.msra.mxu0 %v361
  %533 = vmatmul.bf16.gmra.mxu0 %v118
  %v534 = vpop.f32.mrf.mxu0
  %v535 = vadd.f32 0.0, %v534
  %v536 = vpop.f32.mrf.mxu0
  %537 = vdwg.mxu0
  %538 = vmatpush.bf16.msra.mxu0 0
  %539 = vmatpush.bf16.msra.mxu0 0
  %540 = vmatpush.bf16.msra.mxu0 0
  %541 = vmatpush.bf16.msra.mxu0 0
  %542 = vmatpush.bf16.msra.mxu0 0
  %543 = vmatpush.bf16.msra.mxu0 0
  %544 = vmatpush.bf16.msra.mxu0 %v433
  %545 = vmatpush.bf16.msra.mxu0 %v425
  %546 = vmatmul.bf16.gmra.mxu0 %v523
  %v547 = vpop.f32.mrf.mxu0
  %v548 = vadd.f32 %v535, %v547
  %v549 = vpop.f32.mrf.mxu0
  %550 = vdwg.mxu0
  %551 = vmatpush.bf16.msra.mxu0 %v418
  %552 = vmatpush.bf16.msra.mxu0 %v410
  %553 = vmatpush.bf16.msra.mxu0 %v402
  %554 = vmatpush.bf16.msra.mxu0 %v394
  %555 = vmatpush.bf16.msra.mxu0 %v386
  %556 = vmatpush.bf16.msra.mxu0 %v378
  %557 = vmatpush.bf16.msra.mxu0 %v370
  %558 = vmatpush.bf16.msra.mxu0 %v362
  %559 = vmatmul.bf16.gmra.mxu0 %v118
  %v560 = vpop.f32.mrf.mxu0
  %v561 = vadd.f32 0.0, %v560
  %v562 = vpop.f32.mrf.mxu0
  %563 = vdwg.mxu0
  %564 = vmatpush.bf16.msra.mxu0 0
  %565 = vmatpush.bf16.msra.mxu0 0
  %566 = vmatpush.bf16.msra.mxu0 0
  %567 = vmatpush.bf16.msra.mxu0 0
  %568 = vmatpush.bf16.msra.mxu0 0
  %569 = vmatpush.bf16.msra.mxu0 0
  %570 = vmatpush.bf16.msra.mxu0 %v434
  %571 = vmatpush.bf16.msra.mxu0 %v426
  %572 = vmatmul.bf16.gmra.mxu0 %v523
  %v573 = vpop.f32.mrf.mxu0
  %v574 = vadd.f32 %v561, %v573
  %v575 = vpop.f32.mrf.mxu0
  %576 = vdwg.mxu0
  %577 = vmatpush.bf16.msra.mxu0 %v419
  %578 = vmatpush.bf16.msra.mxu0 %v411
  %579 = vmatpush.bf16.msra.mxu0 %v403
  %580 = vmatpush.bf16.msra.mxu0 %v395
  %581 = vmatpush.bf16.msra.mxu0 %v387
  %582 = vmatpush.bf16.msra.mxu0 %v379
  %583 = vmatpush.bf16.msra.mxu0 %v371
  %584 = vmatpush.bf16.msra.mxu0 %v363
  %585 = vmatmul.bf16.gmra.mxu0 %v118
  %v586 = vpop.f32.mrf.mxu0
  %v587 = vadd.f32 0.0, %v586
  %v588 = vpop.f32.mrf.mxu0
  %589 = vdwg.mxu0
  %590 = vmatpush.bf16.msra.mxu0 0
  %591 = vmatpush.bf16.msra.mxu0 0
  %592 = vmatpush.bf16.msra.mxu0 0
  %593 = vmatpush.bf16.msra.mxu0 0
  %594 = vmatpush.bf16.msra.mxu0 0
  %595 = vmatpush.bf16.msra.mxu0 0
  %596 = vmatpush.bf16.msra.mxu0 %v435
  %597 = vmatpush.bf16.msra.mxu0 %v427
  %598 = vmatmul.bf16.gmra.mxu0 %v523
  %v599 = vpop.f32.mrf.mxu0
  %v600 = vadd.f32 %v587, %v599
  %v601 = vpop.f32.mrf.mxu0
  %602 = vdwg.mxu0
  %603 = vmatpush.bf16.msra.mxu0 %v420
  %604 = vmatpush.bf16.msra.mxu0 %v412
  %605 = vmatpush.bf16.msra.mxu0 %v404
  %606 = vmatpush.bf16.msra.mxu0 %v396
  %607 = vmatpush.bf16.msra.mxu0 %v388
  %608 = vmatpush.bf16.msra.mxu0 %v380
  %609 = vmatpush.bf16.msra.mxu0 %v372
  %610 = vmatpush.bf16.msra.mxu0 %v364
  %611 = vmatmul.bf16.gmra.mxu0 %v118
  %v612 = vpop.f32.mrf.mxu0
  %v613 = vadd.f32 0.0, %v612
  %v614 = vpop.f32.mrf.mxu0
  %615 = vdwg.mxu0
  %616 = vmatpush.bf16.msra.mxu0 0
  %617 = vmatpush.bf16.msra.mxu0 0
  %618 = vmatpush.bf16.msra.mxu0 0
  %619 = vmatpush.bf16.msra.mxu0 0
  %620 = vmatpush.bf16.msra.mxu0 0
  %621 = vmatpush.bf16.msra.mxu0 0
  %622 = vmatpush.bf16.msra.mxu0 %v436
  %623 = vmatpush.bf16.msra.mxu0 %v428
  %624 = vmatmul.bf16.gmra.mxu0 %v523
  %v625 = vpop.f32.mrf.mxu0
  %v626 = vadd.f32 %v613, %v625
  %v627 = vpop.f32.mrf.mxu0
  %628 = vdwg.mxu0
  %629 = vmatpush.bf16.msra.mxu0 %v421
  %630 = vmatpush.bf16.msra.mxu0 %v413
  %631 = vmatpush.bf16.msra.mxu0 %v405
  %632 = vmatpush.bf16.msra.mxu0 %v397
  %633 = vmatpush.bf16.msra.mxu0 %v389
  %634 = vmatpush.bf16.msra.mxu0 %v381
  %635 = vmatpush.bf16.msra.mxu0 %v373
  %636 = vmatpush.bf16.msra.mxu0 %v365
  %637 = vmatmul.bf16.gmra.mxu0 %v118
  %v638 = vpop.f32.mrf.mxu0
  %v639 = vadd.f32 0.0, %v638
  %v640 = vpop.f32.mrf.mxu0
  %641 = vdwg.mxu0
  %642 = vmatpush.bf16.msra.mxu0 0
  %643 = vmatpush.bf16.msra.mxu0 0
  %644 = vmatpush.bf16.msra.mxu0 0
  %645 = vmatpush.bf16.msra.mxu0 0
  %646 = vmatpush.bf16.msra.mxu0 0
  %647 = vmatpush.bf16.msra.mxu0 0
  %648 = vmatpush.bf16.msra.mxu0 %v437
  %649 = vmatpush.bf16.msra.mxu0 %v429
  %650 = vmatmul.bf16.gmra.mxu0 %v523
  %v651 = vpop.f32.mrf.mxu0
  %v652 = vadd.f32 %v639, %v651
  %v653 = vpop.f32.mrf.mxu0
  %654 = vdwg.mxu0
  %655 = vmatpush.bf16.msra.mxu0 %v422
  %656 = vmatpush.bf16.msra.mxu0 %v414
  %657 = vmatpush.bf16.msra.mxu0 %v406
  %658 = vmatpush.bf16.msra.mxu0 %v398
  %659 = vmatpush.bf16.msra.mxu0 %v390
  %660 = vmatpush.bf16.msra.mxu0 %v382
  %661 = vmatpush.bf16.msra.mxu0 %v374
  %662 = vmatpush.bf16.msra.mxu0 %v366
  %663 = vmatmul.bf16.gmra.mxu0 %v118
  %v664 = vpop.f32.mrf.mxu0
  %v665 = vadd.f32 0.0, %v664
  %v666 = vpop.f32.mrf.mxu0
  %667 = vdwg.mxu0
  %668 = vmatpush.bf16.msra.mxu0 0
  %669 = vmatpush.bf16.msra.mxu0 0
  %670 = vmatpush.bf16.msra.mxu0 0
  %671 = vmatpush.bf16.msra.mxu0 0
  %672 = vmatpush.bf16.msra.mxu0 0
  %673 = vmatpush.bf16.msra.mxu0 0
  %674 = vmatpush.bf16.msra.mxu0 %v438
  %675 = vmatpush.bf16.msra.mxu0 %v430
  %676 = vmatmul.bf16.gmra.mxu0 %v523
  %v677 = vpop.f32.mrf.mxu0
  %v678 = vadd.f32 %v665, %v677
  %v679 = vpop.f32.mrf.mxu0
  %680 = vdwg.mxu0
  %681 = vmatpush.bf16.msra.mxu0 %v423
  %682 = vmatpush.bf16.msra.mxu0 %v415
  %683 = vmatpush.bf16.msra.mxu0 %v407
  %684 = vmatpush.bf16.msra.mxu0 %v399
  %685 = vmatpush.bf16.msra.mxu0 %v391
  %686 = vmatpush.bf16.msra.mxu0 %v383
  %687 = vmatpush.bf16.msra.mxu0 %v375
  %688 = vmatpush.bf16.msra.mxu0 %v367
  %689 = vmatmul.bf16.gmra.mxu0 %v118
  %v690 = vpop.f32.mrf.mxu0
  %v691 = vadd.f32 0.0, %v690
  %v692 = vpop.f32.mrf.mxu0
  %693 = vdwg.mxu0
  %694 = vmatpush.bf16.msra.mxu0 0
  %695 = vmatpush.bf16.msra.mxu0 0
  %696 = vmatpush.bf16.msra.mxu0 0
  %697 = vmatpush.bf16.msra.mxu0 0
  %698 = vmatpush.bf16.msra.mxu0 0
  %699 = vmatpush.bf16.msra.mxu0 0
  %700 = vmatpush.bf16.msra.mxu0 %v439
  %701 = vmatpush.bf16.msra.mxu0 %v431
  %702 = vmatmul.bf16.gmra.mxu0 %v523
  %v703 = vpop.f32.mrf.mxu0
  %v704 = vadd.f32 %v691, %v703
  %v705 = vpop.f32.mrf.mxu0
  %706 = vdwg.mxu0
  %707 = vmatpush.bf16.msra.mxu0 %v424
  %708 = vmatpush.bf16.msra.mxu0 %v416
  %709 = vmatpush.bf16.msra.mxu0 %v408
  %710 = vmatpush.bf16.msra.mxu0 %v400
  %711 = vmatpush.bf16.msra.mxu0 %v392
  %712 = vmatpush.bf16.msra.mxu0 %v384
  %713 = vmatpush.bf16.msra.mxu0 %v376
  %714 = vmatpush.bf16.msra.mxu0 %v368
  %715 = vmatmul.bf16.gmra.mxu0 %v118
  %v716 = vpop.f32.mrf.mxu0
  %v717 = vadd.f32 0.0, %v716
  %v718 = vpop.f32.mrf.mxu0
  %719 = vdwg.mxu0
  %720 = vmatpush.bf16.msra.mxu0 0
  %721 = vmatpush.bf16.msra.mxu0 0
  %722 = vmatpush.bf16.msra.mxu0 0
  %723 = vmatpush.bf16.msra.mxu0 0
  %724 = vmatpush.bf16.msra.mxu0 0
  %725 = vmatpush.bf16.msra.mxu0 0
  %726 = vmatpush.bf16.msra.mxu0 %v440
  %727 = vmatpush.bf16.msra.mxu0 %v432
  %728 = vmatmul.bf16.gmra.mxu0 %v523
  %v729 = vpop.f32.mrf.mxu0
  %v730 = vadd.f32 %v717, %v729
  %v731 = vpop.f32.mrf.mxu0
  %732 = vdwg.mxu0
  %v733 = vld [vmem:[%s1] sm:$0xff]
  %v735 = vunpack.c.l.b16 %v733
  %v736 = vunpack.c.h.b16 %v733
  %v737 = vpack.c.b16 %v735, %v735
  %v738 = vpack.c.b16 %v736, %v736
  %v741 = vsel %vm521, %v738, 0
  %743 = vmatpush.bf16.msra.mxu0 %v417
  %744 = vmatpush.bf16.msra.mxu0 %v409
  %745 = vmatpush.bf16.msra.mxu0 %v401
  %746 = vmatpush.bf16.msra.mxu0 %v393
  %747 = vmatpush.bf16.msra.mxu0 %v385
  %748 = vmatpush.bf16.msra.mxu0 %v377
  %749 = vmatpush.bf16.msra.mxu0 %v369
  %750 = vmatpush.bf16.msra.mxu0 %v361
  %751 = vmatmul.bf16.gmra.mxu0 %v737
  %v752 = vpop.f32.mrf.mxu0
  %v753 = vadd.f32 0.0, %v752
  %v754 = vpop.f32.mrf.mxu0
  %755 = vdwg.mxu0
  %756 = vmatpush.bf16.msra.mxu0 0
  %757 = vmatpush.bf16.msra.mxu0 0
  %758 = vmatpush.bf16.msra.mxu0 0
  %759 = vmatpush.bf16.msra.mxu0 0
  %760 = vmatpush.bf16.msra.mxu0 0
  %761 = vmatpush.bf16.msra.mxu0 0
  %762 = vmatpush.bf16.msra.mxu0 %v433
  %763 = vmatpush.bf16.msra.mxu0 %v425
  %764 = vmatmul.bf16.gmra.mxu0 %v741
  %v765 = vpop.f32.mrf.mxu0
  %v766 = vadd.f32 %v753, %v765
  %v767 = vpop.f32.mrf.mxu0
  %768 = vdwg.mxu0
  %769 = vmatpush.bf16.msra.mxu0 %v418
  %770 = vmatpush.bf16.msra.mxu0 %v410
  %771 = vmatpush.bf16.msra.mxu0 %v402
  %772 = vmatpush.bf16.msra.mxu0 %v394
  %773 = vmatpush.bf16.msra.mxu0 %v386
  %774 = vmatpush.bf16.msra.mxu0 %v378
  %775 = vmatpush.bf16.msra.mxu0 %v370
  %776 = vmatpush.bf16.msra.mxu0 %v362
  %777 = vmatmul.bf16.gmra.mxu0 %v737
  %v778 = vpop.f32.mrf.mxu0
  %v779 = vadd.f32 0.0, %v778
  %v780 = vpop.f32.mrf.mxu0
  %781 = vdwg.mxu0
  %782 = vmatpush.bf16.msra.mxu0 0
  %783 = vmatpush.bf16.msra.mxu0 0
  %784 = vmatpush.bf16.msra.mxu0 0
  %785 = vmatpush.bf16.msra.mxu0 0
  %786 = vmatpush.bf16.msra.mxu0 0
  %787 = vmatpush.bf16.msra.mxu0 0
  %788 = vmatpush.bf16.msra.mxu0 %v434
  %789 = vmatpush.bf16.msra.mxu0 %v426
  %790 = vmatmul.bf16.gmra.mxu0 %v741
  %v791 = vpop.f32.mrf.mxu0
  %v792 = vadd.f32 %v779, %v791
  %v793 = vpop.f32.mrf.mxu0
  %794 = vdwg.mxu0
  %795 = vmatpush.bf16.msra.mxu0 %v419
  %796 = vmatpush.bf16.msra.mxu0 %v411
  %797 = vmatpush.bf16.msra.mxu0 %v403
  %798 = vmatpush.bf16.msra.mxu0 %v395
  %799 = vmatpush.bf16.msra.mxu0 %v387
  %800 = vmatpush.bf16.msra.mxu0 %v379
  %801 = vmatpush.bf16.msra.mxu0 %v371
  %802 = vmatpush.bf16.msra.mxu0 %v363
  %803 = vmatmul.bf16.gmra.mxu0 %v737
  %v804 = vpop.f32.mrf.mxu0
  %v805 = vadd.f32 0.0, %v804
  %v806 = vpop.f32.mrf.mxu0
  %807 = vdwg.mxu0
  %808 = vmatpush.bf16.msra.mxu0 0
  %809 = vmatpush.bf16.msra.mxu0 0
  %810 = vmatpush.bf16.msra.mxu0 0
  %811 = vmatpush.bf16.msra.mxu0 0
  %812 = vmatpush.bf16.msra.mxu0 0
  %813 = vmatpush.bf16.msra.mxu0 0
  %814 = vmatpush.bf16.msra.mxu0 %v435
  %815 = vmatpush.bf16.msra.mxu0 %v427
  %816 = vmatmul.bf16.gmra.mxu0 %v741
  %v817 = vpop.f32.mrf.mxu0
  %v818 = vadd.f32 %v805, %v817
  %v819 = vpop.f32.mrf.mxu0
  %820 = vdwg.mxu0
  %821 = vmatpush.bf16.msra.mxu0 %v420
  %822 = vmatpush.bf16.msra.mxu0 %v412
  %823 = vmatpush.bf16.msra.mxu0 %v404
  %824 = vmatpush.bf16.msra.mxu0 %v396
  %825 = vmatpush.bf16.msra.mxu0 %v388
  %826 = vmatpush.bf16.msra.mxu0 %v380
  %827 = vmatpush.bf16.msra.mxu0 %v372
  %828 = vmatpush.bf16.msra.mxu0 %v364
  %829 = vmatmul.bf16.gmra.mxu0 %v737
  %v830 = vpop.f32.mrf.mxu0
  %v831 = vadd.f32 0.0, %v830
  %v832 = vpop.f32.mrf.mxu0
  %833 = vdwg.mxu0
  %834 = vmatpush.bf16.msra.mxu0 0
  %835 = vmatpush.bf16.msra.mxu0 0
  %836 = vmatpush.bf16.msra.mxu0 0
  %837 = vmatpush.bf16.msra.mxu0 0
  %838 = vmatpush.bf16.msra.mxu0 0
  %839 = vmatpush.bf16.msra.mxu0 0
  %840 = vmatpush.bf16.msra.mxu0 %v436
  %841 = vmatpush.bf16.msra.mxu0 %v428
  %842 = vmatmul.bf16.gmra.mxu0 %v741
  %v843 = vpop.f32.mrf.mxu0
  %v844 = vadd.f32 %v831, %v843
  %v845 = vpop.f32.mrf.mxu0
  %846 = vdwg.mxu0
  %847 = vmatpush.bf16.msra.mxu0 %v421
  %848 = vmatpush.bf16.msra.mxu0 %v413
  %849 = vmatpush.bf16.msra.mxu0 %v405
  %850 = vmatpush.bf16.msra.mxu0 %v397
  %851 = vmatpush.bf16.msra.mxu0 %v389
  %852 = vmatpush.bf16.msra.mxu0 %v381
  %853 = vmatpush.bf16.msra.mxu0 %v373
  %854 = vmatpush.bf16.msra.mxu0 %v365
  %855 = vmatmul.bf16.gmra.mxu0 %v737
  %v856 = vpop.f32.mrf.mxu0
  %v857 = vadd.f32 0.0, %v856
  %v858 = vpop.f32.mrf.mxu0
  %859 = vdwg.mxu0
  %860 = vmatpush.bf16.msra.mxu0 0
  %861 = vmatpush.bf16.msra.mxu0 0
  %862 = vmatpush.bf16.msra.mxu0 0
  %863 = vmatpush.bf16.msra.mxu0 0
  %864 = vmatpush.bf16.msra.mxu0 0
  %865 = vmatpush.bf16.msra.mxu0 0
  %866 = vmatpush.bf16.msra.mxu0 %v437
  %867 = vmatpush.bf16.msra.mxu0 %v429
  %868 = vmatmul.bf16.gmra.mxu0 %v741
  %v869 = vpop.f32.mrf.mxu0
  %v870 = vadd.f32 %v857, %v869
  %v871 = vpop.f32.mrf.mxu0
  %872 = vdwg.mxu0
  %873 = vmatpush.bf16.msra.mxu0 %v422
  %874 = vmatpush.bf16.msra.mxu0 %v414
  %875 = vmatpush.bf16.msra.mxu0 %v406
  %876 = vmatpush.bf16.msra.mxu0 %v398
  %877 = vmatpush.bf16.msra.mxu0 %v390
  %878 = vmatpush.bf16.msra.mxu0 %v382
  %879 = vmatpush.bf16.msra.mxu0 %v374
  %880 = vmatpush.bf16.msra.mxu0 %v366
  %881 = vmatmul.bf16.gmra.mxu0 %v737
  %v882 = vpop.f32.mrf.mxu0
  %v883 = vadd.f32 0.0, %v882
  %v884 = vpop.f32.mrf.mxu0
  %885 = vdwg.mxu0
  %886 = vmatpush.bf16.msra.mxu0 0
  %887 = vmatpush.bf16.msra.mxu0 0
  %888 = vmatpush.bf16.msra.mxu0 0
  %889 = vmatpush.bf16.msra.mxu0 0
  %890 = vmatpush.bf16.msra.mxu0 0
  %891 = vmatpush.bf16.msra.mxu0 0
  %892 = vmatpush.bf16.msra.mxu0 %v438
  %893 = vmatpush.bf16.msra.mxu0 %v430
  %894 = vmatmul.bf16.gmra.mxu0 %v741
  %v895 = vpop.f32.mrf.mxu0
  %v896 = vadd.f32 %v883, %v895
  %v897 = vpop.f32.mrf.mxu0
  %898 = vdwg.mxu0
  %899 = vmatpush.bf16.msra.mxu0 %v423
  %900 = vmatpush.bf16.msra.mxu0 %v415
  %901 = vmatpush.bf16.msra.mxu0 %v407
  %902 = vmatpush.bf16.msra.mxu0 %v399
  %903 = vmatpush.bf16.msra.mxu0 %v391
  %904 = vmatpush.bf16.msra.mxu0 %v383
  %905 = vmatpush.bf16.msra.mxu0 %v375
  %906 = vmatpush.bf16.msra.mxu0 %v367
  %907 = vmatmul.bf16.gmra.mxu0 %v737
  %v908 = vpop.f32.mrf.mxu0
  %v909 = vadd.f32 0.0, %v908
  %v910 = vpop.f32.mrf.mxu0
  %911 = vdwg.mxu0
  %912 = vmatpush.bf16.msra.mxu0 0
  %913 = vmatpush.bf16.msra.mxu0 0
  %914 = vmatpush.bf16.msra.mxu0 0
  %915 = vmatpush.bf16.msra.mxu0 0
  %916 = vmatpush.bf16.msra.mxu0 0
  %917 = vmatpush.bf16.msra.mxu0 0
  %918 = vmatpush.bf16.msra.mxu0 %v439
  %919 = vmatpush.bf16.msra.mxu0 %v431
  %920 = vmatmul.bf16.gmra.mxu0 %v741
  %v921 = vpop.f32.mrf.mxu0
  %v922 = vadd.f32 %v909, %v921
  %v923 = vpop.f32.mrf.mxu0
  %924 = vdwg.mxu0
  %925 = vmatpush.bf16.msra.mxu0 %v424
  %926 = vmatpush.bf16.msra.mxu0 %v416
  %927 = vmatpush.bf16.msra.mxu0 %v408
  %928 = vmatpush.bf16.msra.mxu0 %v400
  %929 = vmatpush.bf16.msra.mxu0 %v392
  %930 = vmatpush.bf16.msra.mxu0 %v384
  %931 = vmatpush.bf16.msra.mxu0 %v376
  %932 = vmatpush.bf16.msra.mxu0 %v368
  %933 = vmatmul.bf16.gmra.mxu0 %v737
  %v934 = vpop.f32.mrf.mxu0
  %v935 = vadd.f32 0.0, %v934
  %v936 = vpop.f32.mrf.mxu0
  %937 = vdwg.mxu0
  %938 = vmatpush.bf16.msra.mxu0 0
  %939 = vmatpush.bf16.msra.mxu0 0
  %940 = vmatpush.bf16.msra.mxu0 0
  %941 = vmatpush.bf16.msra.mxu0 0
  %942 = vmatpush.bf16.msra.mxu0 0
  %943 = vmatpush.bf16.msra.mxu0 0
  %944 = vmatpush.bf16.msra.mxu0 %v440
  %945 = vmatpush.bf16.msra.mxu0 %v432
  %946 = vmatmul.bf16.gmra.mxu0 %v741
  %v947 = vpop.f32.mrf.mxu0
  %v948 = vadd.f32 %v935, %v947
  %v949 = vpop.f32.mrf.mxu0
  %950 = vdwg.mxu0
  %v951 = vmax.f32 %v548, %v652
  %v952 = vmax.f32 %v574, %v678
  %v953 = vmax.f32 %v600, %v704
  %v954 = vmax.f32 %v626, %v730
  %v955 = vmax.f32 %v766, %v870
  %v956 = vmax.f32 %v792, %v896
  %v957 = vmax.f32 %v818, %v922
  %v958 = vmax.f32 %v844, %v948
  %v959 = vmax.f32 %v951, %v955
  %v960 = vmax.f32 %v952, %v956
  %v961 = vmax.f32 %v953, %v957
  %v962 = vmax.f32 %v954, %v958
  %v963 = vadd.f32 %v959, %v106
  %v964 = vadd.f32 %v960, %v107
  %v965 = vadd.f32 %v961, %v108
  %v966 = vadd.f32 %v962, %v109
  %v967 = vmax.f32 %v963, 0.0
  %v968 = vmax.f32 %v964, 0.0
  %v969 = vmax.f32 %v965, 0.0
  %v970 = vmax.f32 %v966, 0.0
  %v971 = vpack.c.bf16 %v968, %v967
  %v972 = vpack.c.bf16 %v970, %v969
  %973 = vst [vmem:[#allocation2] sm:$0xff] %v971
  %974 = vst [vmem:[#allocation2 + $0x8] sm:$0xff] %v972
  %s975 = scalar_lea.vmem %s0, 8
  %v976 = vld [vmem:[%s975] sm:$0xff]
  %v978 = vunpack.c.l.b16 %v976
  %v979 = vunpack.c.h.b16 %v976
  %v980 = vpack.c.b16 %v978, %v978
  %v981 = vpack.c.b16 %v979, %v979
  %v984 = vsel %vm521, %v981, 0
  %986 = vmatpush.bf16.msra.mxu0 %v417
  %987 = vmatpush.bf16.msra.mxu0 %v409
  %988 = vmatpush.bf16.msra.mxu0 %v401
  %989 = vmatpush.bf16.msra.mxu0 %v393
  %990 = vmatpush.bf16.msra.mxu0 %v385
  %991 = vmatpush.bf16.msra.mxu0 %v377
  %992 = vmatpush.bf16.msra.mxu0 %v369
  %993 = vmatpush.bf16.msra.mxu0 %v361
  %994 = vmatmul.bf16.gmra.mxu0 %v980
  %v995 = vpop.f32.mrf.mxu0
  %v996 = vadd.f32 0.0, %v995
  %v997 = vpop.f32.mrf.mxu0
  %998 = vdwg.mxu0
  %999 = vmatpush.bf16.msra.mxu0 0
  %1000 = vmatpush.bf16.msra.mxu0 0
  %1001 = vmatpush.bf16.msra.mxu0 0
  %1002 = vmatpush.bf16.msra.mxu0 0
  %1003 = vmatpush.bf16.msra.mxu0 0
  %1004 = vmatpush.bf16.msra.mxu0 0
  %1005 = vmatpush.bf16.msra.mxu0 %v433
  %1006 = vmatpush.bf16.msra.mxu0 %v425
  %1007 = vmatmul.bf16.gmra.mxu0 %v984
  %v1008 = vpop.f32.mrf.mxu0
  %v1009 = vadd.f32 %v996, %v1008
  %v1010 = vpop.f32.mrf.mxu0
  %1011 = vdwg.mxu0
  %1012 = vmatpush.bf16.msra.mxu0 %v418
  %1013 = vmatpush.bf16.msra.mxu0 %v410
  %1014 = vmatpush.bf16.msra.mxu0 %v402
  %1015 = vmatpush.bf16.msra.mxu0 %v394
  %1016 = vmatpush.bf16.msra.mxu0 %v386
  %1017 = vmatpush.bf16.msra.mxu0 %v378
  %1018 = vmatpush.bf16.msra.mxu0 %v370
  %1019 = vmatpush.bf16.msra.mxu0 %v362
  %1020 = vmatmul.bf16.gmra.mxu0 %v980
  %v1021 = vpop.f32.mrf.mxu0
  %v1022 = vadd.f32 0.0, %v1021
  %v1023 = vpop.f32.mrf.mxu0
  %1024 = vdwg.mxu0
  %1025 = vmatpush.bf16.msra.mxu0 0
  %1026 = vmatpush.bf16.msra.mxu0 0
  %1027 = vmatpush.bf16.msra.mxu0 0
  %1028 = vmatpush.bf16.msra.mxu0 0
  %1029 = vmatpush.bf16.msra.mxu0 0
  %1030 = vmatpush.bf16.msra.mxu0 0
  %1031 = vmatpush.bf16.msra.mxu0 %v434
  %1032 = vmatpush.bf16.msra.mxu0 %v426
  %1033 = vmatmul.bf16.gmra.mxu0 %v984
  %v1034 = vpop.f32.mrf.mxu0
  %v1035 = vadd.f32 %v1022, %v1034
  %v1036 = vpop.f32.mrf.mxu0
  %1037 = vdwg.mxu0
  %1038 = vmatpush.bf16.msra.mxu0 %v419
  %1039 = vmatpush.bf16.msra.mxu0 %v411
  %1040 = vmatpush.bf16.msra.mxu0 %v403
  %1041 = vmatpush.bf16.msra.mxu0 %v395
  %1042 = vmatpush.bf16.msra.mxu0 %v387
  %1043 = vmatpush.bf16.msra.mxu0 %v379
  %1044 = vmatpush.bf16.msra.mxu0 %v371
  %1045 = vmatpush.bf16.msra.mxu0 %v363
  %1046 = vmatmul.bf16.gmra.mxu0 %v980
  %v1047 = vpop.f32.mrf.mxu0
  %v1048 = vadd.f32 0.0, %v1047
  %v1049 = vpop.f32.mrf.mxu0
  %1050 = vdwg.mxu0
  %1051 = vmatpush.bf16.msra.mxu0 0
  %1052 = vmatpush.bf16.msra.mxu0 0
  %1053 = vmatpush.bf16.msra.mxu0 0
  %1054 = vmatpush.bf16.msra.mxu0 0
  %1055 = vmatpush.bf16.msra.mxu0 0
  %1056 = vmatpush.bf16.msra.mxu0 0
  %1057 = vmatpush.bf16.msra.mxu0 %v435
  %1058 = vmatpush.bf16.msra.mxu0 %v427
  %1059 = vmatmul.bf16.gmra.mxu0 %v984
  %v1060 = vpop.f32.mrf.mxu0
  %v1061 = vadd.f32 %v1048, %v1060
  %v1062 = vpop.f32.mrf.mxu0
  %1063 = vdwg.mxu0
  %1064 = vmatpush.bf16.msra.mxu0 %v420
  %1065 = vmatpush.bf16.msra.mxu0 %v412
  %1066 = vmatpush.bf16.msra.mxu0 %v404
  %1067 = vmatpush.bf16.msra.mxu0 %v396
  %1068 = vmatpush.bf16.msra.mxu0 %v388
  %1069 = vmatpush.bf16.msra.mxu0 %v380
  %1070 = vmatpush.bf16.msra.mxu0 %v372
  %1071 = vmatpush.bf16.msra.mxu0 %v364
  %1072 = vmatmul.bf16.gmra.mxu0 %v980
  %v1073 = vpop.f32.mrf.mxu0
  %v1074 = vadd.f32 0.0, %v1073
  %v1075 = vpop.f32.mrf.mxu0
  %1076 = vdwg.mxu0
  %1077 = vmatpush.bf16.msra.mxu0 0
  %1078 = vmatpush.bf16.msra.mxu0 0
  %1079 = vmatpush.bf16.msra.mxu0 0
  %1080 = vmatpush.bf16.msra.mxu0 0
  %1081 = vmatpush.bf16.msra.mxu0 0
  %1082 = vmatpush.bf16.msra.mxu0 0
  %1083 = vmatpush.bf16.msra.mxu0 %v436
  %1084 = vmatpush.bf16.msra.mxu0 %v428
  %1085 = vmatmul.bf16.gmra.mxu0 %v984
  %v1086 = vpop.f32.mrf.mxu0
  %v1087 = vadd.f32 %v1074, %v1086
  %v1088 = vpop.f32.mrf.mxu0
  %1089 = vdwg.mxu0
  %1090 = vmatpush.bf16.msra.mxu0 %v421
  %1091 = vmatpush.bf16.msra.mxu0 %v413
  %1092 = vmatpush.bf16.msra.mxu0 %v405
  %1093 = vmatpush.bf16.msra.mxu0 %v397
  %1094 = vmatpush.bf16.msra.mxu0 %v389
  %1095 = vmatpush.bf16.msra.mxu0 %v381
  %1096 = vmatpush.bf16.msra.mxu0 %v373
  %1097 = vmatpush.bf16.msra.mxu0 %v365
  %1098 = vmatmul.bf16.gmra.mxu0 %v980
  %v1099 = vpop.f32.mrf.mxu0
  %v1100 = vadd.f32 0.0, %v1099
  %v1101 = vpop.f32.mrf.mxu0
  %1102 = vdwg.mxu0
  %1103 = vmatpush.bf16.msra.mxu0 0
  %1104 = vmatpush.bf16.msra.mxu0 0
  %1105 = vmatpush.bf16.msra.mxu0 0
  %1106 = vmatpush.bf16.msra.mxu0 0
  %1107 = vmatpush.bf16.msra.mxu0 0
  %1108 = vmatpush.bf16.msra.mxu0 0
  %1109 = vmatpush.bf16.msra.mxu0 %v437
  %1110 = vmatpush.bf16.msra.mxu0 %v429
  %1111 = vmatmul.bf16.gmra.mxu0 %v984
  %v1112 = vpop.f32.mrf.mxu0
  %v1113 = vadd.f32 %v1100, %v1112
  %v1114 = vpop.f32.mrf.mxu0
  %1115 = vdwg.mxu0
  %1116 = vmatpush.bf16.msra.mxu0 %v422
  %1117 = vmatpush.bf16.msra.mxu0 %v414
  %1118 = vmatpush.bf16.msra.mxu0 %v406
  %1119 = vmatpush.bf16.msra.mxu0 %v398
  %1120 = vmatpush.bf16.msra.mxu0 %v390
  %1121 = vmatpush.bf16.msra.mxu0 %v382
  %1122 = vmatpush.bf16.msra.mxu0 %v374
  %1123 = vmatpush.bf16.msra.mxu0 %v366
  %1124 = vmatmul.bf16.gmra.mxu0 %v980
  %v1125 = vpop.f32.mrf.mxu0
  %v1126 = vadd.f32 0.0, %v1125
  %v1127 = vpop.f32.mrf.mxu0
  %1128 = vdwg.mxu0
  %1129 = vmatpush.bf16.msra.mxu0 0
  %1130 = vmatpush.bf16.msra.mxu0 0
  %1131 = vmatpush.bf16.msra.mxu0 0
  %1132 = vmatpush.bf16.msra.mxu0 0
  %1133 = vmatpush.bf16.msra.mxu0 0
  %1134 = vmatpush.bf16.msra.mxu0 0
  %1135 = vmatpush.bf16.msra.mxu0 %v438
  %1136 = vmatpush.bf16.msra.mxu0 %v430
  %1137 = vmatmul.bf16.gmra.mxu0 %v984
  %v1138 = vpop.f32.mrf.mxu0
  %v1139 = vadd.f32 %v1126, %v1138
  %v1140 = vpop.f32.mrf.mxu0
  %1141 = vdwg.mxu0
  %1142 = vmatpush.bf16.msra.mxu0 %v423
  %1143 = vmatpush.bf16.msra.mxu0 %v415
  %1144 = vmatpush.bf16.msra.mxu0 %v407
  %1145 = vmatpush.bf16.msra.mxu0 %v399
  %1146 = vmatpush.bf16.msra.mxu0 %v391
  %1147 = vmatpush.bf16.msra.mxu0 %v383
  %1148 = vmatpush.bf16.msra.mxu0 %v375
  %1149 = vmatpush.bf16.msra.mxu0 %v367
  %1150 = vmatmul.bf16.gmra.mxu0 %v980
  %v1151 = vpop.f32.mrf.mxu0
  %v1152 = vadd.f32 0.0, %v1151
  %v1153 = vpop.f32.mrf.mxu0
  %1154 = vdwg.mxu0
  %1155 = vmatpush.bf16.msra.mxu0 0
  %1156 = vmatpush.bf16.msra.mxu0 0
  %1157 = vmatpush.bf16.msra.mxu0 0
  %1158 = vmatpush.bf16.msra.mxu0 0
  %1159 = vmatpush.bf16.msra.mxu0 0
  %1160 = vmatpush.bf16.msra.mxu0 0
  %1161 = vmatpush.bf16.msra.mxu0 %v439
  %1162 = vmatpush.bf16.msra.mxu0 %v431
  %1163 = vmatmul.bf16.gmra.mxu0 %v984
  %v1164 = vpop.f32.mrf.mxu0
  %v1165 = vadd.f32 %v1152, %v1164
  %v1166 = vpop.f32.mrf.mxu0
  %1167 = vdwg.mxu0
  %1168 = vmatpush.bf16.msra.mxu0 %v424
  %1169 = vmatpush.bf16.msra.mxu0 %v416
  %1170 = vmatpush.bf16.msra.mxu0 %v408
  %1171 = vmatpush.bf16.msra.mxu0 %v400
  %1172 = vmatpush.bf16.msra.mxu0 %v392
  %1173 = vmatpush.bf16.msra.mxu0 %v384
  %1174 = vmatpush.bf16.msra.mxu0 %v376
  %1175 = vmatpush.bf16.msra.mxu0 %v368
  %1176 = vmatmul.bf16.gmra.mxu0 %v980
  %v1177 = vpop.f32.mrf.mxu0
  %v1178 = vadd.f32 0.0, %v1177
  %v1179 = vpop.f32.mrf.mxu0
  %1180 = vdwg.mxu0
  %1181 = vmatpush.bf16.msra.mxu0 0
  %1182 = vmatpush.bf16.msra.mxu0 0
  %1183 = vmatpush.bf16.msra.mxu0 0
  %1184 = vmatpush.bf16.msra.mxu0 0
  %1185 = vmatpush.bf16.msra.mxu0 0
  %1186 = vmatpush.bf16.msra.mxu0 0
  %1187 = vmatpush.bf16.msra.mxu0 %v440
  %1188 = vmatpush.bf16.msra.mxu0 %v432
  %1189 = vmatmul.bf16.gmra.mxu0 %v984
  %v1190 = vpop.f32.mrf.mxu0
  %v1191 = vadd.f32 %v1178, %v1190
  %v1192 = vpop.f32.mrf.mxu0
  %1193 = vdwg.mxu0
  %s1194 = scalar_lea.vmem %s1, 8
  %v1195 = vld [vmem:[%s1194] sm:$0xff]
  %v1197 = vunpack.c.l.b16 %v1195
  %v1198 = vunpack.c.h.b16 %v1195
  %v1199 = vpack.c.b16 %v1197, %v1197
  %v1200 = vpack.c.b16 %v1198, %v1198
  %v1203 = vsel %vm521, %v1200, 0
  %1205 = vmatpush.bf16.msra.mxu0 %v417
  %1206 = vmatpush.bf16.msra.mxu0 %v409
  %1207 = vmatpush.bf16.msra.mxu0 %v401
  %1208 = vmatpush.bf16.msra.mxu0 %v393
  %1209 = vmatpush.bf16.msra.mxu0 %v385
  %1210 = vmatpush.bf16.msra.mxu0 %v377
  %1211 = vmatpush.bf16.msra.mxu0 %v369
  %1212 = vmatpush.bf16.msra.mxu0 %v361
  %1213 = vmatmul.bf16.gmra.mxu0 %v1199
  %v1214 = vpop.f32.mrf.mxu0
  %v1215 = vadd.f32 0.0, %v1214
  %v1216 = vpop.f32.mrf.mxu0
  %1217 = vdwg.mxu0
  %1218 = vmatpush.bf16.msra.mxu0 0
  %1219 = vmatpush.bf16.msra.mxu0 0
  %1220 = vmatpush.bf16.msra.mxu0 0
  %1221 = vmatpush.bf16.msra.mxu0 0
  %1222 = vmatpush.bf16.msra.mxu0 0
  %1223 = vmatpush.bf16.msra.mxu0 0
  %1224 = vmatpush.bf16.msra.mxu0 %v433
  %1225 = vmatpush.bf16.msra.mxu0 %v425
  %1226 = vmatmul.bf16.gmra.mxu0 %v1203
  %v1227 = vpop.f32.mrf.mxu0
  %v1228 = vadd.f32 %v1215, %v1227
  %v1229 = vpop.f32.mrf.mxu0
  %1230 = vdwg.mxu0
  %1231 = vmatpush.bf16.msra.mxu0 %v418
  %1232 = vmatpush.bf16.msra.mxu0 %v410
  %1233 = vmatpush.bf16.msra.mxu0 %v402
  %1234 = vmatpush.bf16.msra.mxu0 %v394
  %1235 = vmatpush.bf16.msra.mxu0 %v386
  %1236 = vmatpush.bf16.msra.mxu0 %v378
  %1237 = vmatpush.bf16.msra.mxu0 %v370
  %1238 = vmatpush.bf16.msra.mxu0 %v362
  %1239 = vmatmul.bf16.gmra.mxu0 %v1199
  %v1240 = vpop.f32.mrf.mxu0
  %v1241 = vadd.f32 0.0, %v1240
  %v1242 = vpop.f32.mrf.mxu0
  %1243 = vdwg.mxu0
  %1244 = vmatpush.bf16.msra.mxu0 0
  %1245 = vmatpush.bf16.msra.mxu0 0
  %1246 = vmatpush.bf16.msra.mxu0 0
  %1247 = vmatpush.bf16.msra.mxu0 0
  %1248 = vmatpush.bf16.msra.mxu0 0
  %1249 = vmatpush.bf16.msra.mxu0 0
  %1250 = vmatpush.bf16.msra.mxu0 %v434
  %1251 = vmatpush.bf16.msra.mxu0 %v426
  %1252 = vmatmul.bf16.gmra.mxu0 %v1203
  %v1253 = vpop.f32.mrf.mxu0
  %v1254 = vadd.f32 %v1241, %v1253
  %v1255 = vpop.f32.mrf.mxu0
  %1256 = vdwg.mxu0
  %1257 = vmatpush.bf16.msra.mxu0 %v419
  %1258 = vmatpush.bf16.msra.mxu0 %v411
  %1259 = vmatpush.bf16.msra.mxu0 %v403
  %1260 = vmatpush.bf16.msra.mxu0 %v395
  %1261 = vmatpush.bf16.msra.mxu0 %v387
  %1262 = vmatpush.bf16.msra.mxu0 %v379
  %1263 = vmatpush.bf16.msra.mxu0 %v371
  %1264 = vmatpush.bf16.msra.mxu0 %v363
  %1265 = vmatmul.bf16.gmra.mxu0 %v1199
  %v1266 = vpop.f32.mrf.mxu0
  %v1267 = vadd.f32 0.0, %v1266
  %v1268 = vpop.f32.mrf.mxu0
  %1269 = vdwg.mxu0
  %1270 = vmatpush.bf16.msra.mxu0 0
  %1271 = vmatpush.bf16.msra.mxu0 0
  %1272 = vmatpush.bf16.msra.mxu0 0
  %1273 = vmatpush.bf16.msra.mxu0 0
  %1274 = vmatpush.bf16.msra.mxu0 0
  %1275 = vmatpush.bf16.msra.mxu0 0
  %1276 = vmatpush.bf16.msra.mxu0 %v435
  %1277 = vmatpush.bf16.msra.mxu0 %v427
  %1278 = vmatmul.bf16.gmra.mxu0 %v1203
  %v1279 = vpop.f32.mrf.mxu0
  %v1280 = vadd.f32 %v1267, %v1279
  %v1281 = vpop.f32.mrf.mxu0
  %1282 = vdwg.mxu0
  %1283 = vmatpush.bf16.msra.mxu0 %v420
  %1284 = vmatpush.bf16.msra.mxu0 %v412
  %1285 = vmatpush.bf16.msra.mxu0 %v404
  %1286 = vmatpush.bf16.msra.mxu0 %v396
  %1287 = vmatpush.bf16.msra.mxu0 %v388
  %1288 = vmatpush.bf16.msra.mxu0 %v380
  %1289 = vmatpush.bf16.msra.mxu0 %v372
  %1290 = vmatpush.bf16.msra.mxu0 %v364
  %1291 = vmatmul.bf16.gmra.mxu0 %v1199
  %v1292 = vpop.f32.mrf.mxu0
  %v1293 = vadd.f32 0.0, %v1292
  %v1294 = vpop.f32.mrf.mxu0
  %1295 = vdwg.mxu0
  %1296 = vmatpush.bf16.msra.mxu0 0
  %1297 = vmatpush.bf16.msra.mxu0 0
  %1298 = vmatpush.bf16.msra.mxu0 0
  %1299 = vmatpush.bf16.msra.mxu0 0
  %1300 = vmatpush.bf16.msra.mxu0 0
  %1301 = vmatpush.bf16.msra.mxu0 0
  %1302 = vmatpush.bf16.msra.mxu0 %v436
  %1303 = vmatpush.bf16.msra.mxu0 %v428
  %1304 = vmatmul.bf16.gmra.mxu0 %v1203
  %v1305 = vpop.f32.mrf.mxu0
  %v1306 = vadd.f32 %v1293, %v1305
  %v1307 = vpop.f32.mrf.mxu0
  %1308 = vdwg.mxu0
  %1309 = vmatpush.bf16.msra.mxu0 %v421
  %1310 = vmatpush.bf16.msra.mxu0 %v413
  %1311 = vmatpush.bf16.msra.mxu0 %v405
  %1312 = vmatpush.bf16.msra.mxu0 %v397
  %1313 = vmatpush.bf16.msra.mxu0 %v389
  %1314 = vmatpush.bf16.msra.mxu0 %v381
  %1315 = vmatpush.bf16.msra.mxu0 %v373
  %1316 = vmatpush.bf16.msra.mxu0 %v365
  %1317 = vmatmul.bf16.gmra.mxu0 %v1199
  %v1318 = vpop.f32.mrf.mxu0
  %v1319 = vadd.f32 0.0, %v1318
  %v1320 = vpop.f32.mrf.mxu0
  %1321 = vdwg.mxu0
  %1322 = vmatpush.bf16.msra.mxu0 0
  %1323 = vmatpush.bf16.msra.mxu0 0
  %1324 = vmatpush.bf16.msra.mxu0 0
  %1325 = vmatpush.bf16.msra.mxu0 0
  %1326 = vmatpush.bf16.msra.mxu0 0
  %1327 = vmatpush.bf16.msra.mxu0 0
  %1328 = vmatpush.bf16.msra.mxu0 %v437
  %1329 = vmatpush.bf16.msra.mxu0 %v429
  %1330 = vmatmul.bf16.gmra.mxu0 %v1203
  %v1331 = vpop.f32.mrf.mxu0
  %v1332 = vadd.f32 %v1319, %v1331
  %v1333 = vpop.f32.mrf.mxu0
  %1334 = vdwg.mxu0
  %1335 = vmatpush.bf16.msra.mxu0 %v422
  %1336 = vmatpush.bf16.msra.mxu0 %v414
  %1337 = vmatpush.bf16.msra.mxu0 %v406
  %1338 = vmatpush.bf16.msra.mxu0 %v398
  %1339 = vmatpush.bf16.msra.mxu0 %v390
  %1340 = vmatpush.bf16.msra.mxu0 %v382
  %1341 = vmatpush.bf16.msra.mxu0 %v374
  %1342 = vmatpush.bf16.msra.mxu0 %v366
  %1343 = vmatmul.bf16.gmra.mxu0 %v1199
  %v1344 = vpop.f32.mrf.mxu0
  %v1345 = vadd.f32 0.0, %v1344
  %v1346 = vpop.f32.mrf.mxu0
  %1347 = vdwg.mxu0
  %1348 = vmatpush.bf16.msra.mxu0 0
  %1349 = vmatpush.bf16.msra.mxu0 0
  %1350 = vmatpush.bf16.msra.mxu0 0
  %1351 = vmatpush.bf16.msra.mxu0 0
  %1352 = vmatpush.bf16.msra.mxu0 0
  %1353 = vmatpush.bf16.msra.mxu0 0
  %1354 = vmatpush.bf16.msra.mxu0 %v438
  %1355 = vmatpush.bf16.msra.mxu0 %v430
  %1356 = vmatmul.bf16.gmra.mxu0 %v1203
  %v1357 = vpop.f32.mrf.mxu0
  %v1358 = vadd.f32 %v1345, %v1357
  %v1359 = vpop.f32.mrf.mxu0
  %1360 = vdwg.mxu0
  %1361 = vmatpush.bf16.msra.mxu0 %v423
  %1362 = vmatpush.bf16.msra.mxu0 %v415
  %1363 = vmatpush.bf16.msra.mxu0 %v407
  %1364 = vmatpush.bf16.msra.mxu0 %v399
  %1365 = vmatpush.bf16.msra.mxu0 %v391
  %1366 = vmatpush.bf16.msra.mxu0 %v383
  %1367 = vmatpush.bf16.msra.mxu0 %v375
  %1368 = vmatpush.bf16.msra.mxu0 %v367
  %1369 = vmatmul.bf16.gmra.mxu0 %v1199
  %v1370 = vpop.f32.mrf.mxu0
  %v1371 = vadd.f32 0.0, %v1370
  %v1372 = vpop.f32.mrf.mxu0
  %1373 = vdwg.mxu0
  %1374 = vmatpush.bf16.msra.mxu0 0
  %1375 = vmatpush.bf16.msra.mxu0 0
  %1376 = vmatpush.bf16.msra.mxu0 0
  %1377 = vmatpush.bf16.msra.mxu0 0
  %1378 = vmatpush.bf16.msra.mxu0 0
  %1379 = vmatpush.bf16.msra.mxu0 0
  %1380 = vmatpush.bf16.msra.mxu0 %v439
  %1381 = vmatpush.bf16.msra.mxu0 %v431
  %1382 = vmatmul.bf16.gmra.mxu0 %v1203
  %v1383 = vpop.f32.mrf.mxu0
  %v1384 = vadd.f32 %v1371, %v1383
  %v1385 = vpop.f32.mrf.mxu0
  %1386 = vdwg.mxu0
  %1387 = vmatpush.bf16.msra.mxu0 %v424
  %1388 = vmatpush.bf16.msra.mxu0 %v416
  %1389 = vmatpush.bf16.msra.mxu0 %v408
  %1390 = vmatpush.bf16.msra.mxu0 %v400
  %1391 = vmatpush.bf16.msra.mxu0 %v392
  %1392 = vmatpush.bf16.msra.mxu0 %v384
  %1393 = vmatpush.bf16.msra.mxu0 %v376
  %1394 = vmatpush.bf16.msra.mxu0 %v368
  %1395 = vmatmul.bf16.gmra.mxu0 %v1199
  %v1396 = vpop.f32.mrf.mxu0
  %v1397 = vadd.f32 0.0, %v1396
  %v1398 = vpop.f32.mrf.mxu0
  %1399 = vdwg.mxu0
  %1400 = vmatpush.bf16.msra.mxu0 0
  %1401 = vmatpush.bf16.msra.mxu0 0
  %1402 = vmatpush.bf16.msra.mxu0 0
  %1403 = vmatpush.bf16.msra.mxu0 0
  %1404 = vmatpush.bf16.msra.mxu0 0
  %1405 = vmatpush.bf16.msra.mxu0 0
  %1406 = vmatpush.bf16.msra.mxu0 %v440
  %1407 = vmatpush.bf16.msra.mxu0 %v432
  %1408 = vmatmul.bf16.gmra.mxu0 %v1203
  %v1409 = vpop.f32.mrf.mxu0
  %v1410 = vadd.f32 %v1397, %v1409
  %v1411 = vpop.f32.mrf.mxu0
  %1412 = vdwg.mxu0
  %v1413 = vmax.f32 %v1009, %v1113
  %v1414 = vmax.f32 %v1035, %v1139
  %v1415 = vmax.f32 %v1061, %v1165
  %v1416 = vmax.f32 %v1087, %v1191
  %v1417 = vmax.f32 %v1228, %v1332
  %v1418 = vmax.f32 %v1254, %v1358
  %v1419 = vmax.f32 %v1280, %v1384
  %v1420 = vmax.f32 %v1306, %v1410
  %v1421 = vmax.f32 %v1413, %v1417
  %v1422 = vmax.f32 %v1414, %v1418
  %v1423 = vmax.f32 %v1415, %v1419
  %v1424 = vmax.f32 %v1416, %v1420
  %v1425 = vadd.f32 %v1421, %v106
  %v1426 = vadd.f32 %v1422, %v107
  %v1427 = vadd.f32 %v1423, %v108
  %v1428 = vadd.f32 %v1424, %v109
  %v1429 = vmax.f32 %v1425, 0.0
  %v1430 = vmax.f32 %v1426, 0.0
  %v1431 = vmax.f32 %v1427, 0.0
  %v1432 = vmax.f32 %v1428, 0.0
  %v1433 = vpack.c.bf16 %v1430, %v1429
  %v1434 = vpack.c.bf16 %v1432, %v1431
  %s1435 = scalar_lea.vmem [#allocation2], 16
  %1436 = vst [vmem:[%s1435] sm:$0xff] %v1433
  %1437 = vst [vmem:[%s1435 + $0x8] sm:$0xff] %v1434
  %s1438 = scalar_lea.vmem %s0, 16
  %v1439 = vld [vmem:[%s1438] sm:$0xff]
  %v1441 = vunpack.c.l.b16 %v1439
  %v1442 = vunpack.c.h.b16 %v1439
  %v1443 = vpack.c.b16 %v1441, %v1441
  %v1444 = vpack.c.b16 %v1442, %v1442
  %v1447 = vsel %vm521, %v1444, 0
  %1449 = vmatpush.bf16.msra.mxu0 %v417
  %1450 = vmatpush.bf16.msra.mxu0 %v409
  %1451 = vmatpush.bf16.msra.mxu0 %v401
  %1452 = vmatpush.bf16.msra.mxu0 %v393
  %1453 = vmatpush.bf16.msra.mxu0 %v385
  %1454 = vmatpush.bf16.msra.mxu0 %v377
  %1455 = vmatpush.bf16.msra.mxu0 %v369
  %1456 = vmatpush.bf16.msra.mxu0 %v361
  %1457 = vmatmul.bf16.gmra.mxu0 %v1443
  %v1458 = vpop.f32.mrf.mxu0
  %v1459 = vadd.f32 0.0, %v1458
  %v1460 = vpop.f32.mrf.mxu0
  %1461 = vdwg.mxu0
  %1462 = vmatpush.bf16.msra.mxu0 0
  %1463 = vmatpush.bf16.msra.mxu0 0
  %1464 = vmatpush.bf16.msra.mxu0 0
  %1465 = vmatpush.bf16.msra.mxu0 0
  %1466 = vmatpush.bf16.msra.mxu0 0
  %1467 = vmatpush.bf16.msra.mxu0 0
  %1468 = vmatpush.bf16.msra.mxu0 %v433
  %1469 = vmatpush.bf16.msra.mxu0 %v425
  %1470 = vmatmul.bf16.gmra.mxu0 %v1447
  %v1471 = vpop.f32.mrf.mxu0
  %v1472 = vadd.f32 %v1459, %v1471
  %v1473 = vpop.f32.mrf.mxu0
  %1474 = vdwg.mxu0
  %1475 = vmatpush.bf16.msra.mxu0 %v418
  %1476 = vmatpush.bf16.msra.mxu0 %v410
  %1477 = vmatpush.bf16.msra.mxu0 %v402
  %1478 = vmatpush.bf16.msra.mxu0 %v394
  %1479 = vmatpush.bf16.msra.mxu0 %v386
  %1480 = vmatpush.bf16.msra.mxu0 %v378
  %1481 = vmatpush.bf16.msra.mxu0 %v370
  %1482 = vmatpush.bf16.msra.mxu0 %v362
  %1483 = vmatmul.bf16.gmra.mxu0 %v1443
  %v1484 = vpop.f32.mrf.mxu0
  %v1485 = vadd.f32 0.0, %v1484
  %v1486 = vpop.f32.mrf.mxu0
  %1487 = vdwg.mxu0
  %1488 = vmatpush.bf16.msra.mxu0 0
  %1489 = vmatpush.bf16.msra.mxu0 0
  %1490 = vmatpush.bf16.msra.mxu0 0
  %1491 = vmatpush.bf16.msra.mxu0 0
  %1492 = vmatpush.bf16.msra.mxu0 0
  %1493 = vmatpush.bf16.msra.mxu0 0
  %1494 = vmatpush.bf16.msra.mxu0 %v434
  %1495 = vmatpush.bf16.msra.mxu0 %v426
  %1496 = vmatmul.bf16.gmra.mxu0 %v1447
  %v1497 = vpop.f32.mrf.mxu0
  %v1498 = vadd.f32 %v1485, %v1497
  %v1499 = vpop.f32.mrf.mxu0
  %1500 = vdwg.mxu0
  %1501 = vmatpush.bf16.msra.mxu0 %v419
  %1502 = vmatpush.bf16.msra.mxu0 %v411
  %1503 = vmatpush.bf16.msra.mxu0 %v403
  %1504 = vmatpush.bf16.msra.mxu0 %v395
  %1505 = vmatpush.bf16.msra.mxu0 %v387
  %1506 = vmatpush.bf16.msra.mxu0 %v379
  %1507 = vmatpush.bf16.msra.mxu0 %v371
  %1508 = vmatpush.bf16.msra.mxu0 %v363
  %1509 = vmatmul.bf16.gmra.mxu0 %v1443
  %v1510 = vpop.f32.mrf.mxu0
  %v1511 = vadd.f32 0.0, %v1510
  %v1512 = vpop.f32.mrf.mxu0
  %1513 = vdwg.mxu0
  %1514 = vmatpush.bf16.msra.mxu0 0
  %1515 = vmatpush.bf16.msra.mxu0 0
  %1516 = vmatpush.bf16.msra.mxu0 0
  %1517 = vmatpush.bf16.msra.mxu0 0
  %1518 = vmatpush.bf16.msra.mxu0 0
  %1519 = vmatpush.bf16.msra.mxu0 0
  %1520 = vmatpush.bf16.msra.mxu0 %v435
  %1521 = vmatpush.bf16.msra.mxu0 %v427
  %1522 = vmatmul.bf16.gmra.mxu0 %v1447
  %v1523 = vpop.f32.mrf.mxu0
  %v1524 = vadd.f32 %v1511, %v1523
  %v1525 = vpop.f32.mrf.mxu0
  %1526 = vdwg.mxu0
  %1527 = vmatpush.bf16.msra.mxu0 %v420
  %1528 = vmatpush.bf16.msra.mxu0 %v412
  %1529 = vmatpush.bf16.msra.mxu0 %v404
  %1530 = vmatpush.bf16.msra.mxu0 %v396
  %1531 = vmatpush.bf16.msra.mxu0 %v388
  %1532 = vmatpush.bf16.msra.mxu0 %v380
  %1533 = vmatpush.bf16.msra.mxu0 %v372
  %1534 = vmatpush.bf16.msra.mxu0 %v364
  %1535 = vmatmul.bf16.gmra.mxu0 %v1443
  %v1536 = vpop.f32.mrf.mxu0
  %v1537 = vadd.f32 0.0, %v1536
  %v1538 = vpop.f32.mrf.mxu0
  %1539 = vdwg.mxu0
  %1540 = vmatpush.bf16.msra.mxu0 0
  %1541 = vmatpush.bf16.msra.mxu0 0
  %1542 = vmatpush.bf16.msra.mxu0 0
  %1543 = vmatpush.bf16.msra.mxu0 0
  %1544 = vmatpush.bf16.msra.mxu0 0
  %1545 = vmatpush.bf16.msra.mxu0 0
  %1546 = vmatpush.bf16.msra.mxu0 %v436
  %1547 = vmatpush.bf16.msra.mxu0 %v428
  %1548 = vmatmul.bf16.gmra.mxu0 %v1447
  %v1549 = vpop.f32.mrf.mxu0
  %v1550 = vadd.f32 %v1537, %v1549
  %v1551 = vpop.f32.mrf.mxu0
  %1552 = vdwg.mxu0
  %1553 = vmatpush.bf16.msra.mxu0 %v421
  %1554 = vmatpush.bf16.msra.mxu0 %v413
  %1555 = vmatpush.bf16.msra.mxu0 %v405
  %1556 = vmatpush.bf16.msra.mxu0 %v397
  %1557 = vmatpush.bf16.msra.mxu0 %v389
  %1558 = vmatpush.bf16.msra.mxu0 %v381
  %1559 = vmatpush.bf16.msra.mxu0 %v373
  %1560 = vmatpush.bf16.msra.mxu0 %v365
  %1561 = vmatmul.bf16.gmra.mxu0 %v1443
  %v1562 = vpop.f32.mrf.mxu0
  %v1563 = vadd.f32 0.0, %v1562
  %v1564 = vpop.f32.mrf.mxu0
  %1565 = vdwg.mxu0
  %1566 = vmatpush.bf16.msra.mxu0 0
  %1567 = vmatpush.bf16.msra.mxu0 0
  %1568 = vmatpush.bf16.msra.mxu0 0
  %1569 = vmatpush.bf16.msra.mxu0 0
  %1570 = vmatpush.bf16.msra.mxu0 0
  %1571 = vmatpush.bf16.msra.mxu0 0
  %1572 = vmatpush.bf16.msra.mxu0 %v437
  %1573 = vmatpush.bf16.msra.mxu0 %v429
  %1574 = vmatmul.bf16.gmra.mxu0 %v1447
  %v1575 = vpop.f32.mrf.mxu0
  %v1576 = vadd.f32 %v1563, %v1575
  %v1577 = vpop.f32.mrf.mxu0
  %1578 = vdwg.mxu0
  %1579 = vmatpush.bf16.msra.mxu0 %v422
  %1580 = vmatpush.bf16.msra.mxu0 %v414
  %1581 = vmatpush.bf16.msra.mxu0 %v406
  %1582 = vmatpush.bf16.msra.mxu0 %v398
  %1583 = vmatpush.bf16.msra.mxu0 %v390
  %1584 = vmatpush.bf16.msra.mxu0 %v382
  %1585 = vmatpush.bf16.msra.mxu0 %v374
  %1586 = vmatpush.bf16.msra.mxu0 %v366
  %1587 = vmatmul.bf16.gmra.mxu0 %v1443
  %v1588 = vpop.f32.mrf.mxu0
  %v1589 = vadd.f32 0.0, %v1588
  %v1590 = vpop.f32.mrf.mxu0
  %1591 = vdwg.mxu0
  %1592 = vmatpush.bf16.msra.mxu0 0
  %1593 = vmatpush.bf16.msra.mxu0 0
  %1594 = vmatpush.bf16.msra.mxu0 0
  %1595 = vmatpush.bf16.msra.mxu0 0
  %1596 = vmatpush.bf16.msra.mxu0 0
  %1597 = vmatpush.bf16.msra.mxu0 0
  %1598 = vmatpush.bf16.msra.mxu0 %v438
  %1599 = vmatpush.bf16.msra.mxu0 %v430
  %1600 = vmatmul.bf16.gmra.mxu0 %v1447
  %v1601 = vpop.f32.mrf.mxu0
  %v1602 = vadd.f32 %v1589, %v1601
  %v1603 = vpop.f32.mrf.mxu0
  %1604 = vdwg.mxu0
  %1605 = vmatpush.bf16.msra.mxu0 %v423
  %1606 = vmatpush.bf16.msra.mxu0 %v415
  %1607 = vmatpush.bf16.msra.mxu0 %v407
  %1608 = vmatpush.bf16.msra.mxu0 %v399
  %1609 = vmatpush.bf16.msra.mxu0 %v391
  %1610 = vmatpush.bf16.msra.mxu0 %v383
  %1611 = vmatpush.bf16.msra.mxu0 %v375
  %1612 = vmatpush.bf16.msra.mxu0 %v367
  %1613 = vmatmul.bf16.gmra.mxu0 %v1443
  %v1614 = vpop.f32.mrf.mxu0
  %v1615 = vadd.f32 0.0, %v1614
  %v1616 = vpop.f32.mrf.mxu0
  %1617 = vdwg.mxu0
  %1618 = vmatpush.bf16.msra.mxu0 0
  %1619 = vmatpush.bf16.msra.mxu0 0
  %1620 = vmatpush.bf16.msra.mxu0 0
  %1621 = vmatpush.bf16.msra.mxu0 0
  %1622 = vmatpush.bf16.msra.mxu0 0
  %1623 = vmatpush.bf16.msra.mxu0 0
  %1624 = vmatpush.bf16.msra.mxu0 %v439
  %1625 = vmatpush.bf16.msra.mxu0 %v431
  %1626 = vmatmul.bf16.gmra.mxu0 %v1447
  %v1627 = vpop.f32.mrf.mxu0
  %v1628 = vadd.f32 %v1615, %v1627
  %v1629 = vpop.f32.mrf.mxu0
  %1630 = vdwg.mxu0
  %1631 = vmatpush.bf16.msra.mxu0 %v424
  %1632 = vmatpush.bf16.msra.mxu0 %v416
  %1633 = vmatpush.bf16.msra.mxu0 %v408
  %1634 = vmatpush.bf16.msra.mxu0 %v400
  %1635 = vmatpush.bf16.msra.mxu0 %v392
  %1636 = vmatpush.bf16.msra.mxu0 %v384
  %1637 = vmatpush.bf16.msra.mxu0 %v376
  %1638 = vmatpush.bf16.msra.mxu0 %v368
  %1639 = vmatmul.bf16.gmra.mxu0 %v1443
  %v1640 = vpop.f32.mrf.mxu0
  %v1641 = vadd.f32 0.0, %v1640
  %v1642 = vpop.f32.mrf.mxu0
  %1643 = vdwg.mxu0
  %1644 = vmatpush.bf16.msra.mxu0 0
  %1645 = vmatpush.bf16.msra.mxu0 0
  %1646 = vmatpush.bf16.msra.mxu0 0
  %1647 = vmatpush.bf16.msra.mxu0 0
  %1648 = vmatpush.bf16.msra.mxu0 0
  %1649 = vmatpush.bf16.msra.mxu0 0
  %1650 = vmatpush.bf16.msra.mxu0 %v440
  %1651 = vmatpush.bf16.msra.mxu0 %v432
  %1652 = vmatmul.bf16.gmra.mxu0 %v1447
  %v1653 = vpop.f32.mrf.mxu0
  %v1654 = vadd.f32 %v1641, %v1653
  %v1655 = vpop.f32.mrf.mxu0
  %1656 = vdwg.mxu0
  %s1657 = scalar_lea.vmem %s1, 16
  %v1658 = vld [vmem:[%s1657] sm:$0xff]
  %v1660 = vunpack.c.l.b16 %v1658
  %v1661 = vunpack.c.h.b16 %v1658
  %v1662 = vpack.c.b16 %v1660, %v1660
  %v1663 = vpack.c.b16 %v1661, %v1661
  %v1666 = vsel %vm521, %v1663, 0
  %1668 = vmatpush.bf16.msra.mxu0 %v417
  %1669 = vmatpush.bf16.msra.mxu0 %v409
  %1670 = vmatpush.bf16.msra.mxu0 %v401
  %1671 = vmatpush.bf16.msra.mxu0 %v393
  %1672 = vmatpush.bf16.msra.mxu0 %v385
  %1673 = vmatpush.bf16.msra.mxu0 %v377
  %1674 = vmatpush.bf16.msra.mxu0 %v369
  %1675 = vmatpush.bf16.msra.mxu0 %v361
  %1676 = vmatmul.bf16.gmra.mxu0 %v1662
  %v1677 = vpop.f32.mrf.mxu0
  %v1678 = vadd.f32 0.0, %v1677
  %v1679 = vpop.f32.mrf.mxu0
  %1680 = vdwg.mxu0
  %1681 = vmatpush.bf16.msra.mxu0 0
  %1682 = vmatpush.bf16.msra.mxu0 0
  %1683 = vmatpush.bf16.msra.mxu0 0
  %1684 = vmatpush.bf16.msra.mxu0 0
  %1685 = vmatpush.bf16.msra.mxu0 0
  %1686 = vmatpush.bf16.msra.mxu0 0
  %1687 = vmatpush.bf16.msra.mxu0 %v433
  %1688 = vmatpush.bf16.msra.mxu0 %v425
  %1689 = vmatmul.bf16.gmra.mxu0 %v1666
  %v1690 = vpop.f32.mrf.mxu0
  %v1691 = vadd.f32 %v1678, %v1690
  %v1692 = vpop.f32.mrf.mxu0
  %1693 = vdwg.mxu0
  %1694 = vmatpush.bf16.msra.mxu0 %v418
  %1695 = vmatpush.bf16.msra.mxu0 %v410
  %1696 = vmatpush.bf16.msra.mxu0 %v402
  %1697 = vmatpush.bf16.msra.mxu0 %v394
  %1698 = vmatpush.bf16.msra.mxu0 %v386
  %1699 = vmatpush.bf16.msra.mxu0 %v378
  %1700 = vmatpush.bf16.msra.mxu0 %v370
  %1701 = vmatpush.bf16.msra.mxu0 %v362
  %1702 = vmatmul.bf16.gmra.mxu0 %v1662
  %v1703 = vpop.f32.mrf.mxu0
  %v1704 = vadd.f32 0.0, %v1703
  %v1705 = vpop.f32.mrf.mxu0
  %1706 = vdwg.mxu0
  %1707 = vmatpush.bf16.msra.mxu0 0
  %1708 = vmatpush.bf16.msra.mxu0 0
  %1709 = vmatpush.bf16.msra.mxu0 0
  %1710 = vmatpush.bf16.msra.mxu0 0
  %1711 = vmatpush.bf16.msra.mxu0 0
  %1712 = vmatpush.bf16.msra.mxu0 0
  %1713 = vmatpush.bf16.msra.mxu0 %v434
  %1714 = vmatpush.bf16.msra.mxu0 %v426
  %1715 = vmatmul.bf16.gmra.mxu0 %v1666
  %v1716 = vpop.f32.mrf.mxu0
  %v1717 = vadd.f32 %v1704, %v1716
  %v1718 = vpop.f32.mrf.mxu0
  %1719 = vdwg.mxu0
  %1720 = vmatpush.bf16.msra.mxu0 %v419
  %1721 = vmatpush.bf16.msra.mxu0 %v411
  %1722 = vmatpush.bf16.msra.mxu0 %v403
  %1723 = vmatpush.bf16.msra.mxu0 %v395
  %1724 = vmatpush.bf16.msra.mxu0 %v387
  %1725 = vmatpush.bf16.msra.mxu0 %v379
  %1726 = vmatpush.bf16.msra.mxu0 %v371
  %1727 = vmatpush.bf16.msra.mxu0 %v363
  %1728 = vmatmul.bf16.gmra.mxu0 %v1662
  %v1729 = vpop.f32.mrf.mxu0
  %v1730 = vadd.f32 0.0, %v1729
  %v1731 = vpop.f32.mrf.mxu0
  %1732 = vdwg.mxu0
  %1733 = vmatpush.bf16.msra.mxu0 0
  %1734 = vmatpush.bf16.msra.mxu0 0
  %1735 = vmatpush.bf16.msra.mxu0 0
  %1736 = vmatpush.bf16.msra.mxu0 0
  %1737 = vmatpush.bf16.msra.mxu0 0
  %1738 = vmatpush.bf16.msra.mxu0 0
  %1739 = vmatpush.bf16.msra.mxu0 %v435
  %1740 = vmatpush.bf16.msra.mxu0 %v427
  %1741 = vmatmul.bf16.gmra.mxu0 %v1666
  %v1742 = vpop.f32.mrf.mxu0
  %v1743 = vadd.f32 %v1730, %v1742
  %v1744 = vpop.f32.mrf.mxu0
  %1745 = vdwg.mxu0
  %1746 = vmatpush.bf16.msra.mxu0 %v420
  %1747 = vmatpush.bf16.msra.mxu0 %v412
  %1748 = vmatpush.bf16.msra.mxu0 %v404
  %1749 = vmatpush.bf16.msra.mxu0 %v396
  %1750 = vmatpush.bf16.msra.mxu0 %v388
  %1751 = vmatpush.bf16.msra.mxu0 %v380
  %1752 = vmatpush.bf16.msra.mxu0 %v372
  %1753 = vmatpush.bf16.msra.mxu0 %v364
  %1754 = vmatmul.bf16.gmra.mxu0 %v1662
  %v1755 = vpop.f32.mrf.mxu0
  %v1756 = vadd.f32 0.0, %v1755
  %v1757 = vpop.f32.mrf.mxu0
  %1758 = vdwg.mxu0
  %1759 = vmatpush.bf16.msra.mxu0 0
  %1760 = vmatpush.bf16.msra.mxu0 0
  %1761 = vmatpush.bf16.msra.mxu0 0
  %1762 = vmatpush.bf16.msra.mxu0 0
  %1763 = vmatpush.bf16.msra.mxu0 0
  %1764 = vmatpush.bf16.msra.mxu0 0
  %1765 = vmatpush.bf16.msra.mxu0 %v436
  %1766 = vmatpush.bf16.msra.mxu0 %v428
  %1767 = vmatmul.bf16.gmra.mxu0 %v1666
  %v1768 = vpop.f32.mrf.mxu0
  %v1769 = vadd.f32 %v1756, %v1768
  %v1770 = vpop.f32.mrf.mxu0
  %1771 = vdwg.mxu0
  %1772 = vmatpush.bf16.msra.mxu0 %v421
  %1773 = vmatpush.bf16.msra.mxu0 %v413
  %1774 = vmatpush.bf16.msra.mxu0 %v405
  %1775 = vmatpush.bf16.msra.mxu0 %v397
  %1776 = vmatpush.bf16.msra.mxu0 %v389
  %1777 = vmatpush.bf16.msra.mxu0 %v381
  %1778 = vmatpush.bf16.msra.mxu0 %v373
  %1779 = vmatpush.bf16.msra.mxu0 %v365
  %1780 = vmatmul.bf16.gmra.mxu0 %v1662
  %v1781 = vpop.f32.mrf.mxu0
  %v1782 = vadd.f32 0.0, %v1781
  %v1783 = vpop.f32.mrf.mxu0
  %1784 = vdwg.mxu0
  %1785 = vmatpush.bf16.msra.mxu0 0
  %1786 = vmatpush.bf16.msra.mxu0 0
  %1787 = vmatpush.bf16.msra.mxu0 0
  %1788 = vmatpush.bf16.msra.mxu0 0
  %1789 = vmatpush.bf16.msra.mxu0 0
  %1790 = vmatpush.bf16.msra.mxu0 0
  %1791 = vmatpush.bf16.msra.mxu0 %v437
  %1792 = vmatpush.bf16.msra.mxu0 %v429
  %1793 = vmatmul.bf16.gmra.mxu0 %v1666
  %v1794 = vpop.f32.mrf.mxu0
  %v1795 = vadd.f32 %v1782, %v1794
  %v1796 = vpop.f32.mrf.mxu0
  %1797 = vdwg.mxu0
  %1798 = vmatpush.bf16.msra.mxu0 %v422
  %1799 = vmatpush.bf16.msra.mxu0 %v414
  %1800 = vmatpush.bf16.msra.mxu0 %v406
  %1801 = vmatpush.bf16.msra.mxu0 %v398
  %1802 = vmatpush.bf16.msra.mxu0 %v390
  %1803 = vmatpush.bf16.msra.mxu0 %v382
  %1804 = vmatpush.bf16.msra.mxu0 %v374
  %1805 = vmatpush.bf16.msra.mxu0 %v366
  %1806 = vmatmul.bf16.gmra.mxu0 %v1662
  %v1807 = vpop.f32.mrf.mxu0
  %v1808 = vadd.f32 0.0, %v1807
  %v1809 = vpop.f32.mrf.mxu0
  %1810 = vdwg.mxu0
  %1811 = vmatpush.bf16.msra.mxu0 0
  %1812 = vmatpush.bf16.msra.mxu0 0
  %1813 = vmatpush.bf16.msra.mxu0 0
  %1814 = vmatpush.bf16.msra.mxu0 0
  %1815 = vmatpush.bf16.msra.mxu0 0
  %1816 = vmatpush.bf16.msra.mxu0 0
  %1817 = vmatpush.bf16.msra.mxu0 %v438
  %1818 = vmatpush.bf16.msra.mxu0 %v430
  %1819 = vmatmul.bf16.gmra.mxu0 %v1666
  %v1820 = vpop.f32.mrf.mxu0
  %v1821 = vadd.f32 %v1808, %v1820
  %v1822 = vpop.f32.mrf.mxu0
  %1823 = vdwg.mxu0
  %1824 = vmatpush.bf16.msra.mxu0 %v423
  %1825 = vmatpush.bf16.msra.mxu0 %v415
  %1826 = vmatpush.bf16.msra.mxu0 %v407
  %1827 = vmatpush.bf16.msra.mxu0 %v399
  %1828 = vmatpush.bf16.msra.mxu0 %v391
  %1829 = vmatpush.bf16.msra.mxu0 %v383
  %1830 = vmatpush.bf16.msra.mxu0 %v375
  %1831 = vmatpush.bf16.msra.mxu0 %v367
  %1832 = vmatmul.bf16.gmra.mxu0 %v1662
  %v1833 = vpop.f32.mrf.mxu0
  %v1834 = vadd.f32 0.0, %v1833
  %v1835 = vpop.f32.mrf.mxu0
  %1836 = vdwg.mxu0
  %1837 = vmatpush.bf16.msra.mxu0 0
  %1838 = vmatpush.bf16.msra.mxu0 0
  %1839 = vmatpush.bf16.msra.mxu0 0
  %1840 = vmatpush.bf16.msra.mxu0 0
  %1841 = vmatpush.bf16.msra.mxu0 0
  %1842 = vmatpush.bf16.msra.mxu0 0
  %1843 = vmatpush.bf16.msra.mxu0 %v439
  %1844 = vmatpush.bf16.msra.mxu0 %v431
  %1845 = vmatmul.bf16.gmra.mxu0 %v1666
  %v1846 = vpop.f32.mrf.mxu0
  %v1847 = vadd.f32 %v1834, %v1846
  %v1848 = vpop.f32.mrf.mxu0
  %1849 = vdwg.mxu0
  %1850 = vmatpush.bf16.msra.mxu0 %v424
  %1851 = vmatpush.bf16.msra.mxu0 %v416
  %1852 = vmatpush.bf16.msra.mxu0 %v408
  %1853 = vmatpush.bf16.msra.mxu0 %v400
  %1854 = vmatpush.bf16.msra.mxu0 %v392
  %1855 = vmatpush.bf16.msra.mxu0 %v384
  %1856 = vmatpush.bf16.msra.mxu0 %v376
  %1857 = vmatpush.bf16.msra.mxu0 %v368
  %1858 = vmatmul.bf16.gmra.mxu0 %v1662
  %v1859 = vpop.f32.mrf.mxu0
  %v1860 = vadd.f32 0.0, %v1859
  %v1861 = vpop.f32.mrf.mxu0
  %1862 = vdwg.mxu0
  %1863 = vmatpush.bf16.msra.mxu0 0
  %1864 = vmatpush.bf16.msra.mxu0 0
  %1865 = vmatpush.bf16.msra.mxu0 0
  %1866 = vmatpush.bf16.msra.mxu0 0
  %1867 = vmatpush.bf16.msra.mxu0 0
  %1868 = vmatpush.bf16.msra.mxu0 0
  %1869 = vmatpush.bf16.msra.mxu0 %v440
  %1870 = vmatpush.bf16.msra.mxu0 %v432
  %1871 = vmatmul.bf16.gmra.mxu0 %v1666
  %v1872 = vpop.f32.mrf.mxu0
  %v1873 = vadd.f32 %v1860, %v1872
  %v1874 = vpop.f32.mrf.mxu0
  %1875 = vdwg.mxu0
  %v1876 = vmax.f32 %v1472, %v1576
  %v1877 = vmax.f32 %v1498, %v1602
  %v1878 = vmax.f32 %v1524, %v1628
  %v1879 = vmax.f32 %v1550, %v1654
  %v1880 = vmax.f32 %v1691, %v1795
  %v1881 = vmax.f32 %v1717, %v1821
  %v1882 = vmax.f32 %v1743, %v1847
  %v1883 = vmax.f32 %v1769, %v1873
  %v1884 = vmax.f32 %v1876, %v1880
  %v1885 = vmax.f32 %v1877, %v1881
  %v1886 = vmax.f32 %v1878, %v1882
  %v1887 = vmax.f32 %v1879, %v1883
  %v1888 = vadd.f32 %v1884, %v106
  %v1889 = vadd.f32 %v1885, %v107
  %v1890 = vadd.f32 %v1886, %v108
  %v1891 = vadd.f32 %v1887, %v109
  %v1892 = vmax.f32 %v1888, 0.0
  %v1893 = vmax.f32 %v1889, 0.0
  %v1894 = vmax.f32 %v1890, 0.0
  %v1895 = vmax.f32 %v1891, 0.0
  %v1896 = vpack.c.bf16 %v1893, %v1892
  %v1897 = vpack.c.bf16 %v1895, %v1894
  %s1898 = scalar_lea.vmem [#allocation2], 32
  %1899 = vst [vmem:[%s1898] sm:$0xff] %v1896
  %1900 = vst [vmem:[%s1898 + $0x8] sm:$0xff] %v1897
  %s1901 = scalar_lea.vmem %s0, 24
  %v1902 = vld [vmem:[%s1901] sm:$0xff]
  %v1904 = vunpack.c.l.b16 %v1902
  %v1905 = vunpack.c.h.b16 %v1902
  %v1906 = vpack.c.b16 %v1904, %v1904
  %v1907 = vpack.c.b16 %v1905, %v1905
  %v1910 = vsel %vm521, %v1907, 0
  %1912 = vmatpush.bf16.msra.mxu0 %v417
  %1913 = vmatpush.bf16.msra.mxu0 %v409
  %1914 = vmatpush.bf16.msra.mxu0 %v401
  %1915 = vmatpush.bf16.msra.mxu0 %v393
  %1916 = vmatpush.bf16.msra.mxu0 %v385
  %1917 = vmatpush.bf16.msra.mxu0 %v377
  %1918 = vmatpush.bf16.msra.mxu0 %v369
  %1919 = vmatpush.bf16.msra.mxu0 %v361
  %1920 = vmatmul.bf16.gmra.mxu0 %v1906
  %v1921 = vpop.f32.mrf.mxu0
  %v1922 = vadd.f32 0.0, %v1921
  %v1923 = vpop.f32.mrf.mxu0
  %1924 = vdwg.mxu0
  %1925 = vmatpush.bf16.msra.mxu0 0
  %1926 = vmatpush.bf16.msra.mxu0 0
  %1927 = vmatpush.bf16.msra.mxu0 0
  %1928 = vmatpush.bf16.msra.mxu0 0
  %1929 = vmatpush.bf16.msra.mxu0 0
  %1930 = vmatpush.bf16.msra.mxu0 0
  %1931 = vmatpush.bf16.msra.mxu0 %v433
  %1932 = vmatpush.bf16.msra.mxu0 %v425
  %1933 = vmatmul.bf16.gmra.mxu0 %v1910
  %v1934 = vpop.f32.mrf.mxu0
  %v1935 = vadd.f32 %v1922, %v1934
  %v1936 = vpop.f32.mrf.mxu0
  %1937 = vdwg.mxu0
  %1938 = vmatpush.bf16.msra.mxu0 %v418
  %1939 = vmatpush.bf16.msra.mxu0 %v410
  %1940 = vmatpush.bf16.msra.mxu0 %v402
  %1941 = vmatpush.bf16.msra.mxu0 %v394
  %1942 = vmatpush.bf16.msra.mxu0 %v386
  %1943 = vmatpush.bf16.msra.mxu0 %v378
  %1944 = vmatpush.bf16.msra.mxu0 %v370
  %1945 = vmatpush.bf16.msra.mxu0 %v362
  %1946 = vmatmul.bf16.gmra.mxu0 %v1906
  %v1947 = vpop.f32.mrf.mxu0
  %v1948 = vadd.f32 0.0, %v1947
  %v1949 = vpop.f32.mrf.mxu0
  %1950 = vdwg.mxu0
  %1951 = vmatpush.bf16.msra.mxu0 0
  %1952 = vmatpush.bf16.msra.mxu0 0
  %1953 = vmatpush.bf16.msra.mxu0 0
  %1954 = vmatpush.bf16.msra.mxu0 0
  %1955 = vmatpush.bf16.msra.mxu0 0
  %1956 = vmatpush.bf16.msra.mxu0 0
  %1957 = vmatpush.bf16.msra.mxu0 %v434
  %1958 = vmatpush.bf16.msra.mxu0 %v426
  %1959 = vmatmul.bf16.gmra.mxu0 %v1910
  %v1960 = vpop.f32.mrf.mxu0
  %v1961 = vadd.f32 %v1948, %v1960
  %v1962 = vpop.f32.mrf.mxu0
  %1963 = vdwg.mxu0
  %1964 = vmatpush.bf16.msra.mxu0 %v419
  %1965 = vmatpush.bf16.msra.mxu0 %v411
  %1966 = vmatpush.bf16.msra.mxu0 %v403
  %1967 = vmatpush.bf16.msra.mxu0 %v395
  %1968 = vmatpush.bf16.msra.mxu0 %v387
  %1969 = vmatpush.bf16.msra.mxu0 %v379
  %1970 = vmatpush.bf16.msra.mxu0 %v371
  %1971 = vmatpush.bf16.msra.mxu0 %v363
  %1972 = vmatmul.bf16.gmra.mxu0 %v1906
  %v1973 = vpop.f32.mrf.mxu0
  %v1974 = vadd.f32 0.0, %v1973
  %v1975 = vpop.f32.mrf.mxu0
  %1976 = vdwg.mxu0
  %1977 = vmatpush.bf16.msra.mxu0 0
  %1978 = vmatpush.bf16.msra.mxu0 0
  %1979 = vmatpush.bf16.msra.mxu0 0
  %1980 = vmatpush.bf16.msra.mxu0 0
  %1981 = vmatpush.bf16.msra.mxu0 0
  %1982 = vmatpush.bf16.msra.mxu0 0
  %1983 = vmatpush.bf16.msra.mxu0 %v435
  %1984 = vmatpush.bf16.msra.mxu0 %v427
  %1985 = vmatmul.bf16.gmra.mxu0 %v1910
  %v1986 = vpop.f32.mrf.mxu0
  %v1987 = vadd.f32 %v1974, %v1986
  %v1988 = vpop.f32.mrf.mxu0
  %1989 = vdwg.mxu0
  %1990 = vmatpush.bf16.msra.mxu0 %v420
  %1991 = vmatpush.bf16.msra.mxu0 %v412
  %1992 = vmatpush.bf16.msra.mxu0 %v404
  %1993 = vmatpush.bf16.msra.mxu0 %v396
  %1994 = vmatpush.bf16.msra.mxu0 %v388
  %1995 = vmatpush.bf16.msra.mxu0 %v380
  %1996 = vmatpush.bf16.msra.mxu0 %v372
  %1997 = vmatpush.bf16.msra.mxu0 %v364
  %1998 = vmatmul.bf16.gmra.mxu0 %v1906
  %v1999 = vpop.f32.mrf.mxu0
  %v2000 = vadd.f32 0.0, %v1999
  %v2001 = vpop.f32.mrf.mxu0
  %2002 = vdwg.mxu0
  %2003 = vmatpush.bf16.msra.mxu0 0
  %2004 = vmatpush.bf16.msra.mxu0 0
  %2005 = vmatpush.bf16.msra.mxu0 0
  %2006 = vmatpush.bf16.msra.mxu0 0
  %2007 = vmatpush.bf16.msra.mxu0 0
  %2008 = vmatpush.bf16.msra.mxu0 0
  %2009 = vmatpush.bf16.msra.mxu0 %v436
  %2010 = vmatpush.bf16.msra.mxu0 %v428
  %2011 = vmatmul.bf16.gmra.mxu0 %v1910
  %v2012 = vpop.f32.mrf.mxu0
  %v2013 = vadd.f32 %v2000, %v2012
  %v2014 = vpop.f32.mrf.mxu0
  %2015 = vdwg.mxu0
  %2016 = vmatpush.bf16.msra.mxu0 %v421
  %2017 = vmatpush.bf16.msra.mxu0 %v413
  %2018 = vmatpush.bf16.msra.mxu0 %v405
  %2019 = vmatpush.bf16.msra.mxu0 %v397
  %2020 = vmatpush.bf16.msra.mxu0 %v389
  %2021 = vmatpush.bf16.msra.mxu0 %v381
  %2022 = vmatpush.bf16.msra.mxu0 %v373
  %2023 = vmatpush.bf16.msra.mxu0 %v365
  %2024 = vmatmul.bf16.gmra.mxu0 %v1906
  %v2025 = vpop.f32.mrf.mxu0
  %v2026 = vadd.f32 0.0, %v2025
  %v2027 = vpop.f32.mrf.mxu0
  %2028 = vdwg.mxu0
  %2029 = vmatpush.bf16.msra.mxu0 0
  %2030 = vmatpush.bf16.msra.mxu0 0
  %2031 = vmatpush.bf16.msra.mxu0 0
  %2032 = vmatpush.bf16.msra.mxu0 0
  %2033 = vmatpush.bf16.msra.mxu0 0
  %2034 = vmatpush.bf16.msra.mxu0 0
  %2035 = vmatpush.bf16.msra.mxu0 %v437
  %2036 = vmatpush.bf16.msra.mxu0 %v429
  %2037 = vmatmul.bf16.gmra.mxu0 %v1910
  %v2038 = vpop.f32.mrf.mxu0
  %v2039 = vadd.f32 %v2026, %v2038
  %v2040 = vpop.f32.mrf.mxu0
  %2041 = vdwg.mxu0
  %2042 = vmatpush.bf16.msra.mxu0 %v422
  %2043 = vmatpush.bf16.msra.mxu0 %v414
  %2044 = vmatpush.bf16.msra.mxu0 %v406
  %2045 = vmatpush.bf16.msra.mxu0 %v398
  %2046 = vmatpush.bf16.msra.mxu0 %v390
  %2047 = vmatpush.bf16.msra.mxu0 %v382
  %2048 = vmatpush.bf16.msra.mxu0 %v374
  %2049 = vmatpush.bf16.msra.mxu0 %v366
  %2050 = vmatmul.bf16.gmra.mxu0 %v1906
  %v2051 = vpop.f32.mrf.mxu0
  %v2052 = vadd.f32 0.0, %v2051
  %v2053 = vpop.f32.mrf.mxu0
  %2054 = vdwg.mxu0
  %2055 = vmatpush.bf16.msra.mxu0 0
  %2056 = vmatpush.bf16.msra.mxu0 0
  %2057 = vmatpush.bf16.msra.mxu0 0
  %2058 = vmatpush.bf16.msra.mxu0 0
  %2059 = vmatpush.bf16.msra.mxu0 0
  %2060 = vmatpush.bf16.msra.mxu0 0
  %2061 = vmatpush.bf16.msra.mxu0 %v438
  %2062 = vmatpush.bf16.msra.mxu0 %v430
  %2063 = vmatmul.bf16.gmra.mxu0 %v1910
  %v2064 = vpop.f32.mrf.mxu0
  %v2065 = vadd.f32 %v2052, %v2064
  %v2066 = vpop.f32.mrf.mxu0
  %2067 = vdwg.mxu0
  %2068 = vmatpush.bf16.msra.mxu0 %v423
  %2069 = vmatpush.bf16.msra.mxu0 %v415
  %2070 = vmatpush.bf16.msra.mxu0 %v407
  %2071 = vmatpush.bf16.msra.mxu0 %v399
  %2072 = vmatpush.bf16.msra.mxu0 %v391
  %2073 = vmatpush.bf16.msra.mxu0 %v383
  %2074 = vmatpush.bf16.msra.mxu0 %v375
  %2075 = vmatpush.bf16.msra.mxu0 %v367
  %2076 = vmatmul.bf16.gmra.mxu0 %v1906
  %v2077 = vpop.f32.mrf.mxu0
  %v2078 = vadd.f32 0.0, %v2077
  %v2079 = vpop.f32.mrf.mxu0
  %2080 = vdwg.mxu0
  %2081 = vmatpush.bf16.msra.mxu0 0
  %2082 = vmatpush.bf16.msra.mxu0 0
  %2083 = vmatpush.bf16.msra.mxu0 0
  %2084 = vmatpush.bf16.msra.mxu0 0
  %2085 = vmatpush.bf16.msra.mxu0 0
  %2086 = vmatpush.bf16.msra.mxu0 0
  %2087 = vmatpush.bf16.msra.mxu0 %v439
  %2088 = vmatpush.bf16.msra.mxu0 %v431
  %2089 = vmatmul.bf16.gmra.mxu0 %v1910
  %v2090 = vpop.f32.mrf.mxu0
  %v2091 = vadd.f32 %v2078, %v2090
  %v2092 = vpop.f32.mrf.mxu0
  %2093 = vdwg.mxu0
  %2094 = vmatpush.bf16.msra.mxu0 %v424
  %2095 = vmatpush.bf16.msra.mxu0 %v416
  %2096 = vmatpush.bf16.msra.mxu0 %v408
  %2097 = vmatpush.bf16.msra.mxu0 %v400
  %2098 = vmatpush.bf16.msra.mxu0 %v392
  %2099 = vmatpush.bf16.msra.mxu0 %v384
  %2100 = vmatpush.bf16.msra.mxu0 %v376
  %2101 = vmatpush.bf16.msra.mxu0 %v368
  %2102 = vmatmul.bf16.gmra.mxu0 %v1906
  %v2103 = vpop.f32.mrf.mxu0
  %v2104 = vadd.f32 0.0, %v2103
  %v2105 = vpop.f32.mrf.mxu0
  %2106 = vdwg.mxu0
  %2107 = vmatpush.bf16.msra.mxu0 0
  %2108 = vmatpush.bf16.msra.mxu0 0
  %2109 = vmatpush.bf16.msra.mxu0 0
  %2110 = vmatpush.bf16.msra.mxu0 0
  %2111 = vmatpush.bf16.msra.mxu0 0
  %2112 = vmatpush.bf16.msra.mxu0 0
  %2113 = vmatpush.bf16.msra.mxu0 %v440
  %2114 = vmatpush.bf16.msra.mxu0 %v432
  %2115 = vmatmul.bf16.gmra.mxu0 %v1910
  %v2116 = vpop.f32.mrf.mxu0
  %v2117 = vadd.f32 %v2104, %v2116
  %v2118 = vpop.f32.mrf.mxu0
  %2119 = vdwg.mxu0
  %s2120 = scalar_lea.vmem %s1, 24
  %v2121 = vld [vmem:[%s2120] sm:$0xff]
  %v2123 = vunpack.c.l.b16 %v2121
  %v2124 = vunpack.c.h.b16 %v2121
  %v2125 = vpack.c.b16 %v2123, %v2123
  %v2126 = vpack.c.b16 %v2124, %v2124
  %v2129 = vsel %vm521, %v2126, 0
  %2131 = vmatpush.bf16.msra.mxu0 %v417
  %2132 = vmatpush.bf16.msra.mxu0 %v409
  %2133 = vmatpush.bf16.msra.mxu0 %v401
  %2134 = vmatpush.bf16.msra.mxu0 %v393
  %2135 = vmatpush.bf16.msra.mxu0 %v385
  %2136 = vmatpush.bf16.msra.mxu0 %v377
  %2137 = vmatpush.bf16.msra.mxu0 %v369
  %2138 = vmatpush.bf16.msra.mxu0 %v361
  %2139 = vmatmul.bf16.gmra.mxu0 %v2125
  %v2140 = vpop.f32.mrf.mxu0
  %v2141 = vadd.f32 0.0, %v2140
  %v2142 = vpop.f32.mrf.mxu0
  %2143 = vdwg.mxu0
  %2144 = vmatpush.bf16.msra.mxu0 0
  %2145 = vmatpush.bf16.msra.mxu0 0
  %2146 = vmatpush.bf16.msra.mxu0 0
  %2147 = vmatpush.bf16.msra.mxu0 0
  %2148 = vmatpush.bf16.msra.mxu0 0
  %2149 = vmatpush.bf16.msra.mxu0 0
  %2150 = vmatpush.bf16.msra.mxu0 %v433
  %2151 = vmatpush.bf16.msra.mxu0 %v425
  %2152 = vmatmul.bf16.gmra.mxu0 %v2129
  %v2153 = vpop.f32.mrf.mxu0
  %v2154 = vadd.f32 %v2141, %v2153
  %v2155 = vpop.f32.mrf.mxu0
  %2156 = vdwg.mxu0
  %2157 = vmatpush.bf16.msra.mxu0 %v418
  %2158 = vmatpush.bf16.msra.mxu0 %v410
  %2159 = vmatpush.bf16.msra.mxu0 %v402
  %2160 = vmatpush.bf16.msra.mxu0 %v394
  %2161 = vmatpush.bf16.msra.mxu0 %v386
  %2162 = vmatpush.bf16.msra.mxu0 %v378
  %2163 = vmatpush.bf16.msra.mxu0 %v370
  %2164 = vmatpush.bf16.msra.mxu0 %v362
  %2165 = vmatmul.bf16.gmra.mxu0 %v2125
  %v2166 = vpop.f32.mrf.mxu0
  %v2167 = vadd.f32 0.0, %v2166
  %v2168 = vpop.f32.mrf.mxu0
  %2169 = vdwg.mxu0
  %2170 = vmatpush.bf16.msra.mxu0 0
  %2171 = vmatpush.bf16.msra.mxu0 0
  %2172 = vmatpush.bf16.msra.mxu0 0
  %2173 = vmatpush.bf16.msra.mxu0 0
  %2174 = vmatpush.bf16.msra.mxu0 0
  %2175 = vmatpush.bf16.msra.mxu0 0
  %2176 = vmatpush.bf16.msra.mxu0 %v434
  %2177 = vmatpush.bf16.msra.mxu0 %v426
  %2178 = vmatmul.bf16.gmra.mxu0 %v2129
  %v2179 = vpop.f32.mrf.mxu0
  %v2180 = vadd.f32 %v2167, %v2179
  %v2181 = vpop.f32.mrf.mxu0
  %2182 = vdwg.mxu0
  %2183 = vmatpush.bf16.msra.mxu0 %v419
  %2184 = vmatpush.bf16.msra.mxu0 %v411
  %2185 = vmatpush.bf16.msra.mxu0 %v403
  %2186 = vmatpush.bf16.msra.mxu0 %v395
  %2187 = vmatpush.bf16.msra.mxu0 %v387
  %2188 = vmatpush.bf16.msra.mxu0 %v379
  %2189 = vmatpush.bf16.msra.mxu0 %v371
  %2190 = vmatpush.bf16.msra.mxu0 %v363
  %2191 = vmatmul.bf16.gmra.mxu0 %v2125
  %v2192 = vpop.f32.mrf.mxu0
  %v2193 = vadd.f32 0.0, %v2192
  %v2194 = vpop.f32.mrf.mxu0
  %2195 = vdwg.mxu0
  %2196 = vmatpush.bf16.msra.mxu0 0
  %2197 = vmatpush.bf16.msra.mxu0 0
  %2198 = vmatpush.bf16.msra.mxu0 0
  %2199 = vmatpush.bf16.msra.mxu0 0
  %2200 = vmatpush.bf16.msra.mxu0 0
  %2201 = vmatpush.bf16.msra.mxu0 0
  %2202 = vmatpush.bf16.msra.mxu0 %v435
  %2203 = vmatpush.bf16.msra.mxu0 %v427
  %2204 = vmatmul.bf16.gmra.mxu0 %v2129
  %v2205 = vpop.f32.mrf.mxu0
  %v2206 = vadd.f32 %v2193, %v2205
  %v2207 = vpop.f32.mrf.mxu0
  %2208 = vdwg.mxu0
  %2209 = vmatpush.bf16.msra.mxu0 %v420
  %2210 = vmatpush.bf16.msra.mxu0 %v412
  %2211 = vmatpush.bf16.msra.mxu0 %v404
  %2212 = vmatpush.bf16.msra.mxu0 %v396
  %2213 = vmatpush.bf16.msra.mxu0 %v388
  %2214 = vmatpush.bf16.msra.mxu0 %v380
  %2215 = vmatpush.bf16.msra.mxu0 %v372
  %2216 = vmatpush.bf16.msra.mxu0 %v364
  %2217 = vmatmul.bf16.gmra.mxu0 %v2125
  %v2218 = vpop.f32.mrf.mxu0
  %v2219 = vadd.f32 0.0, %v2218
  %v2220 = vpop.f32.mrf.mxu0
  %2221 = vdwg.mxu0
  %2222 = vmatpush.bf16.msra.mxu0 0
  %2223 = vmatpush.bf16.msra.mxu0 0
  %2224 = vmatpush.bf16.msra.mxu0 0
  %2225 = vmatpush.bf16.msra.mxu0 0
  %2226 = vmatpush.bf16.msra.mxu0 0
  %2227 = vmatpush.bf16.msra.mxu0 0
  %2228 = vmatpush.bf16.msra.mxu0 %v436
  %2229 = vmatpush.bf16.msra.mxu0 %v428
  %2230 = vmatmul.bf16.gmra.mxu0 %v2129
  %v2231 = vpop.f32.mrf.mxu0
  %v2232 = vadd.f32 %v2219, %v2231
  %v2233 = vpop.f32.mrf.mxu0
  %2234 = vdwg.mxu0
  %2235 = vmatpush.bf16.msra.mxu0 %v421
  %2236 = vmatpush.bf16.msra.mxu0 %v413
  %2237 = vmatpush.bf16.msra.mxu0 %v405
  %2238 = vmatpush.bf16.msra.mxu0 %v397
  %2239 = vmatpush.bf16.msra.mxu0 %v389
  %2240 = vmatpush.bf16.msra.mxu0 %v381
  %2241 = vmatpush.bf16.msra.mxu0 %v373
  %2242 = vmatpush.bf16.msra.mxu0 %v365
  %2243 = vmatmul.bf16.gmra.mxu0 %v2125
  %v2244 = vpop.f32.mrf.mxu0
  %v2245 = vadd.f32 0.0, %v2244
  %v2246 = vpop.f32.mrf.mxu0
  %2247 = vdwg.mxu0
  %2248 = vmatpush.bf16.msra.mxu0 0
  %2249 = vmatpush.bf16.msra.mxu0 0
  %2250 = vmatpush.bf16.msra.mxu0 0
  %2251 = vmatpush.bf16.msra.mxu0 0
  %2252 = vmatpush.bf16.msra.mxu0 0
  %2253 = vmatpush.bf16.msra.mxu0 0
  %2254 = vmatpush.bf16.msra.mxu0 %v437
  %2255 = vmatpush.bf16.msra.mxu0 %v429
  %2256 = vmatmul.bf16.gmra.mxu0 %v2129
  %v2257 = vpop.f32.mrf.mxu0
  %v2258 = vadd.f32 %v2245, %v2257
  %v2259 = vpop.f32.mrf.mxu0
  %2260 = vdwg.mxu0
  %2261 = vmatpush.bf16.msra.mxu0 %v422
  %2262 = vmatpush.bf16.msra.mxu0 %v414
  %2263 = vmatpush.bf16.msra.mxu0 %v406
  %2264 = vmatpush.bf16.msra.mxu0 %v398
  %2265 = vmatpush.bf16.msra.mxu0 %v390
  %2266 = vmatpush.bf16.msra.mxu0 %v382
  %2267 = vmatpush.bf16.msra.mxu0 %v374
  %2268 = vmatpush.bf16.msra.mxu0 %v366
  %2269 = vmatmul.bf16.gmra.mxu0 %v2125
  %v2270 = vpop.f32.mrf.mxu0
  %v2271 = vadd.f32 0.0, %v2270
  %v2272 = vpop.f32.mrf.mxu0
  %2273 = vdwg.mxu0
  %2274 = vmatpush.bf16.msra.mxu0 0
  %2275 = vmatpush.bf16.msra.mxu0 0
  %2276 = vmatpush.bf16.msra.mxu0 0
  %2277 = vmatpush.bf16.msra.mxu0 0
  %2278 = vmatpush.bf16.msra.mxu0 0
  %2279 = vmatpush.bf16.msra.mxu0 0
  %2280 = vmatpush.bf16.msra.mxu0 %v438
  %2281 = vmatpush.bf16.msra.mxu0 %v430
  %2282 = vmatmul.bf16.gmra.mxu0 %v2129
  %v2283 = vpop.f32.mrf.mxu0
  %v2284 = vadd.f32 %v2271, %v2283
  %v2285 = vpop.f32.mrf.mxu0
  %2286 = vdwg.mxu0
  %2287 = vmatpush.bf16.msra.mxu0 %v423
  %2288 = vmatpush.bf16.msra.mxu0 %v415
  %2289 = vmatpush.bf16.msra.mxu0 %v407
  %2290 = vmatpush.bf16.msra.mxu0 %v399
  %2291 = vmatpush.bf16.msra.mxu0 %v391
  %2292 = vmatpush.bf16.msra.mxu0 %v383
  %2293 = vmatpush.bf16.msra.mxu0 %v375
  %2294 = vmatpush.bf16.msra.mxu0 %v367
  %2295 = vmatmul.bf16.gmra.mxu0 %v2125
  %v2296 = vpop.f32.mrf.mxu0
  %v2297 = vadd.f32 0.0, %v2296
  %v2298 = vpop.f32.mrf.mxu0
  %2299 = vdwg.mxu0
  %2300 = vmatpush.bf16.msra.mxu0 0
  %2301 = vmatpush.bf16.msra.mxu0 0
  %2302 = vmatpush.bf16.msra.mxu0 0
  %2303 = vmatpush.bf16.msra.mxu0 0
  %2304 = vmatpush.bf16.msra.mxu0 0
  %2305 = vmatpush.bf16.msra.mxu0 0
  %2306 = vmatpush.bf16.msra.mxu0 %v439
  %2307 = vmatpush.bf16.msra.mxu0 %v431
  %2308 = vmatmul.bf16.gmra.mxu0 %v2129
  %v2309 = vpop.f32.mrf.mxu0
  %v2310 = vadd.f32 %v2297, %v2309
  %v2311 = vpop.f32.mrf.mxu0
  %2312 = vdwg.mxu0
  %2313 = vmatpush.bf16.msra.mxu0 %v424
  %2314 = vmatpush.bf16.msra.mxu0 %v416
  %2315 = vmatpush.bf16.msra.mxu0 %v408
  %2316 = vmatpush.bf16.msra.mxu0 %v400
  %2317 = vmatpush.bf16.msra.mxu0 %v392
  %2318 = vmatpush.bf16.msra.mxu0 %v384
  %2319 = vmatpush.bf16.msra.mxu0 %v376
  %2320 = vmatpush.bf16.msra.mxu0 %v368
  %2321 = vmatmul.bf16.gmra.mxu0 %v2125
  %v2322 = vpop.f32.mrf.mxu0
  %v2323 = vadd.f32 0.0, %v2322
  %v2324 = vpop.f32.mrf.mxu0
  %2325 = vdwg.mxu0
  %2326 = vmatpush.bf16.msra.mxu0 0
  %2327 = vmatpush.bf16.msra.mxu0 0
  %2328 = vmatpush.bf16.msra.mxu0 0
  %2329 = vmatpush.bf16.msra.mxu0 0
  %2330 = vmatpush.bf16.msra.mxu0 0
  %2331 = vmatpush.bf16.msra.mxu0 0
  %2332 = vmatpush.bf16.msra.mxu0 %v440
  %2333 = vmatpush.bf16.msra.mxu0 %v432
  %2334 = vmatmul.bf16.gmra.mxu0 %v2129
  %v2335 = vpop.f32.mrf.mxu0
  %v2336 = vadd.f32 %v2323, %v2335
  %v2337 = vpop.f32.mrf.mxu0
  %2338 = vdwg.mxu0
  %v2339 = vmax.f32 %v1935, %v2039
  %v2340 = vmax.f32 %v1961, %v2065
  %v2341 = vmax.f32 %v1987, %v2091
  %v2342 = vmax.f32 %v2013, %v2117
  %v2343 = vmax.f32 %v2154, %v2258
  %v2344 = vmax.f32 %v2180, %v2284
  %v2345 = vmax.f32 %v2206, %v2310
  %v2346 = vmax.f32 %v2232, %v2336
  %v2347 = vmax.f32 %v2339, %v2343
  %v2348 = vmax.f32 %v2340, %v2344
  %v2349 = vmax.f32 %v2341, %v2345
  %v2350 = vmax.f32 %v2342, %v2346
  %v2351 = vadd.f32 %v2347, %v106
  %v2352 = vadd.f32 %v2348, %v107
  %v2353 = vadd.f32 %v2349, %v108
  %v2354 = vadd.f32 %v2350, %v109
  %v2355 = vmax.f32 %v2351, 0.0
  %v2356 = vmax.f32 %v2352, 0.0
  %v2357 = vmax.f32 %v2353, 0.0
  %v2358 = vmax.f32 %v2354, 0.0
  %v2359 = vpack.c.bf16 %v2356, %v2355
  %v2360 = vpack.c.bf16 %v2358, %v2357
  %s2361 = scalar_lea.vmem [#allocation2], 48
  %2362 = vst [vmem:[%s2361] sm:$0xff] %v2359
  %2363 = vst [vmem:[%s2361 + $0x8] sm:$0xff] %v2360
  %s2364 = scalar_lea.vmem %s0, 32
  %v2365 = vld [vmem:[%s2364] sm:$0xff]
  %v2367 = vunpack.c.l.b16 %v2365
  %v2368 = vunpack.c.h.b16 %v2365
  %v2369 = vpack.c.b16 %v2367, %v2367
  %v2370 = vpack.c.b16 %v2368, %v2368
  %v2373 = vsel %vm521, %v2370, 0
  %2375 = vmatpush.bf16.msra.mxu0 %v417
  %2376 = vmatpush.bf16.msra.mxu0 %v409
  %2377 = vmatpush.bf16.msra.mxu0 %v401
  %2378 = vmatpush.bf16.msra.mxu0 %v393
  %2379 = vmatpush.bf16.msra.mxu0 %v385
  %2380 = vmatpush.bf16.msra.mxu0 %v377
  %2381 = vmatpush.bf16.msra.mxu0 %v369
  %2382 = vmatpush.bf16.msra.mxu0 %v361
  %2383 = vmatmul.bf16.gmra.mxu0 %v2369
  %v2384 = vpop.f32.mrf.mxu0
  %v2385 = vadd.f32 0.0, %v2384
  %v2386 = vpop.f32.mrf.mxu0
  %2387 = vdwg.mxu0
  %2388 = vmatpush.bf16.msra.mxu0 0
  %2389 = vmatpush.bf16.msra.mxu0 0
  %2390 = vmatpush.bf16.msra.mxu0 0
  %2391 = vmatpush.bf16.msra.mxu0 0
  %2392 = vmatpush.bf16.msra.mxu0 0
  %2393 = vmatpush.bf16.msra.mxu0 0
  %2394 = vmatpush.bf16.msra.mxu0 %v433
  %2395 = vmatpush.bf16.msra.mxu0 %v425
  %2396 = vmatmul.bf16.gmra.mxu0 %v2373
  %v2397 = vpop.f32.mrf.mxu0
  %v2398 = vadd.f32 %v2385, %v2397
  %v2399 = vpop.f32.mrf.mxu0
  %2400 = vdwg.mxu0
  %2401 = vmatpush.bf16.msra.mxu0 %v418
  %2402 = vmatpush.bf16.msra.mxu0 %v410
  %2403 = vmatpush.bf16.msra.mxu0 %v402
  %2404 = vmatpush.bf16.msra.mxu0 %v394
  %2405 = vmatpush.bf16.msra.mxu0 %v386
  %2406 = vmatpush.bf16.msra.mxu0 %v378
  %2407 = vmatpush.bf16.msra.mxu0 %v370
  %2408 = vmatpush.bf16.msra.mxu0 %v362
  %2409 = vmatmul.bf16.gmra.mxu0 %v2369
  %v2410 = vpop.f32.mrf.mxu0
  %v2411 = vadd.f32 0.0, %v2410
  %v2412 = vpop.f32.mrf.mxu0
  %2413 = vdwg.mxu0
  %2414 = vmatpush.bf16.msra.mxu0 0
  %2415 = vmatpush.bf16.msra.mxu0 0
  %2416 = vmatpush.bf16.msra.mxu0 0
  %2417 = vmatpush.bf16.msra.mxu0 0
  %2418 = vmatpush.bf16.msra.mxu0 0
  %2419 = vmatpush.bf16.msra.mxu0 0
  %2420 = vmatpush.bf16.msra.mxu0 %v434
  %2421 = vmatpush.bf16.msra.mxu0 %v426
  %2422 = vmatmul.bf16.gmra.mxu0 %v2373
  %v2423 = vpop.f32.mrf.mxu0
  %v2424 = vadd.f32 %v2411, %v2423
  %v2425 = vpop.f32.mrf.mxu0
  %2426 = vdwg.mxu0
  %2427 = vmatpush.bf16.msra.mxu0 %v419
  %2428 = vmatpush.bf16.msra.mxu0 %v411
  %2429 = vmatpush.bf16.msra.mxu0 %v403
  %2430 = vmatpush.bf16.msra.mxu0 %v395
  %2431 = vmatpush.bf16.msra.mxu0 %v387
  %2432 = vmatpush.bf16.msra.mxu0 %v379
  %2433 = vmatpush.bf16.msra.mxu0 %v371
  %2434 = vmatpush.bf16.msra.mxu0 %v363
  %2435 = vmatmul.bf16.gmra.mxu0 %v2369
  %v2436 = vpop.f32.mrf.mxu0
  %v2437 = vadd.f32 0.0, %v2436
  %v2438 = vpop.f32.mrf.mxu0
  %2439 = vdwg.mxu0
  %2440 = vmatpush.bf16.msra.mxu0 0
  %2441 = vmatpush.bf16.msra.mxu0 0
  %2442 = vmatpush.bf16.msra.mxu0 0
  %2443 = vmatpush.bf16.msra.mxu0 0
  %2444 = vmatpush.bf16.msra.mxu0 0
  %2445 = vmatpush.bf16.msra.mxu0 0
  %2446 = vmatpush.bf16.msra.mxu0 %v435
  %2447 = vmatpush.bf16.msra.mxu0 %v427
  %2448 = vmatmul.bf16.gmra.mxu0 %v2373
  %v2449 = vpop.f32.mrf.mxu0
  %v2450 = vadd.f32 %v2437, %v2449
  %v2451 = vpop.f32.mrf.mxu0
  %2452 = vdwg.mxu0
  %2453 = vmatpush.bf16.msra.mxu0 %v420
  %2454 = vmatpush.bf16.msra.mxu0 %v412
  %2455 = vmatpush.bf16.msra.mxu0 %v404
  %2456 = vmatpush.bf16.msra.mxu0 %v396
  %2457 = vmatpush.bf16.msra.mxu0 %v388
  %2458 = vmatpush.bf16.msra.mxu0 %v380
  %2459 = vmatpush.bf16.msra.mxu0 %v372
  %2460 = vmatpush.bf16.msra.mxu0 %v364
  %2461 = vmatmul.bf16.gmra.mxu0 %v2369
  %v2462 = vpop.f32.mrf.mxu0
  %v2463 = vadd.f32 0.0, %v2462
  %v2464 = vpop.f32.mrf.mxu0
  %2465 = vdwg.mxu0
  %2466 = vmatpush.bf16.msra.mxu0 0
  %2467 = vmatpush.bf16.msra.mxu0 0
  %2468 = vmatpush.bf16.msra.mxu0 0
  %2469 = vmatpush.bf16.msra.mxu0 0
  %2470 = vmatpush.bf16.msra.mxu0 0
  %2471 = vmatpush.bf16.msra.mxu0 0
  %2472 = vmatpush.bf16.msra.mxu0 %v436
  %2473 = vmatpush.bf16.msra.mxu0 %v428
  %2474 = vmatmul.bf16.gmra.mxu0 %v2373
  %v2475 = vpop.f32.mrf.mxu0
  %v2476 = vadd.f32 %v2463, %v2475
  %v2477 = vpop.f32.mrf.mxu0
  %2478 = vdwg.mxu0
  %2479 = vmatpush.bf16.msra.mxu0 %v421
  %2480 = vmatpush.bf16.msra.mxu0 %v413
  %2481 = vmatpush.bf16.msra.mxu0 %v405
  %2482 = vmatpush.bf16.msra.mxu0 %v397
  %2483 = vmatpush.bf16.msra.mxu0 %v389
  %2484 = vmatpush.bf16.msra.mxu0 %v381
  %2485 = vmatpush.bf16.msra.mxu0 %v373
  %2486 = vmatpush.bf16.msra.mxu0 %v365
  %2487 = vmatmul.bf16.gmra.mxu0 %v2369
  %v2488 = vpop.f32.mrf.mxu0
  %v2489 = vadd.f32 0.0, %v2488
  %v2490 = vpop.f32.mrf.mxu0
  %2491 = vdwg.mxu0
  %2492 = vmatpush.bf16.msra.mxu0 0
  %2493 = vmatpush.bf16.msra.mxu0 0
  %2494 = vmatpush.bf16.msra.mxu0 0
  %2495 = vmatpush.bf16.msra.mxu0 0
  %2496 = vmatpush.bf16.msra.mxu0 0
  %2497 = vmatpush.bf16.msra.mxu0 0
  %2498 = vmatpush.bf16.msra.mxu0 %v437
  %2499 = vmatpush.bf16.msra.mxu0 %v429
  %2500 = vmatmul.bf16.gmra.mxu0 %v2373
  %v2501 = vpop.f32.mrf.mxu0
  %v2502 = vadd.f32 %v2489, %v2501
  %v2503 = vpop.f32.mrf.mxu0
  %2504 = vdwg.mxu0
  %2505 = vmatpush.bf16.msra.mxu0 %v422
  %2506 = vmatpush.bf16.msra.mxu0 %v414
  %2507 = vmatpush.bf16.msra.mxu0 %v406
  %2508 = vmatpush.bf16.msra.mxu0 %v398
  %2509 = vmatpush.bf16.msra.mxu0 %v390
  %2510 = vmatpush.bf16.msra.mxu0 %v382
  %2511 = vmatpush.bf16.msra.mxu0 %v374
  %2512 = vmatpush.bf16.msra.mxu0 %v366
  %2513 = vmatmul.bf16.gmra.mxu0 %v2369
  %v2514 = vpop.f32.mrf.mxu0
  %v2515 = vadd.f32 0.0, %v2514
  %v2516 = vpop.f32.mrf.mxu0
  %2517 = vdwg.mxu0
  %2518 = vmatpush.bf16.msra.mxu0 0
  %2519 = vmatpush.bf16.msra.mxu0 0
  %2520 = vmatpush.bf16.msra.mxu0 0
  %2521 = vmatpush.bf16.msra.mxu0 0
  %2522 = vmatpush.bf16.msra.mxu0 0
  %2523 = vmatpush.bf16.msra.mxu0 0
  %2524 = vmatpush.bf16.msra.mxu0 %v438
  %2525 = vmatpush.bf16.msra.mxu0 %v430
  %2526 = vmatmul.bf16.gmra.mxu0 %v2373
  %v2527 = vpop.f32.mrf.mxu0
  %v2528 = vadd.f32 %v2515, %v2527
  %v2529 = vpop.f32.mrf.mxu0
  %2530 = vdwg.mxu0
  %2531 = vmatpush.bf16.msra.mxu0 %v423
  %2532 = vmatpush.bf16.msra.mxu0 %v415
  %2533 = vmatpush.bf16.msra.mxu0 %v407
  %2534 = vmatpush.bf16.msra.mxu0 %v399
  %2535 = vmatpush.bf16.msra.mxu0 %v391
  %2536 = vmatpush.bf16.msra.mxu0 %v383
  %2537 = vmatpush.bf16.msra.mxu0 %v375
  %2538 = vmatpush.bf16.msra.mxu0 %v367
  %2539 = vmatmul.bf16.gmra.mxu0 %v2369
  %v2540 = vpop.f32.mrf.mxu0
  %v2541 = vadd.f32 0.0, %v2540
  %v2542 = vpop.f32.mrf.mxu0
  %2543 = vdwg.mxu0
  %2544 = vmatpush.bf16.msra.mxu0 0
  %2545 = vmatpush.bf16.msra.mxu0 0
  %2546 = vmatpush.bf16.msra.mxu0 0
  %2547 = vmatpush.bf16.msra.mxu0 0
  %2548 = vmatpush.bf16.msra.mxu0 0
  %2549 = vmatpush.bf16.msra.mxu0 0
  %2550 = vmatpush.bf16.msra.mxu0 %v439
  %2551 = vmatpush.bf16.msra.mxu0 %v431
  %2552 = vmatmul.bf16.gmra.mxu0 %v2373
  %v2553 = vpop.f32.mrf.mxu0
  %v2554 = vadd.f32 %v2541, %v2553
  %v2555 = vpop.f32.mrf.mxu0
  %2556 = vdwg.mxu0
  %2557 = vmatpush.bf16.msra.mxu0 %v424
  %2558 = vmatpush.bf16.msra.mxu0 %v416
  %2559 = vmatpush.bf16.msra.mxu0 %v408
  %2560 = vmatpush.bf16.msra.mxu0 %v400
  %2561 = vmatpush.bf16.msra.mxu0 %v392
  %2562 = vmatpush.bf16.msra.mxu0 %v384
  %2563 = vmatpush.bf16.msra.mxu0 %v376
  %2564 = vmatpush.bf16.msra.mxu0 %v368
  %2565 = vmatmul.bf16.gmra.mxu0 %v2369
  %v2566 = vpop.f32.mrf.mxu0
  %v2567 = vadd.f32 0.0, %v2566
  %v2568 = vpop.f32.mrf.mxu0
  %2569 = vdwg.mxu0
  %2570 = vmatpush.bf16.msra.mxu0 0
  %2571 = vmatpush.bf16.msra.mxu0 0
  %2572 = vmatpush.bf16.msra.mxu0 0
  %2573 = vmatpush.bf16.msra.mxu0 0
  %2574 = vmatpush.bf16.msra.mxu0 0
  %2575 = vmatpush.bf16.msra.mxu0 0
  %2576 = vmatpush.bf16.msra.mxu0 %v440
  %2577 = vmatpush.bf16.msra.mxu0 %v432
  %2578 = vmatmul.bf16.gmra.mxu0 %v2373
  %v2579 = vpop.f32.mrf.mxu0
  %v2580 = vadd.f32 %v2567, %v2579
  %v2581 = vpop.f32.mrf.mxu0
  %2582 = vdwg.mxu0
  %s2583 = scalar_lea.vmem %s1, 32
  %v2584 = vld [vmem:[%s2583] sm:$0xff]
  %v2586 = vunpack.c.l.b16 %v2584
  %v2587 = vunpack.c.h.b16 %v2584
  %v2588 = vpack.c.b16 %v2586, %v2586
  %v2589 = vpack.c.b16 %v2587, %v2587
  %v2592 = vsel %vm521, %v2589, 0
  %2594 = vmatpush.bf16.msra.mxu0 %v417
  %2595 = vmatpush.bf16.msra.mxu0 %v409
  %2596 = vmatpush.bf16.msra.mxu0 %v401
  %2597 = vmatpush.bf16.msra.mxu0 %v393
  %2598 = vmatpush.bf16.msra.mxu0 %v385
  %2599 = vmatpush.bf16.msra.mxu0 %v377
  %2600 = vmatpush.bf16.msra.mxu0 %v369
  %2601 = vmatpush.bf16.msra.mxu0 %v361
  %2602 = vmatmul.bf16.gmra.mxu0 %v2588
  %v2603 = vpop.f32.mrf.mxu0
  %v2604 = vadd.f32 0.0, %v2603
  %v2605 = vpop.f32.mrf.mxu0
  %2606 = vdwg.mxu0
  %2607 = vmatpush.bf16.msra.mxu0 0
  %2608 = vmatpush.bf16.msra.mxu0 0
  %2609 = vmatpush.bf16.msra.mxu0 0
  %2610 = vmatpush.bf16.msra.mxu0 0
  %2611 = vmatpush.bf16.msra.mxu0 0
  %2612 = vmatpush.bf16.msra.mxu0 0
  %2613 = vmatpush.bf16.msra.mxu0 %v433
  %2614 = vmatpush.bf16.msra.mxu0 %v425
  %2615 = vmatmul.bf16.gmra.mxu0 %v2592
  %v2616 = vpop.f32.mrf.mxu0
  %v2617 = vadd.f32 %v2604, %v2616
  %v2618 = vpop.f32.mrf.mxu0
  %2619 = vdwg.mxu0
  %2620 = vmatpush.bf16.msra.mxu0 %v418
  %2621 = vmatpush.bf16.msra.mxu0 %v410
  %2622 = vmatpush.bf16.msra.mxu0 %v402
  %2623 = vmatpush.bf16.msra.mxu0 %v394
  %2624 = vmatpush.bf16.msra.mxu0 %v386
  %2625 = vmatpush.bf16.msra.mxu0 %v378
  %2626 = vmatpush.bf16.msra.mxu0 %v370
  %2627 = vmatpush.bf16.msra.mxu0 %v362
  %2628 = vmatmul.bf16.gmra.mxu0 %v2588
  %v2629 = vpop.f32.mrf.mxu0
  %v2630 = vadd.f32 0.0, %v2629
  %v2631 = vpop.f32.mrf.mxu0
  %2632 = vdwg.mxu0
  %2633 = vmatpush.bf16.msra.mxu0 0
  %2634 = vmatpush.bf16.msra.mxu0 0
  %2635 = vmatpush.bf16.msra.mxu0 0
  %2636 = vmatpush.bf16.msra.mxu0 0
  %2637 = vmatpush.bf16.msra.mxu0 0
  %2638 = vmatpush.bf16.msra.mxu0 0
  %2639 = vmatpush.bf16.msra.mxu0 %v434
  %2640 = vmatpush.bf16.msra.mxu0 %v426
  %2641 = vmatmul.bf16.gmra.mxu0 %v2592
  %v2642 = vpop.f32.mrf.mxu0
  %v2643 = vadd.f32 %v2630, %v2642
  %v2644 = vpop.f32.mrf.mxu0
  %2645 = vdwg.mxu0
  %2646 = vmatpush.bf16.msra.mxu0 %v419
  %2647 = vmatpush.bf16.msra.mxu0 %v411
  %2648 = vmatpush.bf16.msra.mxu0 %v403
  %2649 = vmatpush.bf16.msra.mxu0 %v395
  %2650 = vmatpush.bf16.msra.mxu0 %v387
  %2651 = vmatpush.bf16.msra.mxu0 %v379
  %2652 = vmatpush.bf16.msra.mxu0 %v371
  %2653 = vmatpush.bf16.msra.mxu0 %v363
  %2654 = vmatmul.bf16.gmra.mxu0 %v2588
  %v2655 = vpop.f32.mrf.mxu0
  %v2656 = vadd.f32 0.0, %v2655
  %v2657 = vpop.f32.mrf.mxu0
  %2658 = vdwg.mxu0
  %2659 = vmatpush.bf16.msra.mxu0 0
  %2660 = vmatpush.bf16.msra.mxu0 0
  %2661 = vmatpush.bf16.msra.mxu0 0
  %2662 = vmatpush.bf16.msra.mxu0 0
  %2663 = vmatpush.bf16.msra.mxu0 0
  %2664 = vmatpush.bf16.msra.mxu0 0
  %2665 = vmatpush.bf16.msra.mxu0 %v435
  %2666 = vmatpush.bf16.msra.mxu0 %v427
  %2667 = vmatmul.bf16.gmra.mxu0 %v2592
  %v2668 = vpop.f32.mrf.mxu0
  %v2669 = vadd.f32 %v2656, %v2668
  %v2670 = vpop.f32.mrf.mxu0
  %2671 = vdwg.mxu0
  %2672 = vmatpush.bf16.msra.mxu0 %v420
  %2673 = vmatpush.bf16.msra.mxu0 %v412
  %2674 = vmatpush.bf16.msra.mxu0 %v404
  %2675 = vmatpush.bf16.msra.mxu0 %v396
  %2676 = vmatpush.bf16.msra.mxu0 %v388
  %2677 = vmatpush.bf16.msra.mxu0 %v380
  %2678 = vmatpush.bf16.msra.mxu0 %v372
  %2679 = vmatpush.bf16.msra.mxu0 %v364
  %2680 = vmatmul.bf16.gmra.mxu0 %v2588
  %v2681 = vpop.f32.mrf.mxu0
  %v2682 = vadd.f32 0.0, %v2681
  %v2683 = vpop.f32.mrf.mxu0
  %2684 = vdwg.mxu0
  %2685 = vmatpush.bf16.msra.mxu0 0
  %2686 = vmatpush.bf16.msra.mxu0 0
  %2687 = vmatpush.bf16.msra.mxu0 0
  %2688 = vmatpush.bf16.msra.mxu0 0
  %2689 = vmatpush.bf16.msra.mxu0 0
  %2690 = vmatpush.bf16.msra.mxu0 0
  %2691 = vmatpush.bf16.msra.mxu0 %v436
  %2692 = vmatpush.bf16.msra.mxu0 %v428
  %2693 = vmatmul.bf16.gmra.mxu0 %v2592
  %v2694 = vpop.f32.mrf.mxu0
  %v2695 = vadd.f32 %v2682, %v2694
  %v2696 = vpop.f32.mrf.mxu0
  %2697 = vdwg.mxu0
  %2698 = vmatpush.bf16.msra.mxu0 %v421
  %2699 = vmatpush.bf16.msra.mxu0 %v413
  %2700 = vmatpush.bf16.msra.mxu0 %v405
  %2701 = vmatpush.bf16.msra.mxu0 %v397
  %2702 = vmatpush.bf16.msra.mxu0 %v389
  %2703 = vmatpush.bf16.msra.mxu0 %v381
  %2704 = vmatpush.bf16.msra.mxu0 %v373
  %2705 = vmatpush.bf16.msra.mxu0 %v365
  %2706 = vmatmul.bf16.gmra.mxu0 %v2588
  %v2707 = vpop.f32.mrf.mxu0
  %v2708 = vadd.f32 0.0, %v2707
  %v2709 = vpop.f32.mrf.mxu0
  %2710 = vdwg.mxu0
  %2711 = vmatpush.bf16.msra.mxu0 0
  %2712 = vmatpush.bf16.msra.mxu0 0
  %2713 = vmatpush.bf16.msra.mxu0 0
  %2714 = vmatpush.bf16.msra.mxu0 0
  %2715 = vmatpush.bf16.msra.mxu0 0
  %2716 = vmatpush.bf16.msra.mxu0 0
  %2717 = vmatpush.bf16.msra.mxu0 %v437
  %2718 = vmatpush.bf16.msra.mxu0 %v429
  %2719 = vmatmul.bf16.gmra.mxu0 %v2592
  %v2720 = vpop.f32.mrf.mxu0
  %v2721 = vadd.f32 %v2708, %v2720
  %v2722 = vpop.f32.mrf.mxu0
  %2723 = vdwg.mxu0
  %2724 = vmatpush.bf16.msra.mxu0 %v422
  %2725 = vmatpush.bf16.msra.mxu0 %v414
  %2726 = vmatpush.bf16.msra.mxu0 %v406
  %2727 = vmatpush.bf16.msra.mxu0 %v398
  %2728 = vmatpush.bf16.msra.mxu0 %v390
  %2729 = vmatpush.bf16.msra.mxu0 %v382
  %2730 = vmatpush.bf16.msra.mxu0 %v374
  %2731 = vmatpush.bf16.msra.mxu0 %v366
  %2732 = vmatmul.bf16.gmra.mxu0 %v2588
  %v2733 = vpop.f32.mrf.mxu0
  %v2734 = vadd.f32 0.0, %v2733
  %v2735 = vpop.f32.mrf.mxu0
  %2736 = vdwg.mxu0
  %2737 = vmatpush.bf16.msra.mxu0 0
  %2738 = vmatpush.bf16.msra.mxu0 0
  %2739 = vmatpush.bf16.msra.mxu0 0
  %2740 = vmatpush.bf16.msra.mxu0 0
  %2741 = vmatpush.bf16.msra.mxu0 0
  %2742 = vmatpush.bf16.msra.mxu0 0
  %2743 = vmatpush.bf16.msra.mxu0 %v438
  %2744 = vmatpush.bf16.msra.mxu0 %v430
  %2745 = vmatmul.bf16.gmra.mxu0 %v2592
  %v2746 = vpop.f32.mrf.mxu0
  %v2747 = vadd.f32 %v2734, %v2746
  %v2748 = vpop.f32.mrf.mxu0
  %2749 = vdwg.mxu0
  %2750 = vmatpush.bf16.msra.mxu0 %v423
  %2751 = vmatpush.bf16.msra.mxu0 %v415
  %2752 = vmatpush.bf16.msra.mxu0 %v407
  %2753 = vmatpush.bf16.msra.mxu0 %v399
  %2754 = vmatpush.bf16.msra.mxu0 %v391
  %2755 = vmatpush.bf16.msra.mxu0 %v383
  %2756 = vmatpush.bf16.msra.mxu0 %v375
  %2757 = vmatpush.bf16.msra.mxu0 %v367
  %2758 = vmatmul.bf16.gmra.mxu0 %v2588
  %v2759 = vpop.f32.mrf.mxu0
  %v2760 = vadd.f32 0.0, %v2759
  %v2761 = vpop.f32.mrf.mxu0
  %2762 = vdwg.mxu0
  %2763 = vmatpush.bf16.msra.mxu0 0
  %2764 = vmatpush.bf16.msra.mxu0 0
  %2765 = vmatpush.bf16.msra.mxu0 0
  %2766 = vmatpush.bf16.msra.mxu0 0
  %2767 = vmatpush.bf16.msra.mxu0 0
  %2768 = vmatpush.bf16.msra.mxu0 0
  %2769 = vmatpush.bf16.msra.mxu0 %v439
  %2770 = vmatpush.bf16.msra.mxu0 %v431
  %2771 = vmatmul.bf16.gmra.mxu0 %v2592
  %v2772 = vpop.f32.mrf.mxu0
  %v2773 = vadd.f32 %v2760, %v2772
  %v2774 = vpop.f32.mrf.mxu0
  %2775 = vdwg.mxu0
  %2776 = vmatpush.bf16.msra.mxu0 %v424
  %2777 = vmatpush.bf16.msra.mxu0 %v416
  %2778 = vmatpush.bf16.msra.mxu0 %v408
  %2779 = vmatpush.bf16.msra.mxu0 %v400
  %2780 = vmatpush.bf16.msra.mxu0 %v392
  %2781 = vmatpush.bf16.msra.mxu0 %v384
  %2782 = vmatpush.bf16.msra.mxu0 %v376
  %2783 = vmatpush.bf16.msra.mxu0 %v368
  %2784 = vmatmul.bf16.gmra.mxu0 %v2588
  %v2785 = vpop.f32.mrf.mxu0
  %v2786 = vadd.f32 0.0, %v2785
  %v2787 = vpop.f32.mrf.mxu0
  %2788 = vdwg.mxu0
  %2789 = vmatpush.bf16.msra.mxu0 0
  %2790 = vmatpush.bf16.msra.mxu0 0
  %2791 = vmatpush.bf16.msra.mxu0 0
  %2792 = vmatpush.bf16.msra.mxu0 0
  %2793 = vmatpush.bf16.msra.mxu0 0
  %2794 = vmatpush.bf16.msra.mxu0 0
  %2795 = vmatpush.bf16.msra.mxu0 %v440
  %2796 = vmatpush.bf16.msra.mxu0 %v432
  %2797 = vmatmul.bf16.gmra.mxu0 %v2592
  %v2798 = vpop.f32.mrf.mxu0
  %v2799 = vadd.f32 %v2786, %v2798
  %v2800 = vpop.f32.mrf.mxu0
  %2801 = vdwg.mxu0
  %v2802 = vmax.f32 %v2398, %v2502
  %v2803 = vmax.f32 %v2424, %v2528
  %v2804 = vmax.f32 %v2450, %v2554
  %v2805 = vmax.f32 %v2476, %v2580
  %v2806 = vmax.f32 %v2617, %v2721
  %v2807 = vmax.f32 %v2643, %v2747
  %v2808 = vmax.f32 %v2669, %v2773
  %v2809 = vmax.f32 %v2695, %v2799
  %v2810 = vmax.f32 %v2802, %v2806
  %v2811 = vmax.f32 %v2803, %v2807
  %v2812 = vmax.f32 %v2804, %v2808
  %v2813 = vmax.f32 %v2805, %v2809
  %v2814 = vadd.f32 %v2810, %v106
  %v2815 = vadd.f32 %v2811, %v107
  %v2816 = vadd.f32 %v2812, %v108
  %v2817 = vadd.f32 %v2813, %v109
  %v2818 = vmax.f32 %v2814, 0.0
  %v2819 = vmax.f32 %v2815, 0.0
  %v2820 = vmax.f32 %v2816, 0.0
  %v2821 = vmax.f32 %v2817, 0.0
  %v2822 = vpack.c.bf16 %v2819, %v2818
  %v2823 = vpack.c.bf16 %v2821, %v2820
  %s2824 = scalar_lea.vmem [#allocation2], 64
  %2825 = vst [vmem:[%s2824] sm:$0xff] %v2822
  %2826 = vst [vmem:[%s2824 + $0x8] sm:$0xff] %v2823
  %s2827 = scalar_lea.vmem %s0, 40
  %v2828 = vld [vmem:[%s2827] sm:$0xff]
  %v2830 = vunpack.c.l.b16 %v2828
  %v2831 = vunpack.c.h.b16 %v2828
  %v2832 = vpack.c.b16 %v2830, %v2830
  %v2833 = vpack.c.b16 %v2831, %v2831
  %v2836 = vsel %vm521, %v2833, 0
  %2838 = vmatpush.bf16.msra.mxu0 %v417
  %2839 = vmatpush.bf16.msra.mxu0 %v409
  %2840 = vmatpush.bf16.msra.mxu0 %v401
  %2841 = vmatpush.bf16.msra.mxu0 %v393
  %2842 = vmatpush.bf16.msra.mxu0 %v385
  %2843 = vmatpush.bf16.msra.mxu0 %v377
  %2844 = vmatpush.bf16.msra.mxu0 %v369
  %2845 = vmatpush.bf16.msra.mxu0 %v361
  %2846 = vmatmul.bf16.gmra.mxu0 %v2832
  %v2847 = vpop.f32.mrf.mxu0
  %v2848 = vadd.f32 0.0, %v2847
  %v2849 = vpop.f32.mrf.mxu0
  %2850 = vdwg.mxu0
  %2851 = vmatpush.bf16.msra.mxu0 0
  %2852 = vmatpush.bf16.msra.mxu0 0
  %2853 = vmatpush.bf16.msra.mxu0 0
  %2854 = vmatpush.bf16.msra.mxu0 0
  %2855 = vmatpush.bf16.msra.mxu0 0
  %2856 = vmatpush.bf16.msra.mxu0 0
  %2857 = vmatpush.bf16.msra.mxu0 %v433
  %2858 = vmatpush.bf16.msra.mxu0 %v425
  %2859 = vmatmul.bf16.gmra.mxu0 %v2836
  %v2860 = vpop.f32.mrf.mxu0
  %v2861 = vadd.f32 %v2848, %v2860
  %v2862 = vpop.f32.mrf.mxu0
  %2863 = vdwg.mxu0
  %2864 = vmatpush.bf16.msra.mxu0 %v418
  %2865 = vmatpush.bf16.msra.mxu0 %v410
  %2866 = vmatpush.bf16.msra.mxu0 %v402
  %2867 = vmatpush.bf16.msra.mxu0 %v394
  %2868 = vmatpush.bf16.msra.mxu0 %v386
  %2869 = vmatpush.bf16.msra.mxu0 %v378
  %2870 = vmatpush.bf16.msra.mxu0 %v370
  %2871 = vmatpush.bf16.msra.mxu0 %v362
  %2872 = vmatmul.bf16.gmra.mxu0 %v2832
  %v2873 = vpop.f32.mrf.mxu0
  %v2874 = vadd.f32 0.0, %v2873
  %v2875 = vpop.f32.mrf.mxu0
  %2876 = vdwg.mxu0
  %2877 = vmatpush.bf16.msra.mxu0 0
  %2878 = vmatpush.bf16.msra.mxu0 0
  %2879 = vmatpush.bf16.msra.mxu0 0
  %2880 = vmatpush.bf16.msra.mxu0 0
  %2881 = vmatpush.bf16.msra.mxu0 0
  %2882 = vmatpush.bf16.msra.mxu0 0
  %2883 = vmatpush.bf16.msra.mxu0 %v434
  %2884 = vmatpush.bf16.msra.mxu0 %v426
  %2885 = vmatmul.bf16.gmra.mxu0 %v2836
  %v2886 = vpop.f32.mrf.mxu0
  %v2887 = vadd.f32 %v2874, %v2886
  %v2888 = vpop.f32.mrf.mxu0
  %2889 = vdwg.mxu0
  %2890 = vmatpush.bf16.msra.mxu0 %v419
  %2891 = vmatpush.bf16.msra.mxu0 %v411
  %2892 = vmatpush.bf16.msra.mxu0 %v403
  %2893 = vmatpush.bf16.msra.mxu0 %v395
  %2894 = vmatpush.bf16.msra.mxu0 %v387
  %2895 = vmatpush.bf16.msra.mxu0 %v379
  %2896 = vmatpush.bf16.msra.mxu0 %v371
  %2897 = vmatpush.bf16.msra.mxu0 %v363
  %2898 = vmatmul.bf16.gmra.mxu0 %v2832
  %v2899 = vpop.f32.mrf.mxu0
  %v2900 = vadd.f32 0.0, %v2899
  %v2901 = vpop.f32.mrf.mxu0
  %2902 = vdwg.mxu0
  %2903 = vmatpush.bf16.msra.mxu0 0
  %2904 = vmatpush.bf16.msra.mxu0 0
  %2905 = vmatpush.bf16.msra.mxu0 0
  %2906 = vmatpush.bf16.msra.mxu0 0
  %2907 = vmatpush.bf16.msra.mxu0 0
  %2908 = vmatpush.bf16.msra.mxu0 0
  %2909 = vmatpush.bf16.msra.mxu0 %v435
  %2910 = vmatpush.bf16.msra.mxu0 %v427
  %2911 = vmatmul.bf16.gmra.mxu0 %v2836
  %v2912 = vpop.f32.mrf.mxu0
  %v2913 = vadd.f32 %v2900, %v2912
  %v2914 = vpop.f32.mrf.mxu0
  %2915 = vdwg.mxu0
  %2916 = vmatpush.bf16.msra.mxu0 %v420
  %2917 = vmatpush.bf16.msra.mxu0 %v412
  %2918 = vmatpush.bf16.msra.mxu0 %v404
  %2919 = vmatpush.bf16.msra.mxu0 %v396
  %2920 = vmatpush.bf16.msra.mxu0 %v388
  %2921 = vmatpush.bf16.msra.mxu0 %v380
  %2922 = vmatpush.bf16.msra.mxu0 %v372
  %2923 = vmatpush.bf16.msra.mxu0 %v364
  %2924 = vmatmul.bf16.gmra.mxu0 %v2832
  %v2925 = vpop.f32.mrf.mxu0
  %v2926 = vadd.f32 0.0, %v2925
  %v2927 = vpop.f32.mrf.mxu0
  %2928 = vdwg.mxu0
  %2929 = vmatpush.bf16.msra.mxu0 0
  %2930 = vmatpush.bf16.msra.mxu0 0
  %2931 = vmatpush.bf16.msra.mxu0 0
  %2932 = vmatpush.bf16.msra.mxu0 0
  %2933 = vmatpush.bf16.msra.mxu0 0
  %2934 = vmatpush.bf16.msra.mxu0 0
  %2935 = vmatpush.bf16.msra.mxu0 %v436
  %2936 = vmatpush.bf16.msra.mxu0 %v428
  %2937 = vmatmul.bf16.gmra.mxu0 %v2836
  %v2938 = vpop.f32.mrf.mxu0
  %v2939 = vadd.f32 %v2926, %v2938
  %v2940 = vpop.f32.mrf.mxu0
  %2941 = vdwg.mxu0
  %2942 = vmatpush.bf16.msra.mxu0 %v421
  %2943 = vmatpush.bf16.msra.mxu0 %v413
  %2944 = vmatpush.bf16.msra.mxu0 %v405
  %2945 = vmatpush.bf16.msra.mxu0 %v397
  %2946 = vmatpush.bf16.msra.mxu0 %v389
  %2947 = vmatpush.bf16.msra.mxu0 %v381
  %2948 = vmatpush.bf16.msra.mxu0 %v373
  %2949 = vmatpush.bf16.msra.mxu0 %v365
  %2950 = vmatmul.bf16.gmra.mxu0 %v2832
  %v2951 = vpop.f32.mrf.mxu0
  %v2952 = vadd.f32 0.0, %v2951
  %v2953 = vpop.f32.mrf.mxu0
  %2954 = vdwg.mxu0
  %2955 = vmatpush.bf16.msra.mxu0 0
  %2956 = vmatpush.bf16.msra.mxu0 0
  %2957 = vmatpush.bf16.msra.mxu0 0
  %2958 = vmatpush.bf16.msra.mxu0 0
  %2959 = vmatpush.bf16.msra.mxu0 0
  %2960 = vmatpush.bf16.msra.mxu0 0
  %2961 = vmatpush.bf16.msra.mxu0 %v437
  %2962 = vmatpush.bf16.msra.mxu0 %v429
  %2963 = vmatmul.bf16.gmra.mxu0 %v2836
  %v2964 = vpop.f32.mrf.mxu0
  %v2965 = vadd.f32 %v2952, %v2964
  %v2966 = vpop.f32.mrf.mxu0
  %2967 = vdwg.mxu0
  %2968 = vmatpush.bf16.msra.mxu0 %v422
  %2969 = vmatpush.bf16.msra.mxu0 %v414
  %2970 = vmatpush.bf16.msra.mxu0 %v406
  %2971 = vmatpush.bf16.msra.mxu0 %v398
  %2972 = vmatpush.bf16.msra.mxu0 %v390
  %2973 = vmatpush.bf16.msra.mxu0 %v382
  %2974 = vmatpush.bf16.msra.mxu0 %v374
  %2975 = vmatpush.bf16.msra.mxu0 %v366
  %2976 = vmatmul.bf16.gmra.mxu0 %v2832
  %v2977 = vpop.f32.mrf.mxu0
  %v2978 = vadd.f32 0.0, %v2977
  %v2979 = vpop.f32.mrf.mxu0
  %2980 = vdwg.mxu0
  %2981 = vmatpush.bf16.msra.mxu0 0
  %2982 = vmatpush.bf16.msra.mxu0 0
  %2983 = vmatpush.bf16.msra.mxu0 0
  %2984 = vmatpush.bf16.msra.mxu0 0
  %2985 = vmatpush.bf16.msra.mxu0 0
  %2986 = vmatpush.bf16.msra.mxu0 0
  %2987 = vmatpush.bf16.msra.mxu0 %v438
  %2988 = vmatpush.bf16.msra.mxu0 %v430
  %2989 = vmatmul.bf16.gmra.mxu0 %v2836
  %v2990 = vpop.f32.mrf.mxu0
  %v2991 = vadd.f32 %v2978, %v2990
  %v2992 = vpop.f32.mrf.mxu0
  %2993 = vdwg.mxu0
  %2994 = vmatpush.bf16.msra.mxu0 %v423
  %2995 = vmatpush.bf16.msra.mxu0 %v415
  %2996 = vmatpush.bf16.msra.mxu0 %v407
  %2997 = vmatpush.bf16.msra.mxu0 %v399
  %2998 = vmatpush.bf16.msra.mxu0 %v391
  %2999 = vmatpush.bf16.msra.mxu0 %v383
  %3000 = vmatpush.bf16.msra.mxu0 %v375
  %3001 = vmatpush.bf16.msra.mxu0 %v367
  %3002 = vmatmul.bf16.gmra.mxu0 %v2832
  %v3003 = vpop.f32.mrf.mxu0
  %v3004 = vadd.f32 0.0, %v3003
  %v3005 = vpop.f32.mrf.mxu0
  %3006 = vdwg.mxu0
  %3007 = vmatpush.bf16.msra.mxu0 0
  %3008 = vmatpush.bf16.msra.mxu0 0
  %3009 = vmatpush.bf16.msra.mxu0 0
  %3010 = vmatpush.bf16.msra.mxu0 0
  %3011 = vmatpush.bf16.msra.mxu0 0
  %3012 = vmatpush.bf16.msra.mxu0 0
  %3013 = vmatpush.bf16.msra.mxu0 %v439
  %3014 = vmatpush.bf16.msra.mxu0 %v431
  %3015 = vmatmul.bf16.gmra.mxu0 %v2836
  %v3016 = vpop.f32.mrf.mxu0
  %v3017 = vadd.f32 %v3004, %v3016
  %v3018 = vpop.f32.mrf.mxu0
  %3019 = vdwg.mxu0
  %3020 = vmatpush.bf16.msra.mxu0 %v424
  %3021 = vmatpush.bf16.msra.mxu0 %v416
  %3022 = vmatpush.bf16.msra.mxu0 %v408
  %3023 = vmatpush.bf16.msra.mxu0 %v400
  %3024 = vmatpush.bf16.msra.mxu0 %v392
  %3025 = vmatpush.bf16.msra.mxu0 %v384
  %3026 = vmatpush.bf16.msra.mxu0 %v376
  %3027 = vmatpush.bf16.msra.mxu0 %v368
  %3028 = vmatmul.bf16.gmra.mxu0 %v2832
  %v3029 = vpop.f32.mrf.mxu0
  %v3030 = vadd.f32 0.0, %v3029
  %v3031 = vpop.f32.mrf.mxu0
  %3032 = vdwg.mxu0
  %3033 = vmatpush.bf16.msra.mxu0 0
  %3034 = vmatpush.bf16.msra.mxu0 0
  %3035 = vmatpush.bf16.msra.mxu0 0
  %3036 = vmatpush.bf16.msra.mxu0 0
  %3037 = vmatpush.bf16.msra.mxu0 0
  %3038 = vmatpush.bf16.msra.mxu0 0
  %3039 = vmatpush.bf16.msra.mxu0 %v440
  %3040 = vmatpush.bf16.msra.mxu0 %v432
  %3041 = vmatmul.bf16.gmra.mxu0 %v2836
  %v3042 = vpop.f32.mrf.mxu0
  %v3043 = vadd.f32 %v3030, %v3042
  %v3044 = vpop.f32.mrf.mxu0
  %3045 = vdwg.mxu0
  %s3046 = scalar_lea.vmem %s1, 40
  %v3047 = vld [vmem:[%s3046] sm:$0xff]
  %v3049 = vunpack.c.l.b16 %v3047
  %v3050 = vunpack.c.h.b16 %v3047
  %v3051 = vpack.c.b16 %v3049, %v3049
  %v3052 = vpack.c.b16 %v3050, %v3050
  %v3055 = vsel %vm521, %v3052, 0
  %3057 = vmatpush.bf16.msra.mxu0 %v417
  %3058 = vmatpush.bf16.msra.mxu0 %v409
  %3059 = vmatpush.bf16.msra.mxu0 %v401
  %3060 = vmatpush.bf16.msra.mxu0 %v393
  %3061 = vmatpush.bf16.msra.mxu0 %v385
  %3062 = vmatpush.bf16.msra.mxu0 %v377
  %3063 = vmatpush.bf16.msra.mxu0 %v369
  %3064 = vmatpush.bf16.msra.mxu0 %v361
  %3065 = vmatmul.bf16.gmra.mxu0 %v3051
  %v3066 = vpop.f32.mrf.mxu0
  %v3067 = vadd.f32 0.0, %v3066
  %v3068 = vpop.f32.mrf.mxu0
  %3069 = vdwg.mxu0
  %3070 = vmatpush.bf16.msra.mxu0 0
  %3071 = vmatpush.bf16.msra.mxu0 0
  %3072 = vmatpush.bf16.msra.mxu0 0
  %3073 = vmatpush.bf16.msra.mxu0 0
  %3074 = vmatpush.bf16.msra.mxu0 0
  %3075 = vmatpush.bf16.msra.mxu0 0
  %3076 = vmatpush.bf16.msra.mxu0 %v433
  %3077 = vmatpush.bf16.msra.mxu0 %v425
  %3078 = vmatmul.bf16.gmra.mxu0 %v3055
  %v3079 = vpop.f32.mrf.mxu0
  %v3080 = vadd.f32 %v3067, %v3079
  %v3081 = vpop.f32.mrf.mxu0
  %3082 = vdwg.mxu0
  %3083 = vmatpush.bf16.msra.mxu0 %v418
  %3084 = vmatpush.bf16.msra.mxu0 %v410
  %3085 = vmatpush.bf16.msra.mxu0 %v402
  %3086 = vmatpush.bf16.msra.mxu0 %v394
  %3087 = vmatpush.bf16.msra.mxu0 %v386
  %3088 = vmatpush.bf16.msra.mxu0 %v378
  %3089 = vmatpush.bf16.msra.mxu0 %v370
  %3090 = vmatpush.bf16.msra.mxu0 %v362
  %3091 = vmatmul.bf16.gmra.mxu0 %v3051
  %v3092 = vpop.f32.mrf.mxu0
  %v3093 = vadd.f32 0.0, %v3092
  %v3094 = vpop.f32.mrf.mxu0
  %3095 = vdwg.mxu0
  %3096 = vmatpush.bf16.msra.mxu0 0
  %3097 = vmatpush.bf16.msra.mxu0 0
  %3098 = vmatpush.bf16.msra.mxu0 0
  %3099 = vmatpush.bf16.msra.mxu0 0
  %3100 = vmatpush.bf16.msra.mxu0 0
  %3101 = vmatpush.bf16.msra.mxu0 0
  %3102 = vmatpush.bf16.msra.mxu0 %v434
  %3103 = vmatpush.bf16.msra.mxu0 %v426
  %3104 = vmatmul.bf16.gmra.mxu0 %v3055
  %v3105 = vpop.f32.mrf.mxu0
  %v3106 = vadd.f32 %v3093, %v3105
  %v3107 = vpop.f32.mrf.mxu0
  %3108 = vdwg.mxu0
  %3109 = vmatpush.bf16.msra.mxu0 %v419
  %3110 = vmatpush.bf16.msra.mxu0 %v411
  %3111 = vmatpush.bf16.msra.mxu0 %v403
  %3112 = vmatpush.bf16.msra.mxu0 %v395
  %3113 = vmatpush.bf16.msra.mxu0 %v387
  %3114 = vmatpush.bf16.msra.mxu0 %v379
  %3115 = vmatpush.bf16.msra.mxu0 %v371
  %3116 = vmatpush.bf16.msra.mxu0 %v363
  %3117 = vmatmul.bf16.gmra.mxu0 %v3051
  %v3118 = vpop.f32.mrf.mxu0
  %v3119 = vadd.f32 0.0, %v3118
  %v3120 = vpop.f32.mrf.mxu0
  %3121 = vdwg.mxu0
  %3122 = vmatpush.bf16.msra.mxu0 0
  %3123 = vmatpush.bf16.msra.mxu0 0
  %3124 = vmatpush.bf16.msra.mxu0 0
  %3125 = vmatpush.bf16.msra.mxu0 0
  %3126 = vmatpush.bf16.msra.mxu0 0
  %3127 = vmatpush.bf16.msra.mxu0 0
  %3128 = vmatpush.bf16.msra.mxu0 %v435
  %3129 = vmatpush.bf16.msra.mxu0 %v427
  %3130 = vmatmul.bf16.gmra.mxu0 %v3055
  %v3131 = vpop.f32.mrf.mxu0
  %v3132 = vadd.f32 %v3119, %v3131
  %v3133 = vpop.f32.mrf.mxu0
  %3134 = vdwg.mxu0
  %3135 = vmatpush.bf16.msra.mxu0 %v420
  %3136 = vmatpush.bf16.msra.mxu0 %v412
  %3137 = vmatpush.bf16.msra.mxu0 %v404
  %3138 = vmatpush.bf16.msra.mxu0 %v396
  %3139 = vmatpush.bf16.msra.mxu0 %v388
  %3140 = vmatpush.bf16.msra.mxu0 %v380
  %3141 = vmatpush.bf16.msra.mxu0 %v372
  %3142 = vmatpush.bf16.msra.mxu0 %v364
  %3143 = vmatmul.bf16.gmra.mxu0 %v3051
  %v3144 = vpop.f32.mrf.mxu0
  %v3145 = vadd.f32 0.0, %v3144
  %v3146 = vpop.f32.mrf.mxu0
  %3147 = vdwg.mxu0
  %3148 = vmatpush.bf16.msra.mxu0 0
  %3149 = vmatpush.bf16.msra.mxu0 0
  %3150 = vmatpush.bf16.msra.mxu0 0
  %3151 = vmatpush.bf16.msra.mxu0 0
  %3152 = vmatpush.bf16.msra.mxu0 0
  %3153 = vmatpush.bf16.msra.mxu0 0
  %3154 = vmatpush.bf16.msra.mxu0 %v436
  %3155 = vmatpush.bf16.msra.mxu0 %v428
  %3156 = vmatmul.bf16.gmra.mxu0 %v3055
  %v3157 = vpop.f32.mrf.mxu0
  %v3158 = vadd.f32 %v3145, %v3157
  %v3159 = vpop.f32.mrf.mxu0
  %3160 = vdwg.mxu0
  %3161 = vmatpush.bf16.msra.mxu0 %v421
  %3162 = vmatpush.bf16.msra.mxu0 %v413
  %3163 = vmatpush.bf16.msra.mxu0 %v405
  %3164 = vmatpush.bf16.msra.mxu0 %v397
  %3165 = vmatpush.bf16.msra.mxu0 %v389
  %3166 = vmatpush.bf16.msra.mxu0 %v381
  %3167 = vmatpush.bf16.msra.mxu0 %v373
  %3168 = vmatpush.bf16.msra.mxu0 %v365
  %3169 = vmatmul.bf16.gmra.mxu0 %v3051
  %v3170 = vpop.f32.mrf.mxu0
  %v3171 = vadd.f32 0.0, %v3170
  %v3172 = vpop.f32.mrf.mxu0
  %3173 = vdwg.mxu0
  %3174 = vmatpush.bf16.msra.mxu0 0
  %3175 = vmatpush.bf16.msra.mxu0 0
  %3176 = vmatpush.bf16.msra.mxu0 0
  %3177 = vmatpush.bf16.msra.mxu0 0
  %3178 = vmatpush.bf16.msra.mxu0 0
  %3179 = vmatpush.bf16.msra.mxu0 0
  %3180 = vmatpush.bf16.msra.mxu0 %v437
  %3181 = vmatpush.bf16.msra.mxu0 %v429
  %3182 = vmatmul.bf16.gmra.mxu0 %v3055
  %v3183 = vpop.f32.mrf.mxu0
  %v3184 = vadd.f32 %v3171, %v3183
  %v3185 = vpop.f32.mrf.mxu0
  %3186 = vdwg.mxu0
  %3187 = vmatpush.bf16.msra.mxu0 %v422
  %3188 = vmatpush.bf16.msra.mxu0 %v414
  %3189 = vmatpush.bf16.msra.mxu0 %v406
  %3190 = vmatpush.bf16.msra.mxu0 %v398
  %3191 = vmatpush.bf16.msra.mxu0 %v390
  %3192 = vmatpush.bf16.msra.mxu0 %v382
  %3193 = vmatpush.bf16.msra.mxu0 %v374
  %3194 = vmatpush.bf16.msra.mxu0 %v366
  %3195 = vmatmul.bf16.gmra.mxu0 %v3051
  %v3196 = vpop.f32.mrf.mxu0
  %v3197 = vadd.f32 0.0, %v3196
  %v3198 = vpop.f32.mrf.mxu0
  %3199 = vdwg.mxu0
  %3200 = vmatpush.bf16.msra.mxu0 0
  %3201 = vmatpush.bf16.msra.mxu0 0
  %3202 = vmatpush.bf16.msra.mxu0 0
  %3203 = vmatpush.bf16.msra.mxu0 0
  %3204 = vmatpush.bf16.msra.mxu0 0
  %3205 = vmatpush.bf16.msra.mxu0 0
  %3206 = vmatpush.bf16.msra.mxu0 %v438
  %3207 = vmatpush.bf16.msra.mxu0 %v430
  %3208 = vmatmul.bf16.gmra.mxu0 %v3055
  %v3209 = vpop.f32.mrf.mxu0
  %v3210 = vadd.f32 %v3197, %v3209
  %v3211 = vpop.f32.mrf.mxu0
  %3212 = vdwg.mxu0
  %3213 = vmatpush.bf16.msra.mxu0 %v423
  %3214 = vmatpush.bf16.msra.mxu0 %v415
  %3215 = vmatpush.bf16.msra.mxu0 %v407
  %3216 = vmatpush.bf16.msra.mxu0 %v399
  %3217 = vmatpush.bf16.msra.mxu0 %v391
  %3218 = vmatpush.bf16.msra.mxu0 %v383
  %3219 = vmatpush.bf16.msra.mxu0 %v375
  %3220 = vmatpush.bf16.msra.mxu0 %v367
  %3221 = vmatmul.bf16.gmra.mxu0 %v3051
  %v3222 = vpop.f32.mrf.mxu0
  %v3223 = vadd.f32 0.0, %v3222
  %v3224 = vpop.f32.mrf.mxu0
  %3225 = vdwg.mxu0
  %3226 = vmatpush.bf16.msra.mxu0 0
  %3227 = vmatpush.bf16.msra.mxu0 0
  %3228 = vmatpush.bf16.msra.mxu0 0
  %3229 = vmatpush.bf16.msra.mxu0 0
  %3230 = vmatpush.bf16.msra.mxu0 0
  %3231 = vmatpush.bf16.msra.mxu0 0
  %3232 = vmatpush.bf16.msra.mxu0 %v439
  %3233 = vmatpush.bf16.msra.mxu0 %v431
  %3234 = vmatmul.bf16.gmra.mxu0 %v3055
  %v3235 = vpop.f32.mrf.mxu0
  %v3236 = vadd.f32 %v3223, %v3235
  %v3237 = vpop.f32.mrf.mxu0
  %3238 = vdwg.mxu0
  %3239 = vmatpush.bf16.msra.mxu0 %v424
  %3240 = vmatpush.bf16.msra.mxu0 %v416
  %3241 = vmatpush.bf16.msra.mxu0 %v408
  %3242 = vmatpush.bf16.msra.mxu0 %v400
  %3243 = vmatpush.bf16.msra.mxu0 %v392
  %3244 = vmatpush.bf16.msra.mxu0 %v384
  %3245 = vmatpush.bf16.msra.mxu0 %v376
  %3246 = vmatpush.bf16.msra.mxu0 %v368
  %3247 = vmatmul.bf16.gmra.mxu0 %v3051
  %v3248 = vpop.f32.mrf.mxu0
  %v3249 = vadd.f32 0.0, %v3248
  %v3250 = vpop.f32.mrf.mxu0
  %3251 = vdwg.mxu0
  %3252 = vmatpush.bf16.msra.mxu0 0
  %3253 = vmatpush.bf16.msra.mxu0 0
  %3254 = vmatpush.bf16.msra.mxu0 0
  %3255 = vmatpush.bf16.msra.mxu0 0
  %3256 = vmatpush.bf16.msra.mxu0 0
  %3257 = vmatpush.bf16.msra.mxu0 0
  %3258 = vmatpush.bf16.msra.mxu0 %v440
  %3259 = vmatpush.bf16.msra.mxu0 %v432
  %3260 = vmatmul.bf16.gmra.mxu0 %v3055
  %v3261 = vpop.f32.mrf.mxu0
  %v3262 = vadd.f32 %v3249, %v3261
  %v3263 = vpop.f32.mrf.mxu0
  %3264 = vdwg.mxu0
  %v3265 = vmax.f32 %v2861, %v2965
  %v3266 = vmax.f32 %v2887, %v2991
  %v3267 = vmax.f32 %v2913, %v3017
  %v3268 = vmax.f32 %v2939, %v3043
  %v3269 = vmax.f32 %v3080, %v3184
  %v3270 = vmax.f32 %v3106, %v3210
  %v3271 = vmax.f32 %v3132, %v3236
  %v3272 = vmax.f32 %v3158, %v3262
  %v3273 = vmax.f32 %v3265, %v3269
  %v3274 = vmax.f32 %v3266, %v3270
  %v3275 = vmax.f32 %v3267, %v3271
  %v3276 = vmax.f32 %v3268, %v3272
  %v3277 = vadd.f32 %v3273, %v106
  %v3278 = vadd.f32 %v3274, %v107
  %v3279 = vadd.f32 %v3275, %v108
  %v3280 = vadd.f32 %v3276, %v109
  %v3281 = vmax.f32 %v3277, 0.0
  %v3282 = vmax.f32 %v3278, 0.0
  %v3283 = vmax.f32 %v3279, 0.0
  %v3284 = vmax.f32 %v3280, 0.0
  %v3285 = vpack.c.bf16 %v3282, %v3281
  %v3286 = vpack.c.bf16 %v3284, %v3283
  %s3287 = scalar_lea.vmem [#allocation2], 80
  %3288 = vst [vmem:[%s3287] sm:$0xff] %v3285
  %3289 = vst [vmem:[%s3287 + $0x8] sm:$0xff] %v3286
  %s3290 = scalar_lea.vmem %s0, 48
  %v3291 = vld [vmem:[%s3290] sm:$0xff]
  %v3293 = vunpack.c.l.b16 %v3291
  %v3294 = vunpack.c.h.b16 %v3291
  %v3295 = vpack.c.b16 %v3293, %v3293
  %v3296 = vpack.c.b16 %v3294, %v3294
  %v3299 = vsel %vm521, %v3296, 0
  %3301 = vmatpush.bf16.msra.mxu0 %v417
  %3302 = vmatpush.bf16.msra.mxu0 %v409
  %3303 = vmatpush.bf16.msra.mxu0 %v401
  %3304 = vmatpush.bf16.msra.mxu0 %v393
  %3305 = vmatpush.bf16.msra.mxu0 %v385
  %3306 = vmatpush.bf16.msra.mxu0 %v377
  %3307 = vmatpush.bf16.msra.mxu0 %v369
  %3308 = vmatpush.bf16.msra.mxu0 %v361
  %3309 = vmatmul.bf16.gmra.mxu0 %v3295
  %v3310 = vpop.f32.mrf.mxu0
  %v3311 = vadd.f32 0.0, %v3310
  %v3312 = vpop.f32.mrf.mxu0
  %3313 = vdwg.mxu0
  %3314 = vmatpush.bf16.msra.mxu0 0
  %3315 = vmatpush.bf16.msra.mxu0 0
  %3316 = vmatpush.bf16.msra.mxu0 0
  %3317 = vmatpush.bf16.msra.mxu0 0
  %3318 = vmatpush.bf16.msra.mxu0 0
  %3319 = vmatpush.bf16.msra.mxu0 0
  %3320 = vmatpush.bf16.msra.mxu0 %v433
  %3321 = vmatpush.bf16.msra.mxu0 %v425
  %3322 = vmatmul.bf16.gmra.mxu0 %v3299
  %v3323 = vpop.f32.mrf.mxu0
  %v3324 = vadd.f32 %v3311, %v3323
  %v3325 = vpop.f32.mrf.mxu0
  %3326 = vdwg.mxu0
  %3327 = vmatpush.bf16.msra.mxu0 %v418
  %3328 = vmatpush.bf16.msra.mxu0 %v410
  %3329 = vmatpush.bf16.msra.mxu0 %v402
  %3330 = vmatpush.bf16.msra.mxu0 %v394
  %3331 = vmatpush.bf16.msra.mxu0 %v386
  %3332 = vmatpush.bf16.msra.mxu0 %v378
  %3333 = vmatpush.bf16.msra.mxu0 %v370
  %3334 = vmatpush.bf16.msra.mxu0 %v362
  %3335 = vmatmul.bf16.gmra.mxu0 %v3295
  %v3336 = vpop.f32.mrf.mxu0
  %v3337 = vadd.f32 0.0, %v3336
  %v3338 = vpop.f32.mrf.mxu0
  %3339 = vdwg.mxu0
  %3340 = vmatpush.bf16.msra.mxu0 0
  %3341 = vmatpush.bf16.msra.mxu0 0
  %3342 = vmatpush.bf16.msra.mxu0 0
  %3343 = vmatpush.bf16.msra.mxu0 0
  %3344 = vmatpush.bf16.msra.mxu0 0
  %3345 = vmatpush.bf16.msra.mxu0 0
  %3346 = vmatpush.bf16.msra.mxu0 %v434
  %3347 = vmatpush.bf16.msra.mxu0 %v426
  %3348 = vmatmul.bf16.gmra.mxu0 %v3299
  %v3349 = vpop.f32.mrf.mxu0
  %v3350 = vadd.f32 %v3337, %v3349
  %v3351 = vpop.f32.mrf.mxu0
  %3352 = vdwg.mxu0
  %3353 = vmatpush.bf16.msra.mxu0 %v419
  %3354 = vmatpush.bf16.msra.mxu0 %v411
  %3355 = vmatpush.bf16.msra.mxu0 %v403
  %3356 = vmatpush.bf16.msra.mxu0 %v395
  %3357 = vmatpush.bf16.msra.mxu0 %v387
  %3358 = vmatpush.bf16.msra.mxu0 %v379
  %3359 = vmatpush.bf16.msra.mxu0 %v371
  %3360 = vmatpush.bf16.msra.mxu0 %v363
  %3361 = vmatmul.bf16.gmra.mxu0 %v3295
  %v3362 = vpop.f32.mrf.mxu0
  %v3363 = vadd.f32 0.0, %v3362
  %v3364 = vpop.f32.mrf.mxu0
  %3365 = vdwg.mxu0
  %3366 = vmatpush.bf16.msra.mxu0 0
  %3367 = vmatpush.bf16.msra.mxu0 0
  %3368 = vmatpush.bf16.msra.mxu0 0
  %3369 = vmatpush.bf16.msra.mxu0 0
  %3370 = vmatpush.bf16.msra.mxu0 0
  %3371 = vmatpush.bf16.msra.mxu0 0
  %3372 = vmatpush.bf16.msra.mxu0 %v435
  %3373 = vmatpush.bf16.msra.mxu0 %v427
  %3374 = vmatmul.bf16.gmra.mxu0 %v3299
  %v3375 = vpop.f32.mrf.mxu0
  %v3376 = vadd.f32 %v3363, %v3375
  %v3377 = vpop.f32.mrf.mxu0
  %3378 = vdwg.mxu0
  %3379 = vmatpush.bf16.msra.mxu0 %v420
  %3380 = vmatpush.bf16.msra.mxu0 %v412
  %3381 = vmatpush.bf16.msra.mxu0 %v404
  %3382 = vmatpush.bf16.msra.mxu0 %v396
  %3383 = vmatpush.bf16.msra.mxu0 %v388
  %3384 = vmatpush.bf16.msra.mxu0 %v380
  %3385 = vmatpush.bf16.msra.mxu0 %v372
  %3386 = vmatpush.bf16.msra.mxu0 %v364
  %3387 = vmatmul.bf16.gmra.mxu0 %v3295
  %v3388 = vpop.f32.mrf.mxu0
  %v3389 = vadd.f32 0.0, %v3388
  %v3390 = vpop.f32.mrf.mxu0
  %3391 = vdwg.mxu0
  %3392 = vmatpush.bf16.msra.mxu0 0
  %3393 = vmatpush.bf16.msra.mxu0 0
  %3394 = vmatpush.bf16.msra.mxu0 0
  %3395 = vmatpush.bf16.msra.mxu0 0
  %3396 = vmatpush.bf16.msra.mxu0 0
  %3397 = vmatpush.bf16.msra.mxu0 0
  %3398 = vmatpush.bf16.msra.mxu0 %v436
  %3399 = vmatpush.bf16.msra.mxu0 %v428
  %3400 = vmatmul.bf16.gmra.mxu0 %v3299
  %v3401 = vpop.f32.mrf.mxu0
  %v3402 = vadd.f32 %v3389, %v3401
  %v3403 = vpop.f32.mrf.mxu0
  %3404 = vdwg.mxu0
  %3405 = vmatpush.bf16.msra.mxu0 %v421
  %3406 = vmatpush.bf16.msra.mxu0 %v413
  %3407 = vmatpush.bf16.msra.mxu0 %v405
  %3408 = vmatpush.bf16.msra.mxu0 %v397
  %3409 = vmatpush.bf16.msra.mxu0 %v389
  %3410 = vmatpush.bf16.msra.mxu0 %v381
  %3411 = vmatpush.bf16.msra.mxu0 %v373
  %3412 = vmatpush.bf16.msra.mxu0 %v365
  %3413 = vmatmul.bf16.gmra.mxu0 %v3295
  %v3414 = vpop.f32.mrf.mxu0
  %v3415 = vadd.f32 0.0, %v3414
  %v3416 = vpop.f32.mrf.mxu0
  %3417 = vdwg.mxu0
  %3418 = vmatpush.bf16.msra.mxu0 0
  %3419 = vmatpush.bf16.msra.mxu0 0
  %3420 = vmatpush.bf16.msra.mxu0 0
  %3421 = vmatpush.bf16.msra.mxu0 0
  %3422 = vmatpush.bf16.msra.mxu0 0
  %3423 = vmatpush.bf16.msra.mxu0 0
  %3424 = vmatpush.bf16.msra.mxu0 %v437
  %3425 = vmatpush.bf16.msra.mxu0 %v429
  %3426 = vmatmul.bf16.gmra.mxu0 %v3299
  %v3427 = vpop.f32.mrf.mxu0
  %v3428 = vadd.f32 %v3415, %v3427
  %v3429 = vpop.f32.mrf.mxu0
  %3430 = vdwg.mxu0
  %3431 = vmatpush.bf16.msra.mxu0 %v422
  %3432 = vmatpush.bf16.msra.mxu0 %v414
  %3433 = vmatpush.bf16.msra.mxu0 %v406
  %3434 = vmatpush.bf16.msra.mxu0 %v398
  %3435 = vmatpush.bf16.msra.mxu0 %v390
  %3436 = vmatpush.bf16.msra.mxu0 %v382
  %3437 = vmatpush.bf16.msra.mxu0 %v374
  %3438 = vmatpush.bf16.msra.mxu0 %v366
  %3439 = vmatmul.bf16.gmra.mxu0 %v3295
  %v3440 = vpop.f32.mrf.mxu0
  %v3441 = vadd.f32 0.0, %v3440
  %v3442 = vpop.f32.mrf.mxu0
  %3443 = vdwg.mxu0
  %3444 = vmatpush.bf16.msra.mxu0 0
  %3445 = vmatpush.bf16.msra.mxu0 0
  %3446 = vmatpush.bf16.msra.mxu0 0
  %3447 = vmatpush.bf16.msra.mxu0 0
  %3448 = vmatpush.bf16.msra.mxu0 0
  %3449 = vmatpush.bf16.msra.mxu0 0
  %3450 = vmatpush.bf16.msra.mxu0 %v438
  %3451 = vmatpush.bf16.msra.mxu0 %v430
  %3452 = vmatmul.bf16.gmra.mxu0 %v3299
  %v3453 = vpop.f32.mrf.mxu0
  %v3454 = vadd.f32 %v3441, %v3453
  %v3455 = vpop.f32.mrf.mxu0
  %3456 = vdwg.mxu0
  %3457 = vmatpush.bf16.msra.mxu0 %v423
  %3458 = vmatpush.bf16.msra.mxu0 %v415
  %3459 = vmatpush.bf16.msra.mxu0 %v407
  %3460 = vmatpush.bf16.msra.mxu0 %v399
  %3461 = vmatpush.bf16.msra.mxu0 %v391
  %3462 = vmatpush.bf16.msra.mxu0 %v383
  %3463 = vmatpush.bf16.msra.mxu0 %v375
  %3464 = vmatpush.bf16.msra.mxu0 %v367
  %3465 = vmatmul.bf16.gmra.mxu0 %v3295
  %v3466 = vpop.f32.mrf.mxu0
  %v3467 = vadd.f32 0.0, %v3466
  %v3468 = vpop.f32.mrf.mxu0
  %3469 = vdwg.mxu0
  %3470 = vmatpush.bf16.msra.mxu0 0
  %3471 = vmatpush.bf16.msra.mxu0 0
  %3472 = vmatpush.bf16.msra.mxu0 0
  %3473 = vmatpush.bf16.msra.mxu0 0
  %3474 = vmatpush.bf16.msra.mxu0 0
  %3475 = vmatpush.bf16.msra.mxu0 0
  %3476 = vmatpush.bf16.msra.mxu0 %v439
  %3477 = vmatpush.bf16.msra.mxu0 %v431
  %3478 = vmatmul.bf16.gmra.mxu0 %v3299
  %v3479 = vpop.f32.mrf.mxu0
  %v3480 = vadd.f32 %v3467, %v3479
  %v3481 = vpop.f32.mrf.mxu0
  %3482 = vdwg.mxu0
  %3483 = vmatpush.bf16.msra.mxu0 %v424
  %3484 = vmatpush.bf16.msra.mxu0 %v416
  %3485 = vmatpush.bf16.msra.mxu0 %v408
  %3486 = vmatpush.bf16.msra.mxu0 %v400
  %3487 = vmatpush.bf16.msra.mxu0 %v392
  %3488 = vmatpush.bf16.msra.mxu0 %v384
  %3489 = vmatpush.bf16.msra.mxu0 %v376
  %3490 = vmatpush.bf16.msra.mxu0 %v368
  %3491 = vmatmul.bf16.gmra.mxu0 %v3295
  %v3492 = vpop.f32.mrf.mxu0
  %v3493 = vadd.f32 0.0, %v3492
  %v3494 = vpop.f32.mrf.mxu0
  %3495 = vdwg.mxu0
  %3496 = vmatpush.bf16.msra.mxu0 0
  %3497 = vmatpush.bf16.msra.mxu0 0
  %3498 = vmatpush.bf16.msra.mxu0 0
  %3499 = vmatpush.bf16.msra.mxu0 0
  %3500 = vmatpush.bf16.msra.mxu0 0
  %3501 = vmatpush.bf16.msra.mxu0 0
  %3502 = vmatpush.bf16.msra.mxu0 %v440
  %3503 = vmatpush.bf16.msra.mxu0 %v432
  %3504 = vmatmul.bf16.gmra.mxu0 %v3299
  %v3505 = vpop.f32.mrf.mxu0
  %v3506 = vadd.f32 %v3493, %v3505
  %v3507 = vpop.f32.mrf.mxu0
  %3508 = vdwg.mxu0
  %s3509 = scalar_lea.vmem %s1, 48
  %v3510 = vld [vmem:[%s3509] sm:$0xff]
  %v3512 = vunpack.c.l.b16 %v3510
  %v3513 = vunpack.c.h.b16 %v3510
  %v3514 = vpack.c.b16 %v3512, %v3512
  %v3515 = vpack.c.b16 %v3513, %v3513
  %v3518 = vsel %vm521, %v3515, 0
  %3520 = vmatpush.bf16.msra.mxu0 %v417
  %3521 = vmatpush.bf16.msra.mxu0 %v409
  %3522 = vmatpush.bf16.msra.mxu0 %v401
  %3523 = vmatpush.bf16.msra.mxu0 %v393
  %3524 = vmatpush.bf16.msra.mxu0 %v385
  %3525 = vmatpush.bf16.msra.mxu0 %v377
  %3526 = vmatpush.bf16.msra.mxu0 %v369
  %3527 = vmatpush.bf16.msra.mxu0 %v361
  %3528 = vmatmul.bf16.gmra.mxu0 %v3514
  %v3529 = vpop.f32.mrf.mxu0
  %v3530 = vadd.f32 0.0, %v3529
  %v3531 = vpop.f32.mrf.mxu0
  %3532 = vdwg.mxu0
  %3533 = vmatpush.bf16.msra.mxu0 0
  %3534 = vmatpush.bf16.msra.mxu0 0
  %3535 = vmatpush.bf16.msra.mxu0 0
  %3536 = vmatpush.bf16.msra.mxu0 0
  %3537 = vmatpush.bf16.msra.mxu0 0
  %3538 = vmatpush.bf16.msra.mxu0 0
  %3539 = vmatpush.bf16.msra.mxu0 %v433
  %3540 = vmatpush.bf16.msra.mxu0 %v425
  %3541 = vmatmul.bf16.gmra.mxu0 %v3518
  %v3542 = vpop.f32.mrf.mxu0
  %v3543 = vadd.f32 %v3530, %v3542
  %v3544 = vpop.f32.mrf.mxu0
  %3545 = vdwg.mxu0
  %3546 = vmatpush.bf16.msra.mxu0 %v418
  %3547 = vmatpush.bf16.msra.mxu0 %v410
  %3548 = vmatpush.bf16.msra.mxu0 %v402
  %3549 = vmatpush.bf16.msra.mxu0 %v394
  %3550 = vmatpush.bf16.msra.mxu0 %v386
  %3551 = vmatpush.bf16.msra.mxu0 %v378
  %3552 = vmatpush.bf16.msra.mxu0 %v370
  %3553 = vmatpush.bf16.msra.mxu0 %v362
  %3554 = vmatmul.bf16.gmra.mxu0 %v3514
  %v3555 = vpop.f32.mrf.mxu0
  %v3556 = vadd.f32 0.0, %v3555
  %v3557 = vpop.f32.mrf.mxu0
  %3558 = vdwg.mxu0
  %3559 = vmatpush.bf16.msra.mxu0 0
  %3560 = vmatpush.bf16.msra.mxu0 0
  %3561 = vmatpush.bf16.msra.mxu0 0
  %3562 = vmatpush.bf16.msra.mxu0 0
  %3563 = vmatpush.bf16.msra.mxu0 0
  %3564 = vmatpush.bf16.msra.mxu0 0
  %3565 = vmatpush.bf16.msra.mxu0 %v434
  %3566 = vmatpush.bf16.msra.mxu0 %v426
  %3567 = vmatmul.bf16.gmra.mxu0 %v3518
  %v3568 = vpop.f32.mrf.mxu0
  %v3569 = vadd.f32 %v3556, %v3568
  %v3570 = vpop.f32.mrf.mxu0
  %3571 = vdwg.mxu0
  %3572 = vmatpush.bf16.msra.mxu0 %v419
  %3573 = vmatpush.bf16.msra.mxu0 %v411
  %3574 = vmatpush.bf16.msra.mxu0 %v403
  %3575 = vmatpush.bf16.msra.mxu0 %v395
  %3576 = vmatpush.bf16.msra.mxu0 %v387
  %3577 = vmatpush.bf16.msra.mxu0 %v379
  %3578 = vmatpush.bf16.msra.mxu0 %v371
  %3579 = vmatpush.bf16.msra.mxu0 %v363
  %3580 = vmatmul.bf16.gmra.mxu0 %v3514
  %v3581 = vpop.f32.mrf.mxu0
  %v3582 = vadd.f32 0.0, %v3581
  %v3583 = vpop.f32.mrf.mxu0
  %3584 = vdwg.mxu0
  %3585 = vmatpush.bf16.msra.mxu0 0
  %3586 = vmatpush.bf16.msra.mxu0 0
  %3587 = vmatpush.bf16.msra.mxu0 0
  %3588 = vmatpush.bf16.msra.mxu0 0
  %3589 = vmatpush.bf16.msra.mxu0 0
  %3590 = vmatpush.bf16.msra.mxu0 0
  %3591 = vmatpush.bf16.msra.mxu0 %v435
  %3592 = vmatpush.bf16.msra.mxu0 %v427
  %3593 = vmatmul.bf16.gmra.mxu0 %v3518
  %v3594 = vpop.f32.mrf.mxu0
  %v3595 = vadd.f32 %v3582, %v3594
  %v3596 = vpop.f32.mrf.mxu0
  %3597 = vdwg.mxu0
  %3598 = vmatpush.bf16.msra.mxu0 %v420
  %3599 = vmatpush.bf16.msra.mxu0 %v412
  %3600 = vmatpush.bf16.msra.mxu0 %v404
  %3601 = vmatpush.bf16.msra.mxu0 %v396
  %3602 = vmatpush.bf16.msra.mxu0 %v388
  %3603 = vmatpush.bf16.msra.mxu0 %v380
  %3604 = vmatpush.bf16.msra.mxu0 %v372
  %3605 = vmatpush.bf16.msra.mxu0 %v364
  %3606 = vmatmul.bf16.gmra.mxu0 %v3514
  %v3607 = vpop.f32.mrf.mxu0
  %v3608 = vadd.f32 0.0, %v3607
  %v3609 = vpop.f32.mrf.mxu0
  %3610 = vdwg.mxu0
  %3611 = vmatpush.bf16.msra.mxu0 0
  %3612 = vmatpush.bf16.msra.mxu0 0
  %3613 = vmatpush.bf16.msra.mxu0 0
  %3614 = vmatpush.bf16.msra.mxu0 0
  %3615 = vmatpush.bf16.msra.mxu0 0
  %3616 = vmatpush.bf16.msra.mxu0 0
  %3617 = vmatpush.bf16.msra.mxu0 %v436
  %3618 = vmatpush.bf16.msra.mxu0 %v428
  %3619 = vmatmul.bf16.gmra.mxu0 %v3518
  %v3620 = vpop.f32.mrf.mxu0
  %v3621 = vadd.f32 %v3608, %v3620
  %v3622 = vpop.f32.mrf.mxu0
  %3623 = vdwg.mxu0
  %3624 = vmatpush.bf16.msra.mxu0 %v421
  %3625 = vmatpush.bf16.msra.mxu0 %v413
  %3626 = vmatpush.bf16.msra.mxu0 %v405
  %3627 = vmatpush.bf16.msra.mxu0 %v397
  %3628 = vmatpush.bf16.msra.mxu0 %v389
  %3629 = vmatpush.bf16.msra.mxu0 %v381
  %3630 = vmatpush.bf16.msra.mxu0 %v373
  %3631 = vmatpush.bf16.msra.mxu0 %v365
  %3632 = vmatmul.bf16.gmra.mxu0 %v3514
  %v3633 = vpop.f32.mrf.mxu0
  %v3634 = vadd.f32 0.0, %v3633
  %v3635 = vpop.f32.mrf.mxu0
  %3636 = vdwg.mxu0
  %3637 = vmatpush.bf16.msra.mxu0 0
  %3638 = vmatpush.bf16.msra.mxu0 0
  %3639 = vmatpush.bf16.msra.mxu0 0
  %3640 = vmatpush.bf16.msra.mxu0 0
  %3641 = vmatpush.bf16.msra.mxu0 0
  %3642 = vmatpush.bf16.msra.mxu0 0
  %3643 = vmatpush.bf16.msra.mxu0 %v437
  %3644 = vmatpush.bf16.msra.mxu0 %v429
  %3645 = vmatmul.bf16.gmra.mxu0 %v3518
  %v3646 = vpop.f32.mrf.mxu0
  %v3647 = vadd.f32 %v3634, %v3646
  %v3648 = vpop.f32.mrf.mxu0
  %3649 = vdwg.mxu0
  %3650 = vmatpush.bf16.msra.mxu0 %v422
  %3651 = vmatpush.bf16.msra.mxu0 %v414
  %3652 = vmatpush.bf16.msra.mxu0 %v406
  %3653 = vmatpush.bf16.msra.mxu0 %v398
  %3654 = vmatpush.bf16.msra.mxu0 %v390
  %3655 = vmatpush.bf16.msra.mxu0 %v382
  %3656 = vmatpush.bf16.msra.mxu0 %v374
  %3657 = vmatpush.bf16.msra.mxu0 %v366
  %3658 = vmatmul.bf16.gmra.mxu0 %v3514
  %v3659 = vpop.f32.mrf.mxu0
  %v3660 = vadd.f32 0.0, %v3659
  %v3661 = vpop.f32.mrf.mxu0
  %3662 = vdwg.mxu0
  %3663 = vmatpush.bf16.msra.mxu0 0
  %3664 = vmatpush.bf16.msra.mxu0 0
  %3665 = vmatpush.bf16.msra.mxu0 0
  %3666 = vmatpush.bf16.msra.mxu0 0
  %3667 = vmatpush.bf16.msra.mxu0 0
  %3668 = vmatpush.bf16.msra.mxu0 0
  %3669 = vmatpush.bf16.msra.mxu0 %v438
  %3670 = vmatpush.bf16.msra.mxu0 %v430
  %3671 = vmatmul.bf16.gmra.mxu0 %v3518
  %v3672 = vpop.f32.mrf.mxu0
  %v3673 = vadd.f32 %v3660, %v3672
  %v3674 = vpop.f32.mrf.mxu0
  %3675 = vdwg.mxu0
  %3676 = vmatpush.bf16.msra.mxu0 %v423
  %3677 = vmatpush.bf16.msra.mxu0 %v415
  %3678 = vmatpush.bf16.msra.mxu0 %v407
  %3679 = vmatpush.bf16.msra.mxu0 %v399
  %3680 = vmatpush.bf16.msra.mxu0 %v391
  %3681 = vmatpush.bf16.msra.mxu0 %v383
  %3682 = vmatpush.bf16.msra.mxu0 %v375
  %3683 = vmatpush.bf16.msra.mxu0 %v367
  %3684 = vmatmul.bf16.gmra.mxu0 %v3514
  %v3685 = vpop.f32.mrf.mxu0
  %v3686 = vadd.f32 0.0, %v3685
  %v3687 = vpop.f32.mrf.mxu0
  %3688 = vdwg.mxu0
  %3689 = vmatpush.bf16.msra.mxu0 0
  %3690 = vmatpush.bf16.msra.mxu0 0
  %3691 = vmatpush.bf16.msra.mxu0 0
  %3692 = vmatpush.bf16.msra.mxu0 0
  %3693 = vmatpush.bf16.msra.mxu0 0
  %3694 = vmatpush.bf16.msra.mxu0 0
  %3695 = vmatpush.bf16.msra.mxu0 %v439
  %3696 = vmatpush.bf16.msra.mxu0 %v431
  %3697 = vmatmul.bf16.gmra.mxu0 %v3518
  %v3698 = vpop.f32.mrf.mxu0
  %v3699 = vadd.f32 %v3686, %v3698
  %v3700 = vpop.f32.mrf.mxu0
  %3701 = vdwg.mxu0
  %3702 = vmatpush.bf16.msra.mxu0 %v424
  %3703 = vmatpush.bf16.msra.mxu0 %v416
  %3704 = vmatpush.bf16.msra.mxu0 %v408
  %3705 = vmatpush.bf16.msra.mxu0 %v400
  %3706 = vmatpush.bf16.msra.mxu0 %v392
  %3707 = vmatpush.bf16.msra.mxu0 %v384
  %3708 = vmatpush.bf16.msra.mxu0 %v376
  %3709 = vmatpush.bf16.msra.mxu0 %v368
  %3710 = vmatmul.bf16.gmra.mxu0 %v3514
  %v3711 = vpop.f32.mrf.mxu0
  %v3712 = vadd.f32 0.0, %v3711
  %v3713 = vpop.f32.mrf.mxu0
  %3714 = vdwg.mxu0
  %3715 = vmatpush.bf16.msra.mxu0 0
  %3716 = vmatpush.bf16.msra.mxu0 0
  %3717 = vmatpush.bf16.msra.mxu0 0
  %3718 = vmatpush.bf16.msra.mxu0 0
  %3719 = vmatpush.bf16.msra.mxu0 0
  %3720 = vmatpush.bf16.msra.mxu0 0
  %3721 = vmatpush.bf16.msra.mxu0 %v440
  %3722 = vmatpush.bf16.msra.mxu0 %v432
  %3723 = vmatmul.bf16.gmra.mxu0 %v3518
  %v3724 = vpop.f32.mrf.mxu0
  %v3725 = vadd.f32 %v3712, %v3724
  %v3726 = vpop.f32.mrf.mxu0
  %3727 = vdwg.mxu0
  %v3728 = vmax.f32 %v3324, %v3428
  %v3729 = vmax.f32 %v3350, %v3454
  %v3730 = vmax.f32 %v3376, %v3480
  %v3731 = vmax.f32 %v3402, %v3506
  %v3732 = vmax.f32 %v3543, %v3647
  %v3733 = vmax.f32 %v3569, %v3673
  %v3734 = vmax.f32 %v3595, %v3699
  %v3735 = vmax.f32 %v3621, %v3725
  %v3736 = vmax.f32 %v3728, %v3732
  %v3737 = vmax.f32 %v3729, %v3733
  %v3738 = vmax.f32 %v3730, %v3734
  %v3739 = vmax.f32 %v3731, %v3735
  %v3740 = vadd.f32 %v3736, %v106
  %v3741 = vadd.f32 %v3737, %v107
  %v3742 = vadd.f32 %v3738, %v108
  %v3743 = vadd.f32 %v3739, %v109
  %v3744 = vmax.f32 %v3740, 0.0
  %v3745 = vmax.f32 %v3741, 0.0
  %v3746 = vmax.f32 %v3742, 0.0
  %v3747 = vmax.f32 %v3743, 0.0
  %v3748 = vpack.c.bf16 %v3745, %v3744
  %v3749 = vpack.c.bf16 %v3747, %v3746
  %s3750 = scalar_lea.vmem [#allocation2], 96
  %3751 = vst [vmem:[%s3750] sm:$0xff] %v3748
  %3752 = vst [vmem:[%s3750 + $0x8] sm:$0xff] %v3749
  %s3753 = scalar_lea.vmem %s0, 56
  %v3754 = vld [vmem:[%s3753] sm:$0xff]
  %v3756 = vunpack.c.l.b16 %v3754
  %v3757 = vunpack.c.h.b16 %v3754
  %v3758 = vpack.c.b16 %v3756, %v3756
  %v3759 = vpack.c.b16 %v3757, %v3757
  %v3762 = vsel %vm521, %v3759, 0
  %3764 = vmatpush.bf16.msra.mxu0 %v417
  %3765 = vmatpush.bf16.msra.mxu0 %v409
  %3766 = vmatpush.bf16.msra.mxu0 %v401
  %3767 = vmatpush.bf16.msra.mxu0 %v393
  %3768 = vmatpush.bf16.msra.mxu0 %v385
  %3769 = vmatpush.bf16.msra.mxu0 %v377
  %3770 = vmatpush.bf16.msra.mxu0 %v369
  %3771 = vmatpush.bf16.msra.mxu0 %v361
  %3772 = vmatmul.bf16.gmra.mxu0 %v3758
  %v3773 = vpop.f32.mrf.mxu0
  %v3774 = vadd.f32 0.0, %v3773
  %v3775 = vpop.f32.mrf.mxu0
  %3776 = vdwg.mxu0
  %3777 = vmatpush.bf16.msra.mxu0 0
  %3778 = vmatpush.bf16.msra.mxu0 0
  %3779 = vmatpush.bf16.msra.mxu0 0
  %3780 = vmatpush.bf16.msra.mxu0 0
  %3781 = vmatpush.bf16.msra.mxu0 0
  %3782 = vmatpush.bf16.msra.mxu0 0
  %3783 = vmatpush.bf16.msra.mxu0 %v433
  %3784 = vmatpush.bf16.msra.mxu0 %v425
  %3785 = vmatmul.bf16.gmra.mxu0 %v3762
  %v3786 = vpop.f32.mrf.mxu0
  %v3787 = vadd.f32 %v3774, %v3786
  %v3788 = vpop.f32.mrf.mxu0
  %3789 = vdwg.mxu0
  %3790 = vmatpush.bf16.msra.mxu0 %v418
  %3791 = vmatpush.bf16.msra.mxu0 %v410
  %3792 = vmatpush.bf16.msra.mxu0 %v402
  %3793 = vmatpush.bf16.msra.mxu0 %v394
  %3794 = vmatpush.bf16.msra.mxu0 %v386
  %3795 = vmatpush.bf16.msra.mxu0 %v378
  %3796 = vmatpush.bf16.msra.mxu0 %v370
  %3797 = vmatpush.bf16.msra.mxu0 %v362
  %3798 = vmatmul.bf16.gmra.mxu0 %v3758
  %v3799 = vpop.f32.mrf.mxu0
  %v3800 = vadd.f32 0.0, %v3799
  %v3801 = vpop.f32.mrf.mxu0
  %3802 = vdwg.mxu0
  %3803 = vmatpush.bf16.msra.mxu0 0
  %3804 = vmatpush.bf16.msra.mxu0 0
  %3805 = vmatpush.bf16.msra.mxu0 0
  %3806 = vmatpush.bf16.msra.mxu0 0
  %3807 = vmatpush.bf16.msra.mxu0 0
  %3808 = vmatpush.bf16.msra.mxu0 0
  %3809 = vmatpush.bf16.msra.mxu0 %v434
  %3810 = vmatpush.bf16.msra.mxu0 %v426
  %3811 = vmatmul.bf16.gmra.mxu0 %v3762
  %v3812 = vpop.f32.mrf.mxu0
  %v3813 = vadd.f32 %v3800, %v3812
  %v3814 = vpop.f32.mrf.mxu0
  %3815 = vdwg.mxu0
  %3816 = vmatpush.bf16.msra.mxu0 %v419
  %3817 = vmatpush.bf16.msra.mxu0 %v411
  %3818 = vmatpush.bf16.msra.mxu0 %v403
  %3819 = vmatpush.bf16.msra.mxu0 %v395
  %3820 = vmatpush.bf16.msra.mxu0 %v387
  %3821 = vmatpush.bf16.msra.mxu0 %v379
  %3822 = vmatpush.bf16.msra.mxu0 %v371
  %3823 = vmatpush.bf16.msra.mxu0 %v363
  %3824 = vmatmul.bf16.gmra.mxu0 %v3758
  %v3825 = vpop.f32.mrf.mxu0
  %v3826 = vadd.f32 0.0, %v3825
  %v3827 = vpop.f32.mrf.mxu0
  %3828 = vdwg.mxu0
  %3829 = vmatpush.bf16.msra.mxu0 0
  %3830 = vmatpush.bf16.msra.mxu0 0
  %3831 = vmatpush.bf16.msra.mxu0 0
  %3832 = vmatpush.bf16.msra.mxu0 0
  %3833 = vmatpush.bf16.msra.mxu0 0
  %3834 = vmatpush.bf16.msra.mxu0 0
  %3835 = vmatpush.bf16.msra.mxu0 %v435
  %3836 = vmatpush.bf16.msra.mxu0 %v427
  %3837 = vmatmul.bf16.gmra.mxu0 %v3762
  %v3838 = vpop.f32.mrf.mxu0
  %v3839 = vadd.f32 %v3826, %v3838
  %v3840 = vpop.f32.mrf.mxu0
  %3841 = vdwg.mxu0
  %3842 = vmatpush.bf16.msra.mxu0 %v420
  %3843 = vmatpush.bf16.msra.mxu0 %v412
  %3844 = vmatpush.bf16.msra.mxu0 %v404
  %3845 = vmatpush.bf16.msra.mxu0 %v396
  %3846 = vmatpush.bf16.msra.mxu0 %v388
  %3847 = vmatpush.bf16.msra.mxu0 %v380
  %3848 = vmatpush.bf16.msra.mxu0 %v372
  %3849 = vmatpush.bf16.msra.mxu0 %v364
  %3850 = vmatmul.bf16.gmra.mxu0 %v3758
  %v3851 = vpop.f32.mrf.mxu0
  %v3852 = vadd.f32 0.0, %v3851
  %v3853 = vpop.f32.mrf.mxu0
  %3854 = vdwg.mxu0
  %3855 = vmatpush.bf16.msra.mxu0 0
  %3856 = vmatpush.bf16.msra.mxu0 0
  %3857 = vmatpush.bf16.msra.mxu0 0
  %3858 = vmatpush.bf16.msra.mxu0 0
  %3859 = vmatpush.bf16.msra.mxu0 0
  %3860 = vmatpush.bf16.msra.mxu0 0
  %3861 = vmatpush.bf16.msra.mxu0 %v436
  %3862 = vmatpush.bf16.msra.mxu0 %v428
  %3863 = vmatmul.bf16.gmra.mxu0 %v3762
  %v3864 = vpop.f32.mrf.mxu0
  %v3865 = vadd.f32 %v3852, %v3864
  %v3866 = vpop.f32.mrf.mxu0
  %3867 = vdwg.mxu0
  %3868 = vmatpush.bf16.msra.mxu0 %v421
  %3869 = vmatpush.bf16.msra.mxu0 %v413
  %3870 = vmatpush.bf16.msra.mxu0 %v405
  %3871 = vmatpush.bf16.msra.mxu0 %v397
  %3872 = vmatpush.bf16.msra.mxu0 %v389
  %3873 = vmatpush.bf16.msra.mxu0 %v381
  %3874 = vmatpush.bf16.msra.mxu0 %v373
  %3875 = vmatpush.bf16.msra.mxu0 %v365
  %3876 = vmatmul.bf16.gmra.mxu0 %v3758
  %v3877 = vpop.f32.mrf.mxu0
  %v3878 = vadd.f32 0.0, %v3877
  %v3879 = vpop.f32.mrf.mxu0
  %3880 = vdwg.mxu0
  %3881 = vmatpush.bf16.msra.mxu0 0
  %3882 = vmatpush.bf16.msra.mxu0 0
  %3883 = vmatpush.bf16.msra.mxu0 0
  %3884 = vmatpush.bf16.msra.mxu0 0
  %3885 = vmatpush.bf16.msra.mxu0 0
  %3886 = vmatpush.bf16.msra.mxu0 0
  %3887 = vmatpush.bf16.msra.mxu0 %v437
  %3888 = vmatpush.bf16.msra.mxu0 %v429
  %3889 = vmatmul.bf16.gmra.mxu0 %v3762
  %v3890 = vpop.f32.mrf.mxu0
  %v3891 = vadd.f32 %v3878, %v3890
  %v3892 = vpop.f32.mrf.mxu0
  %3893 = vdwg.mxu0
  %3894 = vmatpush.bf16.msra.mxu0 %v422
  %3895 = vmatpush.bf16.msra.mxu0 %v414
  %3896 = vmatpush.bf16.msra.mxu0 %v406
  %3897 = vmatpush.bf16.msra.mxu0 %v398
  %3898 = vmatpush.bf16.msra.mxu0 %v390
  %3899 = vmatpush.bf16.msra.mxu0 %v382
  %3900 = vmatpush.bf16.msra.mxu0 %v374
  %3901 = vmatpush.bf16.msra.mxu0 %v366
  %3902 = vmatmul.bf16.gmra.mxu0 %v3758
  %v3903 = vpop.f32.mrf.mxu0
  %v3904 = vadd.f32 0.0, %v3903
  %v3905 = vpop.f32.mrf.mxu0
  %3906 = vdwg.mxu0
  %3907 = vmatpush.bf16.msra.mxu0 0
  %3908 = vmatpush.bf16.msra.mxu0 0
  %3909 = vmatpush.bf16.msra.mxu0 0
  %3910 = vmatpush.bf16.msra.mxu0 0
  %3911 = vmatpush.bf16.msra.mxu0 0
  %3912 = vmatpush.bf16.msra.mxu0 0
  %3913 = vmatpush.bf16.msra.mxu0 %v438
  %3914 = vmatpush.bf16.msra.mxu0 %v430
  %3915 = vmatmul.bf16.gmra.mxu0 %v3762
  %v3916 = vpop.f32.mrf.mxu0
  %v3917 = vadd.f32 %v3904, %v3916
  %v3918 = vpop.f32.mrf.mxu0
  %3919 = vdwg.mxu0
  %3920 = vmatpush.bf16.msra.mxu0 %v423
  %3921 = vmatpush.bf16.msra.mxu0 %v415
  %3922 = vmatpush.bf16.msra.mxu0 %v407
  %3923 = vmatpush.bf16.msra.mxu0 %v399
  %3924 = vmatpush.bf16.msra.mxu0 %v391
  %3925 = vmatpush.bf16.msra.mxu0 %v383
  %3926 = vmatpush.bf16.msra.mxu0 %v375
  %3927 = vmatpush.bf16.msra.mxu0 %v367
  %3928 = vmatmul.bf16.gmra.mxu0 %v3758
  %v3929 = vpop.f32.mrf.mxu0
  %v3930 = vadd.f32 0.0, %v3929
  %v3931 = vpop.f32.mrf.mxu0
  %3932 = vdwg.mxu0
  %3933 = vmatpush.bf16.msra.mxu0 0
  %3934 = vmatpush.bf16.msra.mxu0 0
  %3935 = vmatpush.bf16.msra.mxu0 0
  %3936 = vmatpush.bf16.msra.mxu0 0
  %3937 = vmatpush.bf16.msra.mxu0 0
  %3938 = vmatpush.bf16.msra.mxu0 0
  %3939 = vmatpush.bf16.msra.mxu0 %v439
  %3940 = vmatpush.bf16.msra.mxu0 %v431
  %3941 = vmatmul.bf16.gmra.mxu0 %v3762
  %v3942 = vpop.f32.mrf.mxu0
  %v3943 = vadd.f32 %v3930, %v3942
  %v3944 = vpop.f32.mrf.mxu0
  %3945 = vdwg.mxu0
  %3946 = vmatpush.bf16.msra.mxu0 %v424
  %3947 = vmatpush.bf16.msra.mxu0 %v416
  %3948 = vmatpush.bf16.msra.mxu0 %v408
  %3949 = vmatpush.bf16.msra.mxu0 %v400
  %3950 = vmatpush.bf16.msra.mxu0 %v392
  %3951 = vmatpush.bf16.msra.mxu0 %v384
  %3952 = vmatpush.bf16.msra.mxu0 %v376
  %3953 = vmatpush.bf16.msra.mxu0 %v368
  %3954 = vmatmul.bf16.gmra.mxu0 %v3758
  %v3955 = vpop.f32.mrf.mxu0
  %v3956 = vadd.f32 0.0, %v3955
  %v3957 = vpop.f32.mrf.mxu0
  %3958 = vdwg.mxu0
  %3959 = vmatpush.bf16.msra.mxu0 0
  %3960 = vmatpush.bf16.msra.mxu0 0
  %3961 = vmatpush.bf16.msra.mxu0 0
  %3962 = vmatpush.bf16.msra.mxu0 0
  %3963 = vmatpush.bf16.msra.mxu0 0
  %3964 = vmatpush.bf16.msra.mxu0 0
  %3965 = vmatpush.bf16.msra.mxu0 %v440
  %3966 = vmatpush.bf16.msra.mxu0 %v432
  %3967 = vmatmul.bf16.gmra.mxu0 %v3762
  %v3968 = vpop.f32.mrf.mxu0
  %v3969 = vadd.f32 %v3956, %v3968
  %v3970 = vpop.f32.mrf.mxu0
  %3971 = vdwg.mxu0
  %s3972 = scalar_lea.vmem %s1, 56
  %v3973 = vld [vmem:[%s3972] sm:$0xff]
  %v3975 = vunpack.c.l.b16 %v3973
  %v3976 = vunpack.c.h.b16 %v3973
  %v3977 = vpack.c.b16 %v3975, %v3975
  %v3978 = vpack.c.b16 %v3976, %v3976
  %v3981 = vsel %vm521, %v3978, 0
  %3983 = vmatpush.bf16.msra.mxu0 %v417
  %3984 = vmatpush.bf16.msra.mxu0 %v409
  %3985 = vmatpush.bf16.msra.mxu0 %v401
  %3986 = vmatpush.bf16.msra.mxu0 %v393
  %3987 = vmatpush.bf16.msra.mxu0 %v385
  %3988 = vmatpush.bf16.msra.mxu0 %v377
  %3989 = vmatpush.bf16.msra.mxu0 %v369
  %3990 = vmatpush.bf16.msra.mxu0 %v361
  %3991 = vmatmul.bf16.gmra.mxu0 %v3977
  %v3992 = vpop.f32.mrf.mxu0
  %v3993 = vadd.f32 0.0, %v3992
  %v3994 = vpop.f32.mrf.mxu0
  %3995 = vdwg.mxu0
  %3996 = vmatpush.bf16.msra.mxu0 0
  %3997 = vmatpush.bf16.msra.mxu0 0
  %3998 = vmatpush.bf16.msra.mxu0 0
  %3999 = vmatpush.bf16.msra.mxu0 0
  %4000 = vmatpush.bf16.msra.mxu0 0
  %4001 = vmatpush.bf16.msra.mxu0 0
  %4002 = vmatpush.bf16.msra.mxu0 %v433
  %4003 = vmatpush.bf16.msra.mxu0 %v425
  %4004 = vmatmul.bf16.gmra.mxu0 %v3981
  %v4005 = vpop.f32.mrf.mxu0
  %v4006 = vadd.f32 %v3993, %v4005
  %v4007 = vpop.f32.mrf.mxu0
  %4008 = vdwg.mxu0
  %4009 = vmatpush.bf16.msra.mxu0 %v418
  %4010 = vmatpush.bf16.msra.mxu0 %v410
  %4011 = vmatpush.bf16.msra.mxu0 %v402
  %4012 = vmatpush.bf16.msra.mxu0 %v394
  %4013 = vmatpush.bf16.msra.mxu0 %v386
  %4014 = vmatpush.bf16.msra.mxu0 %v378
  %4015 = vmatpush.bf16.msra.mxu0 %v370
  %4016 = vmatpush.bf16.msra.mxu0 %v362
  %4017 = vmatmul.bf16.gmra.mxu0 %v3977
  %v4018 = vpop.f32.mrf.mxu0
  %v4019 = vadd.f32 0.0, %v4018
  %v4020 = vpop.f32.mrf.mxu0
  %4021 = vdwg.mxu0
  %4022 = vmatpush.bf16.msra.mxu0 0
  %4023 = vmatpush.bf16.msra.mxu0 0
  %4024 = vmatpush.bf16.msra.mxu0 0
  %4025 = vmatpush.bf16.msra.mxu0 0
  %4026 = vmatpush.bf16.msra.mxu0 0
  %4027 = vmatpush.bf16.msra.mxu0 0
  %4028 = vmatpush.bf16.msra.mxu0 %v434
  %4029 = vmatpush.bf16.msra.mxu0 %v426
  %4030 = vmatmul.bf16.gmra.mxu0 %v3981
  %v4031 = vpop.f32.mrf.mxu0
  %v4032 = vadd.f32 %v4019, %v4031
  %v4033 = vpop.f32.mrf.mxu0
  %4034 = vdwg.mxu0
  %4035 = vmatpush.bf16.msra.mxu0 %v419
  %4036 = vmatpush.bf16.msra.mxu0 %v411
  %4037 = vmatpush.bf16.msra.mxu0 %v403
  %4038 = vmatpush.bf16.msra.mxu0 %v395
  %4039 = vmatpush.bf16.msra.mxu0 %v387
  %4040 = vmatpush.bf16.msra.mxu0 %v379
  %4041 = vmatpush.bf16.msra.mxu0 %v371
  %4042 = vmatpush.bf16.msra.mxu0 %v363
  %4043 = vmatmul.bf16.gmra.mxu0 %v3977
  %v4044 = vpop.f32.mrf.mxu0
  %v4045 = vadd.f32 0.0, %v4044
  %v4046 = vpop.f32.mrf.mxu0
  %4047 = vdwg.mxu0
  %4048 = vmatpush.bf16.msra.mxu0 0
  %4049 = vmatpush.bf16.msra.mxu0 0
  %4050 = vmatpush.bf16.msra.mxu0 0
  %4051 = vmatpush.bf16.msra.mxu0 0
  %4052 = vmatpush.bf16.msra.mxu0 0
  %4053 = vmatpush.bf16.msra.mxu0 0
  %4054 = vmatpush.bf16.msra.mxu0 %v435
  %4055 = vmatpush.bf16.msra.mxu0 %v427
  %4056 = vmatmul.bf16.gmra.mxu0 %v3981
  %v4057 = vpop.f32.mrf.mxu0
  %v4058 = vadd.f32 %v4045, %v4057
  %v4059 = vpop.f32.mrf.mxu0
  %4060 = vdwg.mxu0
  %4061 = vmatpush.bf16.msra.mxu0 %v420
  %4062 = vmatpush.bf16.msra.mxu0 %v412
  %4063 = vmatpush.bf16.msra.mxu0 %v404
  %4064 = vmatpush.bf16.msra.mxu0 %v396
  %4065 = vmatpush.bf16.msra.mxu0 %v388
  %4066 = vmatpush.bf16.msra.mxu0 %v380
  %4067 = vmatpush.bf16.msra.mxu0 %v372
  %4068 = vmatpush.bf16.msra.mxu0 %v364
  %4069 = vmatmul.bf16.gmra.mxu0 %v3977
  %v4070 = vpop.f32.mrf.mxu0
  %v4071 = vadd.f32 0.0, %v4070
  %v4072 = vpop.f32.mrf.mxu0
  %4073 = vdwg.mxu0
  %4074 = vmatpush.bf16.msra.mxu0 0
  %4075 = vmatpush.bf16.msra.mxu0 0
  %4076 = vmatpush.bf16.msra.mxu0 0
  %4077 = vmatpush.bf16.msra.mxu0 0
  %4078 = vmatpush.bf16.msra.mxu0 0
  %4079 = vmatpush.bf16.msra.mxu0 0
  %4080 = vmatpush.bf16.msra.mxu0 %v436
  %4081 = vmatpush.bf16.msra.mxu0 %v428
  %4082 = vmatmul.bf16.gmra.mxu0 %v3981
  %v4083 = vpop.f32.mrf.mxu0
  %v4084 = vadd.f32 %v4071, %v4083
  %v4085 = vpop.f32.mrf.mxu0
  %4086 = vdwg.mxu0
  %4087 = vmatpush.bf16.msra.mxu0 %v421
  %4088 = vmatpush.bf16.msra.mxu0 %v413
  %4089 = vmatpush.bf16.msra.mxu0 %v405
  %4090 = vmatpush.bf16.msra.mxu0 %v397
  %4091 = vmatpush.bf16.msra.mxu0 %v389
  %4092 = vmatpush.bf16.msra.mxu0 %v381
  %4093 = vmatpush.bf16.msra.mxu0 %v373
  %4094 = vmatpush.bf16.msra.mxu0 %v365
  %4095 = vmatmul.bf16.gmra.mxu0 %v3977
  %v4096 = vpop.f32.mrf.mxu0
  %v4097 = vadd.f32 0.0, %v4096
  %v4098 = vpop.f32.mrf.mxu0
  %4099 = vdwg.mxu0
  %4100 = vmatpush.bf16.msra.mxu0 0
  %4101 = vmatpush.bf16.msra.mxu0 0
  %4102 = vmatpush.bf16.msra.mxu0 0
  %4103 = vmatpush.bf16.msra.mxu0 0
  %4104 = vmatpush.bf16.msra.mxu0 0
  %4105 = vmatpush.bf16.msra.mxu0 0
  %4106 = vmatpush.bf16.msra.mxu0 %v437
  %4107 = vmatpush.bf16.msra.mxu0 %v429
  %4108 = vmatmul.bf16.gmra.mxu0 %v3981
  %v4109 = vpop.f32.mrf.mxu0
  %v4110 = vadd.f32 %v4097, %v4109
  %v4111 = vpop.f32.mrf.mxu0
  %4112 = vdwg.mxu0
  %4113 = vmatpush.bf16.msra.mxu0 %v422
  %4114 = vmatpush.bf16.msra.mxu0 %v414
  %4115 = vmatpush.bf16.msra.mxu0 %v406
  %4116 = vmatpush.bf16.msra.mxu0 %v398
  %4117 = vmatpush.bf16.msra.mxu0 %v390
  %4118 = vmatpush.bf16.msra.mxu0 %v382
  %4119 = vmatpush.bf16.msra.mxu0 %v374
  %4120 = vmatpush.bf16.msra.mxu0 %v366
  %4121 = vmatmul.bf16.gmra.mxu0 %v3977
  %v4122 = vpop.f32.mrf.mxu0
  %v4123 = vadd.f32 0.0, %v4122
  %v4124 = vpop.f32.mrf.mxu0
  %4125 = vdwg.mxu0
  %4126 = vmatpush.bf16.msra.mxu0 0
  %4127 = vmatpush.bf16.msra.mxu0 0
  %4128 = vmatpush.bf16.msra.mxu0 0
  %4129 = vmatpush.bf16.msra.mxu0 0
  %4130 = vmatpush.bf16.msra.mxu0 0
  %4131 = vmatpush.bf16.msra.mxu0 0
  %4132 = vmatpush.bf16.msra.mxu0 %v438
  %4133 = vmatpush.bf16.msra.mxu0 %v430
  %4134 = vmatmul.bf16.gmra.mxu0 %v3981
  %v4135 = vpop.f32.mrf.mxu0
  %v4136 = vadd.f32 %v4123, %v4135
  %v4137 = vpop.f32.mrf.mxu0
  %4138 = vdwg.mxu0
  %4139 = vmatpush.bf16.msra.mxu0 %v423
  %4140 = vmatpush.bf16.msra.mxu0 %v415
  %4141 = vmatpush.bf16.msra.mxu0 %v407
  %4142 = vmatpush.bf16.msra.mxu0 %v399
  %4143 = vmatpush.bf16.msra.mxu0 %v391
  %4144 = vmatpush.bf16.msra.mxu0 %v383
  %4145 = vmatpush.bf16.msra.mxu0 %v375
  %4146 = vmatpush.bf16.msra.mxu0 %v367
  %4147 = vmatmul.bf16.gmra.mxu0 %v3977
  %v4148 = vpop.f32.mrf.mxu0
  %v4149 = vadd.f32 0.0, %v4148
  %v4150 = vpop.f32.mrf.mxu0
  %4151 = vdwg.mxu0
  %4152 = vmatpush.bf16.msra.mxu0 0
  %4153 = vmatpush.bf16.msra.mxu0 0
  %4154 = vmatpush.bf16.msra.mxu0 0
  %4155 = vmatpush.bf16.msra.mxu0 0
  %4156 = vmatpush.bf16.msra.mxu0 0
  %4157 = vmatpush.bf16.msra.mxu0 0
  %4158 = vmatpush.bf16.msra.mxu0 %v439
  %4159 = vmatpush.bf16.msra.mxu0 %v431
  %4160 = vmatmul.bf16.gmra.mxu0 %v3981
  %v4161 = vpop.f32.mrf.mxu0
  %v4162 = vadd.f32 %v4149, %v4161
  %v4163 = vpop.f32.mrf.mxu0
  %4164 = vdwg.mxu0
  %4165 = vmatpush.bf16.msra.mxu0 %v424
  %4166 = vmatpush.bf16.msra.mxu0 %v416
  %4167 = vmatpush.bf16.msra.mxu0 %v408
  %4168 = vmatpush.bf16.msra.mxu0 %v400
  %4169 = vmatpush.bf16.msra.mxu0 %v392
  %4170 = vmatpush.bf16.msra.mxu0 %v384
  %4171 = vmatpush.bf16.msra.mxu0 %v376
  %4172 = vmatpush.bf16.msra.mxu0 %v368
  %4173 = vmatmul.bf16.gmra.mxu0 %v3977
  %v4174 = vpop.f32.mrf.mxu0
  %v4175 = vadd.f32 0.0, %v4174
  %v4176 = vpop.f32.mrf.mxu0
  %4177 = vdwg.mxu0
  %4178 = vmatpush.bf16.msra.mxu0 0
  %4179 = vmatpush.bf16.msra.mxu0 0
  %4180 = vmatpush.bf16.msra.mxu0 0
  %4181 = vmatpush.bf16.msra.mxu0 0
  %4182 = vmatpush.bf16.msra.mxu0 0
  %4183 = vmatpush.bf16.msra.mxu0 0
  %4184 = vmatpush.bf16.msra.mxu0 %v440
  %4185 = vmatpush.bf16.msra.mxu0 %v432
  %4186 = vmatmul.bf16.gmra.mxu0 %v3981
  %v4187 = vpop.f32.mrf.mxu0
  %v4188 = vadd.f32 %v4175, %v4187
  %v4189 = vpop.f32.mrf.mxu0
  %4190 = vdwg.mxu0
  %v4191 = vmax.f32 %v3787, %v3891
  %v4192 = vmax.f32 %v3813, %v3917
  %v4193 = vmax.f32 %v3839, %v3943
  %v4194 = vmax.f32 %v3865, %v3969
  %v4195 = vmax.f32 %v4006, %v4110
  %v4196 = vmax.f32 %v4032, %v4136
  %v4197 = vmax.f32 %v4058, %v4162
  %v4198 = vmax.f32 %v4084, %v4188
  %v4199 = vmax.f32 %v4191, %v4195
  %v4200 = vmax.f32 %v4192, %v4196
  %v4201 = vmax.f32 %v4193, %v4197
  %v4202 = vmax.f32 %v4194, %v4198
  %v4203 = vadd.f32 %v4199, %v106
  %v4204 = vadd.f32 %v4200, %v107
  %v4205 = vadd.f32 %v4201, %v108
  %v4206 = vadd.f32 %v4202, %v109
  %v4207 = vmax.f32 %v4203, 0.0
  %v4208 = vmax.f32 %v4204, 0.0
  %v4209 = vmax.f32 %v4205, 0.0
  %v4210 = vmax.f32 %v4206, 0.0
  %v4211 = vpack.c.bf16 %v4208, %v4207
  %v4212 = vpack.c.bf16 %v4210, %v4209
  %s4213 = scalar_lea.vmem [#allocation2], 112
  %4214 = vst [vmem:[%s4213] sm:$0xff] %v4211
  %4215 = vst [vmem:[%s4213 + $0x8] sm:$0xff] %v4212
  %s4216 = scalar_lea.vmem %s0, 64
  %v4217 = vld [vmem:[%s4216] sm:$0xff]
  %v4219 = vunpack.c.l.b16 %v4217
  %v4220 = vunpack.c.h.b16 %v4217
  %v4221 = vpack.c.b16 %v4219, %v4219
  %v4222 = vpack.c.b16 %v4220, %v4220
  %v4225 = vsel %vm521, %v4222, 0
  %4227 = vmatpush.bf16.msra.mxu0 %v417
  %4228 = vmatpush.bf16.msra.mxu0 %v409
  %4229 = vmatpush.bf16.msra.mxu0 %v401
  %4230 = vmatpush.bf16.msra.mxu0 %v393
  %4231 = vmatpush.bf16.msra.mxu0 %v385
  %4232 = vmatpush.bf16.msra.mxu0 %v377
  %4233 = vmatpush.bf16.msra.mxu0 %v369
  %4234 = vmatpush.bf16.msra.mxu0 %v361
  %4235 = vmatmul.bf16.gmra.mxu0 %v4221
  %v4236 = vpop.f32.mrf.mxu0
  %v4237 = vadd.f32 0.0, %v4236
  %v4238 = vpop.f32.mrf.mxu0
  %4239 = vdwg.mxu0
  %4240 = vmatpush.bf16.msra.mxu0 0
  %4241 = vmatpush.bf16.msra.mxu0 0
  %4242 = vmatpush.bf16.msra.mxu0 0
  %4243 = vmatpush.bf16.msra.mxu0 0
  %4244 = vmatpush.bf16.msra.mxu0 0
  %4245 = vmatpush.bf16.msra.mxu0 0
  %4246 = vmatpush.bf16.msra.mxu0 %v433
  %4247 = vmatpush.bf16.msra.mxu0 %v425
  %4248 = vmatmul.bf16.gmra.mxu0 %v4225
  %v4249 = vpop.f32.mrf.mxu0
  %v4250 = vadd.f32 %v4237, %v4249
  %v4251 = vpop.f32.mrf.mxu0
  %4252 = vdwg.mxu0
  %4253 = vmatpush.bf16.msra.mxu0 %v418
  %4254 = vmatpush.bf16.msra.mxu0 %v410
  %4255 = vmatpush.bf16.msra.mxu0 %v402
  %4256 = vmatpush.bf16.msra.mxu0 %v394
  %4257 = vmatpush.bf16.msra.mxu0 %v386
  %4258 = vmatpush.bf16.msra.mxu0 %v378
  %4259 = vmatpush.bf16.msra.mxu0 %v370
  %4260 = vmatpush.bf16.msra.mxu0 %v362
  %4261 = vmatmul.bf16.gmra.mxu0 %v4221
  %v4262 = vpop.f32.mrf.mxu0
  %v4263 = vadd.f32 0.0, %v4262
  %v4264 = vpop.f32.mrf.mxu0
  %4265 = vdwg.mxu0
  %4266 = vmatpush.bf16.msra.mxu0 0
  %4267 = vmatpush.bf16.msra.mxu0 0
  %4268 = vmatpush.bf16.msra.mxu0 0
  %4269 = vmatpush.bf16.msra.mxu0 0
  %4270 = vmatpush.bf16.msra.mxu0 0
  %4271 = vmatpush.bf16.msra.mxu0 0
  %4272 = vmatpush.bf16.msra.mxu0 %v434
  %4273 = vmatpush.bf16.msra.mxu0 %v426
  %4274 = vmatmul.bf16.gmra.mxu0 %v4225
  %v4275 = vpop.f32.mrf.mxu0
  %v4276 = vadd.f32 %v4263, %v4275
  %v4277 = vpop.f32.mrf.mxu0
  %4278 = vdwg.mxu0
  %4279 = vmatpush.bf16.msra.mxu0 %v419
  %4280 = vmatpush.bf16.msra.mxu0 %v411
  %4281 = vmatpush.bf16.msra.mxu0 %v403
  %4282 = vmatpush.bf16.msra.mxu0 %v395
  %4283 = vmatpush.bf16.msra.mxu0 %v387
  %4284 = vmatpush.bf16.msra.mxu0 %v379
  %4285 = vmatpush.bf16.msra.mxu0 %v371
  %4286 = vmatpush.bf16.msra.mxu0 %v363
  %4287 = vmatmul.bf16.gmra.mxu0 %v4221
  %v4288 = vpop.f32.mrf.mxu0
  %v4289 = vadd.f32 0.0, %v4288
  %v4290 = vpop.f32.mrf.mxu0
  %4291 = vdwg.mxu0
  %4292 = vmatpush.bf16.msra.mxu0 0
  %4293 = vmatpush.bf16.msra.mxu0 0
  %4294 = vmatpush.bf16.msra.mxu0 0
  %4295 = vmatpush.bf16.msra.mxu0 0
  %4296 = vmatpush.bf16.msra.mxu0 0
  %4297 = vmatpush.bf16.msra.mxu0 0
  %4298 = vmatpush.bf16.msra.mxu0 %v435
  %4299 = vmatpush.bf16.msra.mxu0 %v427
  %4300 = vmatmul.bf16.gmra.mxu0 %v4225
  %v4301 = vpop.f32.mrf.mxu0
  %v4302 = vadd.f32 %v4289, %v4301
  %v4303 = vpop.f32.mrf.mxu0
  %4304 = vdwg.mxu0
  %4305 = vmatpush.bf16.msra.mxu0 %v420
  %4306 = vmatpush.bf16.msra.mxu0 %v412
  %4307 = vmatpush.bf16.msra.mxu0 %v404
  %4308 = vmatpush.bf16.msra.mxu0 %v396
  %4309 = vmatpush.bf16.msra.mxu0 %v388
  %4310 = vmatpush.bf16.msra.mxu0 %v380
  %4311 = vmatpush.bf16.msra.mxu0 %v372
  %4312 = vmatpush.bf16.msra.mxu0 %v364
  %4313 = vmatmul.bf16.gmra.mxu0 %v4221
  %v4314 = vpop.f32.mrf.mxu0
  %v4315 = vadd.f32 0.0, %v4314
  %v4316 = vpop.f32.mrf.mxu0
  %4317 = vdwg.mxu0
  %4318 = vmatpush.bf16.msra.mxu0 0
  %4319 = vmatpush.bf16.msra.mxu0 0
  %4320 = vmatpush.bf16.msra.mxu0 0
  %4321 = vmatpush.bf16.msra.mxu0 0
  %4322 = vmatpush.bf16.msra.mxu0 0
  %4323 = vmatpush.bf16.msra.mxu0 0
  %4324 = vmatpush.bf16.msra.mxu0 %v436
  %4325 = vmatpush.bf16.msra.mxu0 %v428
  %4326 = vmatmul.bf16.gmra.mxu0 %v4225
  %v4327 = vpop.f32.mrf.mxu0
  %v4328 = vadd.f32 %v4315, %v4327
  %v4329 = vpop.f32.mrf.mxu0
  %4330 = vdwg.mxu0
  %4331 = vmatpush.bf16.msra.mxu0 %v421
  %4332 = vmatpush.bf16.msra.mxu0 %v413
  %4333 = vmatpush.bf16.msra.mxu0 %v405
  %4334 = vmatpush.bf16.msra.mxu0 %v397
  %4335 = vmatpush.bf16.msra.mxu0 %v389
  %4336 = vmatpush.bf16.msra.mxu0 %v381
  %4337 = vmatpush.bf16.msra.mxu0 %v373
  %4338 = vmatpush.bf16.msra.mxu0 %v365
  %4339 = vmatmul.bf16.gmra.mxu0 %v4221
  %v4340 = vpop.f32.mrf.mxu0
  %v4341 = vadd.f32 0.0, %v4340
  %v4342 = vpop.f32.mrf.mxu0
  %4343 = vdwg.mxu0
  %4344 = vmatpush.bf16.msra.mxu0 0
  %4345 = vmatpush.bf16.msra.mxu0 0
  %4346 = vmatpush.bf16.msra.mxu0 0
  %4347 = vmatpush.bf16.msra.mxu0 0
  %4348 = vmatpush.bf16.msra.mxu0 0
  %4349 = vmatpush.bf16.msra.mxu0 0
  %4350 = vmatpush.bf16.msra.mxu0 %v437
  %4351 = vmatpush.bf16.msra.mxu0 %v429
  %4352 = vmatmul.bf16.gmra.mxu0 %v4225
  %v4353 = vpop.f32.mrf.mxu0
  %v4354 = vadd.f32 %v4341, %v4353
  %v4355 = vpop.f32.mrf.mxu0
  %4356 = vdwg.mxu0
  %4357 = vmatpush.bf16.msra.mxu0 %v422
  %4358 = vmatpush.bf16.msra.mxu0 %v414
  %4359 = vmatpush.bf16.msra.mxu0 %v406
  %4360 = vmatpush.bf16.msra.mxu0 %v398
  %4361 = vmatpush.bf16.msra.mxu0 %v390
  %4362 = vmatpush.bf16.msra.mxu0 %v382
  %4363 = vmatpush.bf16.msra.mxu0 %v374
  %4364 = vmatpush.bf16.msra.mxu0 %v366
  %4365 = vmatmul.bf16.gmra.mxu0 %v4221
  %v4366 = vpop.f32.mrf.mxu0
  %v4367 = vadd.f32 0.0, %v4366
  %v4368 = vpop.f32.mrf.mxu0
  %4369 = vdwg.mxu0
  %4370 = vmatpush.bf16.msra.mxu0 0
  %4371 = vmatpush.bf16.msra.mxu0 0
  %4372 = vmatpush.bf16.msra.mxu0 0
  %4373 = vmatpush.bf16.msra.mxu0 0
  %4374 = vmatpush.bf16.msra.mxu0 0
  %4375 = vmatpush.bf16.msra.mxu0 0
  %4376 = vmatpush.bf16.msra.mxu0 %v438
  %4377 = vmatpush.bf16.msra.mxu0 %v430
  %4378 = vmatmul.bf16.gmra.mxu0 %v4225
  %v4379 = vpop.f32.mrf.mxu0
  %v4380 = vadd.f32 %v4367, %v4379
  %v4381 = vpop.f32.mrf.mxu0
  %4382 = vdwg.mxu0
  %4383 = vmatpush.bf16.msra.mxu0 %v423
  %4384 = vmatpush.bf16.msra.mxu0 %v415
  %4385 = vmatpush.bf16.msra.mxu0 %v407
  %4386 = vmatpush.bf16.msra.mxu0 %v399
  %4387 = vmatpush.bf16.msra.mxu0 %v391
  %4388 = vmatpush.bf16.msra.mxu0 %v383
  %4389 = vmatpush.bf16.msra.mxu0 %v375
  %4390 = vmatpush.bf16.msra.mxu0 %v367
  %4391 = vmatmul.bf16.gmra.mxu0 %v4221
  %v4392 = vpop.f32.mrf.mxu0
  %v4393 = vadd.f32 0.0, %v4392
  %v4394 = vpop.f32.mrf.mxu0
  %4395 = vdwg.mxu0
  %4396 = vmatpush.bf16.msra.mxu0 0
  %4397 = vmatpush.bf16.msra.mxu0 0
  %4398 = vmatpush.bf16.msra.mxu0 0
  %4399 = vmatpush.bf16.msra.mxu0 0
  %4400 = vmatpush.bf16.msra.mxu0 0
  %4401 = vmatpush.bf16.msra.mxu0 0
  %4402 = vmatpush.bf16.msra.mxu0 %v439
  %4403 = vmatpush.bf16.msra.mxu0 %v431
  %4404 = vmatmul.bf16.gmra.mxu0 %v4225
  %v4405 = vpop.f32.mrf.mxu0
  %v4406 = vadd.f32 %v4393, %v4405
  %v4407 = vpop.f32.mrf.mxu0
  %4408 = vdwg.mxu0
  %4409 = vmatpush.bf16.msra.mxu0 %v424
  %4410 = vmatpush.bf16.msra.mxu0 %v416
  %4411 = vmatpush.bf16.msra.mxu0 %v408
  %4412 = vmatpush.bf16.msra.mxu0 %v400
  %4413 = vmatpush.bf16.msra.mxu0 %v392
  %4414 = vmatpush.bf16.msra.mxu0 %v384
  %4415 = vmatpush.bf16.msra.mxu0 %v376
  %4416 = vmatpush.bf16.msra.mxu0 %v368
  %4417 = vmatmul.bf16.gmra.mxu0 %v4221
  %v4418 = vpop.f32.mrf.mxu0
  %v4419 = vadd.f32 0.0, %v4418
  %v4420 = vpop.f32.mrf.mxu0
  %4421 = vdwg.mxu0
  %4422 = vmatpush.bf16.msra.mxu0 0
  %4423 = vmatpush.bf16.msra.mxu0 0
  %4424 = vmatpush.bf16.msra.mxu0 0
  %4425 = vmatpush.bf16.msra.mxu0 0
  %4426 = vmatpush.bf16.msra.mxu0 0
  %4427 = vmatpush.bf16.msra.mxu0 0
  %4428 = vmatpush.bf16.msra.mxu0 %v440
  %4429 = vmatpush.bf16.msra.mxu0 %v432
  %4430 = vmatmul.bf16.gmra.mxu0 %v4225
  %v4431 = vpop.f32.mrf.mxu0
  %v4432 = vadd.f32 %v4419, %v4431
  %v4433 = vpop.f32.mrf.mxu0
  %4434 = vdwg.mxu0
  %s4435 = scalar_lea.vmem %s1, 64
  %v4436 = vld [vmem:[%s4435] sm:$0xff]
  %v4438 = vunpack.c.l.b16 %v4436
  %v4439 = vunpack.c.h.b16 %v4436
  %v4440 = vpack.c.b16 %v4438, %v4438
  %v4441 = vpack.c.b16 %v4439, %v4439
  %v4444 = vsel %vm521, %v4441, 0
  %4446 = vmatpush.bf16.msra.mxu0 %v417
  %4447 = vmatpush.bf16.msra.mxu0 %v409
  %4448 = vmatpush.bf16.msra.mxu0 %v401
  %4449 = vmatpush.bf16.msra.mxu0 %v393
  %4450 = vmatpush.bf16.msra.mxu0 %v385
  %4451 = vmatpush.bf16.msra.mxu0 %v377
  %4452 = vmatpush.bf16.msra.mxu0 %v369
  %4453 = vmatpush.bf16.msra.mxu0 %v361
  %4454 = vmatmul.bf16.gmra.mxu0 %v4440
  %v4455 = vpop.f32.mrf.mxu0
  %v4456 = vadd.f32 0.0, %v4455
  %v4457 = vpop.f32.mrf.mxu0
  %4458 = vdwg.mxu0
  %4459 = vmatpush.bf16.msra.mxu0 0
  %4460 = vmatpush.bf16.msra.mxu0 0
  %4461 = vmatpush.bf16.msra.mxu0 0
  %4462 = vmatpush.bf16.msra.mxu0 0
  %4463 = vmatpush.bf16.msra.mxu0 0
  %4464 = vmatpush.bf16.msra.mxu0 0
  %4465 = vmatpush.bf16.msra.mxu0 %v433
  %4466 = vmatpush.bf16.msra.mxu0 %v425
  %4467 = vmatmul.bf16.gmra.mxu0 %v4444
  %v4468 = vpop.f32.mrf.mxu0
  %v4469 = vadd.f32 %v4456, %v4468
  %v4470 = vpop.f32.mrf.mxu0
  %4471 = vdwg.mxu0
  %4472 = vmatpush.bf16.msra.mxu0 %v418
  %4473 = vmatpush.bf16.msra.mxu0 %v410
  %4474 = vmatpush.bf16.msra.mxu0 %v402
  %4475 = vmatpush.bf16.msra.mxu0 %v394
  %4476 = vmatpush.bf16.msra.mxu0 %v386
  %4477 = vmatpush.bf16.msra.mxu0 %v378
  %4478 = vmatpush.bf16.msra.mxu0 %v370
  %4479 = vmatpush.bf16.msra.mxu0 %v362
  %4480 = vmatmul.bf16.gmra.mxu0 %v4440
  %v4481 = vpop.f32.mrf.mxu0
  %v4482 = vadd.f32 0.0, %v4481
  %v4483 = vpop.f32.mrf.mxu0
  %4484 = vdwg.mxu0
  %4485 = vmatpush.bf16.msra.mxu0 0
  %4486 = vmatpush.bf16.msra.mxu0 0
  %4487 = vmatpush.bf16.msra.mxu0 0
  %4488 = vmatpush.bf16.msra.mxu0 0
  %4489 = vmatpush.bf16.msra.mxu0 0
  %4490 = vmatpush.bf16.msra.mxu0 0
  %4491 = vmatpush.bf16.msra.mxu0 %v434
  %4492 = vmatpush.bf16.msra.mxu0 %v426
  %4493 = vmatmul.bf16.gmra.mxu0 %v4444
  %v4494 = vpop.f32.mrf.mxu0
  %v4495 = vadd.f32 %v4482, %v4494
  %v4496 = vpop.f32.mrf.mxu0
  %4497 = vdwg.mxu0
  %4498 = vmatpush.bf16.msra.mxu0 %v419
  %4499 = vmatpush.bf16.msra.mxu0 %v411
  %4500 = vmatpush.bf16.msra.mxu0 %v403
  %4501 = vmatpush.bf16.msra.mxu0 %v395
  %4502 = vmatpush.bf16.msra.mxu0 %v387
  %4503 = vmatpush.bf16.msra.mxu0 %v379
  %4504 = vmatpush.bf16.msra.mxu0 %v371
  %4505 = vmatpush.bf16.msra.mxu0 %v363
  %4506 = vmatmul.bf16.gmra.mxu0 %v4440
  %v4507 = vpop.f32.mrf.mxu0
  %v4508 = vadd.f32 0.0, %v4507
  %v4509 = vpop.f32.mrf.mxu0
  %4510 = vdwg.mxu0
  %4511 = vmatpush.bf16.msra.mxu0 0
  %4512 = vmatpush.bf16.msra.mxu0 0
  %4513 = vmatpush.bf16.msra.mxu0 0
  %4514 = vmatpush.bf16.msra.mxu0 0
  %4515 = vmatpush.bf16.msra.mxu0 0
  %4516 = vmatpush.bf16.msra.mxu0 0
  %4517 = vmatpush.bf16.msra.mxu0 %v435
  %4518 = vmatpush.bf16.msra.mxu0 %v427
  %4519 = vmatmul.bf16.gmra.mxu0 %v4444
  %v4520 = vpop.f32.mrf.mxu0
  %v4521 = vadd.f32 %v4508, %v4520
  %v4522 = vpop.f32.mrf.mxu0
  %4523 = vdwg.mxu0
  %4524 = vmatpush.bf16.msra.mxu0 %v420
  %4525 = vmatpush.bf16.msra.mxu0 %v412
  %4526 = vmatpush.bf16.msra.mxu0 %v404
  %4527 = vmatpush.bf16.msra.mxu0 %v396
  %4528 = vmatpush.bf16.msra.mxu0 %v388
  %4529 = vmatpush.bf16.msra.mxu0 %v380
  %4530 = vmatpush.bf16.msra.mxu0 %v372
  %4531 = vmatpush.bf16.msra.mxu0 %v364
  %4532 = vmatmul.bf16.gmra.mxu0 %v4440
  %v4533 = vpop.f32.mrf.mxu0
  %v4534 = vadd.f32 0.0, %v4533
  %v4535 = vpop.f32.mrf.mxu0
  %4536 = vdwg.mxu0
  %4537 = vmatpush.bf16.msra.mxu0 0
  %4538 = vmatpush.bf16.msra.mxu0 0
  %4539 = vmatpush.bf16.msra.mxu0 0
  %4540 = vmatpush.bf16.msra.mxu0 0
  %4541 = vmatpush.bf16.msra.mxu0 0
  %4542 = vmatpush.bf16.msra.mxu0 0
  %4543 = vmatpush.bf16.msra.mxu0 %v436
  %4544 = vmatpush.bf16.msra.mxu0 %v428
  %4545 = vmatmul.bf16.gmra.mxu0 %v4444
  %v4546 = vpop.f32.mrf.mxu0
  %v4547 = vadd.f32 %v4534, %v4546
  %v4548 = vpop.f32.mrf.mxu0
  %4549 = vdwg.mxu0
  %4550 = vmatpush.bf16.msra.mxu0 %v421
  %4551 = vmatpush.bf16.msra.mxu0 %v413
  %4552 = vmatpush.bf16.msra.mxu0 %v405
  %4553 = vmatpush.bf16.msra.mxu0 %v397
  %4554 = vmatpush.bf16.msra.mxu0 %v389
  %4555 = vmatpush.bf16.msra.mxu0 %v381
  %4556 = vmatpush.bf16.msra.mxu0 %v373
  %4557 = vmatpush.bf16.msra.mxu0 %v365
  %4558 = vmatmul.bf16.gmra.mxu0 %v4440
  %v4559 = vpop.f32.mrf.mxu0
  %v4560 = vadd.f32 0.0, %v4559
  %v4561 = vpop.f32.mrf.mxu0
  %4562 = vdwg.mxu0
  %4563 = vmatpush.bf16.msra.mxu0 0
  %4564 = vmatpush.bf16.msra.mxu0 0
  %4565 = vmatpush.bf16.msra.mxu0 0
  %4566 = vmatpush.bf16.msra.mxu0 0
  %4567 = vmatpush.bf16.msra.mxu0 0
  %4568 = vmatpush.bf16.msra.mxu0 0
  %4569 = vmatpush.bf16.msra.mxu0 %v437
  %4570 = vmatpush.bf16.msra.mxu0 %v429
  %4571 = vmatmul.bf16.gmra.mxu0 %v4444
  %v4572 = vpop.f32.mrf.mxu0
  %v4573 = vadd.f32 %v4560, %v4572
  %v4574 = vpop.f32.mrf.mxu0
  %4575 = vdwg.mxu0
  %4576 = vmatpush.bf16.msra.mxu0 %v422
  %4577 = vmatpush.bf16.msra.mxu0 %v414
  %4578 = vmatpush.bf16.msra.mxu0 %v406
  %4579 = vmatpush.bf16.msra.mxu0 %v398
  %4580 = vmatpush.bf16.msra.mxu0 %v390
  %4581 = vmatpush.bf16.msra.mxu0 %v382
  %4582 = vmatpush.bf16.msra.mxu0 %v374
  %4583 = vmatpush.bf16.msra.mxu0 %v366
  %4584 = vmatmul.bf16.gmra.mxu0 %v4440
  %v4585 = vpop.f32.mrf.mxu0
  %v4586 = vadd.f32 0.0, %v4585
  %v4587 = vpop.f32.mrf.mxu0
  %4588 = vdwg.mxu0
  %4589 = vmatpush.bf16.msra.mxu0 0
  %4590 = vmatpush.bf16.msra.mxu0 0
  %4591 = vmatpush.bf16.msra.mxu0 0
  %4592 = vmatpush.bf16.msra.mxu0 0
  %4593 = vmatpush.bf16.msra.mxu0 0
  %4594 = vmatpush.bf16.msra.mxu0 0
  %4595 = vmatpush.bf16.msra.mxu0 %v438
  %4596 = vmatpush.bf16.msra.mxu0 %v430
  %4597 = vmatmul.bf16.gmra.mxu0 %v4444
  %v4598 = vpop.f32.mrf.mxu0
  %v4599 = vadd.f32 %v4586, %v4598
  %v4600 = vpop.f32.mrf.mxu0
  %4601 = vdwg.mxu0
  %4602 = vmatpush.bf16.msra.mxu0 %v423
  %4603 = vmatpush.bf16.msra.mxu0 %v415
  %4604 = vmatpush.bf16.msra.mxu0 %v407
  %4605 = vmatpush.bf16.msra.mxu0 %v399
  %4606 = vmatpush.bf16.msra.mxu0 %v391
  %4607 = vmatpush.bf16.msra.mxu0 %v383
  %4608 = vmatpush.bf16.msra.mxu0 %v375
  %4609 = vmatpush.bf16.msra.mxu0 %v367
  %4610 = vmatmul.bf16.gmra.mxu0 %v4440
  %v4611 = vpop.f32.mrf.mxu0
  %v4612 = vadd.f32 0.0, %v4611
  %v4613 = vpop.f32.mrf.mxu0
  %4614 = vdwg.mxu0
  %4615 = vmatpush.bf16.msra.mxu0 0
  %4616 = vmatpush.bf16.msra.mxu0 0
  %4617 = vmatpush.bf16.msra.mxu0 0
  %4618 = vmatpush.bf16.msra.mxu0 0
  %4619 = vmatpush.bf16.msra.mxu0 0
  %4620 = vmatpush.bf16.msra.mxu0 0
  %4621 = vmatpush.bf16.msra.mxu0 %v439
  %4622 = vmatpush.bf16.msra.mxu0 %v431
  %4623 = vmatmul.bf16.gmra.mxu0 %v4444
  %v4624 = vpop.f32.mrf.mxu0
  %v4625 = vadd.f32 %v4612, %v4624
  %v4626 = vpop.f32.mrf.mxu0
  %4627 = vdwg.mxu0
  %4628 = vmatpush.bf16.msra.mxu0 %v424
  %4629 = vmatpush.bf16.msra.mxu0 %v416
  %4630 = vmatpush.bf16.msra.mxu0 %v408
  %4631 = vmatpush.bf16.msra.mxu0 %v400
  %4632 = vmatpush.bf16.msra.mxu0 %v392
  %4633 = vmatpush.bf16.msra.mxu0 %v384
  %4634 = vmatpush.bf16.msra.mxu0 %v376
  %4635 = vmatpush.bf16.msra.mxu0 %v368
  %4636 = vmatmul.bf16.gmra.mxu0 %v4440
  %v4637 = vpop.f32.mrf.mxu0
  %v4638 = vadd.f32 0.0, %v4637
  %v4639 = vpop.f32.mrf.mxu0
  %4640 = vdwg.mxu0
  %4641 = vmatpush.bf16.msra.mxu0 0
  %4642 = vmatpush.bf16.msra.mxu0 0
  %4643 = vmatpush.bf16.msra.mxu0 0
  %4644 = vmatpush.bf16.msra.mxu0 0
  %4645 = vmatpush.bf16.msra.mxu0 0
  %4646 = vmatpush.bf16.msra.mxu0 0
  %4647 = vmatpush.bf16.msra.mxu0 %v440
  %4648 = vmatpush.bf16.msra.mxu0 %v432
  %4649 = vmatmul.bf16.gmra.mxu0 %v4444
  %v4650 = vpop.f32.mrf.mxu0
  %v4651 = vadd.f32 %v4638, %v4650
  %v4652 = vpop.f32.mrf.mxu0
  %4653 = vdwg.mxu0
  %v4654 = vmax.f32 %v4250, %v4354
  %v4655 = vmax.f32 %v4276, %v4380
  %v4656 = vmax.f32 %v4302, %v4406
  %v4657 = vmax.f32 %v4328, %v4432
  %v4658 = vmax.f32 %v4469, %v4573
  %v4659 = vmax.f32 %v4495, %v4599
  %v4660 = vmax.f32 %v4521, %v4625
  %v4661 = vmax.f32 %v4547, %v4651
  %v4662 = vmax.f32 %v4654, %v4658
  %v4663 = vmax.f32 %v4655, %v4659
  %v4664 = vmax.f32 %v4656, %v4660
  %v4665 = vmax.f32 %v4657, %v4661
  %v4666 = vadd.f32 %v4662, %v106
  %v4667 = vadd.f32 %v4663, %v107
  %v4668 = vadd.f32 %v4664, %v108
  %v4669 = vadd.f32 %v4665, %v109
  %v4670 = vmax.f32 %v4666, 0.0
  %v4671 = vmax.f32 %v4667, 0.0
  %v4672 = vmax.f32 %v4668, 0.0
  %v4673 = vmax.f32 %v4669, 0.0
  %v4674 = vpack.c.bf16 %v4671, %v4670
  %v4675 = vpack.c.bf16 %v4673, %v4672
  %s4676 = scalar_lea.vmem [#allocation2], 128
  %4677 = vst [vmem:[%s4676] sm:$0xff] %v4674
  %4678 = vst [vmem:[%s4676 + $0x8] sm:$0xff] %v4675
  %s4679 = scalar_lea.vmem %s0, 72
  %v4680 = vld [vmem:[%s4679] sm:$0xff]
  %v4682 = vunpack.c.l.b16 %v4680
  %v4683 = vunpack.c.h.b16 %v4680
  %v4684 = vpack.c.b16 %v4682, %v4682
  %v4685 = vpack.c.b16 %v4683, %v4683
  %v4688 = vsel %vm521, %v4685, 0
  %4690 = vmatpush.bf16.msra.mxu0 %v417
  %4691 = vmatpush.bf16.msra.mxu0 %v409
  %4692 = vmatpush.bf16.msra.mxu0 %v401
  %4693 = vmatpush.bf16.msra.mxu0 %v393
  %4694 = vmatpush.bf16.msra.mxu0 %v385
  %4695 = vmatpush.bf16.msra.mxu0 %v377
  %4696 = vmatpush.bf16.msra.mxu0 %v369
  %4697 = vmatpush.bf16.msra.mxu0 %v361
  %4698 = vmatmul.bf16.gmra.mxu0 %v4684
  %v4699 = vpop.f32.mrf.mxu0
  %v4700 = vadd.f32 0.0, %v4699
  %v4701 = vpop.f32.mrf.mxu0
  %4702 = vdwg.mxu0
  %4703 = vmatpush.bf16.msra.mxu0 0
  %4704 = vmatpush.bf16.msra.mxu0 0
  %4705 = vmatpush.bf16.msra.mxu0 0
  %4706 = vmatpush.bf16.msra.mxu0 0
  %4707 = vmatpush.bf16.msra.mxu0 0
  %4708 = vmatpush.bf16.msra.mxu0 0
  %4709 = vmatpush.bf16.msra.mxu0 %v433
  %4710 = vmatpush.bf16.msra.mxu0 %v425
  %4711 = vmatmul.bf16.gmra.mxu0 %v4688
  %v4712 = vpop.f32.mrf.mxu0
  %v4713 = vadd.f32 %v4700, %v4712
  %v4714 = vpop.f32.mrf.mxu0
  %4715 = vdwg.mxu0
  %4716 = vmatpush.bf16.msra.mxu0 %v418
  %4717 = vmatpush.bf16.msra.mxu0 %v410
  %4718 = vmatpush.bf16.msra.mxu0 %v402
  %4719 = vmatpush.bf16.msra.mxu0 %v394
  %4720 = vmatpush.bf16.msra.mxu0 %v386
  %4721 = vmatpush.bf16.msra.mxu0 %v378
  %4722 = vmatpush.bf16.msra.mxu0 %v370
  %4723 = vmatpush.bf16.msra.mxu0 %v362
  %4724 = vmatmul.bf16.gmra.mxu0 %v4684
  %v4725 = vpop.f32.mrf.mxu0
  %v4726 = vadd.f32 0.0, %v4725
  %v4727 = vpop.f32.mrf.mxu0
  %4728 = vdwg.mxu0
  %4729 = vmatpush.bf16.msra.mxu0 0
  %4730 = vmatpush.bf16.msra.mxu0 0
  %4731 = vmatpush.bf16.msra.mxu0 0
  %4732 = vmatpush.bf16.msra.mxu0 0
  %4733 = vmatpush.bf16.msra.mxu0 0
  %4734 = vmatpush.bf16.msra.mxu0 0
  %4735 = vmatpush.bf16.msra.mxu0 %v434
  %4736 = vmatpush.bf16.msra.mxu0 %v426
  %4737 = vmatmul.bf16.gmra.mxu0 %v4688
  %v4738 = vpop.f32.mrf.mxu0
  %v4739 = vadd.f32 %v4726, %v4738
  %v4740 = vpop.f32.mrf.mxu0
  %4741 = vdwg.mxu0
  %4742 = vmatpush.bf16.msra.mxu0 %v419
  %4743 = vmatpush.bf16.msra.mxu0 %v411
  %4744 = vmatpush.bf16.msra.mxu0 %v403
  %4745 = vmatpush.bf16.msra.mxu0 %v395
  %4746 = vmatpush.bf16.msra.mxu0 %v387
  %4747 = vmatpush.bf16.msra.mxu0 %v379
  %4748 = vmatpush.bf16.msra.mxu0 %v371
  %4749 = vmatpush.bf16.msra.mxu0 %v363
  %4750 = vmatmul.bf16.gmra.mxu0 %v4684
  %v4751 = vpop.f32.mrf.mxu0
  %v4752 = vadd.f32 0.0, %v4751
  %v4753 = vpop.f32.mrf.mxu0
  %4754 = vdwg.mxu0
  %4755 = vmatpush.bf16.msra.mxu0 0
  %4756 = vmatpush.bf16.msra.mxu0 0
  %4757 = vmatpush.bf16.msra.mxu0 0
  %4758 = vmatpush.bf16.msra.mxu0 0
  %4759 = vmatpush.bf16.msra.mxu0 0
  %4760 = vmatpush.bf16.msra.mxu0 0
  %4761 = vmatpush.bf16.msra.mxu0 %v435
  %4762 = vmatpush.bf16.msra.mxu0 %v427
  %4763 = vmatmul.bf16.gmra.mxu0 %v4688
  %v4764 = vpop.f32.mrf.mxu0
  %v4765 = vadd.f32 %v4752, %v4764
  %v4766 = vpop.f32.mrf.mxu0
  %4767 = vdwg.mxu0
  %4768 = vmatpush.bf16.msra.mxu0 %v420
  %4769 = vmatpush.bf16.msra.mxu0 %v412
  %4770 = vmatpush.bf16.msra.mxu0 %v404
  %4771 = vmatpush.bf16.msra.mxu0 %v396
  %4772 = vmatpush.bf16.msra.mxu0 %v388
  %4773 = vmatpush.bf16.msra.mxu0 %v380
  %4774 = vmatpush.bf16.msra.mxu0 %v372
  %4775 = vmatpush.bf16.msra.mxu0 %v364
  %4776 = vmatmul.bf16.gmra.mxu0 %v4684
  %v4777 = vpop.f32.mrf.mxu0
  %v4778 = vadd.f32 0.0, %v4777
  %v4779 = vpop.f32.mrf.mxu0
  %4780 = vdwg.mxu0
  %4781 = vmatpush.bf16.msra.mxu0 0
  %4782 = vmatpush.bf16.msra.mxu0 0
  %4783 = vmatpush.bf16.msra.mxu0 0
  %4784 = vmatpush.bf16.msra.mxu0 0
  %4785 = vmatpush.bf16.msra.mxu0 0
  %4786 = vmatpush.bf16.msra.mxu0 0
  %4787 = vmatpush.bf16.msra.mxu0 %v436
  %4788 = vmatpush.bf16.msra.mxu0 %v428
  %4789 = vmatmul.bf16.gmra.mxu0 %v4688
  %v4790 = vpop.f32.mrf.mxu0
  %v4791 = vadd.f32 %v4778, %v4790
  %v4792 = vpop.f32.mrf.mxu0
  %4793 = vdwg.mxu0
  %4794 = vmatpush.bf16.msra.mxu0 %v421
  %4795 = vmatpush.bf16.msra.mxu0 %v413
  %4796 = vmatpush.bf16.msra.mxu0 %v405
  %4797 = vmatpush.bf16.msra.mxu0 %v397
  %4798 = vmatpush.bf16.msra.mxu0 %v389
  %4799 = vmatpush.bf16.msra.mxu0 %v381
  %4800 = vmatpush.bf16.msra.mxu0 %v373
  %4801 = vmatpush.bf16.msra.mxu0 %v365
  %4802 = vmatmul.bf16.gmra.mxu0 %v4684
  %v4803 = vpop.f32.mrf.mxu0
  %v4804 = vadd.f32 0.0, %v4803
  %v4805 = vpop.f32.mrf.mxu0
  %4806 = vdwg.mxu0
  %4807 = vmatpush.bf16.msra.mxu0 0
  %4808 = vmatpush.bf16.msra.mxu0 0
  %4809 = vmatpush.bf16.msra.mxu0 0
  %4810 = vmatpush.bf16.msra.mxu0 0
  %4811 = vmatpush.bf16.msra.mxu0 0
  %4812 = vmatpush.bf16.msra.mxu0 0
  %4813 = vmatpush.bf16.msra.mxu0 %v437
  %4814 = vmatpush.bf16.msra.mxu0 %v429
  %4815 = vmatmul.bf16.gmra.mxu0 %v4688
  %v4816 = vpop.f32.mrf.mxu0
  %v4817 = vadd.f32 %v4804, %v4816
  %v4818 = vpop.f32.mrf.mxu0
  %4819 = vdwg.mxu0
  %4820 = vmatpush.bf16.msra.mxu0 %v422
  %4821 = vmatpush.bf16.msra.mxu0 %v414
  %4822 = vmatpush.bf16.msra.mxu0 %v406
  %4823 = vmatpush.bf16.msra.mxu0 %v398
  %4824 = vmatpush.bf16.msra.mxu0 %v390
  %4825 = vmatpush.bf16.msra.mxu0 %v382
  %4826 = vmatpush.bf16.msra.mxu0 %v374
  %4827 = vmatpush.bf16.msra.mxu0 %v366
  %4828 = vmatmul.bf16.gmra.mxu0 %v4684
  %v4829 = vpop.f32.mrf.mxu0
  %v4830 = vadd.f32 0.0, %v4829
  %v4831 = vpop.f32.mrf.mxu0
  %4832 = vdwg.mxu0
  %4833 = vmatpush.bf16.msra.mxu0 0
  %4834 = vmatpush.bf16.msra.mxu0 0
  %4835 = vmatpush.bf16.msra.mxu0 0
  %4836 = vmatpush.bf16.msra.mxu0 0
  %4837 = vmatpush.bf16.msra.mxu0 0
  %4838 = vmatpush.bf16.msra.mxu0 0
  %4839 = vmatpush.bf16.msra.mxu0 %v438
  %4840 = vmatpush.bf16.msra.mxu0 %v430
  %4841 = vmatmul.bf16.gmra.mxu0 %v4688
  %v4842 = vpop.f32.mrf.mxu0
  %v4843 = vadd.f32 %v4830, %v4842
  %v4844 = vpop.f32.mrf.mxu0
  %4845 = vdwg.mxu0
  %4846 = vmatpush.bf16.msra.mxu0 %v423
  %4847 = vmatpush.bf16.msra.mxu0 %v415
  %4848 = vmatpush.bf16.msra.mxu0 %v407
  %4849 = vmatpush.bf16.msra.mxu0 %v399
  %4850 = vmatpush.bf16.msra.mxu0 %v391
  %4851 = vmatpush.bf16.msra.mxu0 %v383
  %4852 = vmatpush.bf16.msra.mxu0 %v375
  %4853 = vmatpush.bf16.msra.mxu0 %v367
  %4854 = vmatmul.bf16.gmra.mxu0 %v4684
  %v4855 = vpop.f32.mrf.mxu0
  %v4856 = vadd.f32 0.0, %v4855
  %v4857 = vpop.f32.mrf.mxu0
  %4858 = vdwg.mxu0
  %4859 = vmatpush.bf16.msra.mxu0 0
  %4860 = vmatpush.bf16.msra.mxu0 0
  %4861 = vmatpush.bf16.msra.mxu0 0
  %4862 = vmatpush.bf16.msra.mxu0 0
  %4863 = vmatpush.bf16.msra.mxu0 0
  %4864 = vmatpush.bf16.msra.mxu0 0
  %4865 = vmatpush.bf16.msra.mxu0 %v439
  %4866 = vmatpush.bf16.msra.mxu0 %v431
  %4867 = vmatmul.bf16.gmra.mxu0 %v4688
  %v4868 = vpop.f32.mrf.mxu0
  %v4869 = vadd.f32 %v4856, %v4868
  %v4870 = vpop.f32.mrf.mxu0
  %4871 = vdwg.mxu0
  %4872 = vmatpush.bf16.msra.mxu0 %v424
  %4873 = vmatpush.bf16.msra.mxu0 %v416
  %4874 = vmatpush.bf16.msra.mxu0 %v408
  %4875 = vmatpush.bf16.msra.mxu0 %v400
  %4876 = vmatpush.bf16.msra.mxu0 %v392
  %4877 = vmatpush.bf16.msra.mxu0 %v384
  %4878 = vmatpush.bf16.msra.mxu0 %v376
  %4879 = vmatpush.bf16.msra.mxu0 %v368
  %4880 = vmatmul.bf16.gmra.mxu0 %v4684
  %v4881 = vpop.f32.mrf.mxu0
  %v4882 = vadd.f32 0.0, %v4881
  %v4883 = vpop.f32.mrf.mxu0
  %4884 = vdwg.mxu0
  %4885 = vmatpush.bf16.msra.mxu0 0
  %4886 = vmatpush.bf16.msra.mxu0 0
  %4887 = vmatpush.bf16.msra.mxu0 0
  %4888 = vmatpush.bf16.msra.mxu0 0
  %4889 = vmatpush.bf16.msra.mxu0 0
  %4890 = vmatpush.bf16.msra.mxu0 0
  %4891 = vmatpush.bf16.msra.mxu0 %v440
  %4892 = vmatpush.bf16.msra.mxu0 %v432
  %4893 = vmatmul.bf16.gmra.mxu0 %v4688
  %v4894 = vpop.f32.mrf.mxu0
  %v4895 = vadd.f32 %v4882, %v4894
  %v4896 = vpop.f32.mrf.mxu0
  %4897 = vdwg.mxu0
  %s4898 = scalar_lea.vmem %s1, 72
  %v4899 = vld [vmem:[%s4898] sm:$0xff]
  %v4901 = vunpack.c.l.b16 %v4899
  %v4902 = vunpack.c.h.b16 %v4899
  %v4903 = vpack.c.b16 %v4901, %v4901
  %v4904 = vpack.c.b16 %v4902, %v4902
  %v4907 = vsel %vm521, %v4904, 0
  %4909 = vmatpush.bf16.msra.mxu0 %v417
  %4910 = vmatpush.bf16.msra.mxu0 %v409
  %4911 = vmatpush.bf16.msra.mxu0 %v401
  %4912 = vmatpush.bf16.msra.mxu0 %v393
  %4913 = vmatpush.bf16.msra.mxu0 %v385
  %4914 = vmatpush.bf16.msra.mxu0 %v377
  %4915 = vmatpush.bf16.msra.mxu0 %v369
  %4916 = vmatpush.bf16.msra.mxu0 %v361
  %4917 = vmatmul.bf16.gmra.mxu0 %v4903
  %v4918 = vpop.f32.mrf.mxu0
  %v4919 = vadd.f32 0.0, %v4918
  %v4920 = vpop.f32.mrf.mxu0
  %4921 = vdwg.mxu0
  %4922 = vmatpush.bf16.msra.mxu0 0
  %4923 = vmatpush.bf16.msra.mxu0 0
  %4924 = vmatpush.bf16.msra.mxu0 0
  %4925 = vmatpush.bf16.msra.mxu0 0
  %4926 = vmatpush.bf16.msra.mxu0 0
  %4927 = vmatpush.bf16.msra.mxu0 0
  %4928 = vmatpush.bf16.msra.mxu0 %v433
  %4929 = vmatpush.bf16.msra.mxu0 %v425
  %4930 = vmatmul.bf16.gmra.mxu0 %v4907
  %v4931 = vpop.f32.mrf.mxu0
  %v4932 = vadd.f32 %v4919, %v4931
  %v4933 = vpop.f32.mrf.mxu0
  %4934 = vdwg.mxu0
  %4935 = vmatpush.bf16.msra.mxu0 %v418
  %4936 = vmatpush.bf16.msra.mxu0 %v410
  %4937 = vmatpush.bf16.msra.mxu0 %v402
  %4938 = vmatpush.bf16.msra.mxu0 %v394
  %4939 = vmatpush.bf16.msra.mxu0 %v386
  %4940 = vmatpush.bf16.msra.mxu0 %v378
  %4941 = vmatpush.bf16.msra.mxu0 %v370
  %4942 = vmatpush.bf16.msra.mxu0 %v362
  %4943 = vmatmul.bf16.gmra.mxu0 %v4903
  %v4944 = vpop.f32.mrf.mxu0
  %v4945 = vadd.f32 0.0, %v4944
  %v4946 = vpop.f32.mrf.mxu0
  %4947 = vdwg.mxu0
  %4948 = vmatpush.bf16.msra.mxu0 0
  %4949 = vmatpush.bf16.msra.mxu0 0
  %4950 = vmatpush.bf16.msra.mxu0 0
  %4951 = vmatpush.bf16.msra.mxu0 0
  %4952 = vmatpush.bf16.msra.mxu0 0
  %4953 = vmatpush.bf16.msra.mxu0 0
  %4954 = vmatpush.bf16.msra.mxu0 %v434
  %4955 = vmatpush.bf16.msra.mxu0 %v426
  %4956 = vmatmul.bf16.gmra.mxu0 %v4907
  %v4957 = vpop.f32.mrf.mxu0
  %v4958 = vadd.f32 %v4945, %v4957
  %v4959 = vpop.f32.mrf.mxu0
  %4960 = vdwg.mxu0
  %4961 = vmatpush.bf16.msra.mxu0 %v419
  %4962 = vmatpush.bf16.msra.mxu0 %v411
  %4963 = vmatpush.bf16.msra.mxu0 %v403
  %4964 = vmatpush.bf16.msra.mxu0 %v395
  %4965 = vmatpush.bf16.msra.mxu0 %v387
  %4966 = vmatpush.bf16.msra.mxu0 %v379
  %4967 = vmatpush.bf16.msra.mxu0 %v371
  %4968 = vmatpush.bf16.msra.mxu0 %v363
  %4969 = vmatmul.bf16.gmra.mxu0 %v4903
  %v4970 = vpop.f32.mrf.mxu0
  %v4971 = vadd.f32 0.0, %v4970
  %v4972 = vpop.f32.mrf.mxu0
  %4973 = vdwg.mxu0
  %4974 = vmatpush.bf16.msra.mxu0 0
  %4975 = vmatpush.bf16.msra.mxu0 0
  %4976 = vmatpush.bf16.msra.mxu0 0
  %4977 = vmatpush.bf16.msra.mxu0 0
  %4978 = vmatpush.bf16.msra.mxu0 0
  %4979 = vmatpush.bf16.msra.mxu0 0
  %4980 = vmatpush.bf16.msra.mxu0 %v435
  %4981 = vmatpush.bf16.msra.mxu0 %v427
  %4982 = vmatmul.bf16.gmra.mxu0 %v4907
  %v4983 = vpop.f32.mrf.mxu0
  %v4984 = vadd.f32 %v4971, %v4983
  %v4985 = vpop.f32.mrf.mxu0
  %4986 = vdwg.mxu0
  %4987 = vmatpush.bf16.msra.mxu0 %v420
  %4988 = vmatpush.bf16.msra.mxu0 %v412
  %4989 = vmatpush.bf16.msra.mxu0 %v404
  %4990 = vmatpush.bf16.msra.mxu0 %v396
  %4991 = vmatpush.bf16.msra.mxu0 %v388
  %4992 = vmatpush.bf16.msra.mxu0 %v380
  %4993 = vmatpush.bf16.msra.mxu0 %v372
  %4994 = vmatpush.bf16.msra.mxu0 %v364
  %4995 = vmatmul.bf16.gmra.mxu0 %v4903
  %v4996 = vpop.f32.mrf.mxu0
  %v4997 = vadd.f32 0.0, %v4996
  %v4998 = vpop.f32.mrf.mxu0
  %4999 = vdwg.mxu0
  %5000 = vmatpush.bf16.msra.mxu0 0
  %5001 = vmatpush.bf16.msra.mxu0 0
  %5002 = vmatpush.bf16.msra.mxu0 0
  %5003 = vmatpush.bf16.msra.mxu0 0
  %5004 = vmatpush.bf16.msra.mxu0 0
  %5005 = vmatpush.bf16.msra.mxu0 0
  %5006 = vmatpush.bf16.msra.mxu0 %v436
  %5007 = vmatpush.bf16.msra.mxu0 %v428
  %5008 = vmatmul.bf16.gmra.mxu0 %v4907
  %v5009 = vpop.f32.mrf.mxu0
  %v5010 = vadd.f32 %v4997, %v5009
  %v5011 = vpop.f32.mrf.mxu0
  %5012 = vdwg.mxu0
  %5013 = vmatpush.bf16.msra.mxu0 %v421
  %5014 = vmatpush.bf16.msra.mxu0 %v413
  %5015 = vmatpush.bf16.msra.mxu0 %v405
  %5016 = vmatpush.bf16.msra.mxu0 %v397
  %5017 = vmatpush.bf16.msra.mxu0 %v389
  %5018 = vmatpush.bf16.msra.mxu0 %v381
  %5019 = vmatpush.bf16.msra.mxu0 %v373
  %5020 = vmatpush.bf16.msra.mxu0 %v365
  %5021 = vmatmul.bf16.gmra.mxu0 %v4903
  %v5022 = vpop.f32.mrf.mxu0
  %v5023 = vadd.f32 0.0, %v5022
  %v5024 = vpop.f32.mrf.mxu0
  %5025 = vdwg.mxu0
  %5026 = vmatpush.bf16.msra.mxu0 0
  %5027 = vmatpush.bf16.msra.mxu0 0
  %5028 = vmatpush.bf16.msra.mxu0 0
  %5029 = vmatpush.bf16.msra.mxu0 0
  %5030 = vmatpush.bf16.msra.mxu0 0
  %5031 = vmatpush.bf16.msra.mxu0 0
  %5032 = vmatpush.bf16.msra.mxu0 %v437
  %5033 = vmatpush.bf16.msra.mxu0 %v429
  %5034 = vmatmul.bf16.gmra.mxu0 %v4907
  %v5035 = vpop.f32.mrf.mxu0
  %v5036 = vadd.f32 %v5023, %v5035
  %v5037 = vpop.f32.mrf.mxu0
  %5038 = vdwg.mxu0
  %5039 = vmatpush.bf16.msra.mxu0 %v422
  %5040 = vmatpush.bf16.msra.mxu0 %v414
  %5041 = vmatpush.bf16.msra.mxu0 %v406
  %5042 = vmatpush.bf16.msra.mxu0 %v398
  %5043 = vmatpush.bf16.msra.mxu0 %v390
  %5044 = vmatpush.bf16.msra.mxu0 %v382
  %5045 = vmatpush.bf16.msra.mxu0 %v374
  %5046 = vmatpush.bf16.msra.mxu0 %v366
  %5047 = vmatmul.bf16.gmra.mxu0 %v4903
  %v5048 = vpop.f32.mrf.mxu0
  %v5049 = vadd.f32 0.0, %v5048
  %v5050 = vpop.f32.mrf.mxu0
  %5051 = vdwg.mxu0
  %5052 = vmatpush.bf16.msra.mxu0 0
  %5053 = vmatpush.bf16.msra.mxu0 0
  %5054 = vmatpush.bf16.msra.mxu0 0
  %5055 = vmatpush.bf16.msra.mxu0 0
  %5056 = vmatpush.bf16.msra.mxu0 0
  %5057 = vmatpush.bf16.msra.mxu0 0
  %5058 = vmatpush.bf16.msra.mxu0 %v438
  %5059 = vmatpush.bf16.msra.mxu0 %v430
  %5060 = vmatmul.bf16.gmra.mxu0 %v4907
  %v5061 = vpop.f32.mrf.mxu0
  %v5062 = vadd.f32 %v5049, %v5061
  %v5063 = vpop.f32.mrf.mxu0
  %5064 = vdwg.mxu0
  %5065 = vmatpush.bf16.msra.mxu0 %v423
  %5066 = vmatpush.bf16.msra.mxu0 %v415
  %5067 = vmatpush.bf16.msra.mxu0 %v407
  %5068 = vmatpush.bf16.msra.mxu0 %v399
  %5069 = vmatpush.bf16.msra.mxu0 %v391
  %5070 = vmatpush.bf16.msra.mxu0 %v383
  %5071 = vmatpush.bf16.msra.mxu0 %v375
  %5072 = vmatpush.bf16.msra.mxu0 %v367
  %5073 = vmatmul.bf16.gmra.mxu0 %v4903
  %v5074 = vpop.f32.mrf.mxu0
  %v5075 = vadd.f32 0.0, %v5074
  %v5076 = vpop.f32.mrf.mxu0
  %5077 = vdwg.mxu0
  %5078 = vmatpush.bf16.msra.mxu0 0
  %5079 = vmatpush.bf16.msra.mxu0 0
  %5080 = vmatpush.bf16.msra.mxu0 0
  %5081 = vmatpush.bf16.msra.mxu0 0
  %5082 = vmatpush.bf16.msra.mxu0 0
  %5083 = vmatpush.bf16.msra.mxu0 0
  %5084 = vmatpush.bf16.msra.mxu0 %v439
  %5085 = vmatpush.bf16.msra.mxu0 %v431
  %5086 = vmatmul.bf16.gmra.mxu0 %v4907
  %v5087 = vpop.f32.mrf.mxu0
  %v5088 = vadd.f32 %v5075, %v5087
  %v5089 = vpop.f32.mrf.mxu0
  %5090 = vdwg.mxu0
  %5091 = vmatpush.bf16.msra.mxu0 %v424
  %5092 = vmatpush.bf16.msra.mxu0 %v416
  %5093 = vmatpush.bf16.msra.mxu0 %v408
  %5094 = vmatpush.bf16.msra.mxu0 %v400
  %5095 = vmatpush.bf16.msra.mxu0 %v392
  %5096 = vmatpush.bf16.msra.mxu0 %v384
  %5097 = vmatpush.bf16.msra.mxu0 %v376
  %5098 = vmatpush.bf16.msra.mxu0 %v368
  %5099 = vmatmul.bf16.gmra.mxu0 %v4903
  %v5100 = vpop.f32.mrf.mxu0
  %v5101 = vadd.f32 0.0, %v5100
  %v5102 = vpop.f32.mrf.mxu0
  %5103 = vdwg.mxu0
  %5104 = vmatpush.bf16.msra.mxu0 0
  %5105 = vmatpush.bf16.msra.mxu0 0
  %5106 = vmatpush.bf16.msra.mxu0 0
  %5107 = vmatpush.bf16.msra.mxu0 0
  %5108 = vmatpush.bf16.msra.mxu0 0
  %5109 = vmatpush.bf16.msra.mxu0 0
  %5110 = vmatpush.bf16.msra.mxu0 %v440
  %5111 = vmatpush.bf16.msra.mxu0 %v432
  %5112 = vmatmul.bf16.gmra.mxu0 %v4907
  %v5113 = vpop.f32.mrf.mxu0
  %v5114 = vadd.f32 %v5101, %v5113
  %v5115 = vpop.f32.mrf.mxu0
  %5116 = vdwg.mxu0
  %v5117 = vmax.f32 %v4713, %v4817
  %v5118 = vmax.f32 %v4739, %v4843
  %v5119 = vmax.f32 %v4765, %v4869
  %v5120 = vmax.f32 %v4791, %v4895
  %v5121 = vmax.f32 %v4932, %v5036
  %v5122 = vmax.f32 %v4958, %v5062
  %v5123 = vmax.f32 %v4984, %v5088
  %v5124 = vmax.f32 %v5010, %v5114
  %v5125 = vmax.f32 %v5117, %v5121
  %v5126 = vmax.f32 %v5118, %v5122
  %v5127 = vmax.f32 %v5119, %v5123
  %v5128 = vmax.f32 %v5120, %v5124
  %v5129 = vadd.f32 %v5125, %v106
  %v5130 = vadd.f32 %v5126, %v107
  %v5131 = vadd.f32 %v5127, %v108
  %v5132 = vadd.f32 %v5128, %v109
  %v5133 = vmax.f32 %v5129, 0.0
  %v5134 = vmax.f32 %v5130, 0.0
  %v5135 = vmax.f32 %v5131, 0.0
  %v5136 = vmax.f32 %v5132, 0.0
  %v5137 = vpack.c.bf16 %v5134, %v5133
  %v5138 = vpack.c.bf16 %v5136, %v5135
  %s5139 = scalar_lea.vmem [#allocation2], 144
  %5140 = vst [vmem:[%s5139] sm:$0xff] %v5137
  %5141 = vst [vmem:[%s5139 + $0x8] sm:$0xff] %v5138
  %s5142 = scalar_lea.vmem %s0, 80
  %v5143 = vld [vmem:[%s5142] sm:$0xff]
  %v5145 = vunpack.c.l.b16 %v5143
  %v5146 = vunpack.c.h.b16 %v5143
  %v5147 = vpack.c.b16 %v5145, %v5145
  %v5148 = vpack.c.b16 %v5146, %v5146
  %v5151 = vsel %vm521, %v5148, 0
  %5153 = vmatpush.bf16.msra.mxu0 %v417
  %5154 = vmatpush.bf16.msra.mxu0 %v409
  %5155 = vmatpush.bf16.msra.mxu0 %v401
  %5156 = vmatpush.bf16.msra.mxu0 %v393
  %5157 = vmatpush.bf16.msra.mxu0 %v385
  %5158 = vmatpush.bf16.msra.mxu0 %v377
  %5159 = vmatpush.bf16.msra.mxu0 %v369
  %5160 = vmatpush.bf16.msra.mxu0 %v361
  %5161 = vmatmul.bf16.gmra.mxu0 %v5147
  %v5162 = vpop.f32.mrf.mxu0
  %v5163 = vadd.f32 0.0, %v5162
  %v5164 = vpop.f32.mrf.mxu0
  %5165 = vdwg.mxu0
  %5166 = vmatpush.bf16.msra.mxu0 0
  %5167 = vmatpush.bf16.msra.mxu0 0
  %5168 = vmatpush.bf16.msra.mxu0 0
  %5169 = vmatpush.bf16.msra.mxu0 0
  %5170 = vmatpush.bf16.msra.mxu0 0
  %5171 = vmatpush.bf16.msra.mxu0 0
  %5172 = vmatpush.bf16.msra.mxu0 %v433
  %5173 = vmatpush.bf16.msra.mxu0 %v425
  %5174 = vmatmul.bf16.gmra.mxu0 %v5151
  %v5175 = vpop.f32.mrf.mxu0
  %v5176 = vadd.f32 %v5163, %v5175
  %v5177 = vpop.f32.mrf.mxu0
  %5178 = vdwg.mxu0
  %5179 = vmatpush.bf16.msra.mxu0 %v418
  %5180 = vmatpush.bf16.msra.mxu0 %v410
  %5181 = vmatpush.bf16.msra.mxu0 %v402
  %5182 = vmatpush.bf16.msra.mxu0 %v394
  %5183 = vmatpush.bf16.msra.mxu0 %v386
  %5184 = vmatpush.bf16.msra.mxu0 %v378
  %5185 = vmatpush.bf16.msra.mxu0 %v370
  %5186 = vmatpush.bf16.msra.mxu0 %v362
  %5187 = vmatmul.bf16.gmra.mxu0 %v5147
  %v5188 = vpop.f32.mrf.mxu0
  %v5189 = vadd.f32 0.0, %v5188
  %v5190 = vpop.f32.mrf.mxu0
  %5191 = vdwg.mxu0
  %5192 = vmatpush.bf16.msra.mxu0 0
  %5193 = vmatpush.bf16.msra.mxu0 0
  %5194 = vmatpush.bf16.msra.mxu0 0
  %5195 = vmatpush.bf16.msra.mxu0 0
  %5196 = vmatpush.bf16.msra.mxu0 0
  %5197 = vmatpush.bf16.msra.mxu0 0
  %5198 = vmatpush.bf16.msra.mxu0 %v434
  %5199 = vmatpush.bf16.msra.mxu0 %v426
  %5200 = vmatmul.bf16.gmra.mxu0 %v5151
  %v5201 = vpop.f32.mrf.mxu0
  %v5202 = vadd.f32 %v5189, %v5201
  %v5203 = vpop.f32.mrf.mxu0
  %5204 = vdwg.mxu0
  %5205 = vmatpush.bf16.msra.mxu0 %v419
  %5206 = vmatpush.bf16.msra.mxu0 %v411
  %5207 = vmatpush.bf16.msra.mxu0 %v403
  %5208 = vmatpush.bf16.msra.mxu0 %v395
  %5209 = vmatpush.bf16.msra.mxu0 %v387
  %5210 = vmatpush.bf16.msra.mxu0 %v379
  %5211 = vmatpush.bf16.msra.mxu0 %v371
  %5212 = vmatpush.bf16.msra.mxu0 %v363
  %5213 = vmatmul.bf16.gmra.mxu0 %v5147
  %v5214 = vpop.f32.mrf.mxu0
  %v5215 = vadd.f32 0.0, %v5214
  %v5216 = vpop.f32.mrf.mxu0
  %5217 = vdwg.mxu0
  %5218 = vmatpush.bf16.msra.mxu0 0
  %5219 = vmatpush.bf16.msra.mxu0 0
  %5220 = vmatpush.bf16.msra.mxu0 0
  %5221 = vmatpush.bf16.msra.mxu0 0
  %5222 = vmatpush.bf16.msra.mxu0 0
  %5223 = vmatpush.bf16.msra.mxu0 0
  %5224 = vmatpush.bf16.msra.mxu0 %v435
  %5225 = vmatpush.bf16.msra.mxu0 %v427
  %5226 = vmatmul.bf16.gmra.mxu0 %v5151
  %v5227 = vpop.f32.mrf.mxu0
  %v5228 = vadd.f32 %v5215, %v5227
  %v5229 = vpop.f32.mrf.mxu0
  %5230 = vdwg.mxu0
  %5231 = vmatpush.bf16.msra.mxu0 %v420
  %5232 = vmatpush.bf16.msra.mxu0 %v412
  %5233 = vmatpush.bf16.msra.mxu0 %v404
  %5234 = vmatpush.bf16.msra.mxu0 %v396
  %5235 = vmatpush.bf16.msra.mxu0 %v388
  %5236 = vmatpush.bf16.msra.mxu0 %v380
  %5237 = vmatpush.bf16.msra.mxu0 %v372
  %5238 = vmatpush.bf16.msra.mxu0 %v364
  %5239 = vmatmul.bf16.gmra.mxu0 %v5147
  %v5240 = vpop.f32.mrf.mxu0
  %v5241 = vadd.f32 0.0, %v5240
  %v5242 = vpop.f32.mrf.mxu0
  %5243 = vdwg.mxu0
  %5244 = vmatpush.bf16.msra.mxu0 0
  %5245 = vmatpush.bf16.msra.mxu0 0
  %5246 = vmatpush.bf16.msra.mxu0 0
  %5247 = vmatpush.bf16.msra.mxu0 0
  %5248 = vmatpush.bf16.msra.mxu0 0
  %5249 = vmatpush.bf16.msra.mxu0 0
  %5250 = vmatpush.bf16.msra.mxu0 %v436
  %5251 = vmatpush.bf16.msra.mxu0 %v428
  %5252 = vmatmul.bf16.gmra.mxu0 %v5151
  %v5253 = vpop.f32.mrf.mxu0
  %v5254 = vadd.f32 %v5241, %v5253
  %v5255 = vpop.f32.mrf.mxu0
  %5256 = vdwg.mxu0
  %5257 = vmatpush.bf16.msra.mxu0 %v421
  %5258 = vmatpush.bf16.msra.mxu0 %v413
  %5259 = vmatpush.bf16.msra.mxu0 %v405
  %5260 = vmatpush.bf16.msra.mxu0 %v397
  %5261 = vmatpush.bf16.msra.mxu0 %v389
  %5262 = vmatpush.bf16.msra.mxu0 %v381
  %5263 = vmatpush.bf16.msra.mxu0 %v373
  %5264 = vmatpush.bf16.msra.mxu0 %v365
  %5265 = vmatmul.bf16.gmra.mxu0 %v5147
  %v5266 = vpop.f32.mrf.mxu0
  %v5267 = vadd.f32 0.0, %v5266
  %v5268 = vpop.f32.mrf.mxu0
  %5269 = vdwg.mxu0
  %5270 = vmatpush.bf16.msra.mxu0 0
  %5271 = vmatpush.bf16.msra.mxu0 0
  %5272 = vmatpush.bf16.msra.mxu0 0
  %5273 = vmatpush.bf16.msra.mxu0 0
  %5274 = vmatpush.bf16.msra.mxu0 0
  %5275 = vmatpush.bf16.msra.mxu0 0
  %5276 = vmatpush.bf16.msra.mxu0 %v437
  %5277 = vmatpush.bf16.msra.mxu0 %v429
  %5278 = vmatmul.bf16.gmra.mxu0 %v5151
  %v5279 = vpop.f32.mrf.mxu0
  %v5280 = vadd.f32 %v5267, %v5279
  %v5281 = vpop.f32.mrf.mxu0
  %5282 = vdwg.mxu0
  %5283 = vmatpush.bf16.msra.mxu0 %v422
  %5284 = vmatpush.bf16.msra.mxu0 %v414
  %5285 = vmatpush.bf16.msra.mxu0 %v406
  %5286 = vmatpush.bf16.msra.mxu0 %v398
  %5287 = vmatpush.bf16.msra.mxu0 %v390
  %5288 = vmatpush.bf16.msra.mxu0 %v382
  %5289 = vmatpush.bf16.msra.mxu0 %v374
  %5290 = vmatpush.bf16.msra.mxu0 %v366
  %5291 = vmatmul.bf16.gmra.mxu0 %v5147
  %v5292 = vpop.f32.mrf.mxu0
  %v5293 = vadd.f32 0.0, %v5292
  %v5294 = vpop.f32.mrf.mxu0
  %5295 = vdwg.mxu0
  %5296 = vmatpush.bf16.msra.mxu0 0
  %5297 = vmatpush.bf16.msra.mxu0 0
  %5298 = vmatpush.bf16.msra.mxu0 0
  %5299 = vmatpush.bf16.msra.mxu0 0
  %5300 = vmatpush.bf16.msra.mxu0 0
  %5301 = vmatpush.bf16.msra.mxu0 0
  %5302 = vmatpush.bf16.msra.mxu0 %v438
  %5303 = vmatpush.bf16.msra.mxu0 %v430
  %5304 = vmatmul.bf16.gmra.mxu0 %v5151
  %v5305 = vpop.f32.mrf.mxu0
  %v5306 = vadd.f32 %v5293, %v5305
  %v5307 = vpop.f32.mrf.mxu0
  %5308 = vdwg.mxu0
  %5309 = vmatpush.bf16.msra.mxu0 %v423
  %5310 = vmatpush.bf16.msra.mxu0 %v415
  %5311 = vmatpush.bf16.msra.mxu0 %v407
  %5312 = vmatpush.bf16.msra.mxu0 %v399
  %5313 = vmatpush.bf16.msra.mxu0 %v391
  %5314 = vmatpush.bf16.msra.mxu0 %v383
  %5315 = vmatpush.bf16.msra.mxu0 %v375
  %5316 = vmatpush.bf16.msra.mxu0 %v367
  %5317 = vmatmul.bf16.gmra.mxu0 %v5147
  %v5318 = vpop.f32.mrf.mxu0
  %v5319 = vadd.f32 0.0, %v5318
  %v5320 = vpop.f32.mrf.mxu0
  %5321 = vdwg.mxu0
  %5322 = vmatpush.bf16.msra.mxu0 0
  %5323 = vmatpush.bf16.msra.mxu0 0
  %5324 = vmatpush.bf16.msra.mxu0 0
  %5325 = vmatpush.bf16.msra.mxu0 0
  %5326 = vmatpush.bf16.msra.mxu0 0
  %5327 = vmatpush.bf16.msra.mxu0 0
  %5328 = vmatpush.bf16.msra.mxu0 %v439
  %5329 = vmatpush.bf16.msra.mxu0 %v431
  %5330 = vmatmul.bf16.gmra.mxu0 %v5151
  %v5331 = vpop.f32.mrf.mxu0
  %v5332 = vadd.f32 %v5319, %v5331
  %v5333 = vpop.f32.mrf.mxu0
  %5334 = vdwg.mxu0
  %5335 = vmatpush.bf16.msra.mxu0 %v424
  %5336 = vmatpush.bf16.msra.mxu0 %v416
  %5337 = vmatpush.bf16.msra.mxu0 %v408
  %5338 = vmatpush.bf16.msra.mxu0 %v400
  %5339 = vmatpush.bf16.msra.mxu0 %v392
  %5340 = vmatpush.bf16.msra.mxu0 %v384
  %5341 = vmatpush.bf16.msra.mxu0 %v376
  %5342 = vmatpush.bf16.msra.mxu0 %v368
  %5343 = vmatmul.bf16.gmra.mxu0 %v5147
  %v5344 = vpop.f32.mrf.mxu0
  %v5345 = vadd.f32 0.0, %v5344
  %v5346 = vpop.f32.mrf.mxu0
  %5347 = vdwg.mxu0
  %5348 = vmatpush.bf16.msra.mxu0 0
  %5349 = vmatpush.bf16.msra.mxu0 0
  %5350 = vmatpush.bf16.msra.mxu0 0
  %5351 = vmatpush.bf16.msra.mxu0 0
  %5352 = vmatpush.bf16.msra.mxu0 0
  %5353 = vmatpush.bf16.msra.mxu0 0
  %5354 = vmatpush.bf16.msra.mxu0 %v440
  %5355 = vmatpush.bf16.msra.mxu0 %v432
  %5356 = vmatmul.bf16.gmra.mxu0 %v5151
  %v5357 = vpop.f32.mrf.mxu0
  %v5358 = vadd.f32 %v5345, %v5357
  %v5359 = vpop.f32.mrf.mxu0
  %5360 = vdwg.mxu0
  %s5361 = scalar_lea.vmem %s1, 80
  %v5362 = vld [vmem:[%s5361] sm:$0xff]
  %v5364 = vunpack.c.l.b16 %v5362
  %v5365 = vunpack.c.h.b16 %v5362
  %v5366 = vpack.c.b16 %v5364, %v5364
  %v5367 = vpack.c.b16 %v5365, %v5365
  %v5370 = vsel %vm521, %v5367, 0
  %5372 = vmatpush.bf16.msra.mxu0 %v417
  %5373 = vmatpush.bf16.msra.mxu0 %v409
  %5374 = vmatpush.bf16.msra.mxu0 %v401
  %5375 = vmatpush.bf16.msra.mxu0 %v393
  %5376 = vmatpush.bf16.msra.mxu0 %v385
  %5377 = vmatpush.bf16.msra.mxu0 %v377
  %5378 = vmatpush.bf16.msra.mxu0 %v369
  %5379 = vmatpush.bf16.msra.mxu0 %v361
  %5380 = vmatmul.bf16.gmra.mxu0 %v5366
  %v5381 = vpop.f32.mrf.mxu0
  %v5382 = vadd.f32 0.0, %v5381
  %v5383 = vpop.f32.mrf.mxu0
  %5384 = vdwg.mxu0
  %5385 = vmatpush.bf16.msra.mxu0 0
  %5386 = vmatpush.bf16.msra.mxu0 0
  %5387 = vmatpush.bf16.msra.mxu0 0
  %5388 = vmatpush.bf16.msra.mxu0 0
  %5389 = vmatpush.bf16.msra.mxu0 0
  %5390 = vmatpush.bf16.msra.mxu0 0
  %5391 = vmatpush.bf16.msra.mxu0 %v433
  %5392 = vmatpush.bf16.msra.mxu0 %v425
  %5393 = vmatmul.bf16.gmra.mxu0 %v5370
  %v5394 = vpop.f32.mrf.mxu0
  %v5395 = vadd.f32 %v5382, %v5394
  %v5396 = vpop.f32.mrf.mxu0
  %5397 = vdwg.mxu0
  %5398 = vmatpush.bf16.msra.mxu0 %v418
  %5399 = vmatpush.bf16.msra.mxu0 %v410
  %5400 = vmatpush.bf16.msra.mxu0 %v402
  %5401 = vmatpush.bf16.msra.mxu0 %v394
  %5402 = vmatpush.bf16.msra.mxu0 %v386
  %5403 = vmatpush.bf16.msra.mxu0 %v378
  %5404 = vmatpush.bf16.msra.mxu0 %v370
  %5405 = vmatpush.bf16.msra.mxu0 %v362
  %5406 = vmatmul.bf16.gmra.mxu0 %v5366
  %v5407 = vpop.f32.mrf.mxu0
  %v5408 = vadd.f32 0.0, %v5407
  %v5409 = vpop.f32.mrf.mxu0
  %5410 = vdwg.mxu0
  %5411 = vmatpush.bf16.msra.mxu0 0
  %5412 = vmatpush.bf16.msra.mxu0 0
  %5413 = vmatpush.bf16.msra.mxu0 0
  %5414 = vmatpush.bf16.msra.mxu0 0
  %5415 = vmatpush.bf16.msra.mxu0 0
  %5416 = vmatpush.bf16.msra.mxu0 0
  %5417 = vmatpush.bf16.msra.mxu0 %v434
  %5418 = vmatpush.bf16.msra.mxu0 %v426
  %5419 = vmatmul.bf16.gmra.mxu0 %v5370
  %v5420 = vpop.f32.mrf.mxu0
  %v5421 = vadd.f32 %v5408, %v5420
  %v5422 = vpop.f32.mrf.mxu0
  %5423 = vdwg.mxu0
  %5424 = vmatpush.bf16.msra.mxu0 %v419
  %5425 = vmatpush.bf16.msra.mxu0 %v411
  %5426 = vmatpush.bf16.msra.mxu0 %v403
  %5427 = vmatpush.bf16.msra.mxu0 %v395
  %5428 = vmatpush.bf16.msra.mxu0 %v387
  %5429 = vmatpush.bf16.msra.mxu0 %v379
  %5430 = vmatpush.bf16.msra.mxu0 %v371
  %5431 = vmatpush.bf16.msra.mxu0 %v363
  %5432 = vmatmul.bf16.gmra.mxu0 %v5366
  %v5433 = vpop.f32.mrf.mxu0
  %v5434 = vadd.f32 0.0, %v5433
  %v5435 = vpop.f32.mrf.mxu0
  %5436 = vdwg.mxu0
  %5437 = vmatpush.bf16.msra.mxu0 0
  %5438 = vmatpush.bf16.msra.mxu0 0
  %5439 = vmatpush.bf16.msra.mxu0 0
  %5440 = vmatpush.bf16.msra.mxu0 0
  %5441 = vmatpush.bf16.msra.mxu0 0
  %5442 = vmatpush.bf16.msra.mxu0 0
  %5443 = vmatpush.bf16.msra.mxu0 %v435
  %5444 = vmatpush.bf16.msra.mxu0 %v427
  %5445 = vmatmul.bf16.gmra.mxu0 %v5370
  %v5446 = vpop.f32.mrf.mxu0
  %v5447 = vadd.f32 %v5434, %v5446
  %v5448 = vpop.f32.mrf.mxu0
  %5449 = vdwg.mxu0
  %5450 = vmatpush.bf16.msra.mxu0 %v420
  %5451 = vmatpush.bf16.msra.mxu0 %v412
  %5452 = vmatpush.bf16.msra.mxu0 %v404
  %5453 = vmatpush.bf16.msra.mxu0 %v396
  %5454 = vmatpush.bf16.msra.mxu0 %v388
  %5455 = vmatpush.bf16.msra.mxu0 %v380
  %5456 = vmatpush.bf16.msra.mxu0 %v372
  %5457 = vmatpush.bf16.msra.mxu0 %v364
  %5458 = vmatmul.bf16.gmra.mxu0 %v5366
  %v5459 = vpop.f32.mrf.mxu0
  %v5460 = vadd.f32 0.0, %v5459
  %v5461 = vpop.f32.mrf.mxu0
  %5462 = vdwg.mxu0
  %5463 = vmatpush.bf16.msra.mxu0 0
  %5464 = vmatpush.bf16.msra.mxu0 0
  %5465 = vmatpush.bf16.msra.mxu0 0
  %5466 = vmatpush.bf16.msra.mxu0 0
  %5467 = vmatpush.bf16.msra.mxu0 0
  %5468 = vmatpush.bf16.msra.mxu0 0
  %5469 = vmatpush.bf16.msra.mxu0 %v436
  %5470 = vmatpush.bf16.msra.mxu0 %v428
  %5471 = vmatmul.bf16.gmra.mxu0 %v5370
  %v5472 = vpop.f32.mrf.mxu0
  %v5473 = vadd.f32 %v5460, %v5472
  %v5474 = vpop.f32.mrf.mxu0
  %5475 = vdwg.mxu0
  %5476 = vmatpush.bf16.msra.mxu0 %v421
  %5477 = vmatpush.bf16.msra.mxu0 %v413
  %5478 = vmatpush.bf16.msra.mxu0 %v405
  %5479 = vmatpush.bf16.msra.mxu0 %v397
  %5480 = vmatpush.bf16.msra.mxu0 %v389
  %5481 = vmatpush.bf16.msra.mxu0 %v381
  %5482 = vmatpush.bf16.msra.mxu0 %v373
  %5483 = vmatpush.bf16.msra.mxu0 %v365
  %5484 = vmatmul.bf16.gmra.mxu0 %v5366
  %v5485 = vpop.f32.mrf.mxu0
  %v5486 = vadd.f32 0.0, %v5485
  %v5487 = vpop.f32.mrf.mxu0
  %5488 = vdwg.mxu0
  %5489 = vmatpush.bf16.msra.mxu0 0
  %5490 = vmatpush.bf16.msra.mxu0 0
  %5491 = vmatpush.bf16.msra.mxu0 0
  %5492 = vmatpush.bf16.msra.mxu0 0
  %5493 = vmatpush.bf16.msra.mxu0 0
  %5494 = vmatpush.bf16.msra.mxu0 0
  %5495 = vmatpush.bf16.msra.mxu0 %v437
  %5496 = vmatpush.bf16.msra.mxu0 %v429
  %5497 = vmatmul.bf16.gmra.mxu0 %v5370
  %v5498 = vpop.f32.mrf.mxu0
  %v5499 = vadd.f32 %v5486, %v5498
  %v5500 = vpop.f32.mrf.mxu0
  %5501 = vdwg.mxu0
  %5502 = vmatpush.bf16.msra.mxu0 %v422
  %5503 = vmatpush.bf16.msra.mxu0 %v414
  %5504 = vmatpush.bf16.msra.mxu0 %v406
  %5505 = vmatpush.bf16.msra.mxu0 %v398
  %5506 = vmatpush.bf16.msra.mxu0 %v390
  %5507 = vmatpush.bf16.msra.mxu0 %v382
  %5508 = vmatpush.bf16.msra.mxu0 %v374
  %5509 = vmatpush.bf16.msra.mxu0 %v366
  %5510 = vmatmul.bf16.gmra.mxu0 %v5366
  %v5511 = vpop.f32.mrf.mxu0
  %v5512 = vadd.f32 0.0, %v5511
  %v5513 = vpop.f32.mrf.mxu0
  %5514 = vdwg.mxu0
  %5515 = vmatpush.bf16.msra.mxu0 0
  %5516 = vmatpush.bf16.msra.mxu0 0
  %5517 = vmatpush.bf16.msra.mxu0 0
  %5518 = vmatpush.bf16.msra.mxu0 0
  %5519 = vmatpush.bf16.msra.mxu0 0
  %5520 = vmatpush.bf16.msra.mxu0 0
  %5521 = vmatpush.bf16.msra.mxu0 %v438
  %5522 = vmatpush.bf16.msra.mxu0 %v430
  %5523 = vmatmul.bf16.gmra.mxu0 %v5370
  %v5524 = vpop.f32.mrf.mxu0
  %v5525 = vadd.f32 %v5512, %v5524
  %v5526 = vpop.f32.mrf.mxu0
  %5527 = vdwg.mxu0
  %5528 = vmatpush.bf16.msra.mxu0 %v423
  %5529 = vmatpush.bf16.msra.mxu0 %v415
  %5530 = vmatpush.bf16.msra.mxu0 %v407
  %5531 = vmatpush.bf16.msra.mxu0 %v399
  %5532 = vmatpush.bf16.msra.mxu0 %v391
  %5533 = vmatpush.bf16.msra.mxu0 %v383
  %5534 = vmatpush.bf16.msra.mxu0 %v375
  %5535 = vmatpush.bf16.msra.mxu0 %v367
  %5536 = vmatmul.bf16.gmra.mxu0 %v5366
  %v5537 = vpop.f32.mrf.mxu0
  %v5538 = vadd.f32 0.0, %v5537
  %v5539 = vpop.f32.mrf.mxu0
  %5540 = vdwg.mxu0
  %5541 = vmatpush.bf16.msra.mxu0 0
  %5542 = vmatpush.bf16.msra.mxu0 0
  %5543 = vmatpush.bf16.msra.mxu0 0
  %5544 = vmatpush.bf16.msra.mxu0 0
  %5545 = vmatpush.bf16.msra.mxu0 0
  %5546 = vmatpush.bf16.msra.mxu0 0
  %5547 = vmatpush.bf16.msra.mxu0 %v439
  %5548 = vmatpush.bf16.msra.mxu0 %v431
  %5549 = vmatmul.bf16.gmra.mxu0 %v5370
  %v5550 = vpop.f32.mrf.mxu0
  %v5551 = vadd.f32 %v5538, %v5550
  %v5552 = vpop.f32.mrf.mxu0
  %5553 = vdwg.mxu0
  %5554 = vmatpush.bf16.msra.mxu0 %v424
  %5555 = vmatpush.bf16.msra.mxu0 %v416
  %5556 = vmatpush.bf16.msra.mxu0 %v408
  %5557 = vmatpush.bf16.msra.mxu0 %v400
  %5558 = vmatpush.bf16.msra.mxu0 %v392
  %5559 = vmatpush.bf16.msra.mxu0 %v384
  %5560 = vmatpush.bf16.msra.mxu0 %v376
  %5561 = vmatpush.bf16.msra.mxu0 %v368
  %5562 = vmatmul.bf16.gmra.mxu0 %v5366
  %v5563 = vpop.f32.mrf.mxu0
  %v5564 = vadd.f32 0.0, %v5563
  %v5565 = vpop.f32.mrf.mxu0
  %5566 = vdwg.mxu0
  %5567 = vmatpush.bf16.msra.mxu0 0
  %5568 = vmatpush.bf16.msra.mxu0 0
  %5569 = vmatpush.bf16.msra.mxu0 0
  %5570 = vmatpush.bf16.msra.mxu0 0
  %5571 = vmatpush.bf16.msra.mxu0 0
  %5572 = vmatpush.bf16.msra.mxu0 0
  %5573 = vmatpush.bf16.msra.mxu0 %v440
  %5574 = vmatpush.bf16.msra.mxu0 %v432
  %5575 = vmatmul.bf16.gmra.mxu0 %v5370
  %v5576 = vpop.f32.mrf.mxu0
  %v5577 = vadd.f32 %v5564, %v5576
  %v5578 = vpop.f32.mrf.mxu0
  %5579 = vdwg.mxu0
  %v5580 = vmax.f32 %v5176, %v5280
  %v5581 = vmax.f32 %v5202, %v5306
  %v5582 = vmax.f32 %v5228, %v5332
  %v5583 = vmax.f32 %v5254, %v5358
  %v5584 = vmax.f32 %v5395, %v5499
  %v5585 = vmax.f32 %v5421, %v5525
  %v5586 = vmax.f32 %v5447, %v5551
  %v5587 = vmax.f32 %v5473, %v5577
  %v5588 = vmax.f32 %v5580, %v5584
  %v5589 = vmax.f32 %v5581, %v5585
  %v5590 = vmax.f32 %v5582, %v5586
  %v5591 = vmax.f32 %v5583, %v5587
  %v5592 = vadd.f32 %v5588, %v106
  %v5593 = vadd.f32 %v5589, %v107
  %v5594 = vadd.f32 %v5590, %v108
  %v5595 = vadd.f32 %v5591, %v109
  %v5596 = vmax.f32 %v5592, 0.0
  %v5597 = vmax.f32 %v5593, 0.0
  %v5598 = vmax.f32 %v5594, 0.0
  %v5599 = vmax.f32 %v5595, 0.0
  %v5600 = vpack.c.bf16 %v5597, %v5596
  %v5601 = vpack.c.bf16 %v5599, %v5598
  %s5602 = scalar_lea.vmem [#allocation2], 160
  %5603 = vst [vmem:[%s5602] sm:$0xff] %v5600
  %5604 = vst [vmem:[%s5602 + $0x8] sm:$0xff] %v5601
  %s5605 = scalar_lea.vmem %s0, 88
  %v5606 = vld [vmem:[%s5605] sm:$0xff]
  %v5608 = vunpack.c.l.b16 %v5606
  %v5609 = vunpack.c.h.b16 %v5606
  %v5610 = vpack.c.b16 %v5608, %v5608
  %v5611 = vpack.c.b16 %v5609, %v5609
  %v5614 = vsel %vm521, %v5611, 0
  %5616 = vmatpush.bf16.msra.mxu0 %v417
  %5617 = vmatpush.bf16.msra.mxu0 %v409
  %5618 = vmatpush.bf16.msra.mxu0 %v401
  %5619 = vmatpush.bf16.msra.mxu0 %v393
  %5620 = vmatpush.bf16.msra.mxu0 %v385
  %5621 = vmatpush.bf16.msra.mxu0 %v377
  %5622 = vmatpush.bf16.msra.mxu0 %v369
  %5623 = vmatpush.bf16.msra.mxu0 %v361
  %5624 = vmatmul.bf16.gmra.mxu0 %v5610
  %v5625 = vpop.f32.mrf.mxu0
  %v5626 = vadd.f32 0.0, %v5625
  %v5627 = vpop.f32.mrf.mxu0
  %5628 = vdwg.mxu0
  %5629 = vmatpush.bf16.msra.mxu0 0
  %5630 = vmatpush.bf16.msra.mxu0 0
  %5631 = vmatpush.bf16.msra.mxu0 0
  %5632 = vmatpush.bf16.msra.mxu0 0
  %5633 = vmatpush.bf16.msra.mxu0 0
  %5634 = vmatpush.bf16.msra.mxu0 0
  %5635 = vmatpush.bf16.msra.mxu0 %v433
  %5636 = vmatpush.bf16.msra.mxu0 %v425
  %5637 = vmatmul.bf16.gmra.mxu0 %v5614
  %v5638 = vpop.f32.mrf.mxu0
  %v5639 = vadd.f32 %v5626, %v5638
  %v5640 = vpop.f32.mrf.mxu0
  %5641 = vdwg.mxu0
  %5642 = vmatpush.bf16.msra.mxu0 %v418
  %5643 = vmatpush.bf16.msra.mxu0 %v410
  %5644 = vmatpush.bf16.msra.mxu0 %v402
  %5645 = vmatpush.bf16.msra.mxu0 %v394
  %5646 = vmatpush.bf16.msra.mxu0 %v386
  %5647 = vmatpush.bf16.msra.mxu0 %v378
  %5648 = vmatpush.bf16.msra.mxu0 %v370
  %5649 = vmatpush.bf16.msra.mxu0 %v362
  %5650 = vmatmul.bf16.gmra.mxu0 %v5610
  %v5651 = vpop.f32.mrf.mxu0
  %v5652 = vadd.f32 0.0, %v5651
  %v5653 = vpop.f32.mrf.mxu0
  %5654 = vdwg.mxu0
  %5655 = vmatpush.bf16.msra.mxu0 0
  %5656 = vmatpush.bf16.msra.mxu0 0
  %5657 = vmatpush.bf16.msra.mxu0 0
  %5658 = vmatpush.bf16.msra.mxu0 0
  %5659 = vmatpush.bf16.msra.mxu0 0
  %5660 = vmatpush.bf16.msra.mxu0 0
  %5661 = vmatpush.bf16.msra.mxu0 %v434
  %5662 = vmatpush.bf16.msra.mxu0 %v426
  %5663 = vmatmul.bf16.gmra.mxu0 %v5614
  %v5664 = vpop.f32.mrf.mxu0
  %v5665 = vadd.f32 %v5652, %v5664
  %v5666 = vpop.f32.mrf.mxu0
  %5667 = vdwg.mxu0
  %5668 = vmatpush.bf16.msra.mxu0 %v419
  %5669 = vmatpush.bf16.msra.mxu0 %v411
  %5670 = vmatpush.bf16.msra.mxu0 %v403
  %5671 = vmatpush.bf16.msra.mxu0 %v395
  %5672 = vmatpush.bf16.msra.mxu0 %v387
  %5673 = vmatpush.bf16.msra.mxu0 %v379
  %5674 = vmatpush.bf16.msra.mxu0 %v371
  %5675 = vmatpush.bf16.msra.mxu0 %v363
  %5676 = vmatmul.bf16.gmra.mxu0 %v5610
  %v5677 = vpop.f32.mrf.mxu0
  %v5678 = vadd.f32 0.0, %v5677
  %v5679 = vpop.f32.mrf.mxu0
  %5680 = vdwg.mxu0
  %5681 = vmatpush.bf16.msra.mxu0 0
  %5682 = vmatpush.bf16.msra.mxu0 0
  %5683 = vmatpush.bf16.msra.mxu0 0
  %5684 = vmatpush.bf16.msra.mxu0 0
  %5685 = vmatpush.bf16.msra.mxu0 0
  %5686 = vmatpush.bf16.msra.mxu0 0
  %5687 = vmatpush.bf16.msra.mxu0 %v435
  %5688 = vmatpush.bf16.msra.mxu0 %v427
  %5689 = vmatmul.bf16.gmra.mxu0 %v5614
  %v5690 = vpop.f32.mrf.mxu0
  %v5691 = vadd.f32 %v5678, %v5690
  %v5692 = vpop.f32.mrf.mxu0
  %5693 = vdwg.mxu0
  %5694 = vmatpush.bf16.msra.mxu0 %v420
  %5695 = vmatpush.bf16.msra.mxu0 %v412
  %5696 = vmatpush.bf16.msra.mxu0 %v404
  %5697 = vmatpush.bf16.msra.mxu0 %v396
  %5698 = vmatpush.bf16.msra.mxu0 %v388
  %5699 = vmatpush.bf16.msra.mxu0 %v380
  %5700 = vmatpush.bf16.msra.mxu0 %v372
  %5701 = vmatpush.bf16.msra.mxu0 %v364
  %5702 = vmatmul.bf16.gmra.mxu0 %v5610
  %v5703 = vpop.f32.mrf.mxu0
  %v5704 = vadd.f32 0.0, %v5703
  %v5705 = vpop.f32.mrf.mxu0
  %5706 = vdwg.mxu0
  %5707 = vmatpush.bf16.msra.mxu0 0
  %5708 = vmatpush.bf16.msra.mxu0 0
  %5709 = vmatpush.bf16.msra.mxu0 0
  %5710 = vmatpush.bf16.msra.mxu0 0
  %5711 = vmatpush.bf16.msra.mxu0 0
  %5712 = vmatpush.bf16.msra.mxu0 0
  %5713 = vmatpush.bf16.msra.mxu0 %v436
  %5714 = vmatpush.bf16.msra.mxu0 %v428
  %5715 = vmatmul.bf16.gmra.mxu0 %v5614
  %v5716 = vpop.f32.mrf.mxu0
  %v5717 = vadd.f32 %v5704, %v5716
  %v5718 = vpop.f32.mrf.mxu0
  %5719 = vdwg.mxu0
  %5720 = vmatpush.bf16.msra.mxu0 %v421
  %5721 = vmatpush.bf16.msra.mxu0 %v413
  %5722 = vmatpush.bf16.msra.mxu0 %v405
  %5723 = vmatpush.bf16.msra.mxu0 %v397
  %5724 = vmatpush.bf16.msra.mxu0 %v389
  %5725 = vmatpush.bf16.msra.mxu0 %v381
  %5726 = vmatpush.bf16.msra.mxu0 %v373
  %5727 = vmatpush.bf16.msra.mxu0 %v365
  %5728 = vmatmul.bf16.gmra.mxu0 %v5610
  %v5729 = vpop.f32.mrf.mxu0
  %v5730 = vadd.f32 0.0, %v5729
  %v5731 = vpop.f32.mrf.mxu0
  %5732 = vdwg.mxu0
  %5733 = vmatpush.bf16.msra.mxu0 0
  %5734 = vmatpush.bf16.msra.mxu0 0
  %5735 = vmatpush.bf16.msra.mxu0 0
  %5736 = vmatpush.bf16.msra.mxu0 0
  %5737 = vmatpush.bf16.msra.mxu0 0
  %5738 = vmatpush.bf16.msra.mxu0 0
  %5739 = vmatpush.bf16.msra.mxu0 %v437
  %5740 = vmatpush.bf16.msra.mxu0 %v429
  %5741 = vmatmul.bf16.gmra.mxu0 %v5614
  %v5742 = vpop.f32.mrf.mxu0
  %v5743 = vadd.f32 %v5730, %v5742
  %v5744 = vpop.f32.mrf.mxu0
  %5745 = vdwg.mxu0
  %5746 = vmatpush.bf16.msra.mxu0 %v422
  %5747 = vmatpush.bf16.msra.mxu0 %v414
  %5748 = vmatpush.bf16.msra.mxu0 %v406
  %5749 = vmatpush.bf16.msra.mxu0 %v398
  %5750 = vmatpush.bf16.msra.mxu0 %v390
  %5751 = vmatpush.bf16.msra.mxu0 %v382
  %5752 = vmatpush.bf16.msra.mxu0 %v374
  %5753 = vmatpush.bf16.msra.mxu0 %v366
  %5754 = vmatmul.bf16.gmra.mxu0 %v5610
  %v5755 = vpop.f32.mrf.mxu0
  %v5756 = vadd.f32 0.0, %v5755
  %v5757 = vpop.f32.mrf.mxu0
  %5758 = vdwg.mxu0
  %5759 = vmatpush.bf16.msra.mxu0 0
  %5760 = vmatpush.bf16.msra.mxu0 0
  %5761 = vmatpush.bf16.msra.mxu0 0
  %5762 = vmatpush.bf16.msra.mxu0 0
  %5763 = vmatpush.bf16.msra.mxu0 0
  %5764 = vmatpush.bf16.msra.mxu0 0
  %5765 = vmatpush.bf16.msra.mxu0 %v438
  %5766 = vmatpush.bf16.msra.mxu0 %v430
  %5767 = vmatmul.bf16.gmra.mxu0 %v5614
  %v5768 = vpop.f32.mrf.mxu0
  %v5769 = vadd.f32 %v5756, %v5768
  %v5770 = vpop.f32.mrf.mxu0
  %5771 = vdwg.mxu0
  %5772 = vmatpush.bf16.msra.mxu0 %v423
  %5773 = vmatpush.bf16.msra.mxu0 %v415
  %5774 = vmatpush.bf16.msra.mxu0 %v407
  %5775 = vmatpush.bf16.msra.mxu0 %v399
  %5776 = vmatpush.bf16.msra.mxu0 %v391
  %5777 = vmatpush.bf16.msra.mxu0 %v383
  %5778 = vmatpush.bf16.msra.mxu0 %v375
  %5779 = vmatpush.bf16.msra.mxu0 %v367
  %5780 = vmatmul.bf16.gmra.mxu0 %v5610
  %v5781 = vpop.f32.mrf.mxu0
  %v5782 = vadd.f32 0.0, %v5781
  %v5783 = vpop.f32.mrf.mxu0
  %5784 = vdwg.mxu0
  %5785 = vmatpush.bf16.msra.mxu0 0
  %5786 = vmatpush.bf16.msra.mxu0 0
  %5787 = vmatpush.bf16.msra.mxu0 0
  %5788 = vmatpush.bf16.msra.mxu0 0
  %5789 = vmatpush.bf16.msra.mxu0 0
  %5790 = vmatpush.bf16.msra.mxu0 0
  %5791 = vmatpush.bf16.msra.mxu0 %v439
  %5792 = vmatpush.bf16.msra.mxu0 %v431
  %5793 = vmatmul.bf16.gmra.mxu0 %v5614
  %v5794 = vpop.f32.mrf.mxu0
  %v5795 = vadd.f32 %v5782, %v5794
  %v5796 = vpop.f32.mrf.mxu0
  %5797 = vdwg.mxu0
  %5798 = vmatpush.bf16.msra.mxu0 %v424
  %5799 = vmatpush.bf16.msra.mxu0 %v416
  %5800 = vmatpush.bf16.msra.mxu0 %v408
  %5801 = vmatpush.bf16.msra.mxu0 %v400
  %5802 = vmatpush.bf16.msra.mxu0 %v392
  %5803 = vmatpush.bf16.msra.mxu0 %v384
  %5804 = vmatpush.bf16.msra.mxu0 %v376
  %5805 = vmatpush.bf16.msra.mxu0 %v368
  %5806 = vmatmul.bf16.gmra.mxu0 %v5610
  %v5807 = vpop.f32.mrf.mxu0
  %v5808 = vadd.f32 0.0, %v5807
  %v5809 = vpop.f32.mrf.mxu0
  %5810 = vdwg.mxu0
  %5811 = vmatpush.bf16.msra.mxu0 0
  %5812 = vmatpush.bf16.msra.mxu0 0
  %5813 = vmatpush.bf16.msra.mxu0 0
  %5814 = vmatpush.bf16.msra.mxu0 0
  %5815 = vmatpush.bf16.msra.mxu0 0
  %5816 = vmatpush.bf16.msra.mxu0 0
  %5817 = vmatpush.bf16.msra.mxu0 %v440
  %5818 = vmatpush.bf16.msra.mxu0 %v432
  %5819 = vmatmul.bf16.gmra.mxu0 %v5614
  %v5820 = vpop.f32.mrf.mxu0
  %v5821 = vadd.f32 %v5808, %v5820
  %v5822 = vpop.f32.mrf.mxu0
  %5823 = vdwg.mxu0
  %s5824 = scalar_lea.vmem %s1, 88
  %v5825 = vld [vmem:[%s5824] sm:$0xff]
  %v5827 = vunpack.c.l.b16 %v5825
  %v5828 = vunpack.c.h.b16 %v5825
  %v5829 = vpack.c.b16 %v5827, %v5827
  %v5830 = vpack.c.b16 %v5828, %v5828
  %v5833 = vsel %vm521, %v5830, 0
  %5835 = vmatpush.bf16.msra.mxu0 %v417
  %5836 = vmatpush.bf16.msra.mxu0 %v409
  %5837 = vmatpush.bf16.msra.mxu0 %v401
  %5838 = vmatpush.bf16.msra.mxu0 %v393
  %5839 = vmatpush.bf16.msra.mxu0 %v385
  %5840 = vmatpush.bf16.msra.mxu0 %v377
  %5841 = vmatpush.bf16.msra.mxu0 %v369
  %5842 = vmatpush.bf16.msra.mxu0 %v361
  %5843 = vmatmul.bf16.gmra.mxu0 %v5829
  %v5844 = vpop.f32.mrf.mxu0
  %v5845 = vadd.f32 0.0, %v5844
  %v5846 = vpop.f32.mrf.mxu0
  %5847 = vdwg.mxu0
  %5848 = vmatpush.bf16.msra.mxu0 0
  %5849 = vmatpush.bf16.msra.mxu0 0
  %5850 = vmatpush.bf16.msra.mxu0 0
  %5851 = vmatpush.bf16.msra.mxu0 0
  %5852 = vmatpush.bf16.msra.mxu0 0
  %5853 = vmatpush.bf16.msra.mxu0 0
  %5854 = vmatpush.bf16.msra.mxu0 %v433
  %5855 = vmatpush.bf16.msra.mxu0 %v425
  %5856 = vmatmul.bf16.gmra.mxu0 %v5833
  %v5857 = vpop.f32.mrf.mxu0
  %v5858 = vadd.f32 %v5845, %v5857
  %v5859 = vpop.f32.mrf.mxu0
  %5860 = vdwg.mxu0
  %5861 = vmatpush.bf16.msra.mxu0 %v418
  %5862 = vmatpush.bf16.msra.mxu0 %v410
  %5863 = vmatpush.bf16.msra.mxu0 %v402
  %5864 = vmatpush.bf16.msra.mxu0 %v394
  %5865 = vmatpush.bf16.msra.mxu0 %v386
  %5866 = vmatpush.bf16.msra.mxu0 %v378
  %5867 = vmatpush.bf16.msra.mxu0 %v370
  %5868 = vmatpush.bf16.msra.mxu0 %v362
  %5869 = vmatmul.bf16.gmra.mxu0 %v5829
  %v5870 = vpop.f32.mrf.mxu0
  %v5871 = vadd.f32 0.0, %v5870
  %v5872 = vpop.f32.mrf.mxu0
  %5873 = vdwg.mxu0
  %5874 = vmatpush.bf16.msra.mxu0 0
  %5875 = vmatpush.bf16.msra.mxu0 0
  %5876 = vmatpush.bf16.msra.mxu0 0
  %5877 = vmatpush.bf16.msra.mxu0 0
  %5878 = vmatpush.bf16.msra.mxu0 0
  %5879 = vmatpush.bf16.msra.mxu0 0
  %5880 = vmatpush.bf16.msra.mxu0 %v434
  %5881 = vmatpush.bf16.msra.mxu0 %v426
  %5882 = vmatmul.bf16.gmra.mxu0 %v5833
  %v5883 = vpop.f32.mrf.mxu0
  %v5884 = vadd.f32 %v5871, %v5883
  %v5885 = vpop.f32.mrf.mxu0
  %5886 = vdwg.mxu0
  %5887 = vmatpush.bf16.msra.mxu0 %v419
  %5888 = vmatpush.bf16.msra.mxu0 %v411
  %5889 = vmatpush.bf16.msra.mxu0 %v403
  %5890 = vmatpush.bf16.msra.mxu0 %v395
  %5891 = vmatpush.bf16.msra.mxu0 %v387
  %5892 = vmatpush.bf16.msra.mxu0 %v379
  %5893 = vmatpush.bf16.msra.mxu0 %v371
  %5894 = vmatpush.bf16.msra.mxu0 %v363
  %5895 = vmatmul.bf16.gmra.mxu0 %v5829
  %v5896 = vpop.f32.mrf.mxu0
  %v5897 = vadd.f32 0.0, %v5896
  %v5898 = vpop.f32.mrf.mxu0
  %5899 = vdwg.mxu0
  %5900 = vmatpush.bf16.msra.mxu0 0
  %5901 = vmatpush.bf16.msra.mxu0 0
  %5902 = vmatpush.bf16.msra.mxu0 0
  %5903 = vmatpush.bf16.msra.mxu0 0
  %5904 = vmatpush.bf16.msra.mxu0 0
  %5905 = vmatpush.bf16.msra.mxu0 0
  %5906 = vmatpush.bf16.msra.mxu0 %v435
  %5907 = vmatpush.bf16.msra.mxu0 %v427
  %5908 = vmatmul.bf16.gmra.mxu0 %v5833
  %v5909 = vpop.f32.mrf.mxu0
  %v5910 = vadd.f32 %v5897, %v5909
  %v5911 = vpop.f32.mrf.mxu0
  %5912 = vdwg.mxu0
  %5913 = vmatpush.bf16.msra.mxu0 %v420
  %5914 = vmatpush.bf16.msra.mxu0 %v412
  %5915 = vmatpush.bf16.msra.mxu0 %v404
  %5916 = vmatpush.bf16.msra.mxu0 %v396
  %5917 = vmatpush.bf16.msra.mxu0 %v388
  %5918 = vmatpush.bf16.msra.mxu0 %v380
  %5919 = vmatpush.bf16.msra.mxu0 %v372
  %5920 = vmatpush.bf16.msra.mxu0 %v364
  %5921 = vmatmul.bf16.gmra.mxu0 %v5829
  %v5922 = vpop.f32.mrf.mxu0
  %v5923 = vadd.f32 0.0, %v5922
  %v5924 = vpop.f32.mrf.mxu0
  %5925 = vdwg.mxu0
  %5926 = vmatpush.bf16.msra.mxu0 0
  %5927 = vmatpush.bf16.msra.mxu0 0
  %5928 = vmatpush.bf16.msra.mxu0 0
  %5929 = vmatpush.bf16.msra.mxu0 0
  %5930 = vmatpush.bf16.msra.mxu0 0
  %5931 = vmatpush.bf16.msra.mxu0 0
  %5932 = vmatpush.bf16.msra.mxu0 %v436
  %5933 = vmatpush.bf16.msra.mxu0 %v428
  %5934 = vmatmul.bf16.gmra.mxu0 %v5833
  %v5935 = vpop.f32.mrf.mxu0
  %v5936 = vadd.f32 %v5923, %v5935
  %v5937 = vpop.f32.mrf.mxu0
  %5938 = vdwg.mxu0
  %5939 = vmatpush.bf16.msra.mxu0 %v421
  %5940 = vmatpush.bf16.msra.mxu0 %v413
  %5941 = vmatpush.bf16.msra.mxu0 %v405
  %5942 = vmatpush.bf16.msra.mxu0 %v397
  %5943 = vmatpush.bf16.msra.mxu0 %v389
  %5944 = vmatpush.bf16.msra.mxu0 %v381
  %5945 = vmatpush.bf16.msra.mxu0 %v373
  %5946 = vmatpush.bf16.msra.mxu0 %v365
  %5947 = vmatmul.bf16.gmra.mxu0 %v5829
  %v5948 = vpop.f32.mrf.mxu0
  %v5949 = vadd.f32 0.0, %v5948
  %v5950 = vpop.f32.mrf.mxu0
  %5951 = vdwg.mxu0
  %5952 = vmatpush.bf16.msra.mxu0 0
  %5953 = vmatpush.bf16.msra.mxu0 0
  %5954 = vmatpush.bf16.msra.mxu0 0
  %5955 = vmatpush.bf16.msra.mxu0 0
  %5956 = vmatpush.bf16.msra.mxu0 0
  %5957 = vmatpush.bf16.msra.mxu0 0
  %5958 = vmatpush.bf16.msra.mxu0 %v437
  %5959 = vmatpush.bf16.msra.mxu0 %v429
  %5960 = vmatmul.bf16.gmra.mxu0 %v5833
  %v5961 = vpop.f32.mrf.mxu0
  %v5962 = vadd.f32 %v5949, %v5961
  %v5963 = vpop.f32.mrf.mxu0
  %5964 = vdwg.mxu0
  %5965 = vmatpush.bf16.msra.mxu0 %v422
  %5966 = vmatpush.bf16.msra.mxu0 %v414
  %5967 = vmatpush.bf16.msra.mxu0 %v406
  %5968 = vmatpush.bf16.msra.mxu0 %v398
  %5969 = vmatpush.bf16.msra.mxu0 %v390
  %5970 = vmatpush.bf16.msra.mxu0 %v382
  %5971 = vmatpush.bf16.msra.mxu0 %v374
  %5972 = vmatpush.bf16.msra.mxu0 %v366
  %5973 = vmatmul.bf16.gmra.mxu0 %v5829
  %v5974 = vpop.f32.mrf.mxu0
  %v5975 = vadd.f32 0.0, %v5974
  %v5976 = vpop.f32.mrf.mxu0
  %5977 = vdwg.mxu0
  %5978 = vmatpush.bf16.msra.mxu0 0
  %5979 = vmatpush.bf16.msra.mxu0 0
  %5980 = vmatpush.bf16.msra.mxu0 0
  %5981 = vmatpush.bf16.msra.mxu0 0
  %5982 = vmatpush.bf16.msra.mxu0 0
  %5983 = vmatpush.bf16.msra.mxu0 0
  %5984 = vmatpush.bf16.msra.mxu0 %v438
  %5985 = vmatpush.bf16.msra.mxu0 %v430
  %5986 = vmatmul.bf16.gmra.mxu0 %v5833
  %v5987 = vpop.f32.mrf.mxu0
  %v5988 = vadd.f32 %v5975, %v5987
  %v5989 = vpop.f32.mrf.mxu0
  %5990 = vdwg.mxu0
  %5991 = vmatpush.bf16.msra.mxu0 %v423
  %5992 = vmatpush.bf16.msra.mxu0 %v415
  %5993 = vmatpush.bf16.msra.mxu0 %v407
  %5994 = vmatpush.bf16.msra.mxu0 %v399
  %5995 = vmatpush.bf16.msra.mxu0 %v391
  %5996 = vmatpush.bf16.msra.mxu0 %v383
  %5997 = vmatpush.bf16.msra.mxu0 %v375
  %5998 = vmatpush.bf16.msra.mxu0 %v367
  %5999 = vmatmul.bf16.gmra.mxu0 %v5829
  %v6000 = vpop.f32.mrf.mxu0
  %v6001 = vadd.f32 0.0, %v6000
  %v6002 = vpop.f32.mrf.mxu0
  %6003 = vdwg.mxu0
  %6004 = vmatpush.bf16.msra.mxu0 0
  %6005 = vmatpush.bf16.msra.mxu0 0
  %6006 = vmatpush.bf16.msra.mxu0 0
  %6007 = vmatpush.bf16.msra.mxu0 0
  %6008 = vmatpush.bf16.msra.mxu0 0
  %6009 = vmatpush.bf16.msra.mxu0 0
  %6010 = vmatpush.bf16.msra.mxu0 %v439
  %6011 = vmatpush.bf16.msra.mxu0 %v431
  %6012 = vmatmul.bf16.gmra.mxu0 %v5833
  %v6013 = vpop.f32.mrf.mxu0
  %v6014 = vadd.f32 %v6001, %v6013
  %v6015 = vpop.f32.mrf.mxu0
  %6016 = vdwg.mxu0
  %6017 = vmatpush.bf16.msra.mxu0 %v424
  %6018 = vmatpush.bf16.msra.mxu0 %v416
  %6019 = vmatpush.bf16.msra.mxu0 %v408
  %6020 = vmatpush.bf16.msra.mxu0 %v400
  %6021 = vmatpush.bf16.msra.mxu0 %v392
  %6022 = vmatpush.bf16.msra.mxu0 %v384
  %6023 = vmatpush.bf16.msra.mxu0 %v376
  %6024 = vmatpush.bf16.msra.mxu0 %v368
  %6025 = vmatmul.bf16.gmra.mxu0 %v5829
  %v6026 = vpop.f32.mrf.mxu0
  %v6027 = vadd.f32 0.0, %v6026
  %v6028 = vpop.f32.mrf.mxu0
  %6029 = vdwg.mxu0
  %6030 = vmatpush.bf16.msra.mxu0 0
  %6031 = vmatpush.bf16.msra.mxu0 0
  %6032 = vmatpush.bf16.msra.mxu0 0
  %6033 = vmatpush.bf16.msra.mxu0 0
  %6034 = vmatpush.bf16.msra.mxu0 0
  %6035 = vmatpush.bf16.msra.mxu0 0
  %6036 = vmatpush.bf16.msra.mxu0 %v440
  %6037 = vmatpush.bf16.msra.mxu0 %v432
  %6038 = vmatmul.bf16.gmra.mxu0 %v5833
  %v6039 = vpop.f32.mrf.mxu0
  %v6040 = vadd.f32 %v6027, %v6039
  %v6041 = vpop.f32.mrf.mxu0
  %6042 = vdwg.mxu0
  %v6043 = vmax.f32 %v5639, %v5743
  %v6044 = vmax.f32 %v5665, %v5769
  %v6045 = vmax.f32 %v5691, %v5795
  %v6046 = vmax.f32 %v5717, %v5821
  %v6047 = vmax.f32 %v5858, %v5962
  %v6048 = vmax.f32 %v5884, %v5988
  %v6049 = vmax.f32 %v5910, %v6014
  %v6050 = vmax.f32 %v5936, %v6040
  %v6051 = vmax.f32 %v6043, %v6047
  %v6052 = vmax.f32 %v6044, %v6048
  %v6053 = vmax.f32 %v6045, %v6049
  %v6054 = vmax.f32 %v6046, %v6050
  %v6055 = vadd.f32 %v6051, %v106
  %v6056 = vadd.f32 %v6052, %v107
  %v6057 = vadd.f32 %v6053, %v108
  %v6058 = vadd.f32 %v6054, %v109
  %v6059 = vmax.f32 %v6055, 0.0
  %v6060 = vmax.f32 %v6056, 0.0
  %v6061 = vmax.f32 %v6057, 0.0
  %v6062 = vmax.f32 %v6058, 0.0
  %v6063 = vpack.c.bf16 %v6060, %v6059
  %v6064 = vpack.c.bf16 %v6062, %v6061
  %s6065 = scalar_lea.vmem [#allocation2], 176
  %6066 = vst [vmem:[%s6065] sm:$0xff] %v6063
  %6067 = vst [vmem:[%s6065 + $0x8] sm:$0xff] %v6064
  %s6068 = scalar_lea.vmem %s0, 96
  %v6069 = vld [vmem:[%s6068] sm:$0xff]
  %v6071 = vunpack.c.l.b16 %v6069
  %v6072 = vunpack.c.h.b16 %v6069
  %v6073 = vpack.c.b16 %v6071, %v6071
  %v6074 = vpack.c.b16 %v6072, %v6072
  %v6077 = vsel %vm521, %v6074, 0
  %6079 = vmatpush.bf16.msra.mxu0 %v417
  %6080 = vmatpush.bf16.msra.mxu0 %v409
  %6081 = vmatpush.bf16.msra.mxu0 %v401
  %6082 = vmatpush.bf16.msra.mxu0 %v393
  %6083 = vmatpush.bf16.msra.mxu0 %v385
  %6084 = vmatpush.bf16.msra.mxu0 %v377
  %6085 = vmatpush.bf16.msra.mxu0 %v369
  %6086 = vmatpush.bf16.msra.mxu0 %v361
  %6087 = vmatmul.bf16.gmra.mxu0 %v6073
  %v6088 = vpop.f32.mrf.mxu0
  %v6089 = vadd.f32 0.0, %v6088
  %v6090 = vpop.f32.mrf.mxu0
  %6091 = vdwg.mxu0
  %6092 = vmatpush.bf16.msra.mxu0 0
  %6093 = vmatpush.bf16.msra.mxu0 0
  %6094 = vmatpush.bf16.msra.mxu0 0
  %6095 = vmatpush.bf16.msra.mxu0 0
  %6096 = vmatpush.bf16.msra.mxu0 0
  %6097 = vmatpush.bf16.msra.mxu0 0
  %6098 = vmatpush.bf16.msra.mxu0 %v433
  %6099 = vmatpush.bf16.msra.mxu0 %v425
  %6100 = vmatmul.bf16.gmra.mxu0 %v6077
  %v6101 = vpop.f32.mrf.mxu0
  %v6102 = vadd.f32 %v6089, %v6101
  %v6103 = vpop.f32.mrf.mxu0
  %6104 = vdwg.mxu0
  %6105 = vmatpush.bf16.msra.mxu0 %v418
  %6106 = vmatpush.bf16.msra.mxu0 %v410
  %6107 = vmatpush.bf16.msra.mxu0 %v402
  %6108 = vmatpush.bf16.msra.mxu0 %v394
  %6109 = vmatpush.bf16.msra.mxu0 %v386
  %6110 = vmatpush.bf16.msra.mxu0 %v378
  %6111 = vmatpush.bf16.msra.mxu0 %v370
  %6112 = vmatpush.bf16.msra.mxu0 %v362
  %6113 = vmatmul.bf16.gmra.mxu0 %v6073
  %v6114 = vpop.f32.mrf.mxu0
  %v6115 = vadd.f32 0.0, %v6114
  %v6116 = vpop.f32.mrf.mxu0
  %6117 = vdwg.mxu0
  %6118 = vmatpush.bf16.msra.mxu0 0
  %6119 = vmatpush.bf16.msra.mxu0 0
  %6120 = vmatpush.bf16.msra.mxu0 0
  %6121 = vmatpush.bf16.msra.mxu0 0
  %6122 = vmatpush.bf16.msra.mxu0 0
  %6123 = vmatpush.bf16.msra.mxu0 0
  %6124 = vmatpush.bf16.msra.mxu0 %v434
  %6125 = vmatpush.bf16.msra.mxu0 %v426
  %6126 = vmatmul.bf16.gmra.mxu0 %v6077
  %v6127 = vpop.f32.mrf.mxu0
  %v6128 = vadd.f32 %v6115, %v6127
  %v6129 = vpop.f32.mrf.mxu0
  %6130 = vdwg.mxu0
  %6131 = vmatpush.bf16.msra.mxu0 %v419
  %6132 = vmatpush.bf16.msra.mxu0 %v411
  %6133 = vmatpush.bf16.msra.mxu0 %v403
  %6134 = vmatpush.bf16.msra.mxu0 %v395
  %6135 = vmatpush.bf16.msra.mxu0 %v387
  %6136 = vmatpush.bf16.msra.mxu0 %v379
  %6137 = vmatpush.bf16.msra.mxu0 %v371
  %6138 = vmatpush.bf16.msra.mxu0 %v363
  %6139 = vmatmul.bf16.gmra.mxu0 %v6073
  %v6140 = vpop.f32.mrf.mxu0
  %v6141 = vadd.f32 0.0, %v6140
  %v6142 = vpop.f32.mrf.mxu0
  %6143 = vdwg.mxu0
  %6144 = vmatpush.bf16.msra.mxu0 0
  %6145 = vmatpush.bf16.msra.mxu0 0
  %6146 = vmatpush.bf16.msra.mxu0 0
  %6147 = vmatpush.bf16.msra.mxu0 0
  %6148 = vmatpush.bf16.msra.mxu0 0
  %6149 = vmatpush.bf16.msra.mxu0 0
  %6150 = vmatpush.bf16.msra.mxu0 %v435
  %6151 = vmatpush.bf16.msra.mxu0 %v427
  %6152 = vmatmul.bf16.gmra.mxu0 %v6077
  %v6153 = vpop.f32.mrf.mxu0
  %v6154 = vadd.f32 %v6141, %v6153
  %v6155 = vpop.f32.mrf.mxu0
  %6156 = vdwg.mxu0
  %6157 = vmatpush.bf16.msra.mxu0 %v420
  %6158 = vmatpush.bf16.msra.mxu0 %v412
  %6159 = vmatpush.bf16.msra.mxu0 %v404
  %6160 = vmatpush.bf16.msra.mxu0 %v396
  %6161 = vmatpush.bf16.msra.mxu0 %v388
  %6162 = vmatpush.bf16.msra.mxu0 %v380
  %6163 = vmatpush.bf16.msra.mxu0 %v372
  %6164 = vmatpush.bf16.msra.mxu0 %v364
  %6165 = vmatmul.bf16.gmra.mxu0 %v6073
  %v6166 = vpop.f32.mrf.mxu0
  %v6167 = vadd.f32 0.0, %v6166
  %v6168 = vpop.f32.mrf.mxu0
  %6169 = vdwg.mxu0
  %6170 = vmatpush.bf16.msra.mxu0 0
  %6171 = vmatpush.bf16.msra.mxu0 0
  %6172 = vmatpush.bf16.msra.mxu0 0
  %6173 = vmatpush.bf16.msra.mxu0 0
  %6174 = vmatpush.bf16.msra.mxu0 0
  %6175 = vmatpush.bf16.msra.mxu0 0
  %6176 = vmatpush.bf16.msra.mxu0 %v436
  %6177 = vmatpush.bf16.msra.mxu0 %v428
  %6178 = vmatmul.bf16.gmra.mxu0 %v6077
  %v6179 = vpop.f32.mrf.mxu0
  %v6180 = vadd.f32 %v6167, %v6179
  %v6181 = vpop.f32.mrf.mxu0
  %6182 = vdwg.mxu0
  %6183 = vmatpush.bf16.msra.mxu0 %v421
  %6184 = vmatpush.bf16.msra.mxu0 %v413
  %6185 = vmatpush.bf16.msra.mxu0 %v405
  %6186 = vmatpush.bf16.msra.mxu0 %v397
  %6187 = vmatpush.bf16.msra.mxu0 %v389
  %6188 = vmatpush.bf16.msra.mxu0 %v381
  %6189 = vmatpush.bf16.msra.mxu0 %v373
  %6190 = vmatpush.bf16.msra.mxu0 %v365
  %6191 = vmatmul.bf16.gmra.mxu0 %v6073
  %v6192 = vpop.f32.mrf.mxu0
  %v6193 = vadd.f32 0.0, %v6192
  %v6194 = vpop.f32.mrf.mxu0
  %6195 = vdwg.mxu0
  %6196 = vmatpush.bf16.msra.mxu0 0
  %6197 = vmatpush.bf16.msra.mxu0 0
  %6198 = vmatpush.bf16.msra.mxu0 0
  %6199 = vmatpush.bf16.msra.mxu0 0
  %6200 = vmatpush.bf16.msra.mxu0 0
  %6201 = vmatpush.bf16.msra.mxu0 0
  %6202 = vmatpush.bf16.msra.mxu0 %v437
  %6203 = vmatpush.bf16.msra.mxu0 %v429
  %6204 = vmatmul.bf16.gmra.mxu0 %v6077
  %v6205 = vpop.f32.mrf.mxu0
  %v6206 = vadd.f32 %v6193, %v6205
  %v6207 = vpop.f32.mrf.mxu0
  %6208 = vdwg.mxu0
  %6209 = vmatpush.bf16.msra.mxu0 %v422
  %6210 = vmatpush.bf16.msra.mxu0 %v414
  %6211 = vmatpush.bf16.msra.mxu0 %v406
  %6212 = vmatpush.bf16.msra.mxu0 %v398
  %6213 = vmatpush.bf16.msra.mxu0 %v390
  %6214 = vmatpush.bf16.msra.mxu0 %v382
  %6215 = vmatpush.bf16.msra.mxu0 %v374
  %6216 = vmatpush.bf16.msra.mxu0 %v366
  %6217 = vmatmul.bf16.gmra.mxu0 %v6073
  %v6218 = vpop.f32.mrf.mxu0
  %v6219 = vadd.f32 0.0, %v6218
  %v6220 = vpop.f32.mrf.mxu0
  %6221 = vdwg.mxu0
  %6222 = vmatpush.bf16.msra.mxu0 0
  %6223 = vmatpush.bf16.msra.mxu0 0
  %6224 = vmatpush.bf16.msra.mxu0 0
  %6225 = vmatpush.bf16.msra.mxu0 0
  %6226 = vmatpush.bf16.msra.mxu0 0
  %6227 = vmatpush.bf16.msra.mxu0 0
  %6228 = vmatpush.bf16.msra.mxu0 %v438
  %6229 = vmatpush.bf16.msra.mxu0 %v430
  %6230 = vmatmul.bf16.gmra.mxu0 %v6077
  %v6231 = vpop.f32.mrf.mxu0
  %v6232 = vadd.f32 %v6219, %v6231
  %v6233 = vpop.f32.mrf.mxu0
  %6234 = vdwg.mxu0
  %6235 = vmatpush.bf16.msra.mxu0 %v423
  %6236 = vmatpush.bf16.msra.mxu0 %v415
  %6237 = vmatpush.bf16.msra.mxu0 %v407
  %6238 = vmatpush.bf16.msra.mxu0 %v399
  %6239 = vmatpush.bf16.msra.mxu0 %v391
  %6240 = vmatpush.bf16.msra.mxu0 %v383
  %6241 = vmatpush.bf16.msra.mxu0 %v375
  %6242 = vmatpush.bf16.msra.mxu0 %v367
  %6243 = vmatmul.bf16.gmra.mxu0 %v6073
  %v6244 = vpop.f32.mrf.mxu0
  %v6245 = vadd.f32 0.0, %v6244
  %v6246 = vpop.f32.mrf.mxu0
  %6247 = vdwg.mxu0
  %6248 = vmatpush.bf16.msra.mxu0 0
  %6249 = vmatpush.bf16.msra.mxu0 0
  %6250 = vmatpush.bf16.msra.mxu0 0
  %6251 = vmatpush.bf16.msra.mxu0 0
  %6252 = vmatpush.bf16.msra.mxu0 0
  %6253 = vmatpush.bf16.msra.mxu0 0
  %6254 = vmatpush.bf16.msra.mxu0 %v439
  %6255 = vmatpush.bf16.msra.mxu0 %v431
  %6256 = vmatmul.bf16.gmra.mxu0 %v6077
  %v6257 = vpop.f32.mrf.mxu0
  %v6258 = vadd.f32 %v6245, %v6257
  %v6259 = vpop.f32.mrf.mxu0
  %6260 = vdwg.mxu0
  %6261 = vmatpush.bf16.msra.mxu0 %v424
  %6262 = vmatpush.bf16.msra.mxu0 %v416
  %6263 = vmatpush.bf16.msra.mxu0 %v408
  %6264 = vmatpush.bf16.msra.mxu0 %v400
  %6265 = vmatpush.bf16.msra.mxu0 %v392
  %6266 = vmatpush.bf16.msra.mxu0 %v384
  %6267 = vmatpush.bf16.msra.mxu0 %v376
  %6268 = vmatpush.bf16.msra.mxu0 %v368
  %6269 = vmatmul.bf16.gmra.mxu0 %v6073
  %v6270 = vpop.f32.mrf.mxu0
  %v6271 = vadd.f32 0.0, %v6270
  %v6272 = vpop.f32.mrf.mxu0
  %6273 = vdwg.mxu0
  %6274 = vmatpush.bf16.msra.mxu0 0
  %6275 = vmatpush.bf16.msra.mxu0 0
  %6276 = vmatpush.bf16.msra.mxu0 0
  %6277 = vmatpush.bf16.msra.mxu0 0
  %6278 = vmatpush.bf16.msra.mxu0 0
  %6279 = vmatpush.bf16.msra.mxu0 0
  %6280 = vmatpush.bf16.msra.mxu0 %v440
  %6281 = vmatpush.bf16.msra.mxu0 %v432
  %6282 = vmatmul.bf16.gmra.mxu0 %v6077
  %v6283 = vpop.f32.mrf.mxu0
  %v6284 = vadd.f32 %v6271, %v6283
  %v6285 = vpop.f32.mrf.mxu0
  %6286 = vdwg.mxu0
  %s6287 = scalar_lea.vmem %s1, 96
  %v6288 = vld [vmem:[%s6287] sm:$0xff]
  %v6290 = vunpack.c.l.b16 %v6288
  %v6291 = vunpack.c.h.b16 %v6288
  %v6292 = vpack.c.b16 %v6290, %v6290
  %v6293 = vpack.c.b16 %v6291, %v6291
  %v6296 = vsel %vm521, %v6293, 0
  %6298 = vmatpush.bf16.msra.mxu0 %v417
  %6299 = vmatpush.bf16.msra.mxu0 %v409
  %6300 = vmatpush.bf16.msra.mxu0 %v401
  %6301 = vmatpush.bf16.msra.mxu0 %v393
  %6302 = vmatpush.bf16.msra.mxu0 %v385
  %6303 = vmatpush.bf16.msra.mxu0 %v377
  %6304 = vmatpush.bf16.msra.mxu0 %v369
  %6305 = vmatpush.bf16.msra.mxu0 %v361
  %6306 = vmatmul.bf16.gmra.mxu0 %v6292
  %v6307 = vpop.f32.mrf.mxu0
  %v6308 = vadd.f32 0.0, %v6307
  %v6309 = vpop.f32.mrf.mxu0
  %6310 = vdwg.mxu0
  %6311 = vmatpush.bf16.msra.mxu0 0
  %6312 = vmatpush.bf16.msra.mxu0 0
  %6313 = vmatpush.bf16.msra.mxu0 0
  %6314 = vmatpush.bf16.msra.mxu0 0
  %6315 = vmatpush.bf16.msra.mxu0 0
  %6316 = vmatpush.bf16.msra.mxu0 0
  %6317 = vmatpush.bf16.msra.mxu0 %v433
  %6318 = vmatpush.bf16.msra.mxu0 %v425
  %6319 = vmatmul.bf16.gmra.mxu0 %v6296
  %v6320 = vpop.f32.mrf.mxu0
  %v6321 = vadd.f32 %v6308, %v6320
  %v6322 = vpop.f32.mrf.mxu0
  %6323 = vdwg.mxu0
  %6324 = vmatpush.bf16.msra.mxu0 %v418
  %6325 = vmatpush.bf16.msra.mxu0 %v410
  %6326 = vmatpush.bf16.msra.mxu0 %v402
  %6327 = vmatpush.bf16.msra.mxu0 %v394
  %6328 = vmatpush.bf16.msra.mxu0 %v386
  %6329 = vmatpush.bf16.msra.mxu0 %v378
  %6330 = vmatpush.bf16.msra.mxu0 %v370
  %6331 = vmatpush.bf16.msra.mxu0 %v362
  %6332 = vmatmul.bf16.gmra.mxu0 %v6292
  %v6333 = vpop.f32.mrf.mxu0
  %v6334 = vadd.f32 0.0, %v6333
  %v6335 = vpop.f32.mrf.mxu0
  %6336 = vdwg.mxu0
  %6337 = vmatpush.bf16.msra.mxu0 0
  %6338 = vmatpush.bf16.msra.mxu0 0
  %6339 = vmatpush.bf16.msra.mxu0 0
  %6340 = vmatpush.bf16.msra.mxu0 0
  %6341 = vmatpush.bf16.msra.mxu0 0
  %6342 = vmatpush.bf16.msra.mxu0 0
  %6343 = vmatpush.bf16.msra.mxu0 %v434
  %6344 = vmatpush.bf16.msra.mxu0 %v426
  %6345 = vmatmul.bf16.gmra.mxu0 %v6296
  %v6346 = vpop.f32.mrf.mxu0
  %v6347 = vadd.f32 %v6334, %v6346
  %v6348 = vpop.f32.mrf.mxu0
  %6349 = vdwg.mxu0
  %6350 = vmatpush.bf16.msra.mxu0 %v419
  %6351 = vmatpush.bf16.msra.mxu0 %v411
  %6352 = vmatpush.bf16.msra.mxu0 %v403
  %6353 = vmatpush.bf16.msra.mxu0 %v395
  %6354 = vmatpush.bf16.msra.mxu0 %v387
  %6355 = vmatpush.bf16.msra.mxu0 %v379
  %6356 = vmatpush.bf16.msra.mxu0 %v371
  %6357 = vmatpush.bf16.msra.mxu0 %v363
  %6358 = vmatmul.bf16.gmra.mxu0 %v6292
  %v6359 = vpop.f32.mrf.mxu0
  %v6360 = vadd.f32 0.0, %v6359
  %v6361 = vpop.f32.mrf.mxu0
  %6362 = vdwg.mxu0
  %6363 = vmatpush.bf16.msra.mxu0 0
  %6364 = vmatpush.bf16.msra.mxu0 0
  %6365 = vmatpush.bf16.msra.mxu0 0
  %6366 = vmatpush.bf16.msra.mxu0 0
  %6367 = vmatpush.bf16.msra.mxu0 0
  %6368 = vmatpush.bf16.msra.mxu0 0
  %6369 = vmatpush.bf16.msra.mxu0 %v435
  %6370 = vmatpush.bf16.msra.mxu0 %v427
  %6371 = vmatmul.bf16.gmra.mxu0 %v6296
  %v6372 = vpop.f32.mrf.mxu0
  %v6373 = vadd.f32 %v6360, %v6372
  %v6374 = vpop.f32.mrf.mxu0
  %6375 = vdwg.mxu0
  %6376 = vmatpush.bf16.msra.mxu0 %v420
  %6377 = vmatpush.bf16.msra.mxu0 %v412
  %6378 = vmatpush.bf16.msra.mxu0 %v404
  %6379 = vmatpush.bf16.msra.mxu0 %v396
  %6380 = vmatpush.bf16.msra.mxu0 %v388
  %6381 = vmatpush.bf16.msra.mxu0 %v380
  %6382 = vmatpush.bf16.msra.mxu0 %v372
  %6383 = vmatpush.bf16.msra.mxu0 %v364
  %6384 = vmatmul.bf16.gmra.mxu0 %v6292
  %v6385 = vpop.f32.mrf.mxu0
  %v6386 = vadd.f32 0.0, %v6385
  %v6387 = vpop.f32.mrf.mxu0
  %6388 = vdwg.mxu0
  %6389 = vmatpush.bf16.msra.mxu0 0
  %6390 = vmatpush.bf16.msra.mxu0 0
  %6391 = vmatpush.bf16.msra.mxu0 0
  %6392 = vmatpush.bf16.msra.mxu0 0
  %6393 = vmatpush.bf16.msra.mxu0 0
  %6394 = vmatpush.bf16.msra.mxu0 0
  %6395 = vmatpush.bf16.msra.mxu0 %v436
  %6396 = vmatpush.bf16.msra.mxu0 %v428
  %6397 = vmatmul.bf16.gmra.mxu0 %v6296
  %v6398 = vpop.f32.mrf.mxu0
  %v6399 = vadd.f32 %v6386, %v6398
  %v6400 = vpop.f32.mrf.mxu0
  %6401 = vdwg.mxu0
  %6402 = vmatpush.bf16.msra.mxu0 %v421
  %6403 = vmatpush.bf16.msra.mxu0 %v413
  %6404 = vmatpush.bf16.msra.mxu0 %v405
  %6405 = vmatpush.bf16.msra.mxu0 %v397
  %6406 = vmatpush.bf16.msra.mxu0 %v389
  %6407 = vmatpush.bf16.msra.mxu0 %v381
  %6408 = vmatpush.bf16.msra.mxu0 %v373
  %6409 = vmatpush.bf16.msra.mxu0 %v365
  %6410 = vmatmul.bf16.gmra.mxu0 %v6292
  %v6411 = vpop.f32.mrf.mxu0
  %v6412 = vadd.f32 0.0, %v6411
  %v6413 = vpop.f32.mrf.mxu0
  %6414 = vdwg.mxu0
  %6415 = vmatpush.bf16.msra.mxu0 0
  %6416 = vmatpush.bf16.msra.mxu0 0
  %6417 = vmatpush.bf16.msra.mxu0 0
  %6418 = vmatpush.bf16.msra.mxu0 0
  %6419 = vmatpush.bf16.msra.mxu0 0
  %6420 = vmatpush.bf16.msra.mxu0 0
  %6421 = vmatpush.bf16.msra.mxu0 %v437
  %6422 = vmatpush.bf16.msra.mxu0 %v429
  %6423 = vmatmul.bf16.gmra.mxu0 %v6296
  %v6424 = vpop.f32.mrf.mxu0
  %v6425 = vadd.f32 %v6412, %v6424
  %v6426 = vpop.f32.mrf.mxu0
  %6427 = vdwg.mxu0
  %6428 = vmatpush.bf16.msra.mxu0 %v422
  %6429 = vmatpush.bf16.msra.mxu0 %v414
  %6430 = vmatpush.bf16.msra.mxu0 %v406
  %6431 = vmatpush.bf16.msra.mxu0 %v398
  %6432 = vmatpush.bf16.msra.mxu0 %v390
  %6433 = vmatpush.bf16.msra.mxu0 %v382
  %6434 = vmatpush.bf16.msra.mxu0 %v374
  %6435 = vmatpush.bf16.msra.mxu0 %v366
  %6436 = vmatmul.bf16.gmra.mxu0 %v6292
  %v6437 = vpop.f32.mrf.mxu0
  %v6438 = vadd.f32 0.0, %v6437
  %v6439 = vpop.f32.mrf.mxu0
  %6440 = vdwg.mxu0
  %6441 = vmatpush.bf16.msra.mxu0 0
  %6442 = vmatpush.bf16.msra.mxu0 0
  %6443 = vmatpush.bf16.msra.mxu0 0
  %6444 = vmatpush.bf16.msra.mxu0 0
  %6445 = vmatpush.bf16.msra.mxu0 0
  %6446 = vmatpush.bf16.msra.mxu0 0
  %6447 = vmatpush.bf16.msra.mxu0 %v438
  %6448 = vmatpush.bf16.msra.mxu0 %v430
  %6449 = vmatmul.bf16.gmra.mxu0 %v6296
  %v6450 = vpop.f32.mrf.mxu0
  %v6451 = vadd.f32 %v6438, %v6450
  %v6452 = vpop.f32.mrf.mxu0
  %6453 = vdwg.mxu0
  %6454 = vmatpush.bf16.msra.mxu0 %v423
  %6455 = vmatpush.bf16.msra.mxu0 %v415
  %6456 = vmatpush.bf16.msra.mxu0 %v407
  %6457 = vmatpush.bf16.msra.mxu0 %v399
  %6458 = vmatpush.bf16.msra.mxu0 %v391
  %6459 = vmatpush.bf16.msra.mxu0 %v383
  %6460 = vmatpush.bf16.msra.mxu0 %v375
  %6461 = vmatpush.bf16.msra.mxu0 %v367
  %6462 = vmatmul.bf16.gmra.mxu0 %v6292
  %v6463 = vpop.f32.mrf.mxu0
  %v6464 = vadd.f32 0.0, %v6463
  %v6465 = vpop.f32.mrf.mxu0
  %6466 = vdwg.mxu0
  %6467 = vmatpush.bf16.msra.mxu0 0
  %6468 = vmatpush.bf16.msra.mxu0 0
  %6469 = vmatpush.bf16.msra.mxu0 0
  %6470 = vmatpush.bf16.msra.mxu0 0
  %6471 = vmatpush.bf16.msra.mxu0 0
  %6472 = vmatpush.bf16.msra.mxu0 0
  %6473 = vmatpush.bf16.msra.mxu0 %v439
  %6474 = vmatpush.bf16.msra.mxu0 %v431
  %6475 = vmatmul.bf16.gmra.mxu0 %v6296
  %v6476 = vpop.f32.mrf.mxu0
  %v6477 = vadd.f32 %v6464, %v6476
  %v6478 = vpop.f32.mrf.mxu0
  %6479 = vdwg.mxu0
  %6480 = vmatpush.bf16.msra.mxu0 %v424
  %6481 = vmatpush.bf16.msra.mxu0 %v416
  %6482 = vmatpush.bf16.msra.mxu0 %v408
  %6483 = vmatpush.bf16.msra.mxu0 %v400
  %6484 = vmatpush.bf16.msra.mxu0 %v392
  %6485 = vmatpush.bf16.msra.mxu0 %v384
  %6486 = vmatpush.bf16.msra.mxu0 %v376
  %6487 = vmatpush.bf16.msra.mxu0 %v368
  %6488 = vmatmul.bf16.gmra.mxu0 %v6292
  %v6489 = vpop.f32.mrf.mxu0
  %v6490 = vadd.f32 0.0, %v6489
  %v6491 = vpop.f32.mrf.mxu0
  %6492 = vdwg.mxu0
  %6493 = vmatpush.bf16.msra.mxu0 0
  %6494 = vmatpush.bf16.msra.mxu0 0
  %6495 = vmatpush.bf16.msra.mxu0 0
  %6496 = vmatpush.bf16.msra.mxu0 0
  %6497 = vmatpush.bf16.msra.mxu0 0
  %6498 = vmatpush.bf16.msra.mxu0 0
  %6499 = vmatpush.bf16.msra.mxu0 %v440
  %6500 = vmatpush.bf16.msra.mxu0 %v432
  %6501 = vmatmul.bf16.gmra.mxu0 %v6296
  %v6502 = vpop.f32.mrf.mxu0
  %v6503 = vadd.f32 %v6490, %v6502
  %v6504 = vpop.f32.mrf.mxu0
  %6505 = vdwg.mxu0
  %v6506 = vmax.f32 %v6102, %v6206
  %v6507 = vmax.f32 %v6128, %v6232
  %v6508 = vmax.f32 %v6154, %v6258
  %v6509 = vmax.f32 %v6180, %v6284
  %v6510 = vmax.f32 %v6321, %v6425
  %v6511 = vmax.f32 %v6347, %v6451
  %v6512 = vmax.f32 %v6373, %v6477
  %v6513 = vmax.f32 %v6399, %v6503
  %v6514 = vmax.f32 %v6506, %v6510
  %v6515 = vmax.f32 %v6507, %v6511
  %v6516 = vmax.f32 %v6508, %v6512
  %v6517 = vmax.f32 %v6509, %v6513
  %v6518 = vadd.f32 %v6514, %v106
  %v6519 = vadd.f32 %v6515, %v107
  %v6520 = vadd.f32 %v6516, %v108
  %v6521 = vadd.f32 %v6517, %v109
  %v6522 = vmax.f32 %v6518, 0.0
  %v6523 = vmax.f32 %v6519, 0.0
  %v6524 = vmax.f32 %v6520, 0.0
  %v6525 = vmax.f32 %v6521, 0.0
  %v6526 = vpack.c.bf16 %v6523, %v6522
  %v6527 = vpack.c.bf16 %v6525, %v6524
  %s6528 = scalar_lea.vmem [#allocation2], 192
  %6529 = vst [vmem:[%s6528] sm:$0xff] %v6526
  %6530 = vst [vmem:[%s6528 + $0x8] sm:$0xff] %v6527
  %s6531 = scalar_lea.vmem %s0, 104
  %v6532 = vld [vmem:[%s6531] sm:$0xff]
  %v6534 = vunpack.c.l.b16 %v6532
  %v6535 = vunpack.c.h.b16 %v6532
  %v6536 = vpack.c.b16 %v6534, %v6534
  %v6537 = vpack.c.b16 %v6535, %v6535
  %v6540 = vsel %vm521, %v6537, 0
  %6542 = vmatpush.bf16.msra.mxu0 %v417
  %6543 = vmatpush.bf16.msra.mxu0 %v409
  %6544 = vmatpush.bf16.msra.mxu0 %v401
  %6545 = vmatpush.bf16.msra.mxu0 %v393
  %6546 = vmatpush.bf16.msra.mxu0 %v385
  %6547 = vmatpush.bf16.msra.mxu0 %v377
  %6548 = vmatpush.bf16.msra.mxu0 %v369
  %6549 = vmatpush.bf16.msra.mxu0 %v361
  %6550 = vmatmul.bf16.gmra.mxu0 %v6536
  %v6551 = vpop.f32.mrf.mxu0
  %v6552 = vadd.f32 0.0, %v6551
  %v6553 = vpop.f32.mrf.mxu0
  %6554 = vdwg.mxu0
  %6555 = vmatpush.bf16.msra.mxu0 0
  %6556 = vmatpush.bf16.msra.mxu0 0
  %6557 = vmatpush.bf16.msra.mxu0 0
  %6558 = vmatpush.bf16.msra.mxu0 0
  %6559 = vmatpush.bf16.msra.mxu0 0
  %6560 = vmatpush.bf16.msra.mxu0 0
  %6561 = vmatpush.bf16.msra.mxu0 %v433
  %6562 = vmatpush.bf16.msra.mxu0 %v425
  %6563 = vmatmul.bf16.gmra.mxu0 %v6540
  %v6564 = vpop.f32.mrf.mxu0
  %v6565 = vadd.f32 %v6552, %v6564
  %v6566 = vpop.f32.mrf.mxu0
  %6567 = vdwg.mxu0
  %6568 = vmatpush.bf16.msra.mxu0 %v418
  %6569 = vmatpush.bf16.msra.mxu0 %v410
  %6570 = vmatpush.bf16.msra.mxu0 %v402
  %6571 = vmatpush.bf16.msra.mxu0 %v394
  %6572 = vmatpush.bf16.msra.mxu0 %v386
  %6573 = vmatpush.bf16.msra.mxu0 %v378
  %6574 = vmatpush.bf16.msra.mxu0 %v370
  %6575 = vmatpush.bf16.msra.mxu0 %v362
  %6576 = vmatmul.bf16.gmra.mxu0 %v6536
  %v6577 = vpop.f32.mrf.mxu0
  %v6578 = vadd.f32 0.0, %v6577
  %v6579 = vpop.f32.mrf.mxu0
  %6580 = vdwg.mxu0
  %6581 = vmatpush.bf16.msra.mxu0 0
  %6582 = vmatpush.bf16.msra.mxu0 0
  %6583 = vmatpush.bf16.msra.mxu0 0
  %6584 = vmatpush.bf16.msra.mxu0 0
  %6585 = vmatpush.bf16.msra.mxu0 0
  %6586 = vmatpush.bf16.msra.mxu0 0
  %6587 = vmatpush.bf16.msra.mxu0 %v434
  %6588 = vmatpush.bf16.msra.mxu0 %v426
  %6589 = vmatmul.bf16.gmra.mxu0 %v6540
  %v6590 = vpop.f32.mrf.mxu0
  %v6591 = vadd.f32 %v6578, %v6590
  %v6592 = vpop.f32.mrf.mxu0
  %6593 = vdwg.mxu0
  %6594 = vmatpush.bf16.msra.mxu0 %v419
  %6595 = vmatpush.bf16.msra.mxu0 %v411
  %6596 = vmatpush.bf16.msra.mxu0 %v403
  %6597 = vmatpush.bf16.msra.mxu0 %v395
  %6598 = vmatpush.bf16.msra.mxu0 %v387
  %6599 = vmatpush.bf16.msra.mxu0 %v379
  %6600 = vmatpush.bf16.msra.mxu0 %v371
  %6601 = vmatpush.bf16.msra.mxu0 %v363
  %6602 = vmatmul.bf16.gmra.mxu0 %v6536
  %v6603 = vpop.f32.mrf.mxu0
  %v6604 = vadd.f32 0.0, %v6603
  %v6605 = vpop.f32.mrf.mxu0
  %6606 = vdwg.mxu0
  %6607 = vmatpush.bf16.msra.mxu0 0
  %6608 = vmatpush.bf16.msra.mxu0 0
  %6609 = vmatpush.bf16.msra.mxu0 0
  %6610 = vmatpush.bf16.msra.mxu0 0
  %6611 = vmatpush.bf16.msra.mxu0 0
  %6612 = vmatpush.bf16.msra.mxu0 0
  %6613 = vmatpush.bf16.msra.mxu0 %v435
  %6614 = vmatpush.bf16.msra.mxu0 %v427
  %6615 = vmatmul.bf16.gmra.mxu0 %v6540
  %v6616 = vpop.f32.mrf.mxu0
  %v6617 = vadd.f32 %v6604, %v6616
  %v6618 = vpop.f32.mrf.mxu0
  %6619 = vdwg.mxu0
  %6620 = vmatpush.bf16.msra.mxu0 %v420
  %6621 = vmatpush.bf16.msra.mxu0 %v412
  %6622 = vmatpush.bf16.msra.mxu0 %v404
  %6623 = vmatpush.bf16.msra.mxu0 %v396
  %6624 = vmatpush.bf16.msra.mxu0 %v388
  %6625 = vmatpush.bf16.msra.mxu0 %v380
  %6626 = vmatpush.bf16.msra.mxu0 %v372
  %6627 = vmatpush.bf16.msra.mxu0 %v364
  %6628 = vmatmul.bf16.gmra.mxu0 %v6536
  %v6629 = vpop.f32.mrf.mxu0
  %v6630 = vadd.f32 0.0, %v6629
  %v6631 = vpop.f32.mrf.mxu0
  %6632 = vdwg.mxu0
  %6633 = vmatpush.bf16.msra.mxu0 0
  %6634 = vmatpush.bf16.msra.mxu0 0
  %6635 = vmatpush.bf16.msra.mxu0 0
  %6636 = vmatpush.bf16.msra.mxu0 0
  %6637 = vmatpush.bf16.msra.mxu0 0
  %6638 = vmatpush.bf16.msra.mxu0 0
  %6639 = vmatpush.bf16.msra.mxu0 %v436
  %6640 = vmatpush.bf16.msra.mxu0 %v428
  %6641 = vmatmul.bf16.gmra.mxu0 %v6540
  %v6642 = vpop.f32.mrf.mxu0
  %v6643 = vadd.f32 %v6630, %v6642
  %v6644 = vpop.f32.mrf.mxu0
  %6645 = vdwg.mxu0
  %6646 = vmatpush.bf16.msra.mxu0 %v421
  %6647 = vmatpush.bf16.msra.mxu0 %v413
  %6648 = vmatpush.bf16.msra.mxu0 %v405
  %6649 = vmatpush.bf16.msra.mxu0 %v397
  %6650 = vmatpush.bf16.msra.mxu0 %v389
  %6651 = vmatpush.bf16.msra.mxu0 %v381
  %6652 = vmatpush.bf16.msra.mxu0 %v373
  %6653 = vmatpush.bf16.msra.mxu0 %v365
  %6654 = vmatmul.bf16.gmra.mxu0 %v6536
  %v6655 = vpop.f32.mrf.mxu0
  %v6656 = vadd.f32 0.0, %v6655
  %v6657 = vpop.f32.mrf.mxu0
  %6658 = vdwg.mxu0
  %6659 = vmatpush.bf16.msra.mxu0 0
  %6660 = vmatpush.bf16.msra.mxu0 0
  %6661 = vmatpush.bf16.msra.mxu0 0
  %6662 = vmatpush.bf16.msra.mxu0 0
  %6663 = vmatpush.bf16.msra.mxu0 0
  %6664 = vmatpush.bf16.msra.mxu0 0
  %6665 = vmatpush.bf16.msra.mxu0 %v437
  %6666 = vmatpush.bf16.msra.mxu0 %v429
  %6667 = vmatmul.bf16.gmra.mxu0 %v6540
  %v6668 = vpop.f32.mrf.mxu0
  %v6669 = vadd.f32 %v6656, %v6668
  %v6670 = vpop.f32.mrf.mxu0
  %6671 = vdwg.mxu0
  %6672 = vmatpush.bf16.msra.mxu0 %v422
  %6673 = vmatpush.bf16.msra.mxu0 %v414
  %6674 = vmatpush.bf16.msra.mxu0 %v406
  %6675 = vmatpush.bf16.msra.mxu0 %v398
  %6676 = vmatpush.bf16.msra.mxu0 %v390
  %6677 = vmatpush.bf16.msra.mxu0 %v382
  %6678 = vmatpush.bf16.msra.mxu0 %v374
  %6679 = vmatpush.bf16.msra.mxu0 %v366
  %6680 = vmatmul.bf16.gmra.mxu0 %v6536
  %v6681 = vpop.f32.mrf.mxu0
  %v6682 = vadd.f32 0.0, %v6681
  %v6683 = vpop.f32.mrf.mxu0
  %6684 = vdwg.mxu0
  %6685 = vmatpush.bf16.msra.mxu0 0
  %6686 = vmatpush.bf16.msra.mxu0 0
  %6687 = vmatpush.bf16.msra.mxu0 0
  %6688 = vmatpush.bf16.msra.mxu0 0
  %6689 = vmatpush.bf16.msra.mxu0 0
  %6690 = vmatpush.bf16.msra.mxu0 0
  %6691 = vmatpush.bf16.msra.mxu0 %v438
  %6692 = vmatpush.bf16.msra.mxu0 %v430
  %6693 = vmatmul.bf16.gmra.mxu0 %v6540
  %v6694 = vpop.f32.mrf.mxu0
  %v6695 = vadd.f32 %v6682, %v6694
  %v6696 = vpop.f32.mrf.mxu0
  %6697 = vdwg.mxu0
  %6698 = vmatpush.bf16.msra.mxu0 %v423
  %6699 = vmatpush.bf16.msra.mxu0 %v415
  %6700 = vmatpush.bf16.msra.mxu0 %v407
  %6701 = vmatpush.bf16.msra.mxu0 %v399
  %6702 = vmatpush.bf16.msra.mxu0 %v391
  %6703 = vmatpush.bf16.msra.mxu0 %v383
  %6704 = vmatpush.bf16.msra.mxu0 %v375
  %6705 = vmatpush.bf16.msra.mxu0 %v367
  %6706 = vmatmul.bf16.gmra.mxu0 %v6536
  %v6707 = vpop.f32.mrf.mxu0
  %v6708 = vadd.f32 0.0, %v6707
  %v6709 = vpop.f32.mrf.mxu0
  %6710 = vdwg.mxu0
  %6711 = vmatpush.bf16.msra.mxu0 0
  %6712 = vmatpush.bf16.msra.mxu0 0
  %6713 = vmatpush.bf16.msra.mxu0 0
  %6714 = vmatpush.bf16.msra.mxu0 0
  %6715 = vmatpush.bf16.msra.mxu0 0
  %6716 = vmatpush.bf16.msra.mxu0 0
  %6717 = vmatpush.bf16.msra.mxu0 %v439
  %6718 = vmatpush.bf16.msra.mxu0 %v431
  %6719 = vmatmul.bf16.gmra.mxu0 %v6540
  %v6720 = vpop.f32.mrf.mxu0
  %v6721 = vadd.f32 %v6708, %v6720
  %v6722 = vpop.f32.mrf.mxu0
  %6723 = vdwg.mxu0
  %6724 = vmatpush.bf16.msra.mxu0 %v424
  %6725 = vmatpush.bf16.msra.mxu0 %v416
  %6726 = vmatpush.bf16.msra.mxu0 %v408
  %6727 = vmatpush.bf16.msra.mxu0 %v400
  %6728 = vmatpush.bf16.msra.mxu0 %v392
  %6729 = vmatpush.bf16.msra.mxu0 %v384
  %6730 = vmatpush.bf16.msra.mxu0 %v376
  %6731 = vmatpush.bf16.msra.mxu0 %v368
  %6732 = vmatmul.bf16.gmra.mxu0 %v6536
  %v6733 = vpop.f32.mrf.mxu0
  %v6734 = vadd.f32 0.0, %v6733
  %v6735 = vpop.f32.mrf.mxu0
  %6736 = vdwg.mxu0
  %6737 = vmatpush.bf16.msra.mxu0 0
  %6738 = vmatpush.bf16.msra.mxu0 0
  %6739 = vmatpush.bf16.msra.mxu0 0
  %6740 = vmatpush.bf16.msra.mxu0 0
  %6741 = vmatpush.bf16.msra.mxu0 0
  %6742 = vmatpush.bf16.msra.mxu0 0
  %6743 = vmatpush.bf16.msra.mxu0 %v440
  %6744 = vmatpush.bf16.msra.mxu0 %v432
  %6745 = vmatmul.bf16.gmra.mxu0 %v6540
  %v6746 = vpop.f32.mrf.mxu0
  %v6747 = vadd.f32 %v6734, %v6746
  %v6748 = vpop.f32.mrf.mxu0
  %6749 = vdwg.mxu0
  %s6750 = scalar_lea.vmem %s1, 104
  %v6751 = vld [vmem:[%s6750] sm:$0xff]
  %v6753 = vunpack.c.l.b16 %v6751
  %v6754 = vunpack.c.h.b16 %v6751
  %v6755 = vpack.c.b16 %v6753, %v6753
  %v6756 = vpack.c.b16 %v6754, %v6754
  %v6759 = vsel %vm521, %v6756, 0
  %6761 = vmatpush.bf16.msra.mxu0 %v417
  %6762 = vmatpush.bf16.msra.mxu0 %v409
  %6763 = vmatpush.bf16.msra.mxu0 %v401
  %6764 = vmatpush.bf16.msra.mxu0 %v393
  %6765 = vmatpush.bf16.msra.mxu0 %v385
  %6766 = vmatpush.bf16.msra.mxu0 %v377
  %6767 = vmatpush.bf16.msra.mxu0 %v369
  %6768 = vmatpush.bf16.msra.mxu0 %v361
  %6769 = vmatmul.bf16.gmra.mxu0 %v6755
  %v6770 = vpop.f32.mrf.mxu0
  %v6771 = vadd.f32 0.0, %v6770
  %v6772 = vpop.f32.mrf.mxu0
  %6773 = vdwg.mxu0
  %6774 = vmatpush.bf16.msra.mxu0 0
  %6775 = vmatpush.bf16.msra.mxu0 0
  %6776 = vmatpush.bf16.msra.mxu0 0
  %6777 = vmatpush.bf16.msra.mxu0 0
  %6778 = vmatpush.bf16.msra.mxu0 0
  %6779 = vmatpush.bf16.msra.mxu0 0
  %6780 = vmatpush.bf16.msra.mxu0 %v433
  %6781 = vmatpush.bf16.msra.mxu0 %v425
  %6782 = vmatmul.bf16.gmra.mxu0 %v6759
  %v6783 = vpop.f32.mrf.mxu0
  %v6784 = vadd.f32 %v6771, %v6783
  %v6785 = vpop.f32.mrf.mxu0
  %6786 = vdwg.mxu0
  %6787 = vmatpush.bf16.msra.mxu0 %v418
  %6788 = vmatpush.bf16.msra.mxu0 %v410
  %6789 = vmatpush.bf16.msra.mxu0 %v402
  %6790 = vmatpush.bf16.msra.mxu0 %v394
  %6791 = vmatpush.bf16.msra.mxu0 %v386
  %6792 = vmatpush.bf16.msra.mxu0 %v378
  %6793 = vmatpush.bf16.msra.mxu0 %v370
  %6794 = vmatpush.bf16.msra.mxu0 %v362
  %6795 = vmatmul.bf16.gmra.mxu0 %v6755
  %v6796 = vpop.f32.mrf.mxu0
  %v6797 = vadd.f32 0.0, %v6796
  %v6798 = vpop.f32.mrf.mxu0
  %6799 = vdwg.mxu0
  %6800 = vmatpush.bf16.msra.mxu0 0
  %6801 = vmatpush.bf16.msra.mxu0 0
  %6802 = vmatpush.bf16.msra.mxu0 0
  %6803 = vmatpush.bf16.msra.mxu0 0
  %6804 = vmatpush.bf16.msra.mxu0 0
  %6805 = vmatpush.bf16.msra.mxu0 0
  %6806 = vmatpush.bf16.msra.mxu0 %v434
  %6807 = vmatpush.bf16.msra.mxu0 %v426
  %6808 = vmatmul.bf16.gmra.mxu0 %v6759
  %v6809 = vpop.f32.mrf.mxu0
  %v6810 = vadd.f32 %v6797, %v6809
  %v6811 = vpop.f32.mrf.mxu0
  %6812 = vdwg.mxu0
  %6813 = vmatpush.bf16.msra.mxu0 %v419
  %6814 = vmatpush.bf16.msra.mxu0 %v411
  %6815 = vmatpush.bf16.msra.mxu0 %v403
  %6816 = vmatpush.bf16.msra.mxu0 %v395
  %6817 = vmatpush.bf16.msra.mxu0 %v387
  %6818 = vmatpush.bf16.msra.mxu0 %v379
  %6819 = vmatpush.bf16.msra.mxu0 %v371
  %6820 = vmatpush.bf16.msra.mxu0 %v363
  %6821 = vmatmul.bf16.gmra.mxu0 %v6755
  %v6822 = vpop.f32.mrf.mxu0
  %v6823 = vadd.f32 0.0, %v6822
  %v6824 = vpop.f32.mrf.mxu0
  %6825 = vdwg.mxu0
  %6826 = vmatpush.bf16.msra.mxu0 0
  %6827 = vmatpush.bf16.msra.mxu0 0
  %6828 = vmatpush.bf16.msra.mxu0 0
  %6829 = vmatpush.bf16.msra.mxu0 0
  %6830 = vmatpush.bf16.msra.mxu0 0
  %6831 = vmatpush.bf16.msra.mxu0 0
  %6832 = vmatpush.bf16.msra.mxu0 %v435
  %6833 = vmatpush.bf16.msra.mxu0 %v427
  %6834 = vmatmul.bf16.gmra.mxu0 %v6759
  %v6835 = vpop.f32.mrf.mxu0
  %v6836 = vadd.f32 %v6823, %v6835
  %v6837 = vpop.f32.mrf.mxu0
  %6838 = vdwg.mxu0
  %6839 = vmatpush.bf16.msra.mxu0 %v420
  %6840 = vmatpush.bf16.msra.mxu0 %v412
  %6841 = vmatpush.bf16.msra.mxu0 %v404
  %6842 = vmatpush.bf16.msra.mxu0 %v396
  %6843 = vmatpush.bf16.msra.mxu0 %v388
  %6844 = vmatpush.bf16.msra.mxu0 %v380
  %6845 = vmatpush.bf16.msra.mxu0 %v372
  %6846 = vmatpush.bf16.msra.mxu0 %v364
  %6847 = vmatmul.bf16.gmra.mxu0 %v6755
  %v6848 = vpop.f32.mrf.mxu0
  %v6849 = vadd.f32 0.0, %v6848
  %v6850 = vpop.f32.mrf.mxu0
  %6851 = vdwg.mxu0
  %6852 = vmatpush.bf16.msra.mxu0 0
  %6853 = vmatpush.bf16.msra.mxu0 0
  %6854 = vmatpush.bf16.msra.mxu0 0
  %6855 = vmatpush.bf16.msra.mxu0 0
  %6856 = vmatpush.bf16.msra.mxu0 0
  %6857 = vmatpush.bf16.msra.mxu0 0
  %6858 = vmatpush.bf16.msra.mxu0 %v436
  %6859 = vmatpush.bf16.msra.mxu0 %v428
  %6860 = vmatmul.bf16.gmra.mxu0 %v6759
  %v6861 = vpop.f32.mrf.mxu0
  %v6862 = vadd.f32 %v6849, %v6861
  %v6863 = vpop.f32.mrf.mxu0
  %6864 = vdwg.mxu0
  %6865 = vmatpush.bf16.msra.mxu0 %v421
  %6866 = vmatpush.bf16.msra.mxu0 %v413
  %6867 = vmatpush.bf16.msra.mxu0 %v405
  %6868 = vmatpush.bf16.msra.mxu0 %v397
  %6869 = vmatpush.bf16.msra.mxu0 %v389
  %6870 = vmatpush.bf16.msra.mxu0 %v381
  %6871 = vmatpush.bf16.msra.mxu0 %v373
  %6872 = vmatpush.bf16.msra.mxu0 %v365
  %6873 = vmatmul.bf16.gmra.mxu0 %v6755
  %v6874 = vpop.f32.mrf.mxu0
  %v6875 = vadd.f32 0.0, %v6874
  %v6876 = vpop.f32.mrf.mxu0
  %6877 = vdwg.mxu0
  %6878 = vmatpush.bf16.msra.mxu0 0
  %6879 = vmatpush.bf16.msra.mxu0 0
  %6880 = vmatpush.bf16.msra.mxu0 0
  %6881 = vmatpush.bf16.msra.mxu0 0
  %6882 = vmatpush.bf16.msra.mxu0 0
  %6883 = vmatpush.bf16.msra.mxu0 0
  %6884 = vmatpush.bf16.msra.mxu0 %v437
  %6885 = vmatpush.bf16.msra.mxu0 %v429
  %6886 = vmatmul.bf16.gmra.mxu0 %v6759
  %v6887 = vpop.f32.mrf.mxu0
  %v6888 = vadd.f32 %v6875, %v6887
  %v6889 = vpop.f32.mrf.mxu0
  %6890 = vdwg.mxu0
  %6891 = vmatpush.bf16.msra.mxu0 %v422
  %6892 = vmatpush.bf16.msra.mxu0 %v414
  %6893 = vmatpush.bf16.msra.mxu0 %v406
  %6894 = vmatpush.bf16.msra.mxu0 %v398
  %6895 = vmatpush.bf16.msra.mxu0 %v390
  %6896 = vmatpush.bf16.msra.mxu0 %v382
  %6897 = vmatpush.bf16.msra.mxu0 %v374
  %6898 = vmatpush.bf16.msra.mxu0 %v366
  %6899 = vmatmul.bf16.gmra.mxu0 %v6755
  %v6900 = vpop.f32.mrf.mxu0
  %v6901 = vadd.f32 0.0, %v6900
  %v6902 = vpop.f32.mrf.mxu0
  %6903 = vdwg.mxu0
  %6904 = vmatpush.bf16.msra.mxu0 0
  %6905 = vmatpush.bf16.msra.mxu0 0
  %6906 = vmatpush.bf16.msra.mxu0 0
  %6907 = vmatpush.bf16.msra.mxu0 0
  %6908 = vmatpush.bf16.msra.mxu0 0
  %6909 = vmatpush.bf16.msra.mxu0 0
  %6910 = vmatpush.bf16.msra.mxu0 %v438
  %6911 = vmatpush.bf16.msra.mxu0 %v430
  %6912 = vmatmul.bf16.gmra.mxu0 %v6759
  %v6913 = vpop.f32.mrf.mxu0
  %v6914 = vadd.f32 %v6901, %v6913
  %v6915 = vpop.f32.mrf.mxu0
  %6916 = vdwg.mxu0
  %6917 = vmatpush.bf16.msra.mxu0 %v423
  %6918 = vmatpush.bf16.msra.mxu0 %v415
  %6919 = vmatpush.bf16.msra.mxu0 %v407
  %6920 = vmatpush.bf16.msra.mxu0 %v399
  %6921 = vmatpush.bf16.msra.mxu0 %v391
  %6922 = vmatpush.bf16.msra.mxu0 %v383
  %6923 = vmatpush.bf16.msra.mxu0 %v375
  %6924 = vmatpush.bf16.msra.mxu0 %v367
  %6925 = vmatmul.bf16.gmra.mxu0 %v6755
  %v6926 = vpop.f32.mrf.mxu0
  %v6927 = vadd.f32 0.0, %v6926
  %v6928 = vpop.f32.mrf.mxu0
  %6929 = vdwg.mxu0
  %6930 = vmatpush.bf16.msra.mxu0 0
  %6931 = vmatpush.bf16.msra.mxu0 0
  %6932 = vmatpush.bf16.msra.mxu0 0
  %6933 = vmatpush.bf16.msra.mxu0 0
  %6934 = vmatpush.bf16.msra.mxu0 0
  %6935 = vmatpush.bf16.msra.mxu0 0
  %6936 = vmatpush.bf16.msra.mxu0 %v439
  %6937 = vmatpush.bf16.msra.mxu0 %v431
  %6938 = vmatmul.bf16.gmra.mxu0 %v6759
  %v6939 = vpop.f32.mrf.mxu0
  %v6940 = vadd.f32 %v6927, %v6939
  %v6941 = vpop.f32.mrf.mxu0
  %6942 = vdwg.mxu0
  %6943 = vmatpush.bf16.msra.mxu0 %v424
  %6944 = vmatpush.bf16.msra.mxu0 %v416
  %6945 = vmatpush.bf16.msra.mxu0 %v408
  %6946 = vmatpush.bf16.msra.mxu0 %v400
  %6947 = vmatpush.bf16.msra.mxu0 %v392
  %6948 = vmatpush.bf16.msra.mxu0 %v384
  %6949 = vmatpush.bf16.msra.mxu0 %v376
  %6950 = vmatpush.bf16.msra.mxu0 %v368
  %6951 = vmatmul.bf16.gmra.mxu0 %v6755
  %v6952 = vpop.f32.mrf.mxu0
  %v6953 = vadd.f32 0.0, %v6952
  %v6954 = vpop.f32.mrf.mxu0
  %6955 = vdwg.mxu0
  %6956 = vmatpush.bf16.msra.mxu0 0
  %6957 = vmatpush.bf16.msra.mxu0 0
  %6958 = vmatpush.bf16.msra.mxu0 0
  %6959 = vmatpush.bf16.msra.mxu0 0
  %6960 = vmatpush.bf16.msra.mxu0 0
  %6961 = vmatpush.bf16.msra.mxu0 0
  %6962 = vmatpush.bf16.msra.mxu0 %v440
  %6963 = vmatpush.bf16.msra.mxu0 %v432
  %6964 = vmatmul.bf16.gmra.mxu0 %v6759
  %v6965 = vpop.f32.mrf.mxu0
  %v6966 = vadd.f32 %v6953, %v6965
  %v6967 = vpop.f32.mrf.mxu0
  %6968 = vdwg.mxu0
  %v6969 = vmax.f32 %v6565, %v6669
  %v6970 = vmax.f32 %v6591, %v6695
  %v6971 = vmax.f32 %v6617, %v6721
  %v6972 = vmax.f32 %v6643, %v6747
  %v6973 = vmax.f32 %v6784, %v6888
  %v6974 = vmax.f32 %v6810, %v6914
  %v6975 = vmax.f32 %v6836, %v6940
  %v6976 = vmax.f32 %v6862, %v6966
  %v6977 = vmax.f32 %v6969, %v6973
  %v6978 = vmax.f32 %v6970, %v6974
  %v6979 = vmax.f32 %v6971, %v6975
  %v6980 = vmax.f32 %v6972, %v6976
  %v6981 = vadd.f32 %v6977, %v106
  %v6982 = vadd.f32 %v6978, %v107
  %v6983 = vadd.f32 %v6979, %v108
  %v6984 = vadd.f32 %v6980, %v109
  %v6985 = vmax.f32 %v6981, 0.0
  %v6986 = vmax.f32 %v6982, 0.0
  %v6987 = vmax.f32 %v6983, 0.0
  %v6988 = vmax.f32 %v6984, 0.0
  %v6989 = vpack.c.bf16 %v6986, %v6985
  %v6990 = vpack.c.bf16 %v6988, %v6987
  %s6991 = scalar_lea.vmem [#allocation2], 208
  %6992 = vst [vmem:[%s6991] sm:$0xff] %v6989
  %6993 = vst [vmem:[%s6991 + $0x8] sm:$0xff] %v6990
  %v6994 = vld [vmem:[#allocation2] sm:$0xff]
  %v6995 = vld [vmem:[#allocation2 + $0x8] sm:$0xff]
  %v6996 = vld [vmem:[%s4] sm:$0xf]
  %v6997 = vld [vmem:[%s4 + $0x4] sm:$0xf]
  %v6998 = vld [vmem:[%s4 + $0x8] sm:$0xf]
  %v6999 = vld [vmem:[%s4 + $0xc] sm:$0xf]
  %v7000 = vld [vmem:[%s4 + $0x10] sm:$0xf]
  %v7001 = vld [vmem:[%s4 + $0x14] sm:$0xf]
  %v7002 = vld [vmem:[%s4 + $0x18] sm:$0xf]
  %v7003 = vld [vmem:[%s4 + $0x1c] sm:$0xf]
  %v7004 = vld [vmem:[%s4 + $0x20] sm:$0xf]
  %v7005 = vld [vmem:[%s4 + $0x24] sm:$0xf]
  %v7006 = vld [vmem:[%s4 + $0x28] sm:$0xf]
  %v7007 = vld [vmem:[%s4 + $0x2c] sm:$0xf]
  %v7008 = vld [vmem:[%s4 + $0x30] sm:$0xf]
  %v7009 = vld [vmem:[%s4 + $0x34] sm:$0xf]
  %v7010 = vld [vmem:[%s4 + $0x38] sm:$0xf]
  %v7011 = vld [vmem:[%s4 + $0x3c] sm:$0xf]
  %v7012 = vld [vmem:[%s4 + $0x40] sm:$0xf]
  %v7013 = vld [vmem:[%s4 + $0x44] sm:$0xf]
  %v7014 = vld [vmem:[%s4 + $0x48] sm:$0xf]
  %v7015 = vld [vmem:[%s4 + $0x4c] sm:$0xf]
  %v7016 = vld [vmem:[%s4 + $0x50] sm:$0xf]
  %v7017 = vld [vmem:[%s4 + $0x54] sm:$0xf]
  %v7018 = vld [vmem:[%s4 + $0x58] sm:$0xf]
  %v7019 = vld [vmem:[%s4 + $0x5c] sm:$0xf]
  %v7020 = vld [vmem:[%s4 + $0x60] sm:$0xf]
  %v7021 = vld [vmem:[%s4 + $0x64] sm:$0xf]
  %v7022 = vld [vmem:[%s4 + $0x68] sm:$0xf]
  %v7023 = vld [vmem:[%s4 + $0x6c] sm:$0xf]
  %v7024 = vld [vmem:[%s4 + $0x70] sm:$0xf]
  %v7025 = vld [vmem:[%s4 + $0x74] sm:$0xf]
  %v7026 = vld [vmem:[%s4 + $0x78] sm:$0xf]
  %v7027 = vld [vmem:[%s4 + $0x7c] sm:$0xf]
  %v7028 = vld [vmem:[%s4 + $0x80] sm:$0xf]
  %v7029 = vld [vmem:[%s4 + $0x84] sm:$0xf]
  %v7030 = vld [vmem:[%s4 + $0x88] sm:$0xf]
  %v7031 = vld [vmem:[%s4 + $0x8c] sm:$0xf]
  %v7032 = vld [vmem:[%s4 + $0x90] sm:$0xf]
  %v7033 = vld [vmem:[%s4 + $0x94] sm:$0xf]
  %v7034 = vld [vmem:[%s4 + $0x98] sm:$0xf]
  %v7035 = vld [vmem:[%s4 + $0x9c] sm:$0xf]
  %v7036 = vld [vmem:[%s4 + $0xa0] sm:$0xf]
  %v7037 = vld [vmem:[%s4 + $0xa4] sm:$0xf]
  %v7038 = vld [vmem:[%s4 + $0xa8] sm:$0xf]
  %v7039 = vld [vmem:[%s4 + $0xac] sm:$0xf]
  %v7040 = vld [vmem:[%s4 + $0xb0] sm:$0xf]
  %v7041 = vld [vmem:[%s4 + $0xb4] sm:$0xf]
  %v7042 = vld [vmem:[%s4 + $0xb8] sm:$0xf]
  %v7043 = vld [vmem:[%s4 + $0xbc] sm:$0xf]
  %v7044 = vld [vmem:[%s4 + $0xc0] sm:$0xf]
  %v7045 = vld [vmem:[%s4 + $0xc4] sm:$0xf]
  %v7046 = vld [vmem:[%s4 + $0xc8] sm:$0xf]
  %v7047 = vld [vmem:[%s4 + $0xcc] sm:$0xf]
  %v7048 = vld [vmem:[%s4 + $0xd0] sm:$0xf]
  %v7049 = vld [vmem:[%s4 + $0xd4] sm:$0xf]
  %v7050 = vld [vmem:[%s4 + $0xd8] sm:$0xf]
  %v7051 = vld [vmem:[%s4 + $0xdc] sm:$0xf]
  %v7052 = vld [vmem:[%s4 + $0xe0] sm:$0xf]
  %v7053 = vld [vmem:[%s4 + $0xe4] sm:$0xf]
  %v7054 = vld [vmem:[%s4 + $0xe8] sm:$0xf]
  %v7055 = vld [vmem:[%s4 + $0xec] sm:$0xf]
  %v7056 = vld [vmem:[%s4 + $0xf0] sm:$0xf]
  %v7057 = vld [vmem:[%s4 + $0xf4] sm:$0xf]
  %v7058 = vld [vmem:[%s4 + $0xf8] sm:$0xf]
  %v7059 = vld [vmem:[%s4 + $0xfc] sm:$0xf]
  %v7060 = vld [vmem:[%s1435] sm:$0xff]
  %v7061 = vld [vmem:[%s1435 + $0x8] sm:$0xff]
  %s7062 = scalar_lea.vmem %s4, 256
  %v7063 = vld [vmem:[%s7062] sm:$0xf]
  %v7064 = vld [vmem:[%s7062 + $0x4] sm:$0xf]
  %v7065 = vld [vmem:[%s7062 + $0x8] sm:$0xf]
  %v7066 = vld [vmem:[%s7062 + $0xc] sm:$0xf]
  %v7067 = vld [vmem:[%s7062 + $0x10] sm:$0xf]
  %v7068 = vld [vmem:[%s7062 + $0x14] sm:$0xf]
  %v7069 = vld [vmem:[%s7062 + $0x18] sm:$0xf]
  %v7070 = vld [vmem:[%s7062 + $0x1c] sm:$0xf]
  %v7071 = vld [vmem:[%s7062 + $0x20] sm:$0xf]
  %v7072 = vld [vmem:[%s7062 + $0x24] sm:$0xf]
  %v7073 = vld [vmem:[%s7062 + $0x28] sm:$0xf]
  %v7074 = vld [vmem:[%s7062 + $0x2c] sm:$0xf]
  %v7075 = vld [vmem:[%s7062 + $0x30] sm:$0xf]
  %v7076 = vld [vmem:[%s7062 + $0x34] sm:$0xf]
  %v7077 = vld [vmem:[%s7062 + $0x38] sm:$0xf]
  %v7078 = vld [vmem:[%s7062 + $0x3c] sm:$0xf]
  %v7079 = vld [vmem:[%s7062 + $0x40] sm:$0xf]
  %v7080 = vld [vmem:[%s7062 + $0x44] sm:$0xf]
  %v7081 = vld [vmem:[%s7062 + $0x48] sm:$0xf]
  %v7082 = vld [vmem:[%s7062 + $0x4c] sm:$0xf]
  %v7083 = vld [vmem:[%s7062 + $0x50] sm:$0xf]
  %v7084 = vld [vmem:[%s7062 + $0x54] sm:$0xf]
  %v7085 = vld [vmem:[%s7062 + $0x58] sm:$0xf]
  %v7086 = vld [vmem:[%s7062 + $0x5c] sm:$0xf]
  %v7087 = vld [vmem:[%s7062 + $0x60] sm:$0xf]
  %v7088 = vld [vmem:[%s7062 + $0x64] sm:$0xf]
  %v7089 = vld [vmem:[%s7062 + $0x68] sm:$0xf]
  %v7090 = vld [vmem:[%s7062 + $0x6c] sm:$0xf]
  %v7091 = vld [vmem:[%s7062 + $0x70] sm:$0xf]
  %v7092 = vld [vmem:[%s7062 + $0x74] sm:$0xf]
  %v7093 = vld [vmem:[%s7062 + $0x78] sm:$0xf]
  %v7094 = vld [vmem:[%s7062 + $0x7c] sm:$0xf]
  %v7095 = vld [vmem:[%s7062 + $0x80] sm:$0xf]
  %v7096 = vld [vmem:[%s7062 + $0x84] sm:$0xf]
  %v7097 = vld [vmem:[%s7062 + $0x88] sm:$0xf]
  %v7098 = vld [vmem:[%s7062 + $0x8c] sm:$0xf]
  %v7099 = vld [vmem:[%s7062 + $0x90] sm:$0xf]
  %v7100 = vld [vmem:[%s7062 + $0x94] sm:$0xf]
  %v7101 = vld [vmem:[%s7062 + $0x98] sm:$0xf]
  %v7102 = vld [vmem:[%s7062 + $0x9c] sm:$0xf]
  %v7103 = vld [vmem:[%s7062 + $0xa0] sm:$0xf]
  %v7104 = vld [vmem:[%s7062 + $0xa4] sm:$0xf]
  %v7105 = vld [vmem:[%s7062 + $0xa8] sm:$0xf]
  %v7106 = vld [vmem:[%s7062 + $0xac] sm:$0xf]
  %v7107 = vld [vmem:[%s7062 + $0xb0] sm:$0xf]
  %v7108 = vld [vmem:[%s7062 + $0xb4] sm:$0xf]
  %v7109 = vld [vmem:[%s7062 + $0xb8] sm:$0xf]
  %v7110 = vld [vmem:[%s7062 + $0xbc] sm:$0xf]
  %v7111 = vld [vmem:[%s7062 + $0xc0] sm:$0xf]
  %v7112 = vld [vmem:[%s7062 + $0xc4] sm:$0xf]
  %v7113 = vld [vmem:[%s7062 + $0xc8] sm:$0xf]
  %v7114 = vld [vmem:[%s7062 + $0xcc] sm:$0xf]
  %v7115 = vld [vmem:[%s7062 + $0xd0] sm:$0xf]
  %v7116 = vld [vmem:[%s7062 + $0xd4] sm:$0xf]
  %v7117 = vld [vmem:[%s7062 + $0xd8] sm:$0xf]
  %v7118 = vld [vmem:[%s7062 + $0xdc] sm:$0xf]
  %v7119 = vld [vmem:[%s7062 + $0xe0] sm:$0xf]
  %v7120 = vld [vmem:[%s7062 + $0xe4] sm:$0xf]
  %v7121 = vld [vmem:[%s7062 + $0xe8] sm:$0xf]
  %v7122 = vld [vmem:[%s7062 + $0xec] sm:$0xf]
  %v7123 = vld [vmem:[%s7062 + $0xf0] sm:$0xf]
  %v7124 = vld [vmem:[%s7062 + $0xf4] sm:$0xf]
  %v7125 = vld [vmem:[%s7062 + $0xf8] sm:$0xf]
  %v7126 = vld [vmem:[%s7062 + $0xfc] sm:$0xf]
  %v7129 = vunpack.c.l.b16 %v7060
  %v7130 = vunpack.c.h.b16 %v7060
  %v7131 = vunpack.c.l.b16 %v7061
  %v7132 = vunpack.c.h.b16 %v7061
  %v7133 = vpack.c.b16 %v7129, %v7129
  %v7134 = vpack.c.b16 %v7130, %v7130
  %v7135 = vpack.c.b16 %v7131, %v7131
  %v7136 = vpack.c.b16 %v7132, %v7132
  %v7205 = vunpack.c.l.b16 %v7063
  %v7206 = vunpack.c.l.b16 %v7064
  %v7207 = vunpack.c.l.b16 %v7065
  %v7208 = vunpack.c.l.b16 %v7066
  %v7209 = vunpack.c.l.b16 %v7067
  %v7210 = vunpack.c.l.b16 %v7068
  %v7211 = vunpack.c.l.b16 %v7069
  %v7212 = vunpack.c.l.b16 %v7070
  %v7213 = vunpack.c.l.b16 %v7071
  %v7214 = vunpack.c.l.b16 %v7072
  %v7215 = vunpack.c.l.b16 %v7073
  %v7216 = vunpack.c.l.b16 %v7074
  %v7217 = vunpack.c.l.b16 %v7075
  %v7218 = vunpack.c.l.b16 %v7076
  %v7219 = vunpack.c.l.b16 %v7077
  %v7220 = vunpack.c.l.b16 %v7078
  %v7221 = vunpack.c.l.b16 %v7079
  %v7222 = vunpack.c.l.b16 %v7080
  %v7223 = vunpack.c.l.b16 %v7081
  %v7224 = vunpack.c.l.b16 %v7082
  %v7225 = vunpack.c.l.b16 %v7083
  %v7226 = vunpack.c.l.b16 %v7084
  %v7227 = vunpack.c.l.b16 %v7085
  %v7228 = vunpack.c.l.b16 %v7086
  %v7229 = vunpack.c.l.b16 %v7087
  %v7230 = vunpack.c.l.b16 %v7088
  %v7231 = vunpack.c.l.b16 %v7089
  %v7232 = vunpack.c.l.b16 %v7090
  %v7233 = vunpack.c.l.b16 %v7091
  %v7234 = vunpack.c.l.b16 %v7092
  %v7235 = vunpack.c.l.b16 %v7093
  %v7236 = vunpack.c.l.b16 %v7094
  %v7237 = vunpack.c.l.b16 %v7095
  %v7238 = vunpack.c.l.b16 %v7096
  %v7239 = vunpack.c.l.b16 %v7097
  %v7240 = vunpack.c.l.b16 %v7098
  %v7241 = vunpack.c.l.b16 %v7099
  %v7242 = vunpack.c.l.b16 %v7100
  %v7243 = vunpack.c.l.b16 %v7101
  %v7244 = vunpack.c.l.b16 %v7102
  %v7245 = vunpack.c.l.b16 %v7103
  %v7246 = vunpack.c.l.b16 %v7104
  %v7247 = vunpack.c.l.b16 %v7105
  %v7248 = vunpack.c.l.b16 %v7106
  %v7249 = vunpack.c.l.b16 %v7107
  %v7250 = vunpack.c.l.b16 %v7108
  %v7251 = vunpack.c.l.b16 %v7109
  %v7252 = vunpack.c.l.b16 %v7110
  %v7253 = vunpack.c.l.b16 %v7111
  %v7254 = vunpack.c.l.b16 %v7112
  %v7255 = vunpack.c.l.b16 %v7113
  %v7256 = vunpack.c.l.b16 %v7114
  %v7257 = vunpack.c.l.b16 %v7115
  %v7258 = vunpack.c.l.b16 %v7116
  %v7259 = vunpack.c.l.b16 %v7117
  %v7260 = vunpack.c.l.b16 %v7118
  %v7261 = vunpack.c.l.b16 %v7119
  %v7262 = vunpack.c.l.b16 %v7120
  %v7263 = vunpack.c.l.b16 %v7121
  %v7264 = vunpack.c.l.b16 %v7122
  %v7265 = vunpack.c.l.b16 %v7123
  %v7266 = vunpack.c.l.b16 %v7124
  %v7267 = vunpack.c.l.b16 %v7125
  %v7268 = vunpack.c.l.b16 %v7126
  %v7269 = vpack.c.b16 %v7206, %v7205
  %v7270 = vpack.c.b16 %v7208, %v7207
  %v7271 = vpack.c.b16 %v7210, %v7209
  %v7272 = vpack.c.b16 %v7212, %v7211
  %v7273 = vpack.c.b16 %v7214, %v7213
  %v7274 = vpack.c.b16 %v7216, %v7215
  %v7275 = vpack.c.b16 %v7218, %v7217
  %v7276 = vpack.c.b16 %v7220, %v7219
  %v7277 = vpack.c.b16 %v7222, %v7221
  %v7278 = vpack.c.b16 %v7224, %v7223
  %v7279 = vpack.c.b16 %v7226, %v7225
  %v7280 = vpack.c.b16 %v7228, %v7227
  %v7281 = vpack.c.b16 %v7230, %v7229
  %v7282 = vpack.c.b16 %v7232, %v7231
  %v7283 = vpack.c.b16 %v7234, %v7233
  %v7284 = vpack.c.b16 %v7236, %v7235
  %v7285 = vpack.c.b16 %v7238, %v7237
  %v7286 = vpack.c.b16 %v7240, %v7239
  %v7287 = vpack.c.b16 %v7242, %v7241
  %v7288 = vpack.c.b16 %v7244, %v7243
  %v7289 = vpack.c.b16 %v7246, %v7245
  %v7290 = vpack.c.b16 %v7248, %v7247
  %v7291 = vpack.c.b16 %v7250, %v7249
  %v7292 = vpack.c.b16 %v7252, %v7251
  %v7293 = vpack.c.b16 %v7254, %v7253
  %v7294 = vpack.c.b16 %v7256, %v7255
  %v7295 = vpack.c.b16 %v7258, %v7257
  %v7296 = vpack.c.b16 %v7260, %v7259
  %v7297 = vpack.c.b16 %v7262, %v7261
  %v7298 = vpack.c.b16 %v7264, %v7263
  %v7299 = vpack.c.b16 %v7266, %v7265
  %v7300 = vpack.c.b16 %v7268, %v7267
  %7333 = vmatpush.bf16.msra.mxu0 %v7276
  %7334 = vmatpush.bf16.msra.mxu0 %v7275
  %7335 = vmatpush.bf16.msra.mxu0 %v7274
  %7336 = vmatpush.bf16.msra.mxu0 %v7273
  %7337 = vmatpush.bf16.msra.mxu0 %v7272
  %7338 = vmatpush.bf16.msra.mxu0 %v7271
  %7339 = vmatpush.bf16.msra.mxu0 %v7270
  %7340 = vmatpush.bf16.msra.mxu0 %v7269
  %7341 = vmatmul.bf16.gmra.mxu0 %v7133
  %v7342 = vpop.f32.mrf.mxu0
  %v7343 = vadd.f32 0.0, %v7342
  %v7344 = vpop.f32.mrf.mxu0
  %7345 = vdwg.mxu0
  %7346 = vmatpush.bf16.msra.mxu0 %v7284
  %7347 = vmatpush.bf16.msra.mxu0 %v7283
  %7348 = vmatpush.bf16.msra.mxu0 %v7282
  %7349 = vmatpush.bf16.msra.mxu0 %v7281
  %7350 = vmatpush.bf16.msra.mxu0 %v7280
  %7351 = vmatpush.bf16.msra.mxu0 %v7279
  %7352 = vmatpush.bf16.msra.mxu0 %v7278
  %7353 = vmatpush.bf16.msra.mxu0 %v7277
  %7354 = vmatmul.bf16.gmra.mxu0 %v7134
  %v7355 = vpop.f32.mrf.mxu0
  %v7356 = vadd.f32 %v7343, %v7355
  %v7357 = vpop.f32.mrf.mxu0
  %7358 = vdwg.mxu0
  %7359 = vmatpush.bf16.msra.mxu0 %v7292
  %7360 = vmatpush.bf16.msra.mxu0 %v7291
  %7361 = vmatpush.bf16.msra.mxu0 %v7290
  %7362 = vmatpush.bf16.msra.mxu0 %v7289
  %7363 = vmatpush.bf16.msra.mxu0 %v7288
  %7364 = vmatpush.bf16.msra.mxu0 %v7287
  %7365 = vmatpush.bf16.msra.mxu0 %v7286
  %7366 = vmatpush.bf16.msra.mxu0 %v7285
  %7367 = vmatmul.bf16.gmra.mxu0 %v7135
  %v7368 = vpop.f32.mrf.mxu0
  %v7369 = vadd.f32 %v7356, %v7368
  %v7370 = vpop.f32.mrf.mxu0
  %7371 = vdwg.mxu0
  %7372 = vmatpush.bf16.msra.mxu0 %v7300
  %7373 = vmatpush.bf16.msra.mxu0 %v7299
  %7374 = vmatpush.bf16.msra.mxu0 %v7298
  %7375 = vmatpush.bf16.msra.mxu0 %v7297
  %7376 = vmatpush.bf16.msra.mxu0 %v7296
  %7377 = vmatpush.bf16.msra.mxu0 %v7295
  %7378 = vmatpush.bf16.msra.mxu0 %v7294
  %7379 = vmatpush.bf16.msra.mxu0 %v7293
  %7380 = vmatmul.bf16.gmra.mxu0 %v7136
  %v7381 = vpop.f32.mrf.mxu0
  %v7382 = vadd.f32 %v7369, %v7381
  %v7383 = vpop.f32.mrf.mxu0
  %7384 = vdwg.mxu0
  %v7387 = vunpack.c.l.b16 %v6994
  %v7388 = vunpack.c.h.b16 %v6994
  %v7389 = vunpack.c.l.b16 %v6995
  %v7390 = vunpack.c.h.b16 %v6995
  %v7391 = vpack.c.b16 %v7387, %v7387
  %v7392 = vpack.c.b16 %v7388, %v7388
  %v7393 = vpack.c.b16 %v7389, %v7389
  %v7394 = vpack.c.b16 %v7390, %v7390
  %v7463 = vunpack.c.l.b16 %v6996
  %v7464 = vunpack.c.l.b16 %v6997
  %v7465 = vunpack.c.l.b16 %v6998
  %v7466 = vunpack.c.l.b16 %v6999
  %v7467 = vunpack.c.l.b16 %v7000
  %v7468 = vunpack.c.l.b16 %v7001
  %v7469 = vunpack.c.l.b16 %v7002
  %v7470 = vunpack.c.l.b16 %v7003
  %v7471 = vunpack.c.l.b16 %v7004
  %v7472 = vunpack.c.l.b16 %v7005
  %v7473 = vunpack.c.l.b16 %v7006
  %v7474 = vunpack.c.l.b16 %v7007
  %v7475 = vunpack.c.l.b16 %v7008
  %v7476 = vunpack.c.l.b16 %v7009
  %v7477 = vunpack.c.l.b16 %v7010
  %v7478 = vunpack.c.l.b16 %v7011
  %v7479 = vunpack.c.l.b16 %v7012
  %v7480 = vunpack.c.l.b16 %v7013
  %v7481 = vunpack.c.l.b16 %v7014
  %v7482 = vunpack.c.l.b16 %v7015
  %v7483 = vunpack.c.l.b16 %v7016
  %v7484 = vunpack.c.l.b16 %v7017
  %v7485 = vunpack.c.l.b16 %v7018
  %v7486 = vunpack.c.l.b16 %v7019
  %v7487 = vunpack.c.l.b16 %v7020
  %v7488 = vunpack.c.l.b16 %v7021
  %v7489 = vunpack.c.l.b16 %v7022
  %v7490 = vunpack.c.l.b16 %v7023
  %v7491 = vunpack.c.l.b16 %v7024
  %v7492 = vunpack.c.l.b16 %v7025
  %v7493 = vunpack.c.l.b16 %v7026
  %v7494 = vunpack.c.l.b16 %v7027
  %v7495 = vunpack.c.l.b16 %v7028
  %v7496 = vunpack.c.l.b16 %v7029
  %v7497 = vunpack.c.l.b16 %v7030
  %v7498 = vunpack.c.l.b16 %v7031
  %v7499 = vunpack.c.l.b16 %v7032
  %v7500 = vunpack.c.l.b16 %v7033
  %v7501 = vunpack.c.l.b16 %v7034
  %v7502 = vunpack.c.l.b16 %v7035
  %v7503 = vunpack.c.l.b16 %v7036
  %v7504 = vunpack.c.l.b16 %v7037
  %v7505 = vunpack.c.l.b16 %v7038
  %v7506 = vunpack.c.l.b16 %v7039
  %v7507 = vunpack.c.l.b16 %v7040
  %v7508 = vunpack.c.l.b16 %v7041
  %v7509 = vunpack.c.l.b16 %v7042
  %v7510 = vunpack.c.l.b16 %v7043
  %v7511 = vunpack.c.l.b16 %v7044
  %v7512 = vunpack.c.l.b16 %v7045
  %v7513 = vunpack.c.l.b16 %v7046
  %v7514 = vunpack.c.l.b16 %v7047
  %v7515 = vunpack.c.l.b16 %v7048
  %v7516 = vunpack.c.l.b16 %v7049
  %v7517 = vunpack.c.l.b16 %v7050
  %v7518 = vunpack.c.l.b16 %v7051
  %v7519 = vunpack.c.l.b16 %v7052
  %v7520 = vunpack.c.l.b16 %v7053
  %v7521 = vunpack.c.l.b16 %v7054
  %v7522 = vunpack.c.l.b16 %v7055
  %v7523 = vunpack.c.l.b16 %v7056
  %v7524 = vunpack.c.l.b16 %v7057
  %v7525 = vunpack.c.l.b16 %v7058
  %v7526 = vunpack.c.l.b16 %v7059
  %v7527 = vpack.c.b16 %v7464, %v7463
  %v7528 = vpack.c.b16 %v7466, %v7465
  %v7529 = vpack.c.b16 %v7468, %v7467
  %v7530 = vpack.c.b16 %v7470, %v7469
  %v7531 = vpack.c.b16 %v7472, %v7471
  %v7532 = vpack.c.b16 %v7474, %v7473
  %v7533 = vpack.c.b16 %v7476, %v7475
  %v7534 = vpack.c.b16 %v7478, %v7477
  %v7535 = vpack.c.b16 %v7480, %v7479
  %v7536 = vpack.c.b16 %v7482, %v7481
  %v7537 = vpack.c.b16 %v7484, %v7483
  %v7538 = vpack.c.b16 %v7486, %v7485
  %v7539 = vpack.c.b16 %v7488, %v7487
  %v7540 = vpack.c.b16 %v7490, %v7489
  %v7541 = vpack.c.b16 %v7492, %v7491
  %v7542 = vpack.c.b16 %v7494, %v7493
  %v7543 = vpack.c.b16 %v7496, %v7495
  %v7544 = vpack.c.b16 %v7498, %v7497
  %v7545 = vpack.c.b16 %v7500, %v7499
  %v7546 = vpack.c.b16 %v7502, %v7501
  %v7547 = vpack.c.b16 %v7504, %v7503
  %v7548 = vpack.c.b16 %v7506, %v7505
  %v7549 = vpack.c.b16 %v7508, %v7507
  %v7550 = vpack.c.b16 %v7510, %v7509
  %v7551 = vpack.c.b16 %v7512, %v7511
  %v7552 = vpack.c.b16 %v7514, %v7513
  %v7553 = vpack.c.b16 %v7516, %v7515
  %v7554 = vpack.c.b16 %v7518, %v7517
  %v7555 = vpack.c.b16 %v7520, %v7519
  %v7556 = vpack.c.b16 %v7522, %v7521
  %v7557 = vpack.c.b16 %v7524, %v7523
  %v7558 = vpack.c.b16 %v7526, %v7525
  %7591 = vmatpush.bf16.msra.mxu0 %v7534
  %7592 = vmatpush.bf16.msra.mxu0 %v7533
  %7593 = vmatpush.bf16.msra.mxu0 %v7532
  %7594 = vmatpush.bf16.msra.mxu0 %v7531
  %7595 = vmatpush.bf16.msra.mxu0 %v7530
  %7596 = vmatpush.bf16.msra.mxu0 %v7529
  %7597 = vmatpush.bf16.msra.mxu0 %v7528
  %7598 = vmatpush.bf16.msra.mxu0 %v7527
  %7599 = vmatmul.bf16.gmra.mxu0 %v7391
  %v7600 = vpop.f32.mrf.mxu0
  %v7601 = vadd.f32 %v7382, %v7600
  %v7602 = vpop.f32.mrf.mxu0
  %7603 = vdwg.mxu0
  %7604 = vmatpush.bf16.msra.mxu0 %v7542
  %7605 = vmatpush.bf16.msra.mxu0 %v7541
  %7606 = vmatpush.bf16.msra.mxu0 %v7540
  %7607 = vmatpush.bf16.msra.mxu0 %v7539
  %7608 = vmatpush.bf16.msra.mxu0 %v7538
  %7609 = vmatpush.bf16.msra.mxu0 %v7537
  %7610 = vmatpush.bf16.msra.mxu0 %v7536
  %7611 = vmatpush.bf16.msra.mxu0 %v7535
  %7612 = vmatmul.bf16.gmra.mxu0 %v7392
  %v7613 = vpop.f32.mrf.mxu0
  %v7614 = vadd.f32 %v7601, %v7613
  %v7615 = vpop.f32.mrf.mxu0
  %7616 = vdwg.mxu0
  %7617 = vmatpush.bf16.msra.mxu0 %v7550
  %7618 = vmatpush.bf16.msra.mxu0 %v7549
  %7619 = vmatpush.bf16.msra.mxu0 %v7548
  %7620 = vmatpush.bf16.msra.mxu0 %v7547
  %7621 = vmatpush.bf16.msra.mxu0 %v7546
  %7622 = vmatpush.bf16.msra.mxu0 %v7545
  %7623 = vmatpush.bf16.msra.mxu0 %v7544
  %7624 = vmatpush.bf16.msra.mxu0 %v7543
  %7625 = vmatmul.bf16.gmra.mxu0 %v7393
  %v7626 = vpop.f32.mrf.mxu0
  %v7627 = vadd.f32 %v7614, %v7626
  %v7628 = vpop.f32.mrf.mxu0
  %7629 = vdwg.mxu0
  %7630 = vmatpush.bf16.msra.mxu0 %v7558
  %7631 = vmatpush.bf16.msra.mxu0 %v7557
  %7632 = vmatpush.bf16.msra.mxu0 %v7556
  %7633 = vmatpush.bf16.msra.mxu0 %v7555
  %7634 = vmatpush.bf16.msra.mxu0 %v7554
  %7635 = vmatpush.bf16.msra.mxu0 %v7553
  %7636 = vmatpush.bf16.msra.mxu0 %v7552
  %7637 = vmatpush.bf16.msra.mxu0 %v7551
  %7638 = vmatmul.bf16.gmra.mxu0 %v7394
  %v7639 = vpop.f32.mrf.mxu0
  %v7640 = vadd.f32 %v7627, %v7639
  %v7641 = vpop.f32.mrf.mxu0
  %7642 = vdwg.mxu0
  %v7643 = vld [vmem:[%s1898] sm:$0xff]
  %v7644 = vld [vmem:[%s1898 + $0x8] sm:$0xff]
  %s7645 = scalar_lea.vmem %s4, 512
  %v7646 = vld [vmem:[%s7645] sm:$0xf]
  %v7647 = vld [vmem:[%s7645 + $0x4] sm:$0xf]
  %v7648 = vld [vmem:[%s7645 + $0x8] sm:$0xf]
  %v7649 = vld [vmem:[%s7645 + $0xc] sm:$0xf]
  %v7650 = vld [vmem:[%s7645 + $0x10] sm:$0xf]
  %v7651 = vld [vmem:[%s7645 + $0x14] sm:$0xf]
  %v7652 = vld [vmem:[%s7645 + $0x18] sm:$0xf]
  %v7653 = vld [vmem:[%s7645 + $0x1c] sm:$0xf]
  %v7654 = vld [vmem:[%s7645 + $0x20] sm:$0xf]
  %v7655 = vld [vmem:[%s7645 + $0x24] sm:$0xf]
  %v7656 = vld [vmem:[%s7645 + $0x28] sm:$0xf]
  %v7657 = vld [vmem:[%s7645 + $0x2c] sm:$0xf]
  %v7658 = vld [vmem:[%s7645 + $0x30] sm:$0xf]
  %v7659 = vld [vmem:[%s7645 + $0x34] sm:$0xf]
  %v7660 = vld [vmem:[%s7645 + $0x38] sm:$0xf]
  %v7661 = vld [vmem:[%s7645 + $0x3c] sm:$0xf]
  %v7662 = vld [vmem:[%s7645 + $0x40] sm:$0xf]
  %v7663 = vld [vmem:[%s7645 + $0x44] sm:$0xf]
  %v7664 = vld [vmem:[%s7645 + $0x48] sm:$0xf]
  %v7665 = vld [vmem:[%s7645 + $0x4c] sm:$0xf]
  %v7666 = vld [vmem:[%s7645 + $0x50] sm:$0xf]
  %v7667 = vld [vmem:[%s7645 + $0x54] sm:$0xf]
  %v7668 = vld [vmem:[%s7645 + $0x58] sm:$0xf]
  %v7669 = vld [vmem:[%s7645 + $0x5c] sm:$0xf]
  %v7670 = vld [vmem:[%s7645 + $0x60] sm:$0xf]
  %v7671 = vld [vmem:[%s7645 + $0x64] sm:$0xf]
  %v7672 = vld [vmem:[%s7645 + $0x68] sm:$0xf]
  %v7673 = vld [vmem:[%s7645 + $0x6c] sm:$0xf]
  %v7674 = vld [vmem:[%s7645 + $0x70] sm:$0xf]
  %v7675 = vld [vmem:[%s7645 + $0x74] sm:$0xf]
  %v7676 = vld [vmem:[%s7645 + $0x78] sm:$0xf]
  %v7677 = vld [vmem:[%s7645 + $0x7c] sm:$0xf]
  %v7678 = vld [vmem:[%s7645 + $0x80] sm:$0xf]
  %v7679 = vld [vmem:[%s7645 + $0x84] sm:$0xf]
  %v7680 = vld [vmem:[%s7645 + $0x88] sm:$0xf]
  %v7681 = vld [vmem:[%s7645 + $0x8c] sm:$0xf]
  %v7682 = vld [vmem:[%s7645 + $0x90] sm:$0xf]
  %v7683 = vld [vmem:[%s7645 + $0x94] sm:$0xf]
  %v7684 = vld [vmem:[%s7645 + $0x98] sm:$0xf]
  %v7685 = vld [vmem:[%s7645 + $0x9c] sm:$0xf]
  %v7686 = vld [vmem:[%s7645 + $0xa0] sm:$0xf]
  %v7687 = vld [vmem:[%s7645 + $0xa4] sm:$0xf]
  %v7688 = vld [vmem:[%s7645 + $0xa8] sm:$0xf]
  %v7689 = vld [vmem:[%s7645 + $0xac] sm:$0xf]
  %v7690 = vld [vmem:[%s7645 + $0xb0] sm:$0xf]
  %v7691 = vld [vmem:[%s7645 + $0xb4] sm:$0xf]
  %v7692 = vld [vmem:[%s7645 + $0xb8] sm:$0xf]
  %v7693 = vld [vmem:[%s7645 + $0xbc] sm:$0xf]
  %v7694 = vld [vmem:[%s7645 + $0xc0] sm:$0xf]
  %v7695 = vld [vmem:[%s7645 + $0xc4] sm:$0xf]
  %v7696 = vld [vmem:[%s7645 + $0xc8] sm:$0xf]
  %v7697 = vld [vmem:[%s7645 + $0xcc] sm:$0xf]
  %v7698 = vld [vmem:[%s7645 + $0xd0] sm:$0xf]
  %v7699 = vld [vmem:[%s7645 + $0xd4] sm:$0xf]
  %v7700 = vld [vmem:[%s7645 + $0xd8] sm:$0xf]
  %v7701 = vld [vmem:[%s7645 + $0xdc] sm:$0xf]
  %v7702 = vld [vmem:[%s7645 + $0xe0] sm:$0xf]
  %v7703 = vld [vmem:[%s7645 + $0xe4] sm:$0xf]
  %v7704 = vld [vmem:[%s7645 + $0xe8] sm:$0xf]
  %v7705 = vld [vmem:[%s7645 + $0xec] sm:$0xf]
  %v7706 = vld [vmem:[%s7645 + $0xf0] sm:$0xf]
  %v7707 = vld [vmem:[%s7645 + $0xf4] sm:$0xf]
  %v7708 = vld [vmem:[%s7645 + $0xf8] sm:$0xf]
  %v7709 = vld [vmem:[%s7645 + $0xfc] sm:$0xf]
  %v7712 = vunpack.c.l.b16 %v7643
  %v7713 = vunpack.c.h.b16 %v7643
  %v7714 = vunpack.c.l.b16 %v7644
  %v7715 = vunpack.c.h.b16 %v7644
  %v7716 = vpack.c.b16 %v7712, %v7712
  %v7717 = vpack.c.b16 %v7713, %v7713
  %v7718 = vpack.c.b16 %v7714, %v7714
  %v7719 = vpack.c.b16 %v7715, %v7715
  %v7788 = vunpack.c.l.b16 %v7646
  %v7789 = vunpack.c.l.b16 %v7647
  %v7790 = vunpack.c.l.b16 %v7648
  %v7791 = vunpack.c.l.b16 %v7649
  %v7792 = vunpack.c.l.b16 %v7650
  %v7793 = vunpack.c.l.b16 %v7651
  %v7794 = vunpack.c.l.b16 %v7652
  %v7795 = vunpack.c.l.b16 %v7653
  %v7796 = vunpack.c.l.b16 %v7654
  %v7797 = vunpack.c.l.b16 %v7655
  %v7798 = vunpack.c.l.b16 %v7656
  %v7799 = vunpack.c.l.b16 %v7657
  %v7800 = vunpack.c.l.b16 %v7658
  %v7801 = vunpack.c.l.b16 %v7659
  %v7802 = vunpack.c.l.b16 %v7660
  %v7803 = vunpack.c.l.b16 %v7661
  %v7804 = vunpack.c.l.b16 %v7662
  %v7805 = vunpack.c.l.b16 %v7663
  %v7806 = vunpack.c.l.b16 %v7664
  %v7807 = vunpack.c.l.b16 %v7665
  %v7808 = vunpack.c.l.b16 %v7666
  %v7809 = vunpack.c.l.b16 %v7667
  %v7810 = vunpack.c.l.b16 %v7668
  %v7811 = vunpack.c.l.b16 %v7669
  %v7812 = vunpack.c.l.b16 %v7670
  %v7813 = vunpack.c.l.b16 %v7671
  %v7814 = vunpack.c.l.b16 %v7672
  %v7815 = vunpack.c.l.b16 %v7673
  %v7816 = vunpack.c.l.b16 %v7674
  %v7817 = vunpack.c.l.b16 %v7675
  %v7818 = vunpack.c.l.b16 %v7676
  %v7819 = vunpack.c.l.b16 %v7677
  %v7820 = vunpack.c.l.b16 %v7678
  %v7821 = vunpack.c.l.b16 %v7679
  %v7822 = vunpack.c.l.b16 %v7680
  %v7823 = vunpack.c.l.b16 %v7681
  %v7824 = vunpack.c.l.b16 %v7682
  %v7825 = vunpack.c.l.b16 %v7683
  %v7826 = vunpack.c.l.b16 %v7684
  %v7827 = vunpack.c.l.b16 %v7685
  %v7828 = vunpack.c.l.b16 %v7686
  %v7829 = vunpack.c.l.b16 %v7687
  %v7830 = vunpack.c.l.b16 %v7688
  %v7831 = vunpack.c.l.b16 %v7689
  %v7832 = vunpack.c.l.b16 %v7690
  %v7833 = vunpack.c.l.b16 %v7691
  %v7834 = vunpack.c.l.b16 %v7692
  %v7835 = vunpack.c.l.b16 %v7693
  %v7836 = vunpack.c.l.b16 %v7694
  %v7837 = vunpack.c.l.b16 %v7695
  %v7838 = vunpack.c.l.b16 %v7696
  %v7839 = vunpack.c.l.b16 %v7697
  %v7840 = vunpack.c.l.b16 %v7698
  %v7841 = vunpack.c.l.b16 %v7699
  %v7842 = vunpack.c.l.b16 %v7700
  %v7843 = vunpack.c.l.b16 %v7701
  %v7844 = vunpack.c.l.b16 %v7702
  %v7845 = vunpack.c.l.b16 %v7703
  %v7846 = vunpack.c.l.b16 %v7704
  %v7847 = vunpack.c.l.b16 %v7705
  %v7848 = vunpack.c.l.b16 %v7706
  %v7849 = vunpack.c.l.b16 %v7707
  %v7850 = vunpack.c.l.b16 %v7708
  %v7851 = vunpack.c.l.b16 %v7709
  %v7852 = vpack.c.b16 %v7789, %v7788
  %v7853 = vpack.c.b16 %v7791, %v7790
  %v7854 = vpack.c.b16 %v7793, %v7792
  %v7855 = vpack.c.b16 %v7795, %v7794
  %v7856 = vpack.c.b16 %v7797, %v7796
  %v7857 = vpack.c.b16 %v7799, %v7798
  %v7858 = vpack.c.b16 %v7801, %v7800
  %v7859 = vpack.c.b16 %v7803, %v7802
  %v7860 = vpack.c.b16 %v7805, %v7804
  %v7861 = vpack.c.b16 %v7807, %v7806
  %v7862 = vpack.c.b16 %v7809, %v7808
  %v7863 = vpack.c.b16 %v7811, %v7810
  %v7864 = vpack.c.b16 %v7813, %v7812
  %v7865 = vpack.c.b16 %v7815, %v7814
  %v7866 = vpack.c.b16 %v7817, %v7816
  %v7867 = vpack.c.b16 %v7819, %v7818
  %v7868 = vpack.c.b16 %v7821, %v7820
  %v7869 = vpack.c.b16 %v7823, %v7822
  %v7870 = vpack.c.b16 %v7825, %v7824
  %v7871 = vpack.c.b16 %v7827, %v7826
  %v7872 = vpack.c.b16 %v7829, %v7828
  %v7873 = vpack.c.b16 %v7831, %v7830
  %v7874 = vpack.c.b16 %v7833, %v7832
  %v7875 = vpack.c.b16 %v7835, %v7834
  %v7876 = vpack.c.b16 %v7837, %v7836
  %v7877 = vpack.c.b16 %v7839, %v7838
  %v7878 = vpack.c.b16 %v7841, %v7840
  %v7879 = vpack.c.b16 %v7843, %v7842
  %v7880 = vpack.c.b16 %v7845, %v7844
  %v7881 = vpack.c.b16 %v7847, %v7846
  %v7882 = vpack.c.b16 %v7849, %v7848
  %v7883 = vpack.c.b16 %v7851, %v7850
  %7916 = vmatpush.bf16.msra.mxu0 %v7859
  %7917 = vmatpush.bf16.msra.mxu0 %v7858
  %7918 = vmatpush.bf16.msra.mxu0 %v7857
  %7919 = vmatpush.bf16.msra.mxu0 %v7856
  %7920 = vmatpush.bf16.msra.mxu0 %v7855
  %7921 = vmatpush.bf16.msra.mxu0 %v7854
  %7922 = vmatpush.bf16.msra.mxu0 %v7853
  %7923 = vmatpush.bf16.msra.mxu0 %v7852
  %7924 = vmatmul.bf16.gmra.mxu0 %v7716
  %v7925 = vpop.f32.mrf.mxu0
  %v7926 = vadd.f32 0.0, %v7925
  %v7927 = vpop.f32.mrf.mxu0
  %7928 = vdwg.mxu0
  %7929 = vmatpush.bf16.msra.mxu0 %v7867
  %7930 = vmatpush.bf16.msra.mxu0 %v7866
  %7931 = vmatpush.bf16.msra.mxu0 %v7865
  %7932 = vmatpush.bf16.msra.mxu0 %v7864
  %7933 = vmatpush.bf16.msra.mxu0 %v7863
  %7934 = vmatpush.bf16.msra.mxu0 %v7862
  %7935 = vmatpush.bf16.msra.mxu0 %v7861
  %7936 = vmatpush.bf16.msra.mxu0 %v7860
  %7937 = vmatmul.bf16.gmra.mxu0 %v7717
  %v7938 = vpop.f32.mrf.mxu0
  %v7939 = vadd.f32 %v7926, %v7938
  %v7940 = vpop.f32.mrf.mxu0
  %7941 = vdwg.mxu0
  %7942 = vmatpush.bf16.msra.mxu0 %v7875
  %7943 = vmatpush.bf16.msra.mxu0 %v7874
  %7944 = vmatpush.bf16.msra.mxu0 %v7873
  %7945 = vmatpush.bf16.msra.mxu0 %v7872
  %7946 = vmatpush.bf16.msra.mxu0 %v7871
  %7947 = vmatpush.bf16.msra.mxu0 %v7870
  %7948 = vmatpush.bf16.msra.mxu0 %v7869
  %7949 = vmatpush.bf16.msra.mxu0 %v7868
  %7950 = vmatmul.bf16.gmra.mxu0 %v7718
  %v7951 = vpop.f32.mrf.mxu0
  %v7952 = vadd.f32 %v7939, %v7951
  %v7953 = vpop.f32.mrf.mxu0
  %7954 = vdwg.mxu0
  %7955 = vmatpush.bf16.msra.mxu0 %v7883
  %7956 = vmatpush.bf16.msra.mxu0 %v7882
  %7957 = vmatpush.bf16.msra.mxu0 %v7881
  %7958 = vmatpush.bf16.msra.mxu0 %v7880
  %7959 = vmatpush.bf16.msra.mxu0 %v7879
  %7960 = vmatpush.bf16.msra.mxu0 %v7878
  %7961 = vmatpush.bf16.msra.mxu0 %v7877
  %7962 = vmatpush.bf16.msra.mxu0 %v7876
  %7963 = vmatmul.bf16.gmra.mxu0 %v7719
  %v7964 = vpop.f32.mrf.mxu0
  %v7965 = vadd.f32 %v7952, %v7964
  %v7966 = vpop.f32.mrf.mxu0
  %7967 = vdwg.mxu0
  %v7968 = vadd.f32 %v7640, %v7965
  %v7969 = vld [vmem:[%s2361] sm:$0xff]
  %v7970 = vld [vmem:[%s2361 + $0x8] sm:$0xff]
  %s7971 = scalar_lea.vmem %s4, 768
  %v7972 = vld [vmem:[%s7971] sm:$0xf]
  %v7973 = vld [vmem:[%s7971 + $0x4] sm:$0xf]
  %v7974 = vld [vmem:[%s7971 + $0x8] sm:$0xf]
  %v7975 = vld [vmem:[%s7971 + $0xc] sm:$0xf]
  %v7976 = vld [vmem:[%s7971 + $0x10] sm:$0xf]
  %v7977 = vld [vmem:[%s7971 + $0x14] sm:$0xf]
  %v7978 = vld [vmem:[%s7971 + $0x18] sm:$0xf]
  %v7979 = vld [vmem:[%s7971 + $0x1c] sm:$0xf]
  %v7980 = vld [vmem:[%s7971 + $0x20] sm:$0xf]
  %v7981 = vld [vmem:[%s7971 + $0x24] sm:$0xf]
  %v7982 = vld [vmem:[%s7971 + $0x28] sm:$0xf]
  %v7983 = vld [vmem:[%s7971 + $0x2c] sm:$0xf]
  %v7984 = vld [vmem:[%s7971 + $0x30] sm:$0xf]
  %v7985 = vld [vmem:[%s7971 + $0x34] sm:$0xf]
  %v7986 = vld [vmem:[%s7971 + $0x38] sm:$0xf]
  %v7987 = vld [vmem:[%s7971 + $0x3c] sm:$0xf]
  %v7988 = vld [vmem:[%s7971 + $0x40] sm:$0xf]
  %v7989 = vld [vmem:[%s7971 + $0x44] sm:$0xf]
  %v7990 = vld [vmem:[%s7971 + $0x48] sm:$0xf]
  %v7991 = vld [vmem:[%s7971 + $0x4c] sm:$0xf]
  %v7992 = vld [vmem:[%s7971 + $0x50] sm:$0xf]
  %v7993 = vld [vmem:[%s7971 + $0x54] sm:$0xf]
  %v7994 = vld [vmem:[%s7971 + $0x58] sm:$0xf]
  %v7995 = vld [vmem:[%s7971 + $0x5c] sm:$0xf]
  %v7996 = vld [vmem:[%s7971 + $0x60] sm:$0xf]
  %v7997 = vld [vmem:[%s7971 + $0x64] sm:$0xf]
  %v7998 = vld [vmem:[%s7971 + $0x68] sm:$0xf]
  %v7999 = vld [vmem:[%s7971 + $0x6c] sm:$0xf]
  %v8000 = vld [vmem:[%s7971 + $0x70] sm:$0xf]
  %v8001 = vld [vmem:[%s7971 + $0x74] sm:$0xf]
  %v8002 = vld [vmem:[%s7971 + $0x78] sm:$0xf]
  %v8003 = vld [vmem:[%s7971 + $0x7c] sm:$0xf]
  %v8004 = vld [vmem:[%s7971 + $0x80] sm:$0xf]
  %v8005 = vld [vmem:[%s7971 + $0x84] sm:$0xf]
  %v8006 = vld [vmem:[%s7971 + $0x88] sm:$0xf]
  %v8007 = vld [vmem:[%s7971 + $0x8c] sm:$0xf]
  %v8008 = vld [vmem:[%s7971 + $0x90] sm:$0xf]
  %v8009 = vld [vmem:[%s7971 + $0x94] sm:$0xf]
  %v8010 = vld [vmem:[%s7971 + $0x98] sm:$0xf]
  %v8011 = vld [vmem:[%s7971 + $0x9c] sm:$0xf]
  %v8012 = vld [vmem:[%s7971 + $0xa0] sm:$0xf]
  %v8013 = vld [vmem:[%s7971 + $0xa4] sm:$0xf]
  %v8014 = vld [vmem:[%s7971 + $0xa8] sm:$0xf]
  %v8015 = vld [vmem:[%s7971 + $0xac] sm:$0xf]
  %v8016 = vld [vmem:[%s7971 + $0xb0] sm:$0xf]
  %v8017 = vld [vmem:[%s7971 + $0xb4] sm:$0xf]
  %v8018 = vld [vmem:[%s7971 + $0xb8] sm:$0xf]
  %v8019 = vld [vmem:[%s7971 + $0xbc] sm:$0xf]
  %v8020 = vld [vmem:[%s7971 + $0xc0] sm:$0xf]
  %v8021 = vld [vmem:[%s7971 + $0xc4] sm:$0xf]
  %v8022 = vld [vmem:[%s7971 + $0xc8] sm:$0xf]
  %v8023 = vld [vmem:[%s7971 + $0xcc] sm:$0xf]
  %v8024 = vld [vmem:[%s7971 + $0xd0] sm:$0xf]
  %v8025 = vld [vmem:[%s7971 + $0xd4] sm:$0xf]
  %v8026 = vld [vmem:[%s7971 + $0xd8] sm:$0xf]
  %v8027 = vld [vmem:[%s7971 + $0xdc] sm:$0xf]
  %v8028 = vld [vmem:[%s7971 + $0xe0] sm:$0xf]
  %v8029 = vld [vmem:[%s7971 + $0xe4] sm:$0xf]
  %v8030 = vld [vmem:[%s7971 + $0xe8] sm:$0xf]
  %v8031 = vld [vmem:[%s7971 + $0xec] sm:$0xf]
  %v8032 = vld [vmem:[%s7971 + $0xf0] sm:$0xf]
  %v8033 = vld [vmem:[%s7971 + $0xf4] sm:$0xf]
  %v8034 = vld [vmem:[%s7971 + $0xf8] sm:$0xf]
  %v8035 = vld [vmem:[%s7971 + $0xfc] sm:$0xf]
  %v8038 = vunpack.c.l.b16 %v7969
  %v8039 = vunpack.c.h.b16 %v7969
  %v8040 = vunpack.c.l.b16 %v7970
  %v8041 = vunpack.c.h.b16 %v7970
  %v8042 = vpack.c.b16 %v8038, %v8038
  %v8043 = vpack.c.b16 %v8039, %v8039
  %v8044 = vpack.c.b16 %v8040, %v8040
  %v8045 = vpack.c.b16 %v8041, %v8041
  %v8114 = vunpack.c.l.b16 %v7972
  %v8115 = vunpack.c.l.b16 %v7973
  %v8116 = vunpack.c.l.b16 %v7974
  %v8117 = vunpack.c.l.b16 %v7975
  %v8118 = vunpack.c.l.b16 %v7976
  %v8119 = vunpack.c.l.b16 %v7977
  %v8120 = vunpack.c.l.b16 %v7978
  %v8121 = vunpack.c.l.b16 %v7979
  %v8122 = vunpack.c.l.b16 %v7980
  %v8123 = vunpack.c.l.b16 %v7981
  %v8124 = vunpack.c.l.b16 %v7982
  %v8125 = vunpack.c.l.b16 %v7983
  %v8126 = vunpack.c.l.b16 %v7984
  %v8127 = vunpack.c.l.b16 %v7985
  %v8128 = vunpack.c.l.b16 %v7986
  %v8129 = vunpack.c.l.b16 %v7987
  %v8130 = vunpack.c.l.b16 %v7988
  %v8131 = vunpack.c.l.b16 %v7989
  %v8132 = vunpack.c.l.b16 %v7990
  %v8133 = vunpack.c.l.b16 %v7991
  %v8134 = vunpack.c.l.b16 %v7992
  %v8135 = vunpack.c.l.b16 %v7993
  %v8136 = vunpack.c.l.b16 %v7994
  %v8137 = vunpack.c.l.b16 %v7995
  %v8138 = vunpack.c.l.b16 %v7996
  %v8139 = vunpack.c.l.b16 %v7997
  %v8140 = vunpack.c.l.b16 %v7998
  %v8141 = vunpack.c.l.b16 %v7999
  %v8142 = vunpack.c.l.b16 %v8000
  %v8143 = vunpack.c.l.b16 %v8001
  %v8144 = vunpack.c.l.b16 %v8002
  %v8145 = vunpack.c.l.b16 %v8003
  %v8146 = vunpack.c.l.b16 %v8004
  %v8147 = vunpack.c.l.b16 %v8005
  %v8148 = vunpack.c.l.b16 %v8006
  %v8149 = vunpack.c.l.b16 %v8007
  %v8150 = vunpack.c.l.b16 %v8008
  %v8151 = vunpack.c.l.b16 %v8009
  %v8152 = vunpack.c.l.b16 %v8010
  %v8153 = vunpack.c.l.b16 %v8011
  %v8154 = vunpack.c.l.b16 %v8012
  %v8155 = vunpack.c.l.b16 %v8013
  %v8156 = vunpack.c.l.b16 %v8014
  %v8157 = vunpack.c.l.b16 %v8015
  %v8158 = vunpack.c.l.b16 %v8016
  %v8159 = vunpack.c.l.b16 %v8017
  %v8160 = vunpack.c.l.b16 %v8018
  %v8161 = vunpack.c.l.b16 %v8019
  %v8162 = vunpack.c.l.b16 %v8020
  %v8163 = vunpack.c.l.b16 %v8021
  %v8164 = vunpack.c.l.b16 %v8022
  %v8165 = vunpack.c.l.b16 %v8023
  %v8166 = vunpack.c.l.b16 %v8024
  %v8167 = vunpack.c.l.b16 %v8025
  %v8168 = vunpack.c.l.b16 %v8026
  %v8169 = vunpack.c.l.b16 %v8027
  %v8170 = vunpack.c.l.b16 %v8028
  %v8171 = vunpack.c.l.b16 %v8029
  %v8172 = vunpack.c.l.b16 %v8030
  %v8173 = vunpack.c.l.b16 %v8031
  %v8174 = vunpack.c.l.b16 %v8032
  %v8175 = vunpack.c.l.b16 %v8033
  %v8176 = vunpack.c.l.b16 %v8034
  %v8177 = vunpack.c.l.b16 %v8035
  %v8178 = vpack.c.b16 %v8115, %v8114
  %v8179 = vpack.c.b16 %v8117, %v8116
  %v8180 = vpack.c.b16 %v8119, %v8118
  %v8181 = vpack.c.b16 %v8121, %v8120
  %v8182 = vpack.c.b16 %v8123, %v8122
  %v8183 = vpack.c.b16 %v8125, %v8124
  %v8184 = vpack.c.b16 %v8127, %v8126
  %v8185 = vpack.c.b16 %v8129, %v8128
  %v8186 = vpack.c.b16 %v8131, %v8130
  %v8187 = vpack.c.b16 %v8133, %v8132
  %v8188 = vpack.c.b16 %v8135, %v8134
  %v8189 = vpack.c.b16 %v8137, %v8136
  %v8190 = vpack.c.b16 %v8139, %v8138
  %v8191 = vpack.c.b16 %v8141, %v8140
  %v8192 = vpack.c.b16 %v8143, %v8142
  %v8193 = vpack.c.b16 %v8145, %v8144
  %v8194 = vpack.c.b16 %v8147, %v8146
  %v8195 = vpack.c.b16 %v8149, %v8148
  %v8196 = vpack.c.b16 %v8151, %v8150
  %v8197 = vpack.c.b16 %v8153, %v8152
  %v8198 = vpack.c.b16 %v8155, %v8154
  %v8199 = vpack.c.b16 %v8157, %v8156
  %v8200 = vpack.c.b16 %v8159, %v8158
  %v8201 = vpack.c.b16 %v8161, %v8160
  %v8202 = vpack.c.b16 %v8163, %v8162
  %v8203 = vpack.c.b16 %v8165, %v8164
  %v8204 = vpack.c.b16 %v8167, %v8166
  %v8205 = vpack.c.b16 %v8169, %v8168
  %v8206 = vpack.c.b16 %v8171, %v8170
  %v8207 = vpack.c.b16 %v8173, %v8172
  %v8208 = vpack.c.b16 %v8175, %v8174
  %v8209 = vpack.c.b16 %v8177, %v8176
  %8242 = vmatpush.bf16.msra.mxu0 %v8185
  %8243 = vmatpush.bf16.msra.mxu0 %v8184
  %8244 = vmatpush.bf16.msra.mxu0 %v8183
  %8245 = vmatpush.bf16.msra.mxu0 %v8182
  %8246 = vmatpush.bf16.msra.mxu0 %v8181
  %8247 = vmatpush.bf16.msra.mxu0 %v8180
  %8248 = vmatpush.bf16.msra.mxu0 %v8179
  %8249 = vmatpush.bf16.msra.mxu0 %v8178
  %8250 = vmatmul.bf16.gmra.mxu0 %v8042
  %v8251 = vpop.f32.mrf.mxu0
  %v8252 = vadd.f32 0.0, %v8251
  %v8253 = vpop.f32.mrf.mxu0
  %8254 = vdwg.mxu0
  %8255 = vmatpush.bf16.msra.mxu0 %v8193
  %8256 = vmatpush.bf16.msra.mxu0 %v8192
  %8257 = vmatpush.bf16.msra.mxu0 %v8191
  %8258 = vmatpush.bf16.msra.mxu0 %v8190
  %8259 = vmatpush.bf16.msra.mxu0 %v8189
  %8260 = vmatpush.bf16.msra.mxu0 %v8188
  %8261 = vmatpush.bf16.msra.mxu0 %v8187
  %8262 = vmatpush.bf16.msra.mxu0 %v8186
  %8263 = vmatmul.bf16.gmra.mxu0 %v8043
  %v8264 = vpop.f32.mrf.mxu0
  %v8265 = vadd.f32 %v8252, %v8264
  %v8266 = vpop.f32.mrf.mxu0
  %8267 = vdwg.mxu0
  %8268 = vmatpush.bf16.msra.mxu0 %v8201
  %8269 = vmatpush.bf16.msra.mxu0 %v8200
  %8270 = vmatpush.bf16.msra.mxu0 %v8199
  %8271 = vmatpush.bf16.msra.mxu0 %v8198
  %8272 = vmatpush.bf16.msra.mxu0 %v8197
  %8273 = vmatpush.bf16.msra.mxu0 %v8196
  %8274 = vmatpush.bf16.msra.mxu0 %v8195
  %8275 = vmatpush.bf16.msra.mxu0 %v8194
  %8276 = vmatmul.bf16.gmra.mxu0 %v8044
  %v8277 = vpop.f32.mrf.mxu0
  %v8278 = vadd.f32 %v8265, %v8277
  %v8279 = vpop.f32.mrf.mxu0
  %8280 = vdwg.mxu0
  %8281 = vmatpush.bf16.msra.mxu0 %v8209
  %8282 = vmatpush.bf16.msra.mxu0 %v8208
  %8283 = vmatpush.bf16.msra.mxu0 %v8207
  %8284 = vmatpush.bf16.msra.mxu0 %v8206
  %8285 = vmatpush.bf16.msra.mxu0 %v8205
  %8286 = vmatpush.bf16.msra.mxu0 %v8204
  %8287 = vmatpush.bf16.msra.mxu0 %v8203
  %8288 = vmatpush.bf16.msra.mxu0 %v8202
  %8289 = vmatmul.bf16.gmra.mxu0 %v8045
  %v8290 = vpop.f32.mrf.mxu0
  %v8291 = vadd.f32 %v8278, %v8290
  %v8292 = vpop.f32.mrf.mxu0
  %8293 = vdwg.mxu0
  %v8294 = vadd.f32 %v7968, %v8291
  %v8295 = vld [vmem:[%s2824] sm:$0xff]
  %v8296 = vld [vmem:[%s2824 + $0x8] sm:$0xff]
  %s8297 = scalar_lea.vmem %s4, 1024
  %v8298 = vld [vmem:[%s8297] sm:$0xf]
  %v8299 = vld [vmem:[%s8297 + $0x4] sm:$0xf]
  %v8300 = vld [vmem:[%s8297 + $0x8] sm:$0xf]
  %v8301 = vld [vmem:[%s8297 + $0xc] sm:$0xf]
  %v8302 = vld [vmem:[%s8297 + $0x10] sm:$0xf]
  %v8303 = vld [vmem:[%s8297 + $0x14] sm:$0xf]
  %v8304 = vld [vmem:[%s8297 + $0x18] sm:$0xf]
  %v8305 = vld [vmem:[%s8297 + $0x1c] sm:$0xf]
  %v8306 = vld [vmem:[%s8297 + $0x20] sm:$0xf]
  %v8307 = vld [vmem:[%s8297 + $0x24] sm:$0xf]
  %v8308 = vld [vmem:[%s8297 + $0x28] sm:$0xf]
  %v8309 = vld [vmem:[%s8297 + $0x2c] sm:$0xf]
  %v8310 = vld [vmem:[%s8297 + $0x30] sm:$0xf]
  %v8311 = vld [vmem:[%s8297 + $0x34] sm:$0xf]
  %v8312 = vld [vmem:[%s8297 + $0x38] sm:$0xf]
  %v8313 = vld [vmem:[%s8297 + $0x3c] sm:$0xf]
  %v8314 = vld [vmem:[%s8297 + $0x40] sm:$0xf]
  %v8315 = vld [vmem:[%s8297 + $0x44] sm:$0xf]
  %v8316 = vld [vmem:[%s8297 + $0x48] sm:$0xf]
  %v8317 = vld [vmem:[%s8297 + $0x4c] sm:$0xf]
  %v8318 = vld [vmem:[%s8297 + $0x50] sm:$0xf]
  %v8319 = vld [vmem:[%s8297 + $0x54] sm:$0xf]
  %v8320 = vld [vmem:[%s8297 + $0x58] sm:$0xf]
  %v8321 = vld [vmem:[%s8297 + $0x5c] sm:$0xf]
  %v8322 = vld [vmem:[%s8297 + $0x60] sm:$0xf]
  %v8323 = vld [vmem:[%s8297 + $0x64] sm:$0xf]
  %v8324 = vld [vmem:[%s8297 + $0x68] sm:$0xf]
  %v8325 = vld [vmem:[%s8297 + $0x6c] sm:$0xf]
  %v8326 = vld [vmem:[%s8297 + $0x70] sm:$0xf]
  %v8327 = vld [vmem:[%s8297 + $0x74] sm:$0xf]
  %v8328 = vld [vmem:[%s8297 + $0x78] sm:$0xf]
  %v8329 = vld [vmem:[%s8297 + $0x7c] sm:$0xf]
  %v8330 = vld [vmem:[%s8297 + $0x80] sm:$0xf]
  %v8331 = vld [vmem:[%s8297 + $0x84] sm:$0xf]
  %v8332 = vld [vmem:[%s8297 + $0x88] sm:$0xf]
  %v8333 = vld [vmem:[%s8297 + $0x8c] sm:$0xf]
  %v8334 = vld [vmem:[%s8297 + $0x90] sm:$0xf]
  %v8335 = vld [vmem:[%s8297 + $0x94] sm:$0xf]
  %v8336 = vld [vmem:[%s8297 + $0x98] sm:$0xf]
  %v8337 = vld [vmem:[%s8297 + $0x9c] sm:$0xf]
  %v8338 = vld [vmem:[%s8297 + $0xa0] sm:$0xf]
  %v8339 = vld [vmem:[%s8297 + $0xa4] sm:$0xf]
  %v8340 = vld [vmem:[%s8297 + $0xa8] sm:$0xf]
  %v8341 = vld [vmem:[%s8297 + $0xac] sm:$0xf]
  %v8342 = vld [vmem:[%s8297 + $0xb0] sm:$0xf]
  %v8343 = vld [vmem:[%s8297 + $0xb4] sm:$0xf]
  %v8344 = vld [vmem:[%s8297 + $0xb8] sm:$0xf]
  %v8345 = vld [vmem:[%s8297 + $0xbc] sm:$0xf]
  %v8346 = vld [vmem:[%s8297 + $0xc0] sm:$0xf]
  %v8347 = vld [vmem:[%s8297 + $0xc4] sm:$0xf]
  %v8348 = vld [vmem:[%s8297 + $0xc8] sm:$0xf]
  %v8349 = vld [vmem:[%s8297 + $0xcc] sm:$0xf]
  %v8350 = vld [vmem:[%s8297 + $0xd0] sm:$0xf]
  %v8351 = vld [vmem:[%s8297 + $0xd4] sm:$0xf]
  %v8352 = vld [vmem:[%s8297 + $0xd8] sm:$0xf]
  %v8353 = vld [vmem:[%s8297 + $0xdc] sm:$0xf]
  %v8354 = vld [vmem:[%s8297 + $0xe0] sm:$0xf]
  %v8355 = vld [vmem:[%s8297 + $0xe4] sm:$0xf]
  %v8356 = vld [vmem:[%s8297 + $0xe8] sm:$0xf]
  %v8357 = vld [vmem:[%s8297 + $0xec] sm:$0xf]
  %v8358 = vld [vmem:[%s8297 + $0xf0] sm:$0xf]
  %v8359 = vld [vmem:[%s8297 + $0xf4] sm:$0xf]
  %v8360 = vld [vmem:[%s8297 + $0xf8] sm:$0xf]
  %v8361 = vld [vmem:[%s8297 + $0xfc] sm:$0xf]
  %v8364 = vunpack.c.l.b16 %v8295
  %v8365 = vunpack.c.h.b16 %v8295
  %v8366 = vunpack.c.l.b16 %v8296
  %v8367 = vunpack.c.h.b16 %v8296
  %v8368 = vpack.c.b16 %v8364, %v8364
  %v8369 = vpack.c.b16 %v8365, %v8365
  %v8370 = vpack.c.b16 %v8366, %v8366
  %v8371 = vpack.c.b16 %v8367, %v8367
  %v8440 = vunpack.c.l.b16 %v8298
  %v8441 = vunpack.c.l.b16 %v8299
  %v8442 = vunpack.c.l.b16 %v8300
  %v8443 = vunpack.c.l.b16 %v8301
  %v8444 = vunpack.c.l.b16 %v8302
  %v8445 = vunpack.c.l.b16 %v8303
  %v8446 = vunpack.c.l.b16 %v8304
  %v8447 = vunpack.c.l.b16 %v8305
  %v8448 = vunpack.c.l.b16 %v8306
  %v8449 = vunpack.c.l.b16 %v8307
  %v8450 = vunpack.c.l.b16 %v8308
  %v8451 = vunpack.c.l.b16 %v8309
  %v8452 = vunpack.c.l.b16 %v8310
  %v8453 = vunpack.c.l.b16 %v8311
  %v8454 = vunpack.c.l.b16 %v8312
  %v8455 = vunpack.c.l.b16 %v8313
  %v8456 = vunpack.c.l.b16 %v8314
  %v8457 = vunpack.c.l.b16 %v8315
  %v8458 = vunpack.c.l.b16 %v8316
  %v8459 = vunpack.c.l.b16 %v8317
  %v8460 = vunpack.c.l.b16 %v8318
  %v8461 = vunpack.c.l.b16 %v8319
  %v8462 = vunpack.c.l.b16 %v8320
  %v8463 = vunpack.c.l.b16 %v8321
  %v8464 = vunpack.c.l.b16 %v8322
  %v8465 = vunpack.c.l.b16 %v8323
  %v8466 = vunpack.c.l.b16 %v8324
  %v8467 = vunpack.c.l.b16 %v8325
  %v8468 = vunpack.c.l.b16 %v8326
  %v8469 = vunpack.c.l.b16 %v8327
  %v8470 = vunpack.c.l.b16 %v8328
  %v8471 = vunpack.c.l.b16 %v8329
  %v8472 = vunpack.c.l.b16 %v8330
  %v8473 = vunpack.c.l.b16 %v8331
  %v8474 = vunpack.c.l.b16 %v8332
  %v8475 = vunpack.c.l.b16 %v8333
  %v8476 = vunpack.c.l.b16 %v8334
  %v8477 = vunpack.c.l.b16 %v8335
  %v8478 = vunpack.c.l.b16 %v8336
  %v8479 = vunpack.c.l.b16 %v8337
  %v8480 = vunpack.c.l.b16 %v8338
  %v8481 = vunpack.c.l.b16 %v8339
  %v8482 = vunpack.c.l.b16 %v8340
  %v8483 = vunpack.c.l.b16 %v8341
  %v8484 = vunpack.c.l.b16 %v8342
  %v8485 = vunpack.c.l.b16 %v8343
  %v8486 = vunpack.c.l.b16 %v8344
  %v8487 = vunpack.c.l.b16 %v8345
  %v8488 = vunpack.c.l.b16 %v8346
  %v8489 = vunpack.c.l.b16 %v8347
  %v8490 = vunpack.c.l.b16 %v8348
  %v8491 = vunpack.c.l.b16 %v8349
  %v8492 = vunpack.c.l.b16 %v8350
  %v8493 = vunpack.c.l.b16 %v8351
  %v8494 = vunpack.c.l.b16 %v8352
  %v8495 = vunpack.c.l.b16 %v8353
  %v8496 = vunpack.c.l.b16 %v8354
  %v8497 = vunpack.c.l.b16 %v8355
  %v8498 = vunpack.c.l.b16 %v8356
  %v8499 = vunpack.c.l.b16 %v8357
  %v8500 = vunpack.c.l.b16 %v8358
  %v8501 = vunpack.c.l.b16 %v8359
  %v8502 = vunpack.c.l.b16 %v8360
  %v8503 = vunpack.c.l.b16 %v8361
  %v8504 = vpack.c.b16 %v8441, %v8440
  %v8505 = vpack.c.b16 %v8443, %v8442
  %v8506 = vpack.c.b16 %v8445, %v8444
  %v8507 = vpack.c.b16 %v8447, %v8446
  %v8508 = vpack.c.b16 %v8449, %v8448
  %v8509 = vpack.c.b16 %v8451, %v8450
  %v8510 = vpack.c.b16 %v8453, %v8452
  %v8511 = vpack.c.b16 %v8455, %v8454
  %v8512 = vpack.c.b16 %v8457, %v8456
  %v8513 = vpack.c.b16 %v8459, %v8458
  %v8514 = vpack.c.b16 %v8461, %v8460
  %v8515 = vpack.c.b16 %v8463, %v8462
  %v8516 = vpack.c.b16 %v8465, %v8464
  %v8517 = vpack.c.b16 %v8467, %v8466
  %v8518 = vpack.c.b16 %v8469, %v8468
  %v8519 = vpack.c.b16 %v8471, %v8470
  %v8520 = vpack.c.b16 %v8473, %v8472
  %v8521 = vpack.c.b16 %v8475, %v8474
  %v8522 = vpack.c.b16 %v8477, %v8476
  %v8523 = vpack.c.b16 %v8479, %v8478
  %v8524 = vpack.c.b16 %v8481, %v8480
  %v8525 = vpack.c.b16 %v8483, %v8482
  %v8526 = vpack.c.b16 %v8485, %v8484
  %v8527 = vpack.c.b16 %v8487, %v8486
  %v8528 = vpack.c.b16 %v8489, %v8488
  %v8529 = vpack.c.b16 %v8491, %v8490
  %v8530 = vpack.c.b16 %v8493, %v8492
  %v8531 = vpack.c.b16 %v8495, %v8494
  %v8532 = vpack.c.b16 %v8497, %v8496
  %v8533 = vpack.c.b16 %v8499, %v8498
  %v8534 = vpack.c.b16 %v8501, %v8500
  %v8535 = vpack.c.b16 %v8503, %v8502
  %8568 = vmatpush.bf16.msra.mxu0 %v8511
  %8569 = vmatpush.bf16.msra.mxu0 %v8510
  %8570 = vmatpush.bf16.msra.mxu0 %v8509
  %8571 = vmatpush.bf16.msra.mxu0 %v8508
  %8572 = vmatpush.bf16.msra.mxu0 %v8507
  %8573 = vmatpush.bf16.msra.mxu0 %v8506
  %8574 = vmatpush.bf16.msra.mxu0 %v8505
  %8575 = vmatpush.bf16.msra.mxu0 %v8504
  %8576 = vmatmul.bf16.gmra.mxu0 %v8368
  %v8577 = vpop.f32.mrf.mxu0
  %v8578 = vadd.f32 0.0, %v8577
  %v8579 = vpop.f32.mrf.mxu0
  %8580 = vdwg.mxu0
  %8581 = vmatpush.bf16.msra.mxu0 %v8519
  %8582 = vmatpush.bf16.msra.mxu0 %v8518
  %8583 = vmatpush.bf16.msra.mxu0 %v8517
  %8584 = vmatpush.bf16.msra.mxu0 %v8516
  %8585 = vmatpush.bf16.msra.mxu0 %v8515
  %8586 = vmatpush.bf16.msra.mxu0 %v8514
  %8587 = vmatpush.bf16.msra.mxu0 %v8513
  %8588 = vmatpush.bf16.msra.mxu0 %v8512
  %8589 = vmatmul.bf16.gmra.mxu0 %v8369
  %v8590 = vpop.f32.mrf.mxu0
  %v8591 = vadd.f32 %v8578, %v8590
  %v8592 = vpop.f32.mrf.mxu0
  %8593 = vdwg.mxu0
  %8594 = vmatpush.bf16.msra.mxu0 %v8527
  %8595 = vmatpush.bf16.msra.mxu0 %v8526
  %8596 = vmatpush.bf16.msra.mxu0 %v8525
  %8597 = vmatpush.bf16.msra.mxu0 %v8524
  %8598 = vmatpush.bf16.msra.mxu0 %v8523
  %8599 = vmatpush.bf16.msra.mxu0 %v8522
  %8600 = vmatpush.bf16.msra.mxu0 %v8521
  %8601 = vmatpush.bf16.msra.mxu0 %v8520
  %8602 = vmatmul.bf16.gmra.mxu0 %v8370
  %v8603 = vpop.f32.mrf.mxu0
  %v8604 = vadd.f32 %v8591, %v8603
  %v8605 = vpop.f32.mrf.mxu0
  %8606 = vdwg.mxu0
  %8607 = vmatpush.bf16.msra.mxu0 %v8535
  %8608 = vmatpush.bf16.msra.mxu0 %v8534
  %8609 = vmatpush.bf16.msra.mxu0 %v8533
  %8610 = vmatpush.bf16.msra.mxu0 %v8532
  %8611 = vmatpush.bf16.msra.mxu0 %v8531
  %8612 = vmatpush.bf16.msra.mxu0 %v8530
  %8613 = vmatpush.bf16.msra.mxu0 %v8529
  %8614 = vmatpush.bf16.msra.mxu0 %v8528
  %8615 = vmatmul.bf16.gmra.mxu0 %v8371
  %v8616 = vpop.f32.mrf.mxu0
  %v8617 = vadd.f32 %v8604, %v8616
  %v8618 = vpop.f32.mrf.mxu0
  %8619 = vdwg.mxu0
  %v8620 = vadd.f32 %v8294, %v8617
  %v8621 = vld [vmem:[%s3287] sm:$0xff]
  %v8622 = vld [vmem:[%s3287 + $0x8] sm:$0xff]
  %s8623 = scalar_lea.vmem %s4, 1280
  %v8624 = vld [vmem:[%s8623] sm:$0xf]
  %v8625 = vld [vmem:[%s8623 + $0x4] sm:$0xf]
  %v8626 = vld [vmem:[%s8623 + $0x8] sm:$0xf]
  %v8627 = vld [vmem:[%s8623 + $0xc] sm:$0xf]
  %v8628 = vld [vmem:[%s8623 + $0x10] sm:$0xf]
  %v8629 = vld [vmem:[%s8623 + $0x14] sm:$0xf]
  %v8630 = vld [vmem:[%s8623 + $0x18] sm:$0xf]
  %v8631 = vld [vmem:[%s8623 + $0x1c] sm:$0xf]
  %v8632 = vld [vmem:[%s8623 + $0x20] sm:$0xf]
  %v8633 = vld [vmem:[%s8623 + $0x24] sm:$0xf]
  %v8634 = vld [vmem:[%s8623 + $0x28] sm:$0xf]
  %v8635 = vld [vmem:[%s8623 + $0x2c] sm:$0xf]
  %v8636 = vld [vmem:[%s8623 + $0x30] sm:$0xf]
  %v8637 = vld [vmem:[%s8623 + $0x34] sm:$0xf]
  %v8638 = vld [vmem:[%s8623 + $0x38] sm:$0xf]
  %v8639 = vld [vmem:[%s8623 + $0x3c] sm:$0xf]
  %v8640 = vld [vmem:[%s8623 + $0x40] sm:$0xf]
  %v8641 = vld [vmem:[%s8623 + $0x44] sm:$0xf]
  %v8642 = vld [vmem:[%s8623 + $0x48] sm:$0xf]
  %v8643 = vld [vmem:[%s8623 + $0x4c] sm:$0xf]
  %v8644 = vld [vmem:[%s8623 + $0x50] sm:$0xf]
  %v8645 = vld [vmem:[%s8623 + $0x54] sm:$0xf]
  %v8646 = vld [vmem:[%s8623 + $0x58] sm:$0xf]
  %v8647 = vld [vmem:[%s8623 + $0x5c] sm:$0xf]
  %v8648 = vld [vmem:[%s8623 + $0x60] sm:$0xf]
  %v8649 = vld [vmem:[%s8623 + $0x64] sm:$0xf]
  %v8650 = vld [vmem:[%s8623 + $0x68] sm:$0xf]
  %v8651 = vld [vmem:[%s8623 + $0x6c] sm:$0xf]
  %v8652 = vld [vmem:[%s8623 + $0x70] sm:$0xf]
  %v8653 = vld [vmem:[%s8623 + $0x74] sm:$0xf]
  %v8654 = vld [vmem:[%s8623 + $0x78] sm:$0xf]
  %v8655 = vld [vmem:[%s8623 + $0x7c] sm:$0xf]
  %v8656 = vld [vmem:[%s8623 + $0x80] sm:$0xf]
  %v8657 = vld [vmem:[%s8623 + $0x84] sm:$0xf]
  %v8658 = vld [vmem:[%s8623 + $0x88] sm:$0xf]
  %v8659 = vld [vmem:[%s8623 + $0x8c] sm:$0xf]
  %v8660 = vld [vmem:[%s8623 + $0x90] sm:$0xf]
  %v8661 = vld [vmem:[%s8623 + $0x94] sm:$0xf]
  %v8662 = vld [vmem:[%s8623 + $0x98] sm:$0xf]
  %v8663 = vld [vmem:[%s8623 + $0x9c] sm:$0xf]
  %v8664 = vld [vmem:[%s8623 + $0xa0] sm:$0xf]
  %v8665 = vld [vmem:[%s8623 + $0xa4] sm:$0xf]
  %v8666 = vld [vmem:[%s8623 + $0xa8] sm:$0xf]
  %v8667 = vld [vmem:[%s8623 + $0xac] sm:$0xf]
  %v8668 = vld [vmem:[%s8623 + $0xb0] sm:$0xf]
  %v8669 = vld [vmem:[%s8623 + $0xb4] sm:$0xf]
  %v8670 = vld [vmem:[%s8623 + $0xb8] sm:$0xf]
  %v8671 = vld [vmem:[%s8623 + $0xbc] sm:$0xf]
  %v8672 = vld [vmem:[%s8623 + $0xc0] sm:$0xf]
  %v8673 = vld [vmem:[%s8623 + $0xc4] sm:$0xf]
  %v8674 = vld [vmem:[%s8623 + $0xc8] sm:$0xf]
  %v8675 = vld [vmem:[%s8623 + $0xcc] sm:$0xf]
  %v8676 = vld [vmem:[%s8623 + $0xd0] sm:$0xf]
  %v8677 = vld [vmem:[%s8623 + $0xd4] sm:$0xf]
  %v8678 = vld [vmem:[%s8623 + $0xd8] sm:$0xf]
  %v8679 = vld [vmem:[%s8623 + $0xdc] sm:$0xf]
  %v8680 = vld [vmem:[%s8623 + $0xe0] sm:$0xf]
  %v8681 = vld [vmem:[%s8623 + $0xe4] sm:$0xf]
  %v8682 = vld [vmem:[%s8623 + $0xe8] sm:$0xf]
  %v8683 = vld [vmem:[%s8623 + $0xec] sm:$0xf]
  %v8684 = vld [vmem:[%s8623 + $0xf0] sm:$0xf]
  %v8685 = vld [vmem:[%s8623 + $0xf4] sm:$0xf]
  %v8686 = vld [vmem:[%s8623 + $0xf8] sm:$0xf]
  %v8687 = vld [vmem:[%s8623 + $0xfc] sm:$0xf]
  %v8690 = vunpack.c.l.b16 %v8621
  %v8691 = vunpack.c.h.b16 %v8621
  %v8692 = vunpack.c.l.b16 %v8622
  %v8693 = vunpack.c.h.b16 %v8622
  %v8694 = vpack.c.b16 %v8690, %v8690
  %v8695 = vpack.c.b16 %v8691, %v8691
  %v8696 = vpack.c.b16 %v8692, %v8692
  %v8697 = vpack.c.b16 %v8693, %v8693
  %v8766 = vunpack.c.l.b16 %v8624
  %v8767 = vunpack.c.l.b16 %v8625
  %v8768 = vunpack.c.l.b16 %v8626
  %v8769 = vunpack.c.l.b16 %v8627
  %v8770 = vunpack.c.l.b16 %v8628
  %v8771 = vunpack.c.l.b16 %v8629
  %v8772 = vunpack.c.l.b16 %v8630
  %v8773 = vunpack.c.l.b16 %v8631
  %v8774 = vunpack.c.l.b16 %v8632
  %v8775 = vunpack.c.l.b16 %v8633
  %v8776 = vunpack.c.l.b16 %v8634
  %v8777 = vunpack.c.l.b16 %v8635
  %v8778 = vunpack.c.l.b16 %v8636
  %v8779 = vunpack.c.l.b16 %v8637
  %v8780 = vunpack.c.l.b16 %v8638
  %v8781 = vunpack.c.l.b16 %v8639
  %v8782 = vunpack.c.l.b16 %v8640
  %v8783 = vunpack.c.l.b16 %v8641
  %v8784 = vunpack.c.l.b16 %v8642
  %v8785 = vunpack.c.l.b16 %v8643
  %v8786 = vunpack.c.l.b16 %v8644
  %v8787 = vunpack.c.l.b16 %v8645
  %v8788 = vunpack.c.l.b16 %v8646
  %v8789 = vunpack.c.l.b16 %v8647
  %v8790 = vunpack.c.l.b16 %v8648
  %v8791 = vunpack.c.l.b16 %v8649
  %v8792 = vunpack.c.l.b16 %v8650
  %v8793 = vunpack.c.l.b16 %v8651
  %v8794 = vunpack.c.l.b16 %v8652
  %v8795 = vunpack.c.l.b16 %v8653
  %v8796 = vunpack.c.l.b16 %v8654
  %v8797 = vunpack.c.l.b16 %v8655
  %v8798 = vunpack.c.l.b16 %v8656
  %v8799 = vunpack.c.l.b16 %v8657
  %v8800 = vunpack.c.l.b16 %v8658
  %v8801 = vunpack.c.l.b16 %v8659
  %v8802 = vunpack.c.l.b16 %v8660
  %v8803 = vunpack.c.l.b16 %v8661
  %v8804 = vunpack.c.l.b16 %v8662
  %v8805 = vunpack.c.l.b16 %v8663
  %v8806 = vunpack.c.l.b16 %v8664
  %v8807 = vunpack.c.l.b16 %v8665
  %v8808 = vunpack.c.l.b16 %v8666
  %v8809 = vunpack.c.l.b16 %v8667
  %v8810 = vunpack.c.l.b16 %v8668
  %v8811 = vunpack.c.l.b16 %v8669
  %v8812 = vunpack.c.l.b16 %v8670
  %v8813 = vunpack.c.l.b16 %v8671
  %v8814 = vunpack.c.l.b16 %v8672
  %v8815 = vunpack.c.l.b16 %v8673
  %v8816 = vunpack.c.l.b16 %v8674
  %v8817 = vunpack.c.l.b16 %v8675
  %v8818 = vunpack.c.l.b16 %v8676
  %v8819 = vunpack.c.l.b16 %v8677
  %v8820 = vunpack.c.l.b16 %v8678
  %v8821 = vunpack.c.l.b16 %v8679
  %v8822 = vunpack.c.l.b16 %v8680
  %v8823 = vunpack.c.l.b16 %v8681
  %v8824 = vunpack.c.l.b16 %v8682
  %v8825 = vunpack.c.l.b16 %v8683
  %v8826 = vunpack.c.l.b16 %v8684
  %v8827 = vunpack.c.l.b16 %v8685
  %v8828 = vunpack.c.l.b16 %v8686
  %v8829 = vunpack.c.l.b16 %v8687
  %v8830 = vpack.c.b16 %v8767, %v8766
  %v8831 = vpack.c.b16 %v8769, %v8768
  %v8832 = vpack.c.b16 %v8771, %v8770
  %v8833 = vpack.c.b16 %v8773, %v8772
  %v8834 = vpack.c.b16 %v8775, %v8774
  %v8835 = vpack.c.b16 %v8777, %v8776
  %v8836 = vpack.c.b16 %v8779, %v8778
  %v8837 = vpack.c.b16 %v8781, %v8780
  %v8838 = vpack.c.b16 %v8783, %v8782
  %v8839 = vpack.c.b16 %v8785, %v8784
  %v8840 = vpack.c.b16 %v8787, %v8786
  %v8841 = vpack.c.b16 %v8789, %v8788
  %v8842 = vpack.c.b16 %v8791, %v8790
  %v8843 = vpack.c.b16 %v8793, %v8792
  %v8844 = vpack.c.b16 %v8795, %v8794
  %v8845 = vpack.c.b16 %v8797, %v8796
  %v8846 = vpack.c.b16 %v8799, %v8798
  %v8847 = vpack.c.b16 %v8801, %v8800
  %v8848 = vpack.c.b16 %v8803, %v8802
  %v8849 = vpack.c.b16 %v8805, %v8804
  %v8850 = vpack.c.b16 %v8807, %v8806
  %v8851 = vpack.c.b16 %v8809, %v8808
  %v8852 = vpack.c.b16 %v8811, %v8810
  %v8853 = vpack.c.b16 %v8813, %v8812
  %v8854 = vpack.c.b16 %v8815, %v8814
  %v8855 = vpack.c.b16 %v8817, %v8816
  %v8856 = vpack.c.b16 %v8819, %v8818
  %v8857 = vpack.c.b16 %v8821, %v8820
  %v8858 = vpack.c.b16 %v8823, %v8822
  %v8859 = vpack.c.b16 %v8825, %v8824
  %v8860 = vpack.c.b16 %v8827, %v8826
  %v8861 = vpack.c.b16 %v8829, %v8828
  %8894 = vmatpush.bf16.msra.mxu0 %v8837
  %8895 = vmatpush.bf16.msra.mxu0 %v8836
  %8896 = vmatpush.bf16.msra.mxu0 %v8835
  %8897 = vmatpush.bf16.msra.mxu0 %v8834
  %8898 = vmatpush.bf16.msra.mxu0 %v8833
  %8899 = vmatpush.bf16.msra.mxu0 %v8832
  %8900 = vmatpush.bf16.msra.mxu0 %v8831
  %8901 = vmatpush.bf16.msra.mxu0 %v8830
  %8902 = vmatmul.bf16.gmra.mxu0 %v8694
  %v8903 = vpop.f32.mrf.mxu0
  %v8904 = vadd.f32 0.0, %v8903
  %v8905 = vpop.f32.mrf.mxu0
  %8906 = vdwg.mxu0
  %8907 = vmatpush.bf16.msra.mxu0 %v8845
  %8908 = vmatpush.bf16.msra.mxu0 %v8844
  %8909 = vmatpush.bf16.msra.mxu0 %v8843
  %8910 = vmatpush.bf16.msra.mxu0 %v8842
  %8911 = vmatpush.bf16.msra.mxu0 %v8841
  %8912 = vmatpush.bf16.msra.mxu0 %v8840
  %8913 = vmatpush.bf16.msra.mxu0 %v8839
  %8914 = vmatpush.bf16.msra.mxu0 %v8838
  %8915 = vmatmul.bf16.gmra.mxu0 %v8695
  %v8916 = vpop.f32.mrf.mxu0
  %v8917 = vadd.f32 %v8904, %v8916
  %v8918 = vpop.f32.mrf.mxu0
  %8919 = vdwg.mxu0
  %8920 = vmatpush.bf16.msra.mxu0 %v8853
  %8921 = vmatpush.bf16.msra.mxu0 %v8852
  %8922 = vmatpush.bf16.msra.mxu0 %v8851
  %8923 = vmatpush.bf16.msra.mxu0 %v8850
  %8924 = vmatpush.bf16.msra.mxu0 %v8849
  %8925 = vmatpush.bf16.msra.mxu0 %v8848
  %8926 = vmatpush.bf16.msra.mxu0 %v8847
  %8927 = vmatpush.bf16.msra.mxu0 %v8846
  %8928 = vmatmul.bf16.gmra.mxu0 %v8696
  %v8929 = vpop.f32.mrf.mxu0
  %v8930 = vadd.f32 %v8917, %v8929
  %v8931 = vpop.f32.mrf.mxu0
  %8932 = vdwg.mxu0
  %8933 = vmatpush.bf16.msra.mxu0 %v8861
  %8934 = vmatpush.bf16.msra.mxu0 %v8860
  %8935 = vmatpush.bf16.msra.mxu0 %v8859
  %8936 = vmatpush.bf16.msra.mxu0 %v8858
  %8937 = vmatpush.bf16.msra.mxu0 %v8857
  %8938 = vmatpush.bf16.msra.mxu0 %v8856
  %8939 = vmatpush.bf16.msra.mxu0 %v8855
  %8940 = vmatpush.bf16.msra.mxu0 %v8854
  %8941 = vmatmul.bf16.gmra.mxu0 %v8697
  %v8942 = vpop.f32.mrf.mxu0
  %v8943 = vadd.f32 %v8930, %v8942
  %v8944 = vpop.f32.mrf.mxu0
  %8945 = vdwg.mxu0
  %v8946 = vadd.f32 %v8620, %v8943
  %v8947 = vld [vmem:[%s3750] sm:$0xff]
  %v8948 = vld [vmem:[%s3750 + $0x8] sm:$0xff]
  %s8949 = scalar_lea.vmem %s4, 1536
  %v8950 = vld [vmem:[%s8949] sm:$0xf]
  %v8951 = vld [vmem:[%s8949 + $0x4] sm:$0xf]
  %v8952 = vld [vmem:[%s8949 + $0x8] sm:$0xf]
  %v8953 = vld [vmem:[%s8949 + $0xc] sm:$0xf]
  %v8954 = vld [vmem:[%s8949 + $0x10] sm:$0xf]
  %v8955 = vld [vmem:[%s8949 + $0x14] sm:$0xf]
  %v8956 = vld [vmem:[%s8949 + $0x18] sm:$0xf]
  %v8957 = vld [vmem:[%s8949 + $0x1c] sm:$0xf]
  %v8958 = vld [vmem:[%s8949 + $0x20] sm:$0xf]
  %v8959 = vld [vmem:[%s8949 + $0x24] sm:$0xf]
  %v8960 = vld [vmem:[%s8949 + $0x28] sm:$0xf]
  %v8961 = vld [vmem:[%s8949 + $0x2c] sm:$0xf]
  %v8962 = vld [vmem:[%s8949 + $0x30] sm:$0xf]
  %v8963 = vld [vmem:[%s8949 + $0x34] sm:$0xf]
  %v8964 = vld [vmem:[%s8949 + $0x38] sm:$0xf]
  %v8965 = vld [vmem:[%s8949 + $0x3c] sm:$0xf]
  %v8966 = vld [vmem:[%s8949 + $0x40] sm:$0xf]
  %v8967 = vld [vmem:[%s8949 + $0x44] sm:$0xf]
  %v8968 = vld [vmem:[%s8949 + $0x48] sm:$0xf]
  %v8969 = vld [vmem:[%s8949 + $0x4c] sm:$0xf]
  %v8970 = vld [vmem:[%s8949 + $0x50] sm:$0xf]
  %v8971 = vld [vmem:[%s8949 + $0x54] sm:$0xf]
  %v8972 = vld [vmem:[%s8949 + $0x58] sm:$0xf]
  %v8973 = vld [vmem:[%s8949 + $0x5c] sm:$0xf]
  %v8974 = vld [vmem:[%s8949 + $0x60] sm:$0xf]
  %v8975 = vld [vmem:[%s8949 + $0x64] sm:$0xf]
  %v8976 = vld [vmem:[%s8949 + $0x68] sm:$0xf]
  %v8977 = vld [vmem:[%s8949 + $0x6c] sm:$0xf]
  %v8978 = vld [vmem:[%s8949 + $0x70] sm:$0xf]
  %v8979 = vld [vmem:[%s8949 + $0x74] sm:$0xf]
  %v8980 = vld [vmem:[%s8949 + $0x78] sm:$0xf]
  %v8981 = vld [vmem:[%s8949 + $0x7c] sm:$0xf]
  %v8982 = vld [vmem:[%s8949 + $0x80] sm:$0xf]
  %v8983 = vld [vmem:[%s8949 + $0x84] sm:$0xf]
  %v8984 = vld [vmem:[%s8949 + $0x88] sm:$0xf]
  %v8985 = vld [vmem:[%s8949 + $0x8c] sm:$0xf]
  %v8986 = vld [vmem:[%s8949 + $0x90] sm:$0xf]
  %v8987 = vld [vmem:[%s8949 + $0x94] sm:$0xf]
  %v8988 = vld [vmem:[%s8949 + $0x98] sm:$0xf]
  %v8989 = vld [vmem:[%s8949 + $0x9c] sm:$0xf]
  %v8990 = vld [vmem:[%s8949 + $0xa0] sm:$0xf]
  %v8991 = vld [vmem:[%s8949 + $0xa4] sm:$0xf]
  %v8992 = vld [vmem:[%s8949 + $0xa8] sm:$0xf]
  %v8993 = vld [vmem:[%s8949 + $0xac] sm:$0xf]
  %v8994 = vld [vmem:[%s8949 + $0xb0] sm:$0xf]
  %v8995 = vld [vmem:[%s8949 + $0xb4] sm:$0xf]
  %v8996 = vld [vmem:[%s8949 + $0xb8] sm:$0xf]
  %v8997 = vld [vmem:[%s8949 + $0xbc] sm:$0xf]
  %v8998 = vld [vmem:[%s8949 + $0xc0] sm:$0xf]
  %v8999 = vld [vmem:[%s8949 + $0xc4] sm:$0xf]
  %v9000 = vld [vmem:[%s8949 + $0xc8] sm:$0xf]
  %v9001 = vld [vmem:[%s8949 + $0xcc] sm:$0xf]
  %v9002 = vld [vmem:[%s8949 + $0xd0] sm:$0xf]
  %v9003 = vld [vmem:[%s8949 + $0xd4] sm:$0xf]
  %v9004 = vld [vmem:[%s8949 + $0xd8] sm:$0xf]
  %v9005 = vld [vmem:[%s8949 + $0xdc] sm:$0xf]
  %v9006 = vld [vmem:[%s8949 + $0xe0] sm:$0xf]
  %v9007 = vld [vmem:[%s8949 + $0xe4] sm:$0xf]
  %v9008 = vld [vmem:[%s8949 + $0xe8] sm:$0xf]
  %v9009 = vld [vmem:[%s8949 + $0xec] sm:$0xf]
  %v9010 = vld [vmem:[%s8949 + $0xf0] sm:$0xf]
  %v9011 = vld [vmem:[%s8949 + $0xf4] sm:$0xf]
  %v9012 = vld [vmem:[%s8949 + $0xf8] sm:$0xf]
  %v9013 = vld [vmem:[%s8949 + $0xfc] sm:$0xf]
  %v9016 = vunpack.c.l.b16 %v8947
  %v9017 = vunpack.c.h.b16 %v8947
  %v9018 = vunpack.c.l.b16 %v8948
  %v9019 = vunpack.c.h.b16 %v8948
  %v9020 = vpack.c.b16 %v9016, %v9016
  %v9021 = vpack.c.b16 %v9017, %v9017
  %v9022 = vpack.c.b16 %v9018, %v9018
  %v9023 = vpack.c.b16 %v9019, %v9019
  %v9092 = vunpack.c.l.b16 %v8950
  %v9093 = vunpack.c.l.b16 %v8951
  %v9094 = vunpack.c.l.b16 %v8952
  %v9095 = vunpack.c.l.b16 %v8953
  %v9096 = vunpack.c.l.b16 %v8954
  %v9097 = vunpack.c.l.b16 %v8955
  %v9098 = vunpack.c.l.b16 %v8956
  %v9099 = vunpack.c.l.b16 %v8957
  %v9100 = vunpack.c.l.b16 %v8958
  %v9101 = vunpack.c.l.b16 %v8959
  %v9102 = vunpack.c.l.b16 %v8960
  %v9103 = vunpack.c.l.b16 %v8961
  %v9104 = vunpack.c.l.b16 %v8962
  %v9105 = vunpack.c.l.b16 %v8963
  %v9106 = vunpack.c.l.b16 %v8964
  %v9107 = vunpack.c.l.b16 %v8965
  %v9108 = vunpack.c.l.b16 %v8966
  %v9109 = vunpack.c.l.b16 %v8967
  %v9110 = vunpack.c.l.b16 %v8968
  %v9111 = vunpack.c.l.b16 %v8969
  %v9112 = vunpack.c.l.b16 %v8970
  %v9113 = vunpack.c.l.b16 %v8971
  %v9114 = vunpack.c.l.b16 %v8972
  %v9115 = vunpack.c.l.b16 %v8973
  %v9116 = vunpack.c.l.b16 %v8974
  %v9117 = vunpack.c.l.b16 %v8975
  %v9118 = vunpack.c.l.b16 %v8976
  %v9119 = vunpack.c.l.b16 %v8977
  %v9120 = vunpack.c.l.b16 %v8978
  %v9121 = vunpack.c.l.b16 %v8979
  %v9122 = vunpack.c.l.b16 %v8980
  %v9123 = vunpack.c.l.b16 %v8981
  %v9124 = vunpack.c.l.b16 %v8982
  %v9125 = vunpack.c.l.b16 %v8983
  %v9126 = vunpack.c.l.b16 %v8984
  %v9127 = vunpack.c.l.b16 %v8985
  %v9128 = vunpack.c.l.b16 %v8986
  %v9129 = vunpack.c.l.b16 %v8987
  %v9130 = vunpack.c.l.b16 %v8988
  %v9131 = vunpack.c.l.b16 %v8989
  %v9132 = vunpack.c.l.b16 %v8990
  %v9133 = vunpack.c.l.b16 %v8991
  %v9134 = vunpack.c.l.b16 %v8992
  %v9135 = vunpack.c.l.b16 %v8993
  %v9136 = vunpack.c.l.b16 %v8994
  %v9137 = vunpack.c.l.b16 %v8995
  %v9138 = vunpack.c.l.b16 %v8996
  %v9139 = vunpack.c.l.b16 %v8997
  %v9140 = vunpack.c.l.b16 %v8998
  %v9141 = vunpack.c.l.b16 %v8999
  %v9142 = vunpack.c.l.b16 %v9000
  %v9143 = vunpack.c.l.b16 %v9001
  %v9144 = vunpack.c.l.b16 %v9002
  %v9145 = vunpack.c.l.b16 %v9003
  %v9146 = vunpack.c.l.b16 %v9004
  %v9147 = vunpack.c.l.b16 %v9005
  %v9148 = vunpack.c.l.b16 %v9006
  %v9149 = vunpack.c.l.b16 %v9007
  %v9150 = vunpack.c.l.b16 %v9008
  %v9151 = vunpack.c.l.b16 %v9009
  %v9152 = vunpack.c.l.b16 %v9010
  %v9153 = vunpack.c.l.b16 %v9011
  %v9154 = vunpack.c.l.b16 %v9012
  %v9155 = vunpack.c.l.b16 %v9013
  %v9156 = vpack.c.b16 %v9093, %v9092
  %v9157 = vpack.c.b16 %v9095, %v9094
  %v9158 = vpack.c.b16 %v9097, %v9096
  %v9159 = vpack.c.b16 %v9099, %v9098
  %v9160 = vpack.c.b16 %v9101, %v9100
  %v9161 = vpack.c.b16 %v9103, %v9102
  %v9162 = vpack.c.b16 %v9105, %v9104
  %v9163 = vpack.c.b16 %v9107, %v9106
  %v9164 = vpack.c.b16 %v9109, %v9108
  %v9165 = vpack.c.b16 %v9111, %v9110
  %v9166 = vpack.c.b16 %v9113, %v9112
  %v9167 = vpack.c.b16 %v9115, %v9114
  %v9168 = vpack.c.b16 %v9117, %v9116
  %v9169 = vpack.c.b16 %v9119, %v9118
  %v9170 = vpack.c.b16 %v9121, %v9120
  %v9171 = vpack.c.b16 %v9123, %v9122
  %v9172 = vpack.c.b16 %v9125, %v9124
  %v9173 = vpack.c.b16 %v9127, %v9126
  %v9174 = vpack.c.b16 %v9129, %v9128
  %v9175 = vpack.c.b16 %v9131, %v9130
  %v9176 = vpack.c.b16 %v9133, %v9132
  %v9177 = vpack.c.b16 %v9135, %v9134
  %v9178 = vpack.c.b16 %v9137, %v9136
  %v9179 = vpack.c.b16 %v9139, %v9138
  %v9180 = vpack.c.b16 %v9141, %v9140
  %v9181 = vpack.c.b16 %v9143, %v9142
  %v9182 = vpack.c.b16 %v9145, %v9144
  %v9183 = vpack.c.b16 %v9147, %v9146
  %v9184 = vpack.c.b16 %v9149, %v9148
  %v9185 = vpack.c.b16 %v9151, %v9150
  %v9186 = vpack.c.b16 %v9153, %v9152
  %v9187 = vpack.c.b16 %v9155, %v9154
  %9220 = vmatpush.bf16.msra.mxu0 %v9163
  %9221 = vmatpush.bf16.msra.mxu0 %v9162
  %9222 = vmatpush.bf16.msra.mxu0 %v9161
  %9223 = vmatpush.bf16.msra.mxu0 %v9160
  %9224 = vmatpush.bf16.msra.mxu0 %v9159
  %9225 = vmatpush.bf16.msra.mxu0 %v9158
  %9226 = vmatpush.bf16.msra.mxu0 %v9157
  %9227 = vmatpush.bf16.msra.mxu0 %v9156
  %9228 = vmatmul.bf16.gmra.mxu0 %v9020
  %v9229 = vpop.f32.mrf.mxu0
  %v9230 = vadd.f32 0.0, %v9229
  %v9231 = vpop.f32.mrf.mxu0
  %9232 = vdwg.mxu0
  %9233 = vmatpush.bf16.msra.mxu0 %v9171
  %9234 = vmatpush.bf16.msra.mxu0 %v9170
  %9235 = vmatpush.bf16.msra.mxu0 %v9169
  %9236 = vmatpush.bf16.msra.mxu0 %v9168
  %9237 = vmatpush.bf16.msra.mxu0 %v9167
  %9238 = vmatpush.bf16.msra.mxu0 %v9166
  %9239 = vmatpush.bf16.msra.mxu0 %v9165
  %9240 = vmatpush.bf16.msra.mxu0 %v9164
  %9241 = vmatmul.bf16.gmra.mxu0 %v9021
  %v9242 = vpop.f32.mrf.mxu0
  %v9243 = vadd.f32 %v9230, %v9242
  %v9244 = vpop.f32.mrf.mxu0
  %9245 = vdwg.mxu0
  %9246 = vmatpush.bf16.msra.mxu0 %v9179
  %9247 = vmatpush.bf16.msra.mxu0 %v9178
  %9248 = vmatpush.bf16.msra.mxu0 %v9177
  %9249 = vmatpush.bf16.msra.mxu0 %v9176
  %9250 = vmatpush.bf16.msra.mxu0 %v9175
  %9251 = vmatpush.bf16.msra.mxu0 %v9174
  %9252 = vmatpush.bf16.msra.mxu0 %v9173
  %9253 = vmatpush.bf16.msra.mxu0 %v9172
  %9254 = vmatmul.bf16.gmra.mxu0 %v9022
  %v9255 = vpop.f32.mrf.mxu0
  %v9256 = vadd.f32 %v9243, %v9255
  %v9257 = vpop.f32.mrf.mxu0
  %9258 = vdwg.mxu0
  %9259 = vmatpush.bf16.msra.mxu0 %v9187
  %9260 = vmatpush.bf16.msra.mxu0 %v9186
  %9261 = vmatpush.bf16.msra.mxu0 %v9185
  %9262 = vmatpush.bf16.msra.mxu0 %v9184
  %9263 = vmatpush.bf16.msra.mxu0 %v9183
  %9264 = vmatpush.bf16.msra.mxu0 %v9182
  %9265 = vmatpush.bf16.msra.mxu0 %v9181
  %9266 = vmatpush.bf16.msra.mxu0 %v9180
  %9267 = vmatmul.bf16.gmra.mxu0 %v9023
  %v9268 = vpop.f32.mrf.mxu0
  %v9269 = vadd.f32 %v9256, %v9268
  %v9270 = vpop.f32.mrf.mxu0
  %9271 = vdwg.mxu0
  %v9272 = vadd.f32 %v8946, %v9269
  %v9273 = vld [vmem:[%s4213] sm:$0xff]
  %v9274 = vld [vmem:[%s4213 + $0x8] sm:$0xff]
  %s9275 = scalar_lea.vmem %s4, 1792
  %v9276 = vld [vmem:[%s9275] sm:$0xf]
  %v9277 = vld [vmem:[%s9275 + $0x4] sm:$0xf]
  %v9278 = vld [vmem:[%s9275 + $0x8] sm:$0xf]
  %v9279 = vld [vmem:[%s9275 + $0xc] sm:$0xf]
  %v9280 = vld [vmem:[%s9275 + $0x10] sm:$0xf]
  %v9281 = vld [vmem:[%s9275 + $0x14] sm:$0xf]
  %v9282 = vld [vmem:[%s9275 + $0x18] sm:$0xf]
  %v9283 = vld [vmem:[%s9275 + $0x1c] sm:$0xf]
  %v9284 = vld [vmem:[%s9275 + $0x20] sm:$0xf]
  %v9285 = vld [vmem:[%s9275 + $0x24] sm:$0xf]
  %v9286 = vld [vmem:[%s9275 + $0x28] sm:$0xf]
  %v9287 = vld [vmem:[%s9275 + $0x2c] sm:$0xf]
  %v9288 = vld [vmem:[%s9275 + $0x30] sm:$0xf]
  %v9289 = vld [vmem:[%s9275 + $0x34] sm:$0xf]
  %v9290 = vld [vmem:[%s9275 + $0x38] sm:$0xf]
  %v9291 = vld [vmem:[%s9275 + $0x3c] sm:$0xf]
  %v9292 = vld [vmem:[%s9275 + $0x40] sm:$0xf]
  %v9293 = vld [vmem:[%s9275 + $0x44] sm:$0xf]
  %v9294 = vld [vmem:[%s9275 + $0x48] sm:$0xf]
  %v9295 = vld [vmem:[%s9275 + $0x4c] sm:$0xf]
  %v9296 = vld [vmem:[%s9275 + $0x50] sm:$0xf]
  %v9297 = vld [vmem:[%s9275 + $0x54] sm:$0xf]
  %v9298 = vld [vmem:[%s9275 + $0x58] sm:$0xf]
  %v9299 = vld [vmem:[%s9275 + $0x5c] sm:$0xf]
  %v9300 = vld [vmem:[%s9275 + $0x60] sm:$0xf]
  %v9301 = vld [vmem:[%s9275 + $0x64] sm:$0xf]
  %v9302 = vld [vmem:[%s9275 + $0x68] sm:$0xf]
  %v9303 = vld [vmem:[%s9275 + $0x6c] sm:$0xf]
  %v9304 = vld [vmem:[%s9275 + $0x70] sm:$0xf]
  %v9305 = vld [vmem:[%s9275 + $0x74] sm:$0xf]
  %v9306 = vld [vmem:[%s9275 + $0x78] sm:$0xf]
  %v9307 = vld [vmem:[%s9275 + $0x7c] sm:$0xf]
  %v9308 = vld [vmem:[%s9275 + $0x80] sm:$0xf]
  %v9309 = vld [vmem:[%s9275 + $0x84] sm:$0xf]
  %v9310 = vld [vmem:[%s9275 + $0x88] sm:$0xf]
  %v9311 = vld [vmem:[%s9275 + $0x8c] sm:$0xf]
  %v9312 = vld [vmem:[%s9275 + $0x90] sm:$0xf]
  %v9313 = vld [vmem:[%s9275 + $0x94] sm:$0xf]
  %v9314 = vld [vmem:[%s9275 + $0x98] sm:$0xf]
  %v9315 = vld [vmem:[%s9275 + $0x9c] sm:$0xf]
  %v9316 = vld [vmem:[%s9275 + $0xa0] sm:$0xf]
  %v9317 = vld [vmem:[%s9275 + $0xa4] sm:$0xf]
  %v9318 = vld [vmem:[%s9275 + $0xa8] sm:$0xf]
  %v9319 = vld [vmem:[%s9275 + $0xac] sm:$0xf]
  %v9320 = vld [vmem:[%s9275 + $0xb0] sm:$0xf]
  %v9321 = vld [vmem:[%s9275 + $0xb4] sm:$0xf]
  %v9322 = vld [vmem:[%s9275 + $0xb8] sm:$0xf]
  %v9323 = vld [vmem:[%s9275 + $0xbc] sm:$0xf]
  %v9324 = vld [vmem:[%s9275 + $0xc0] sm:$0xf]
  %v9325 = vld [vmem:[%s9275 + $0xc4] sm:$0xf]
  %v9326 = vld [vmem:[%s9275 + $0xc8] sm:$0xf]
  %v9327 = vld [vmem:[%s9275 + $0xcc] sm:$0xf]
  %v9328 = vld [vmem:[%s9275 + $0xd0] sm:$0xf]
  %v9329 = vld [vmem:[%s9275 + $0xd4] sm:$0xf]
  %v9330 = vld [vmem:[%s9275 + $0xd8] sm:$0xf]
  %v9331 = vld [vmem:[%s9275 + $0xdc] sm:$0xf]
  %v9332 = vld [vmem:[%s9275 + $0xe0] sm:$0xf]
  %v9333 = vld [vmem:[%s9275 + $0xe4] sm:$0xf]
  %v9334 = vld [vmem:[%s9275 + $0xe8] sm:$0xf]
  %v9335 = vld [vmem:[%s9275 + $0xec] sm:$0xf]
  %v9336 = vld [vmem:[%s9275 + $0xf0] sm:$0xf]
  %v9337 = vld [vmem:[%s9275 + $0xf4] sm:$0xf]
  %v9338 = vld [vmem:[%s9275 + $0xf8] sm:$0xf]
  %v9339 = vld [vmem:[%s9275 + $0xfc] sm:$0xf]
  %v9342 = vunpack.c.l.b16 %v9273
  %v9343 = vunpack.c.h.b16 %v9273
  %v9344 = vunpack.c.l.b16 %v9274
  %v9345 = vunpack.c.h.b16 %v9274
  %v9346 = vpack.c.b16 %v9342, %v9342
  %v9347 = vpack.c.b16 %v9343, %v9343
  %v9348 = vpack.c.b16 %v9344, %v9344
  %v9349 = vpack.c.b16 %v9345, %v9345
  %v9418 = vunpack.c.l.b16 %v9276
  %v9419 = vunpack.c.l.b16 %v9277
  %v9420 = vunpack.c.l.b16 %v9278
  %v9421 = vunpack.c.l.b16 %v9279
  %v9422 = vunpack.c.l.b16 %v9280
  %v9423 = vunpack.c.l.b16 %v9281
  %v9424 = vunpack.c.l.b16 %v9282
  %v9425 = vunpack.c.l.b16 %v9283
  %v9426 = vunpack.c.l.b16 %v9284
  %v9427 = vunpack.c.l.b16 %v9285
  %v9428 = vunpack.c.l.b16 %v9286
  %v9429 = vunpack.c.l.b16 %v9287
  %v9430 = vunpack.c.l.b16 %v9288
  %v9431 = vunpack.c.l.b16 %v9289
  %v9432 = vunpack.c.l.b16 %v9290
  %v9433 = vunpack.c.l.b16 %v9291
  %v9434 = vunpack.c.l.b16 %v9292
  %v9435 = vunpack.c.l.b16 %v9293
  %v9436 = vunpack.c.l.b16 %v9294
  %v9437 = vunpack.c.l.b16 %v9295
  %v9438 = vunpack.c.l.b16 %v9296
  %v9439 = vunpack.c.l.b16 %v9297
  %v9440 = vunpack.c.l.b16 %v9298
  %v9441 = vunpack.c.l.b16 %v9299
  %v9442 = vunpack.c.l.b16 %v9300
  %v9443 = vunpack.c.l.b16 %v9301
  %v9444 = vunpack.c.l.b16 %v9302
  %v9445 = vunpack.c.l.b16 %v9303
  %v9446 = vunpack.c.l.b16 %v9304
  %v9447 = vunpack.c.l.b16 %v9305
  %v9448 = vunpack.c.l.b16 %v9306
  %v9449 = vunpack.c.l.b16 %v9307
  %v9450 = vunpack.c.l.b16 %v9308
  %v9451 = vunpack.c.l.b16 %v9309
  %v9452 = vunpack.c.l.b16 %v9310
  %v9453 = vunpack.c.l.b16 %v9311
  %v9454 = vunpack.c.l.b16 %v9312
  %v9455 = vunpack.c.l.b16 %v9313
  %v9456 = vunpack.c.l.b16 %v9314
  %v9457 = vunpack.c.l.b16 %v9315
  %v9458 = vunpack.c.l.b16 %v9316
  %v9459 = vunpack.c.l.b16 %v9317
  %v9460 = vunpack.c.l.b16 %v9318
  %v9461 = vunpack.c.l.b16 %v9319
  %v9462 = vunpack.c.l.b16 %v9320
  %v9463 = vunpack.c.l.b16 %v9321
  %v9464 = vunpack.c.l.b16 %v9322
  %v9465 = vunpack.c.l.b16 %v9323
  %v9466 = vunpack.c.l.b16 %v9324
  %v9467 = vunpack.c.l.b16 %v9325
  %v9468 = vunpack.c.l.b16 %v9326
  %v9469 = vunpack.c.l.b16 %v9327
  %v9470 = vunpack.c.l.b16 %v9328
  %v9471 = vunpack.c.l.b16 %v9329
  %v9472 = vunpack.c.l.b16 %v9330
  %v9473 = vunpack.c.l.b16 %v9331
  %v9474 = vunpack.c.l.b16 %v9332
  %v9475 = vunpack.c.l.b16 %v9333
  %v9476 = vunpack.c.l.b16 %v9334
  %v9477 = vunpack.c.l.b16 %v9335
  %v9478 = vunpack.c.l.b16 %v9336
  %v9479 = vunpack.c.l.b16 %v9337
  %v9480 = vunpack.c.l.b16 %v9338
  %v9481 = vunpack.c.l.b16 %v9339
  %v9482 = vpack.c.b16 %v9419, %v9418
  %v9483 = vpack.c.b16 %v9421, %v9420
  %v9484 = vpack.c.b16 %v9423, %v9422
  %v9485 = vpack.c.b16 %v9425, %v9424
  %v9486 = vpack.c.b16 %v9427, %v9426
  %v9487 = vpack.c.b16 %v9429, %v9428
  %v9488 = vpack.c.b16 %v9431, %v9430
  %v9489 = vpack.c.b16 %v9433, %v9432
  %v9490 = vpack.c.b16 %v9435, %v9434
  %v9491 = vpack.c.b16 %v9437, %v9436
  %v9492 = vpack.c.b16 %v9439, %v9438
  %v9493 = vpack.c.b16 %v9441, %v9440
  %v9494 = vpack.c.b16 %v9443, %v9442
  %v9495 = vpack.c.b16 %v9445, %v9444
  %v9496 = vpack.c.b16 %v9447, %v9446
  %v9497 = vpack.c.b16 %v9449, %v9448
  %v9498 = vpack.c.b16 %v9451, %v9450
  %v9499 = vpack.c.b16 %v9453, %v9452
  %v9500 = vpack.c.b16 %v9455, %v9454
  %v9501 = vpack.c.b16 %v9457, %v9456
  %v9502 = vpack.c.b16 %v9459, %v9458
  %v9503 = vpack.c.b16 %v9461, %v9460
  %v9504 = vpack.c.b16 %v9463, %v9462
  %v9505 = vpack.c.b16 %v9465, %v9464
  %v9506 = vpack.c.b16 %v9467, %v9466
  %v9507 = vpack.c.b16 %v9469, %v9468
  %v9508 = vpack.c.b16 %v9471, %v9470
  %v9509 = vpack.c.b16 %v9473, %v9472
  %v9510 = vpack.c.b16 %v9475, %v9474
  %v9511 = vpack.c.b16 %v9477, %v9476
  %v9512 = vpack.c.b16 %v9479, %v9478
  %v9513 = vpack.c.b16 %v9481, %v9480
  %9546 = vmatpush.bf16.msra.mxu0 %v9489
  %9547 = vmatpush.bf16.msra.mxu0 %v9488
  %9548 = vmatpush.bf16.msra.mxu0 %v9487
  %9549 = vmatpush.bf16.msra.mxu0 %v9486
  %9550 = vmatpush.bf16.msra.mxu0 %v9485
  %9551 = vmatpush.bf16.msra.mxu0 %v9484
  %9552 = vmatpush.bf16.msra.mxu0 %v9483
  %9553 = vmatpush.bf16.msra.mxu0 %v9482
  %9554 = vmatmul.bf16.gmra.mxu0 %v9346
  %v9555 = vpop.f32.mrf.mxu0
  %v9556 = vadd.f32 0.0, %v9555
  %v9557 = vpop.f32.mrf.mxu0
  %9558 = vdwg.mxu0
  %9559 = vmatpush.bf16.msra.mxu0 %v9497
  %9560 = vmatpush.bf16.msra.mxu0 %v9496
  %9561 = vmatpush.bf16.msra.mxu0 %v9495
  %9562 = vmatpush.bf16.msra.mxu0 %v9494
  %9563 = vmatpush.bf16.msra.mxu0 %v9493
  %9564 = vmatpush.bf16.msra.mxu0 %v9492
  %9565 = vmatpush.bf16.msra.mxu0 %v9491
  %9566 = vmatpush.bf16.msra.mxu0 %v9490
  %9567 = vmatmul.bf16.gmra.mxu0 %v9347
  %v9568 = vpop.f32.mrf.mxu0
  %v9569 = vadd.f32 %v9556, %v9568
  %v9570 = vpop.f32.mrf.mxu0
  %9571 = vdwg.mxu0
  %9572 = vmatpush.bf16.msra.mxu0 %v9505
  %9573 = vmatpush.bf16.msra.mxu0 %v9504
  %9574 = vmatpush.bf16.msra.mxu0 %v9503
  %9575 = vmatpush.bf16.msra.mxu0 %v9502
  %9576 = vmatpush.bf16.msra.mxu0 %v9501
  %9577 = vmatpush.bf16.msra.mxu0 %v9500
  %9578 = vmatpush.bf16.msra.mxu0 %v9499
  %9579 = vmatpush.bf16.msra.mxu0 %v9498
  %9580 = vmatmul.bf16.gmra.mxu0 %v9348
  %v9581 = vpop.f32.mrf.mxu0
  %v9582 = vadd.f32 %v9569, %v9581
  %v9583 = vpop.f32.mrf.mxu0
  %9584 = vdwg.mxu0
  %9585 = vmatpush.bf16.msra.mxu0 %v9513
  %9586 = vmatpush.bf16.msra.mxu0 %v9512
  %9587 = vmatpush.bf16.msra.mxu0 %v9511
  %9588 = vmatpush.bf16.msra.mxu0 %v9510
  %9589 = vmatpush.bf16.msra.mxu0 %v9509
  %9590 = vmatpush.bf16.msra.mxu0 %v9508
  %9591 = vmatpush.bf16.msra.mxu0 %v9507
  %9592 = vmatpush.bf16.msra.mxu0 %v9506
  %9593 = vmatmul.bf16.gmra.mxu0 %v9349
  %v9594 = vpop.f32.mrf.mxu0
  %v9595 = vadd.f32 %v9582, %v9594
  %v9596 = vpop.f32.mrf.mxu0
  %9597 = vdwg.mxu0
  %v9598 = vadd.f32 %v9272, %v9595
  %v9599 = vld [vmem:[%s4676] sm:$0xff]
  %v9600 = vld [vmem:[%s4676 + $0x8] sm:$0xff]
  %s9601 = scalar_lea.vmem %s4, 2048
  %v9602 = vld [vmem:[%s9601] sm:$0xf]
  %v9603 = vld [vmem:[%s9601 + $0x4] sm:$0xf]
  %v9604 = vld [vmem:[%s9601 + $0x8] sm:$0xf]
  %v9605 = vld [vmem:[%s9601 + $0xc] sm:$0xf]
  %v9606 = vld [vmem:[%s9601 + $0x10] sm:$0xf]
  %v9607 = vld [vmem:[%s9601 + $0x14] sm:$0xf]
  %v9608 = vld [vmem:[%s9601 + $0x18] sm:$0xf]
  %v9609 = vld [vmem:[%s9601 + $0x1c] sm:$0xf]
  %v9610 = vld [vmem:[%s9601 + $0x20] sm:$0xf]
  %v9611 = vld [vmem:[%s9601 + $0x24] sm:$0xf]
  %v9612 = vld [vmem:[%s9601 + $0x28] sm:$0xf]
  %v9613 = vld [vmem:[%s9601 + $0x2c] sm:$0xf]
  %v9614 = vld [vmem:[%s9601 + $0x30] sm:$0xf]
  %v9615 = vld [vmem:[%s9601 + $0x34] sm:$0xf]
  %v9616 = vld [vmem:[%s9601 + $0x38] sm:$0xf]
  %v9617 = vld [vmem:[%s9601 + $0x3c] sm:$0xf]
  %v9618 = vld [vmem:[%s9601 + $0x40] sm:$0xf]
  %v9619 = vld [vmem:[%s9601 + $0x44] sm:$0xf]
  %v9620 = vld [vmem:[%s9601 + $0x48] sm:$0xf]
  %v9621 = vld [vmem:[%s9601 + $0x4c] sm:$0xf]
  %v9622 = vld [vmem:[%s9601 + $0x50] sm:$0xf]
  %v9623 = vld [vmem:[%s9601 + $0x54] sm:$0xf]
  %v9624 = vld [vmem:[%s9601 + $0x58] sm:$0xf]
  %v9625 = vld [vmem:[%s9601 + $0x5c] sm:$0xf]
  %v9626 = vld [vmem:[%s9601 + $0x60] sm:$0xf]
  %v9627 = vld [vmem:[%s9601 + $0x64] sm:$0xf]
  %v9628 = vld [vmem:[%s9601 + $0x68] sm:$0xf]
  %v9629 = vld [vmem:[%s9601 + $0x6c] sm:$0xf]
  %v9630 = vld [vmem:[%s9601 + $0x70] sm:$0xf]
  %v9631 = vld [vmem:[%s9601 + $0x74] sm:$0xf]
  %v9632 = vld [vmem:[%s9601 + $0x78] sm:$0xf]
  %v9633 = vld [vmem:[%s9601 + $0x7c] sm:$0xf]
  %v9634 = vld [vmem:[%s9601 + $0x80] sm:$0xf]
  %v9635 = vld [vmem:[%s9601 + $0x84] sm:$0xf]
  %v9636 = vld [vmem:[%s9601 + $0x88] sm:$0xf]
  %v9637 = vld [vmem:[%s9601 + $0x8c] sm:$0xf]
  %v9638 = vld [vmem:[%s9601 + $0x90] sm:$0xf]
  %v9639 = vld [vmem:[%s9601 + $0x94] sm:$0xf]
  %v9640 = vld [vmem:[%s9601 + $0x98] sm:$0xf]
  %v9641 = vld [vmem:[%s9601 + $0x9c] sm:$0xf]
  %v9642 = vld [vmem:[%s9601 + $0xa0] sm:$0xf]
  %v9643 = vld [vmem:[%s9601 + $0xa4] sm:$0xf]
  %v9644 = vld [vmem:[%s9601 + $0xa8] sm:$0xf]
  %v9645 = vld [vmem:[%s9601 + $0xac] sm:$0xf]
  %v9646 = vld [vmem:[%s9601 + $0xb0] sm:$0xf]
  %v9647 = vld [vmem:[%s9601 + $0xb4] sm:$0xf]
  %v9648 = vld [vmem:[%s9601 + $0xb8] sm:$0xf]
  %v9649 = vld [vmem:[%s9601 + $0xbc] sm:$0xf]
  %v9650 = vld [vmem:[%s9601 + $0xc0] sm:$0xf]
  %v9651 = vld [vmem:[%s9601 + $0xc4] sm:$0xf]
  %v9652 = vld [vmem:[%s9601 + $0xc8] sm:$0xf]
  %v9653 = vld [vmem:[%s9601 + $0xcc] sm:$0xf]
  %v9654 = vld [vmem:[%s9601 + $0xd0] sm:$0xf]
  %v9655 = vld [vmem:[%s9601 + $0xd4] sm:$0xf]
  %v9656 = vld [vmem:[%s9601 + $0xd8] sm:$0xf]
  %v9657 = vld [vmem:[%s9601 + $0xdc] sm:$0xf]
  %v9658 = vld [vmem:[%s9601 + $0xe0] sm:$0xf]
  %v9659 = vld [vmem:[%s9601 + $0xe4] sm:$0xf]
  %v9660 = vld [vmem:[%s9601 + $0xe8] sm:$0xf]
  %v9661 = vld [vmem:[%s9601 + $0xec] sm:$0xf]
  %v9662 = vld [vmem:[%s9601 + $0xf0] sm:$0xf]
  %v9663 = vld [vmem:[%s9601 + $0xf4] sm:$0xf]
  %v9664 = vld [vmem:[%s9601 + $0xf8] sm:$0xf]
  %v9665 = vld [vmem:[%s9601 + $0xfc] sm:$0xf]
  %v9668 = vunpack.c.l.b16 %v9599
  %v9669 = vunpack.c.h.b16 %v9599
  %v9670 = vunpack.c.l.b16 %v9600
  %v9671 = vunpack.c.h.b16 %v9600
  %v9672 = vpack.c.b16 %v9668, %v9668
  %v9673 = vpack.c.b16 %v9669, %v9669
  %v9674 = vpack.c.b16 %v9670, %v9670
  %v9675 = vpack.c.b16 %v9671, %v9671
  %v9744 = vunpack.c.l.b16 %v9602
  %v9745 = vunpack.c.l.b16 %v9603
  %v9746 = vunpack.c.l.b16 %v9604
  %v9747 = vunpack.c.l.b16 %v9605
  %v9748 = vunpack.c.l.b16 %v9606
  %v9749 = vunpack.c.l.b16 %v9607
  %v9750 = vunpack.c.l.b16 %v9608
  %v9751 = vunpack.c.l.b16 %v9609
  %v9752 = vunpack.c.l.b16 %v9610
  %v9753 = vunpack.c.l.b16 %v9611
  %v9754 = vunpack.c.l.b16 %v9612
  %v9755 = vunpack.c.l.b16 %v9613
  %v9756 = vunpack.c.l.b16 %v9614
  %v9757 = vunpack.c.l.b16 %v9615
  %v9758 = vunpack.c.l.b16 %v9616
  %v9759 = vunpack.c.l.b16 %v9617
  %v9760 = vunpack.c.l.b16 %v9618
  %v9761 = vunpack.c.l.b16 %v9619
  %v9762 = vunpack.c.l.b16 %v9620
  %v9763 = vunpack.c.l.b16 %v9621
  %v9764 = vunpack.c.l.b16 %v9622
  %v9765 = vunpack.c.l.b16 %v9623
  %v9766 = vunpack.c.l.b16 %v9624
  %v9767 = vunpack.c.l.b16 %v9625
  %v9768 = vunpack.c.l.b16 %v9626
  %v9769 = vunpack.c.l.b16 %v9627
  %v9770 = vunpack.c.l.b16 %v9628
  %v9771 = vunpack.c.l.b16 %v9629
  %v9772 = vunpack.c.l.b16 %v9630
  %v9773 = vunpack.c.l.b16 %v9631
  %v9774 = vunpack.c.l.b16 %v9632
  %v9775 = vunpack.c.l.b16 %v9633
  %v9776 = vunpack.c.l.b16 %v9634
  %v9777 = vunpack.c.l.b16 %v9635
  %v9778 = vunpack.c.l.b16 %v9636
  %v9779 = vunpack.c.l.b16 %v9637
  %v9780 = vunpack.c.l.b16 %v9638
  %v9781 = vunpack.c.l.b16 %v9639
  %v9782 = vunpack.c.l.b16 %v9640
  %v9783 = vunpack.c.l.b16 %v9641
  %v9784 = vunpack.c.l.b16 %v9642
  %v9785 = vunpack.c.l.b16 %v9643
  %v9786 = vunpack.c.l.b16 %v9644
  %v9787 = vunpack.c.l.b16 %v9645
  %v9788 = vunpack.c.l.b16 %v9646
  %v9789 = vunpack.c.l.b16 %v9647
  %v9790 = vunpack.c.l.b16 %v9648
  %v9791 = vunpack.c.l.b16 %v9649
  %v9792 = vunpack.c.l.b16 %v9650
  %v9793 = vunpack.c.l.b16 %v9651
  %v9794 = vunpack.c.l.b16 %v9652
  %v9795 = vunpack.c.l.b16 %v9653
  %v9796 = vunpack.c.l.b16 %v9654
  %v9797 = vunpack.c.l.b16 %v9655
  %v9798 = vunpack.c.l.b16 %v9656
  %v9799 = vunpack.c.l.b16 %v9657
  %v9800 = vunpack.c.l.b16 %v9658
  %v9801 = vunpack.c.l.b16 %v9659
  %v9802 = vunpack.c.l.b16 %v9660
  %v9803 = vunpack.c.l.b16 %v9661
  %v9804 = vunpack.c.l.b16 %v9662
  %v9805 = vunpack.c.l.b16 %v9663
  %v9806 = vunpack.c.l.b16 %v9664
  %v9807 = vunpack.c.l.b16 %v9665
  %v9808 = vpack.c.b16 %v9745, %v9744
  %v9809 = vpack.c.b16 %v9747, %v9746
  %v9810 = vpack.c.b16 %v9749, %v9748
  %v9811 = vpack.c.b16 %v9751, %v9750
  %v9812 = vpack.c.b16 %v9753, %v9752
  %v9813 = vpack.c.b16 %v9755, %v9754
  %v9814 = vpack.c.b16 %v9757, %v9756
  %v9815 = vpack.c.b16 %v9759, %v9758
  %v9816 = vpack.c.b16 %v9761, %v9760
  %v9817 = vpack.c.b16 %v9763, %v9762
  %v9818 = vpack.c.b16 %v9765, %v9764
  %v9819 = vpack.c.b16 %v9767, %v9766
  %v9820 = vpack.c.b16 %v9769, %v9768
  %v9821 = vpack.c.b16 %v9771, %v9770
  %v9822 = vpack.c.b16 %v9773, %v9772
  %v9823 = vpack.c.b16 %v9775, %v9774
  %v9824 = vpack.c.b16 %v9777, %v9776
  %v9825 = vpack.c.b16 %v9779, %v9778
  %v9826 = vpack.c.b16 %v9781, %v9780
  %v9827 = vpack.c.b16 %v9783, %v9782
  %v9828 = vpack.c.b16 %v9785, %v9784
  %v9829 = vpack.c.b16 %v9787, %v9786
  %v9830 = vpack.c.b16 %v9789, %v9788
  %v9831 = vpack.c.b16 %v9791, %v9790
  %v9832 = vpack.c.b16 %v9793, %v9792
  %v9833 = vpack.c.b16 %v9795, %v9794
  %v9834 = vpack.c.b16 %v9797, %v9796
  %v9835 = vpack.c.b16 %v9799, %v9798
  %v9836 = vpack.c.b16 %v9801, %v9800
  %v9837 = vpack.c.b16 %v9803, %v9802
  %v9838 = vpack.c.b16 %v9805, %v9804
  %v9839 = vpack.c.b16 %v9807, %v9806
  %9872 = vmatpush.bf16.msra.mxu0 %v9815
  %9873 = vmatpush.bf16.msra.mxu0 %v9814
  %9874 = vmatpush.bf16.msra.mxu0 %v9813
  %9875 = vmatpush.bf16.msra.mxu0 %v9812
  %9876 = vmatpush.bf16.msra.mxu0 %v9811
  %9877 = vmatpush.bf16.msra.mxu0 %v9810
  %9878 = vmatpush.bf16.msra.mxu0 %v9809
  %9879 = vmatpush.bf16.msra.mxu0 %v9808
  %9880 = vmatmul.bf16.gmra.mxu0 %v9672
  %v9881 = vpop.f32.mrf.mxu0
  %v9882 = vadd.f32 0.0, %v9881
  %v9883 = vpop.f32.mrf.mxu0
  %9884 = vdwg.mxu0
  %9885 = vmatpush.bf16.msra.mxu0 %v9823
  %9886 = vmatpush.bf16.msra.mxu0 %v9822
  %9887 = vmatpush.bf16.msra.mxu0 %v9821
  %9888 = vmatpush.bf16.msra.mxu0 %v9820
  %9889 = vmatpush.bf16.msra.mxu0 %v9819
  %9890 = vmatpush.bf16.msra.mxu0 %v9818
  %9891 = vmatpush.bf16.msra.mxu0 %v9817
  %9892 = vmatpush.bf16.msra.mxu0 %v9816
  %9893 = vmatmul.bf16.gmra.mxu0 %v9673
  %v9894 = vpop.f32.mrf.mxu0
  %v9895 = vadd.f32 %v9882, %v9894
  %v9896 = vpop.f32.mrf.mxu0
  %9897 = vdwg.mxu0
  %9898 = vmatpush.bf16.msra.mxu0 %v9831
  %9899 = vmatpush.bf16.msra.mxu0 %v9830
  %9900 = vmatpush.bf16.msra.mxu0 %v9829
  %9901 = vmatpush.bf16.msra.mxu0 %v9828
  %9902 = vmatpush.bf16.msra.mxu0 %v9827
  %9903 = vmatpush.bf16.msra.mxu0 %v9826
  %9904 = vmatpush.bf16.msra.mxu0 %v9825
  %9905 = vmatpush.bf16.msra.mxu0 %v9824
  %9906 = vmatmul.bf16.gmra.mxu0 %v9674
  %v9907 = vpop.f32.mrf.mxu0
  %v9908 = vadd.f32 %v9895, %v9907
  %v9909 = vpop.f32.mrf.mxu0
  %9910 = vdwg.mxu0
  %9911 = vmatpush.bf16.msra.mxu0 %v9839
  %9912 = vmatpush.bf16.msra.mxu0 %v9838
  %9913 = vmatpush.bf16.msra.mxu0 %v9837
  %9914 = vmatpush.bf16.msra.mxu0 %v9836
  %9915 = vmatpush.bf16.msra.mxu0 %v9835
  %9916 = vmatpush.bf16.msra.mxu0 %v9834
  %9917 = vmatpush.bf16.msra.mxu0 %v9833
  %9918 = vmatpush.bf16.msra.mxu0 %v9832
  %9919 = vmatmul.bf16.gmra.mxu0 %v9675
  %v9920 = vpop.f32.mrf.mxu0
  %v9921 = vadd.f32 %v9908, %v9920
  %v9922 = vpop.f32.mrf.mxu0
  %9923 = vdwg.mxu0
  %v9924 = vadd.f32 %v9598, %v9921
  %v9925 = vld [vmem:[%s5139] sm:$0xff]
  %v9926 = vld [vmem:[%s5139 + $0x8] sm:$0xff]
  %s9927 = scalar_lea.vmem %s4, 2304
  %v9928 = vld [vmem:[%s9927] sm:$0xf]
  %v9929 = vld [vmem:[%s9927 + $0x4] sm:$0xf]
  %v9930 = vld [vmem:[%s9927 + $0x8] sm:$0xf]
  %v9931 = vld [vmem:[%s9927 + $0xc] sm:$0xf]
  %v9932 = vld [vmem:[%s9927 + $0x10] sm:$0xf]
  %v9933 = vld [vmem:[%s9927 + $0x14] sm:$0xf]
  %v9934 = vld [vmem:[%s9927 + $0x18] sm:$0xf]
  %v9935 = vld [vmem:[%s9927 + $0x1c] sm:$0xf]
  %v9936 = vld [vmem:[%s9927 + $0x20] sm:$0xf]
  %v9937 = vld [vmem:[%s9927 + $0x24] sm:$0xf]
  %v9938 = vld [vmem:[%s9927 + $0x28] sm:$0xf]
  %v9939 = vld [vmem:[%s9927 + $0x2c] sm:$0xf]
  %v9940 = vld [vmem:[%s9927 + $0x30] sm:$0xf]
  %v9941 = vld [vmem:[%s9927 + $0x34] sm:$0xf]
  %v9942 = vld [vmem:[%s9927 + $0x38] sm:$0xf]
  %v9943 = vld [vmem:[%s9927 + $0x3c] sm:$0xf]
  %v9944 = vld [vmem:[%s9927 + $0x40] sm:$0xf]
  %v9945 = vld [vmem:[%s9927 + $0x44] sm:$0xf]
  %v9946 = vld [vmem:[%s9927 + $0x48] sm:$0xf]
  %v9947 = vld [vmem:[%s9927 + $0x4c] sm:$0xf]
  %v9948 = vld [vmem:[%s9927 + $0x50] sm:$0xf]
  %v9949 = vld [vmem:[%s9927 + $0x54] sm:$0xf]
  %v9950 = vld [vmem:[%s9927 + $0x58] sm:$0xf]
  %v9951 = vld [vmem:[%s9927 + $0x5c] sm:$0xf]
  %v9952 = vld [vmem:[%s9927 + $0x60] sm:$0xf]
  %v9953 = vld [vmem:[%s9927 + $0x64] sm:$0xf]
  %v9954 = vld [vmem:[%s9927 + $0x68] sm:$0xf]
  %v9955 = vld [vmem:[%s9927 + $0x6c] sm:$0xf]
  %v9956 = vld [vmem:[%s9927 + $0x70] sm:$0xf]
  %v9957 = vld [vmem:[%s9927 + $0x74] sm:$0xf]
  %v9958 = vld [vmem:[%s9927 + $0x78] sm:$0xf]
  %v9959 = vld [vmem:[%s9927 + $0x7c] sm:$0xf]
  %v9960 = vld [vmem:[%s9927 + $0x80] sm:$0xf]
  %v9961 = vld [vmem:[%s9927 + $0x84] sm:$0xf]
  %v9962 = vld [vmem:[%s9927 + $0x88] sm:$0xf]
  %v9963 = vld [vmem:[%s9927 + $0x8c] sm:$0xf]
  %v9964 = vld [vmem:[%s9927 + $0x90] sm:$0xf]
  %v9965 = vld [vmem:[%s9927 + $0x94] sm:$0xf]
  %v9966 = vld [vmem:[%s9927 + $0x98] sm:$0xf]
  %v9967 = vld [vmem:[%s9927 + $0x9c] sm:$0xf]
  %v9968 = vld [vmem:[%s9927 + $0xa0] sm:$0xf]
  %v9969 = vld [vmem:[%s9927 + $0xa4] sm:$0xf]
  %v9970 = vld [vmem:[%s9927 + $0xa8] sm:$0xf]
  %v9971 = vld [vmem:[%s9927 + $0xac] sm:$0xf]
  %v9972 = vld [vmem:[%s9927 + $0xb0] sm:$0xf]
  %v9973 = vld [vmem:[%s9927 + $0xb4] sm:$0xf]
  %v9974 = vld [vmem:[%s9927 + $0xb8] sm:$0xf]
  %v9975 = vld [vmem:[%s9927 + $0xbc] sm:$0xf]
  %v9976 = vld [vmem:[%s9927 + $0xc0] sm:$0xf]
  %v9977 = vld [vmem:[%s9927 + $0xc4] sm:$0xf]
  %v9978 = vld [vmem:[%s9927 + $0xc8] sm:$0xf]
  %v9979 = vld [vmem:[%s9927 + $0xcc] sm:$0xf]
  %v9980 = vld [vmem:[%s9927 + $0xd0] sm:$0xf]
  %v9981 = vld [vmem:[%s9927 + $0xd4] sm:$0xf]
  %v9982 = vld [vmem:[%s9927 + $0xd8] sm:$0xf]
  %v9983 = vld [vmem:[%s9927 + $0xdc] sm:$0xf]
  %v9984 = vld [vmem:[%s9927 + $0xe0] sm:$0xf]
  %v9985 = vld [vmem:[%s9927 + $0xe4] sm:$0xf]
  %v9986 = vld [vmem:[%s9927 + $0xe8] sm:$0xf]
  %v9987 = vld [vmem:[%s9927 + $0xec] sm:$0xf]
  %v9988 = vld [vmem:[%s9927 + $0xf0] sm:$0xf]
  %v9989 = vld [vmem:[%s9927 + $0xf4] sm:$0xf]
  %v9990 = vld [vmem:[%s9927 + $0xf8] sm:$0xf]
  %v9991 = vld [vmem:[%s9927 + $0xfc] sm:$0xf]
  %v9994 = vunpack.c.l.b16 %v9925
  %v9995 = vunpack.c.h.b16 %v9925
  %v9996 = vunpack.c.l.b16 %v9926
  %v9997 = vunpack.c.h.b16 %v9926
  %v9998 = vpack.c.b16 %v9994, %v9994
  %v9999 = vpack.c.b16 %v9995, %v9995
  %v10000 = vpack.c.b16 %v9996, %v9996
  %v10001 = vpack.c.b16 %v9997, %v9997
  %v10070 = vunpack.c.l.b16 %v9928
  %v10071 = vunpack.c.l.b16 %v9929
  %v10072 = vunpack.c.l.b16 %v9930
  %v10073 = vunpack.c.l.b16 %v9931
  %v10074 = vunpack.c.l.b16 %v9932
  %v10075 = vunpack.c.l.b16 %v9933
  %v10076 = vunpack.c.l.b16 %v9934
  %v10077 = vunpack.c.l.b16 %v9935
  %v10078 = vunpack.c.l.b16 %v9936
  %v10079 = vunpack.c.l.b16 %v9937
  %v10080 = vunpack.c.l.b16 %v9938
  %v10081 = vunpack.c.l.b16 %v9939
  %v10082 = vunpack.c.l.b16 %v9940
  %v10083 = vunpack.c.l.b16 %v9941
  %v10084 = vunpack.c.l.b16 %v9942
  %v10085 = vunpack.c.l.b16 %v9943
  %v10086 = vunpack.c.l.b16 %v9944
  %v10087 = vunpack.c.l.b16 %v9945
  %v10088 = vunpack.c.l.b16 %v9946
  %v10089 = vunpack.c.l.b16 %v9947
  %v10090 = vunpack.c.l.b16 %v9948
  %v10091 = vunpack.c.l.b16 %v9949
  %v10092 = vunpack.c.l.b16 %v9950
  %v10093 = vunpack.c.l.b16 %v9951
  %v10094 = vunpack.c.l.b16 %v9952
  %v10095 = vunpack.c.l.b16 %v9953
  %v10096 = vunpack.c.l.b16 %v9954
  %v10097 = vunpack.c.l.b16 %v9955
  %v10098 = vunpack.c.l.b16 %v9956
  %v10099 = vunpack.c.l.b16 %v9957
  %v10100 = vunpack.c.l.b16 %v9958
  %v10101 = vunpack.c.l.b16 %v9959
  %v10102 = vunpack.c.l.b16 %v9960
  %v10103 = vunpack.c.l.b16 %v9961
  %v10104 = vunpack.c.l.b16 %v9962
  %v10105 = vunpack.c.l.b16 %v9963
  %v10106 = vunpack.c.l.b16 %v9964
  %v10107 = vunpack.c.l.b16 %v9965
  %v10108 = vunpack.c.l.b16 %v9966
  %v10109 = vunpack.c.l.b16 %v9967
  %v10110 = vunpack.c.l.b16 %v9968
  %v10111 = vunpack.c.l.b16 %v9969
  %v10112 = vunpack.c.l.b16 %v9970
  %v10113 = vunpack.c.l.b16 %v9971
  %v10114 = vunpack.c.l.b16 %v9972
  %v10115 = vunpack.c.l.b16 %v9973
  %v10116 = vunpack.c.l.b16 %v9974
  %v10117 = vunpack.c.l.b16 %v9975
  %v10118 = vunpack.c.l.b16 %v9976
  %v10119 = vunpack.c.l.b16 %v9977
  %v10120 = vunpack.c.l.b16 %v9978
  %v10121 = vunpack.c.l.b16 %v9979
  %v10122 = vunpack.c.l.b16 %v9980
  %v10123 = vunpack.c.l.b16 %v9981
  %v10124 = vunpack.c.l.b16 %v9982
  %v10125 = vunpack.c.l.b16 %v9983
  %v10126 = vunpack.c.l.b16 %v9984
  %v10127 = vunpack.c.l.b16 %v9985
  %v10128 = vunpack.c.l.b16 %v9986
  %v10129 = vunpack.c.l.b16 %v9987
  %v10130 = vunpack.c.l.b16 %v9988
  %v10131 = vunpack.c.l.b16 %v9989
  %v10132 = vunpack.c.l.b16 %v9990
  %v10133 = vunpack.c.l.b16 %v9991
  %v10134 = vpack.c.b16 %v10071, %v10070
  %v10135 = vpack.c.b16 %v10073, %v10072
  %v10136 = vpack.c.b16 %v10075, %v10074
  %v10137 = vpack.c.b16 %v10077, %v10076
  %v10138 = vpack.c.b16 %v10079, %v10078
  %v10139 = vpack.c.b16 %v10081, %v10080
  %v10140 = vpack.c.b16 %v10083, %v10082
  %v10141 = vpack.c.b16 %v10085, %v10084
  %v10142 = vpack.c.b16 %v10087, %v10086
  %v10143 = vpack.c.b16 %v10089, %v10088
  %v10144 = vpack.c.b16 %v10091, %v10090
  %v10145 = vpack.c.b16 %v10093, %v10092
  %v10146 = vpack.c.b16 %v10095, %v10094
  %v10147 = vpack.c.b16 %v10097, %v10096
  %v10148 = vpack.c.b16 %v10099, %v10098
  %v10149 = vpack.c.b16 %v10101, %v10100
  %v10150 = vpack.c.b16 %v10103, %v10102
  %v10151 = vpack.c.b16 %v10105, %v10104
  %v10152 = vpack.c.b16 %v10107, %v10106
  %v10153 = vpack.c.b16 %v10109, %v10108
  %v10154 = vpack.c.b16 %v10111, %v10110
  %v10155 = vpack.c.b16 %v10113, %v10112
  %v10156 = vpack.c.b16 %v10115, %v10114
  %v10157 = vpack.c.b16 %v10117, %v10116
  %v10158 = vpack.c.b16 %v10119, %v10118
  %v10159 = vpack.c.b16 %v10121, %v10120
  %v10160 = vpack.c.b16 %v10123, %v10122
  %v10161 = vpack.c.b16 %v10125, %v10124
  %v10162 = vpack.c.b16 %v10127, %v10126
  %v10163 = vpack.c.b16 %v10129, %v10128
  %v10164 = vpack.c.b16 %v10131, %v10130
  %v10165 = vpack.c.b16 %v10133, %v10132
  %10198 = vmatpush.bf16.msra.mxu0 %v10141
  %10199 = vmatpush.bf16.msra.mxu0 %v10140
  %10200 = vmatpush.bf16.msra.mxu0 %v10139
  %10201 = vmatpush.bf16.msra.mxu0 %v10138
  %10202 = vmatpush.bf16.msra.mxu0 %v10137
  %10203 = vmatpush.bf16.msra.mxu0 %v10136
  %10204 = vmatpush.bf16.msra.mxu0 %v10135
  %10205 = vmatpush.bf16.msra.mxu0 %v10134
  %10206 = vmatmul.bf16.gmra.mxu0 %v9998
  %v10207 = vpop.f32.mrf.mxu0
  %v10208 = vadd.f32 0.0, %v10207
  %v10209 = vpop.f32.mrf.mxu0
  %10210 = vdwg.mxu0
  %10211 = vmatpush.bf16.msra.mxu0 %v10149
  %10212 = vmatpush.bf16.msra.mxu0 %v10148
  %10213 = vmatpush.bf16.msra.mxu0 %v10147
  %10214 = vmatpush.bf16.msra.mxu0 %v10146
  %10215 = vmatpush.bf16.msra.mxu0 %v10145
  %10216 = vmatpush.bf16.msra.mxu0 %v10144
  %10217 = vmatpush.bf16.msra.mxu0 %v10143
  %10218 = vmatpush.bf16.msra.mxu0 %v10142
  %10219 = vmatmul.bf16.gmra.mxu0 %v9999
  %v10220 = vpop.f32.mrf.mxu0
  %v10221 = vadd.f32 %v10208, %v10220
  %v10222 = vpop.f32.mrf.mxu0
  %10223 = vdwg.mxu0
  %10224 = vmatpush.bf16.msra.mxu0 %v10157
  %10225 = vmatpush.bf16.msra.mxu0 %v10156
  %10226 = vmatpush.bf16.msra.mxu0 %v10155
  %10227 = vmatpush.bf16.msra.mxu0 %v10154
  %10228 = vmatpush.bf16.msra.mxu0 %v10153
  %10229 = vmatpush.bf16.msra.mxu0 %v10152
  %10230 = vmatpush.bf16.msra.mxu0 %v10151
  %10231 = vmatpush.bf16.msra.mxu0 %v10150
  %10232 = vmatmul.bf16.gmra.mxu0 %v10000
  %v10233 = vpop.f32.mrf.mxu0
  %v10234 = vadd.f32 %v10221, %v10233
  %v10235 = vpop.f32.mrf.mxu0
  %10236 = vdwg.mxu0
  %10237 = vmatpush.bf16.msra.mxu0 %v10165
  %10238 = vmatpush.bf16.msra.mxu0 %v10164
  %10239 = vmatpush.bf16.msra.mxu0 %v10163
  %10240 = vmatpush.bf16.msra.mxu0 %v10162
  %10241 = vmatpush.bf16.msra.mxu0 %v10161
  %10242 = vmatpush.bf16.msra.mxu0 %v10160
  %10243 = vmatpush.bf16.msra.mxu0 %v10159
  %10244 = vmatpush.bf16.msra.mxu0 %v10158
  %10245 = vmatmul.bf16.gmra.mxu0 %v10001
  %v10246 = vpop.f32.mrf.mxu0
  %v10247 = vadd.f32 %v10234, %v10246
  %v10248 = vpop.f32.mrf.mxu0
  %10249 = vdwg.mxu0
  %v10250 = vadd.f32 %v9924, %v10247
  %v10251 = vld [vmem:[%s5602] sm:$0xff]
  %v10252 = vld [vmem:[%s5602 + $0x8] sm:$0xff]
  %s10253 = scalar_lea.vmem %s4, 2560
  %v10254 = vld [vmem:[%s10253] sm:$0xf]
  %v10255 = vld [vmem:[%s10253 + $0x4] sm:$0xf]
  %v10256 = vld [vmem:[%s10253 + $0x8] sm:$0xf]
  %v10257 = vld [vmem:[%s10253 + $0xc] sm:$0xf]
  %v10258 = vld [vmem:[%s10253 + $0x10] sm:$0xf]
  %v10259 = vld [vmem:[%s10253 + $0x14] sm:$0xf]
  %v10260 = vld [vmem:[%s10253 + $0x18] sm:$0xf]
  %v10261 = vld [vmem:[%s10253 + $0x1c] sm:$0xf]
  %v10262 = vld [vmem:[%s10253 + $0x20] sm:$0xf]
  %v10263 = vld [vmem:[%s10253 + $0x24] sm:$0xf]
  %v10264 = vld [vmem:[%s10253 + $0x28] sm:$0xf]
  %v10265 = vld [vmem:[%s10253 + $0x2c] sm:$0xf]
  %v10266 = vld [vmem:[%s10253 + $0x30] sm:$0xf]
  %v10267 = vld [vmem:[%s10253 + $0x34] sm:$0xf]
  %v10268 = vld [vmem:[%s10253 + $0x38] sm:$0xf]
  %v10269 = vld [vmem:[%s10253 + $0x3c] sm:$0xf]
  %v10270 = vld [vmem:[%s10253 + $0x40] sm:$0xf]
  %v10271 = vld [vmem:[%s10253 + $0x44] sm:$0xf]
  %v10272 = vld [vmem:[%s10253 + $0x48] sm:$0xf]
  %v10273 = vld [vmem:[%s10253 + $0x4c] sm:$0xf]
  %v10274 = vld [vmem:[%s10253 + $0x50] sm:$0xf]
  %v10275 = vld [vmem:[%s10253 + $0x54] sm:$0xf]
  %v10276 = vld [vmem:[%s10253 + $0x58] sm:$0xf]
  %v10277 = vld [vmem:[%s10253 + $0x5c] sm:$0xf]
  %v10278 = vld [vmem:[%s10253 + $0x60] sm:$0xf]
  %v10279 = vld [vmem:[%s10253 + $0x64] sm:$0xf]
  %v10280 = vld [vmem:[%s10253 + $0x68] sm:$0xf]
  %v10281 = vld [vmem:[%s10253 + $0x6c] sm:$0xf]
  %v10282 = vld [vmem:[%s10253 + $0x70] sm:$0xf]
  %v10283 = vld [vmem:[%s10253 + $0x74] sm:$0xf]
  %v10284 = vld [vmem:[%s10253 + $0x78] sm:$0xf]
  %v10285 = vld [vmem:[%s10253 + $0x7c] sm:$0xf]
  %v10286 = vld [vmem:[%s10253 + $0x80] sm:$0xf]
  %v10287 = vld [vmem:[%s10253 + $0x84] sm:$0xf]
  %v10288 = vld [vmem:[%s10253 + $0x88] sm:$0xf]
  %v10289 = vld [vmem:[%s10253 + $0x8c] sm:$0xf]
  %v10290 = vld [vmem:[%s10253 + $0x90] sm:$0xf]
  %v10291 = vld [vmem:[%s10253 + $0x94] sm:$0xf]
  %v10292 = vld [vmem:[%s10253 + $0x98] sm:$0xf]
  %v10293 = vld [vmem:[%s10253 + $0x9c] sm:$0xf]
  %v10294 = vld [vmem:[%s10253 + $0xa0] sm:$0xf]
  %v10295 = vld [vmem:[%s10253 + $0xa4] sm:$0xf]
  %v10296 = vld [vmem:[%s10253 + $0xa8] sm:$0xf]
  %v10297 = vld [vmem:[%s10253 + $0xac] sm:$0xf]
  %v10298 = vld [vmem:[%s10253 + $0xb0] sm:$0xf]
  %v10299 = vld [vmem:[%s10253 + $0xb4] sm:$0xf]
  %v10300 = vld [vmem:[%s10253 + $0xb8] sm:$0xf]
  %v10301 = vld [vmem:[%s10253 + $0xbc] sm:$0xf]
  %v10302 = vld [vmem:[%s10253 + $0xc0] sm:$0xf]
  %v10303 = vld [vmem:[%s10253 + $0xc4] sm:$0xf]
  %v10304 = vld [vmem:[%s10253 + $0xc8] sm:$0xf]
  %v10305 = vld [vmem:[%s10253 + $0xcc] sm:$0xf]
  %v10306 = vld [vmem:[%s10253 + $0xd0] sm:$0xf]
  %v10307 = vld [vmem:[%s10253 + $0xd4] sm:$0xf]
  %v10308 = vld [vmem:[%s10253 + $0xd8] sm:$0xf]
  %v10309 = vld [vmem:[%s10253 + $0xdc] sm:$0xf]
  %v10310 = vld [vmem:[%s10253 + $0xe0] sm:$0xf]
  %v10311 = vld [vmem:[%s10253 + $0xe4] sm:$0xf]
  %v10312 = vld [vmem:[%s10253 + $0xe8] sm:$0xf]
  %v10313 = vld [vmem:[%s10253 + $0xec] sm:$0xf]
  %v10314 = vld [vmem:[%s10253 + $0xf0] sm:$0xf]
  %v10315 = vld [vmem:[%s10253 + $0xf4] sm:$0xf]
  %v10316 = vld [vmem:[%s10253 + $0xf8] sm:$0xf]
  %v10317 = vld [vmem:[%s10253 + $0xfc] sm:$0xf]
  %v10320 = vunpack.c.l.b16 %v10251
  %v10321 = vunpack.c.h.b16 %v10251
  %v10322 = vunpack.c.l.b16 %v10252
  %v10323 = vunpack.c.h.b16 %v10252
  %v10324 = vpack.c.b16 %v10320, %v10320
  %v10325 = vpack.c.b16 %v10321, %v10321
  %v10326 = vpack.c.b16 %v10322, %v10322
  %v10327 = vpack.c.b16 %v10323, %v10323
  %v10396 = vunpack.c.l.b16 %v10254
  %v10397 = vunpack.c.l.b16 %v10255
  %v10398 = vunpack.c.l.b16 %v10256
  %v10399 = vunpack.c.l.b16 %v10257
  %v10400 = vunpack.c.l.b16 %v10258
  %v10401 = vunpack.c.l.b16 %v10259
  %v10402 = vunpack.c.l.b16 %v10260
  %v10403 = vunpack.c.l.b16 %v10261
  %v10404 = vunpack.c.l.b16 %v10262
  %v10405 = vunpack.c.l.b16 %v10263
  %v10406 = vunpack.c.l.b16 %v10264
  %v10407 = vunpack.c.l.b16 %v10265
  %v10408 = vunpack.c.l.b16 %v10266
  %v10409 = vunpack.c.l.b16 %v10267
  %v10410 = vunpack.c.l.b16 %v10268
  %v10411 = vunpack.c.l.b16 %v10269
  %v10412 = vunpack.c.l.b16 %v10270
  %v10413 = vunpack.c.l.b16 %v10271
  %v10414 = vunpack.c.l.b16 %v10272
  %v10415 = vunpack.c.l.b16 %v10273
  %v10416 = vunpack.c.l.b16 %v10274
  %v10417 = vunpack.c.l.b16 %v10275
  %v10418 = vunpack.c.l.b16 %v10276
  %v10419 = vunpack.c.l.b16 %v10277
  %v10420 = vunpack.c.l.b16 %v10278
  %v10421 = vunpack.c.l.b16 %v10279
  %v10422 = vunpack.c.l.b16 %v10280
  %v10423 = vunpack.c.l.b16 %v10281
  %v10424 = vunpack.c.l.b16 %v10282
  %v10425 = vunpack.c.l.b16 %v10283
  %v10426 = vunpack.c.l.b16 %v10284
  %v10427 = vunpack.c.l.b16 %v10285
  %v10428 = vunpack.c.l.b16 %v10286
  %v10429 = vunpack.c.l.b16 %v10287
  %v10430 = vunpack.c.l.b16 %v10288
  %v10431 = vunpack.c.l.b16 %v10289
  %v10432 = vunpack.c.l.b16 %v10290
  %v10433 = vunpack.c.l.b16 %v10291
  %v10434 = vunpack.c.l.b16 %v10292
  %v10435 = vunpack.c.l.b16 %v10293
  %v10436 = vunpack.c.l.b16 %v10294
  %v10437 = vunpack.c.l.b16 %v10295
  %v10438 = vunpack.c.l.b16 %v10296
  %v10439 = vunpack.c.l.b16 %v10297
  %v10440 = vunpack.c.l.b16 %v10298
  %v10441 = vunpack.c.l.b16 %v10299
  %v10442 = vunpack.c.l.b16 %v10300
  %v10443 = vunpack.c.l.b16 %v10301
  %v10444 = vunpack.c.l.b16 %v10302
  %v10445 = vunpack.c.l.b16 %v10303
  %v10446 = vunpack.c.l.b16 %v10304
  %v10447 = vunpack.c.l.b16 %v10305
  %v10448 = vunpack.c.l.b16 %v10306
  %v10449 = vunpack.c.l.b16 %v10307
  %v10450 = vunpack.c.l.b16 %v10308
  %v10451 = vunpack.c.l.b16 %v10309
  %v10452 = vunpack.c.l.b16 %v10310
  %v10453 = vunpack.c.l.b16 %v10311
  %v10454 = vunpack.c.l.b16 %v10312
  %v10455 = vunpack.c.l.b16 %v10313
  %v10456 = vunpack.c.l.b16 %v10314
  %v10457 = vunpack.c.l.b16 %v10315
  %v10458 = vunpack.c.l.b16 %v10316
  %v10459 = vunpack.c.l.b16 %v10317
  %v10460 = vpack.c.b16 %v10397, %v10396
  %v10461 = vpack.c.b16 %v10399, %v10398
  %v10462 = vpack.c.b16 %v10401, %v10400
  %v10463 = vpack.c.b16 %v10403, %v10402
  %v10464 = vpack.c.b16 %v10405, %v10404
  %v10465 = vpack.c.b16 %v10407, %v10406
  %v10466 = vpack.c.b16 %v10409, %v10408
  %v10467 = vpack.c.b16 %v10411, %v10410
  %v10468 = vpack.c.b16 %v10413, %v10412
  %v10469 = vpack.c.b16 %v10415, %v10414
  %v10470 = vpack.c.b16 %v10417, %v10416
  %v10471 = vpack.c.b16 %v10419, %v10418
  %v10472 = vpack.c.b16 %v10421, %v10420
  %v10473 = vpack.c.b16 %v10423, %v10422
  %v10474 = vpack.c.b16 %v10425, %v10424
  %v10475 = vpack.c.b16 %v10427, %v10426
  %v10476 = vpack.c.b16 %v10429, %v10428
  %v10477 = vpack.c.b16 %v10431, %v10430
  %v10478 = vpack.c.b16 %v10433, %v10432
  %v10479 = vpack.c.b16 %v10435, %v10434
  %v10480 = vpack.c.b16 %v10437, %v10436
  %v10481 = vpack.c.b16 %v10439, %v10438
  %v10482 = vpack.c.b16 %v10441, %v10440
  %v10483 = vpack.c.b16 %v10443, %v10442
  %v10484 = vpack.c.b16 %v10445, %v10444
  %v10485 = vpack.c.b16 %v10447, %v10446
  %v10486 = vpack.c.b16 %v10449, %v10448
  %v10487 = vpack.c.b16 %v10451, %v10450
  %v10488 = vpack.c.b16 %v10453, %v10452
  %v10489 = vpack.c.b16 %v10455, %v10454
  %v10490 = vpack.c.b16 %v10457, %v10456
  %v10491 = vpack.c.b16 %v10459, %v10458
  %10524 = vmatpush.bf16.msra.mxu0 %v10467
  %10525 = vmatpush.bf16.msra.mxu0 %v10466
  %10526 = vmatpush.bf16.msra.mxu0 %v10465
  %10527 = vmatpush.bf16.msra.mxu0 %v10464
  %10528 = vmatpush.bf16.msra.mxu0 %v10463
  %10529 = vmatpush.bf16.msra.mxu0 %v10462
  %10530 = vmatpush.bf16.msra.mxu0 %v10461
  %10531 = vmatpush.bf16.msra.mxu0 %v10460
  %10532 = vmatmul.bf16.gmra.mxu0 %v10324
  %v10533 = vpop.f32.mrf.mxu0
  %v10534 = vadd.f32 0.0, %v10533
  %v10535 = vpop.f32.mrf.mxu0
  %10536 = vdwg.mxu0
  %10537 = vmatpush.bf16.msra.mxu0 %v10475
  %10538 = vmatpush.bf16.msra.mxu0 %v10474
  %10539 = vmatpush.bf16.msra.mxu0 %v10473
  %10540 = vmatpush.bf16.msra.mxu0 %v10472
  %10541 = vmatpush.bf16.msra.mxu0 %v10471
  %10542 = vmatpush.bf16.msra.mxu0 %v10470
  %10543 = vmatpush.bf16.msra.mxu0 %v10469
  %10544 = vmatpush.bf16.msra.mxu0 %v10468
  %10545 = vmatmul.bf16.gmra.mxu0 %v10325
  %v10546 = vpop.f32.mrf.mxu0
  %v10547 = vadd.f32 %v10534, %v10546
  %v10548 = vpop.f32.mrf.mxu0
  %10549 = vdwg.mxu0
  %10550 = vmatpush.bf16.msra.mxu0 %v10483
  %10551 = vmatpush.bf16.msra.mxu0 %v10482
  %10552 = vmatpush.bf16.msra.mxu0 %v10481
  %10553 = vmatpush.bf16.msra.mxu0 %v10480
  %10554 = vmatpush.bf16.msra.mxu0 %v10479
  %10555 = vmatpush.bf16.msra.mxu0 %v10478
  %10556 = vmatpush.bf16.msra.mxu0 %v10477
  %10557 = vmatpush.bf16.msra.mxu0 %v10476
  %10558 = vmatmul.bf16.gmra.mxu0 %v10326
  %v10559 = vpop.f32.mrf.mxu0
  %v10560 = vadd.f32 %v10547, %v10559
  %v10561 = vpop.f32.mrf.mxu0
  %10562 = vdwg.mxu0
  %10563 = vmatpush.bf16.msra.mxu0 %v10491
  %10564 = vmatpush.bf16.msra.mxu0 %v10490
  %10565 = vmatpush.bf16.msra.mxu0 %v10489
  %10566 = vmatpush.bf16.msra.mxu0 %v10488
  %10567 = vmatpush.bf16.msra.mxu0 %v10487
  %10568 = vmatpush.bf16.msra.mxu0 %v10486
  %10569 = vmatpush.bf16.msra.mxu0 %v10485
  %10570 = vmatpush.bf16.msra.mxu0 %v10484
  %10571 = vmatmul.bf16.gmra.mxu0 %v10327
  %v10572 = vpop.f32.mrf.mxu0
  %v10573 = vadd.f32 %v10560, %v10572
  %v10574 = vpop.f32.mrf.mxu0
  %10575 = vdwg.mxu0
  %v10576 = vadd.f32 %v10250, %v10573
  %v10577 = vld [vmem:[%s6065] sm:$0xff]
  %v10578 = vld [vmem:[%s6065 + $0x8] sm:$0xff]
  %s10579 = scalar_lea.vmem %s4, 2816
  %v10580 = vld [vmem:[%s10579] sm:$0xf]
  %v10581 = vld [vmem:[%s10579 + $0x4] sm:$0xf]
  %v10582 = vld [vmem:[%s10579 + $0x8] sm:$0xf]
  %v10583 = vld [vmem:[%s10579 + $0xc] sm:$0xf]
  %v10584 = vld [vmem:[%s10579 + $0x10] sm:$0xf]
  %v10585 = vld [vmem:[%s10579 + $0x14] sm:$0xf]
  %v10586 = vld [vmem:[%s10579 + $0x18] sm:$0xf]
  %v10587 = vld [vmem:[%s10579 + $0x1c] sm:$0xf]
  %v10588 = vld [vmem:[%s10579 + $0x20] sm:$0xf]
  %v10589 = vld [vmem:[%s10579 + $0x24] sm:$0xf]
  %v10590 = vld [vmem:[%s10579 + $0x28] sm:$0xf]
  %v10591 = vld [vmem:[%s10579 + $0x2c] sm:$0xf]
  %v10592 = vld [vmem:[%s10579 + $0x30] sm:$0xf]
  %v10593 = vld [vmem:[%s10579 + $0x34] sm:$0xf]
  %v10594 = vld [vmem:[%s10579 + $0x38] sm:$0xf]
  %v10595 = vld [vmem:[%s10579 + $0x3c] sm:$0xf]
  %v10596 = vld [vmem:[%s10579 + $0x40] sm:$0xf]
  %v10597 = vld [vmem:[%s10579 + $0x44] sm:$0xf]
  %v10598 = vld [vmem:[%s10579 + $0x48] sm:$0xf]
  %v10599 = vld [vmem:[%s10579 + $0x4c] sm:$0xf]
  %v10600 = vld [vmem:[%s10579 + $0x50] sm:$0xf]
  %v10601 = vld [vmem:[%s10579 + $0x54] sm:$0xf]
  %v10602 = vld [vmem:[%s10579 + $0x58] sm:$0xf]
  %v10603 = vld [vmem:[%s10579 + $0x5c] sm:$0xf]
  %v10604 = vld [vmem:[%s10579 + $0x60] sm:$0xf]
  %v10605 = vld [vmem:[%s10579 + $0x64] sm:$0xf]
  %v10606 = vld [vmem:[%s10579 + $0x68] sm:$0xf]
  %v10607 = vld [vmem:[%s10579 + $0x6c] sm:$0xf]
  %v10608 = vld [vmem:[%s10579 + $0x70] sm:$0xf]
  %v10609 = vld [vmem:[%s10579 + $0x74] sm:$0xf]
  %v10610 = vld [vmem:[%s10579 + $0x78] sm:$0xf]
  %v10611 = vld [vmem:[%s10579 + $0x7c] sm:$0xf]
  %v10612 = vld [vmem:[%s10579 + $0x80] sm:$0xf]
  %v10613 = vld [vmem:[%s10579 + $0x84] sm:$0xf]
  %v10614 = vld [vmem:[%s10579 + $0x88] sm:$0xf]
  %v10615 = vld [vmem:[%s10579 + $0x8c] sm:$0xf]
  %v10616 = vld [vmem:[%s10579 + $0x90] sm:$0xf]
  %v10617 = vld [vmem:[%s10579 + $0x94] sm:$0xf]
  %v10618 = vld [vmem:[%s10579 + $0x98] sm:$0xf]
  %v10619 = vld [vmem:[%s10579 + $0x9c] sm:$0xf]
  %v10620 = vld [vmem:[%s10579 + $0xa0] sm:$0xf]
  %v10621 = vld [vmem:[%s10579 + $0xa4] sm:$0xf]
  %v10622 = vld [vmem:[%s10579 + $0xa8] sm:$0xf]
  %v10623 = vld [vmem:[%s10579 + $0xac] sm:$0xf]
  %v10624 = vld [vmem:[%s10579 + $0xb0] sm:$0xf]
  %v10625 = vld [vmem:[%s10579 + $0xb4] sm:$0xf]
  %v10626 = vld [vmem:[%s10579 + $0xb8] sm:$0xf]
  %v10627 = vld [vmem:[%s10579 + $0xbc] sm:$0xf]
  %v10628 = vld [vmem:[%s10579 + $0xc0] sm:$0xf]
  %v10629 = vld [vmem:[%s10579 + $0xc4] sm:$0xf]
  %v10630 = vld [vmem:[%s10579 + $0xc8] sm:$0xf]
  %v10631 = vld [vmem:[%s10579 + $0xcc] sm:$0xf]
  %v10632 = vld [vmem:[%s10579 + $0xd0] sm:$0xf]
  %v10633 = vld [vmem:[%s10579 + $0xd4] sm:$0xf]
  %v10634 = vld [vmem:[%s10579 + $0xd8] sm:$0xf]
  %v10635 = vld [vmem:[%s10579 + $0xdc] sm:$0xf]
  %v10636 = vld [vmem:[%s10579 + $0xe0] sm:$0xf]
  %v10637 = vld [vmem:[%s10579 + $0xe4] sm:$0xf]
  %v10638 = vld [vmem:[%s10579 + $0xe8] sm:$0xf]
  %v10639 = vld [vmem:[%s10579 + $0xec] sm:$0xf]
  %v10640 = vld [vmem:[%s10579 + $0xf0] sm:$0xf]
  %v10641 = vld [vmem:[%s10579 + $0xf4] sm:$0xf]
  %v10642 = vld [vmem:[%s10579 + $0xf8] sm:$0xf]
  %v10643 = vld [vmem:[%s10579 + $0xfc] sm:$0xf]
  %v10646 = vunpack.c.l.b16 %v10577
  %v10647 = vunpack.c.h.b16 %v10577
  %v10648 = vunpack.c.l.b16 %v10578
  %v10649 = vunpack.c.h.b16 %v10578
  %v10650 = vpack.c.b16 %v10646, %v10646
  %v10651 = vpack.c.b16 %v10647, %v10647
  %v10652 = vpack.c.b16 %v10648, %v10648
  %v10653 = vpack.c.b16 %v10649, %v10649
  %v10722 = vunpack.c.l.b16 %v10580
  %v10723 = vunpack.c.l.b16 %v10581
  %v10724 = vunpack.c.l.b16 %v10582
  %v10725 = vunpack.c.l.b16 %v10583
  %v10726 = vunpack.c.l.b16 %v10584
  %v10727 = vunpack.c.l.b16 %v10585
  %v10728 = vunpack.c.l.b16 %v10586
  %v10729 = vunpack.c.l.b16 %v10587
  %v10730 = vunpack.c.l.b16 %v10588
  %v10731 = vunpack.c.l.b16 %v10589
  %v10732 = vunpack.c.l.b16 %v10590
  %v10733 = vunpack.c.l.b16 %v10591
  %v10734 = vunpack.c.l.b16 %v10592
  %v10735 = vunpack.c.l.b16 %v10593
  %v10736 = vunpack.c.l.b16 %v10594
  %v10737 = vunpack.c.l.b16 %v10595
  %v10738 = vunpack.c.l.b16 %v10596
  %v10739 = vunpack.c.l.b16 %v10597
  %v10740 = vunpack.c.l.b16 %v10598
  %v10741 = vunpack.c.l.b16 %v10599
  %v10742 = vunpack.c.l.b16 %v10600
  %v10743 = vunpack.c.l.b16 %v10601
  %v10744 = vunpack.c.l.b16 %v10602
  %v10745 = vunpack.c.l.b16 %v10603
  %v10746 = vunpack.c.l.b16 %v10604
  %v10747 = vunpack.c.l.b16 %v10605
  %v10748 = vunpack.c.l.b16 %v10606
  %v10749 = vunpack.c.l.b16 %v10607
  %v10750 = vunpack.c.l.b16 %v10608
  %v10751 = vunpack.c.l.b16 %v10609
  %v10752 = vunpack.c.l.b16 %v10610
  %v10753 = vunpack.c.l.b16 %v10611
  %v10754 = vunpack.c.l.b16 %v10612
  %v10755 = vunpack.c.l.b16 %v10613
  %v10756 = vunpack.c.l.b16 %v10614
  %v10757 = vunpack.c.l.b16 %v10615
  %v10758 = vunpack.c.l.b16 %v10616
  %v10759 = vunpack.c.l.b16 %v10617
  %v10760 = vunpack.c.l.b16 %v10618
  %v10761 = vunpack.c.l.b16 %v10619
  %v10762 = vunpack.c.l.b16 %v10620
  %v10763 = vunpack.c.l.b16 %v10621
  %v10764 = vunpack.c.l.b16 %v10622
  %v10765 = vunpack.c.l.b16 %v10623
  %v10766 = vunpack.c.l.b16 %v10624
  %v10767 = vunpack.c.l.b16 %v10625
  %v10768 = vunpack.c.l.b16 %v10626
  %v10769 = vunpack.c.l.b16 %v10627
  %v10770 = vunpack.c.l.b16 %v10628
  %v10771 = vunpack.c.l.b16 %v10629
  %v10772 = vunpack.c.l.b16 %v10630
  %v10773 = vunpack.c.l.b16 %v10631
  %v10774 = vunpack.c.l.b16 %v10632
  %v10775 = vunpack.c.l.b16 %v10633
  %v10776 = vunpack.c.l.b16 %v10634
  %v10777 = vunpack.c.l.b16 %v10635
  %v10778 = vunpack.c.l.b16 %v10636
  %v10779 = vunpack.c.l.b16 %v10637
  %v10780 = vunpack.c.l.b16 %v10638
  %v10781 = vunpack.c.l.b16 %v10639
  %v10782 = vunpack.c.l.b16 %v10640
  %v10783 = vunpack.c.l.b16 %v10641
  %v10784 = vunpack.c.l.b16 %v10642
  %v10785 = vunpack.c.l.b16 %v10643
  %v10786 = vpack.c.b16 %v10723, %v10722
  %v10787 = vpack.c.b16 %v10725, %v10724
  %v10788 = vpack.c.b16 %v10727, %v10726
  %v10789 = vpack.c.b16 %v10729, %v10728
  %v10790 = vpack.c.b16 %v10731, %v10730
  %v10791 = vpack.c.b16 %v10733, %v10732
  %v10792 = vpack.c.b16 %v10735, %v10734
  %v10793 = vpack.c.b16 %v10737, %v10736
  %v10794 = vpack.c.b16 %v10739, %v10738
  %v10795 = vpack.c.b16 %v10741, %v10740
  %v10796 = vpack.c.b16 %v10743, %v10742
  %v10797 = vpack.c.b16 %v10745, %v10744
  %v10798 = vpack.c.b16 %v10747, %v10746
  %v10799 = vpack.c.b16 %v10749, %v10748
  %v10800 = vpack.c.b16 %v10751, %v10750
  %v10801 = vpack.c.b16 %v10753, %v10752
  %v10802 = vpack.c.b16 %v10755, %v10754
  %v10803 = vpack.c.b16 %v10757, %v10756
  %v10804 = vpack.c.b16 %v10759, %v10758
  %v10805 = vpack.c.b16 %v10761, %v10760
  %v10806 = vpack.c.b16 %v10763, %v10762
  %v10807 = vpack.c.b16 %v10765, %v10764
  %v10808 = vpack.c.b16 %v10767, %v10766
  %v10809 = vpack.c.b16 %v10769, %v10768
  %v10810 = vpack.c.b16 %v10771, %v10770
  %v10811 = vpack.c.b16 %v10773, %v10772
  %v10812 = vpack.c.b16 %v10775, %v10774
  %v10813 = vpack.c.b16 %v10777, %v10776
  %v10814 = vpack.c.b16 %v10779, %v10778
  %v10815 = vpack.c.b16 %v10781, %v10780
  %v10816 = vpack.c.b16 %v10783, %v10782
  %v10817 = vpack.c.b16 %v10785, %v10784
  %10850 = vmatpush.bf16.msra.mxu0 %v10793
  %10851 = vmatpush.bf16.msra.mxu0 %v10792
  %10852 = vmatpush.bf16.msra.mxu0 %v10791
  %10853 = vmatpush.bf16.msra.mxu0 %v10790
  %10854 = vmatpush.bf16.msra.mxu0 %v10789
  %10855 = vmatpush.bf16.msra.mxu0 %v10788
  %10856 = vmatpush.bf16.msra.mxu0 %v10787
  %10857 = vmatpush.bf16.msra.mxu0 %v10786
  %10858 = vmatmul.bf16.gmra.mxu0 %v10650
  %v10859 = vpop.f32.mrf.mxu0
  %v10860 = vadd.f32 0.0, %v10859
  %v10861 = vpop.f32.mrf.mxu0
  %10862 = vdwg.mxu0
  %10863 = vmatpush.bf16.msra.mxu0 %v10801
  %10864 = vmatpush.bf16.msra.mxu0 %v10800
  %10865 = vmatpush.bf16.msra.mxu0 %v10799
  %10866 = vmatpush.bf16.msra.mxu0 %v10798
  %10867 = vmatpush.bf16.msra.mxu0 %v10797
  %10868 = vmatpush.bf16.msra.mxu0 %v10796
  %10869 = vmatpush.bf16.msra.mxu0 %v10795
  %10870 = vmatpush.bf16.msra.mxu0 %v10794
  %10871 = vmatmul.bf16.gmra.mxu0 %v10651
  %v10872 = vpop.f32.mrf.mxu0
  %v10873 = vadd.f32 %v10860, %v10872
  %v10874 = vpop.f32.mrf.mxu0
  %10875 = vdwg.mxu0
  %10876 = vmatpush.bf16.msra.mxu0 %v10809
  %10877 = vmatpush.bf16.msra.mxu0 %v10808
  %10878 = vmatpush.bf16.msra.mxu0 %v10807
  %10879 = vmatpush.bf16.msra.mxu0 %v10806
  %10880 = vmatpush.bf16.msra.mxu0 %v10805
  %10881 = vmatpush.bf16.msra.mxu0 %v10804
  %10882 = vmatpush.bf16.msra.mxu0 %v10803
  %10883 = vmatpush.bf16.msra.mxu0 %v10802
  %10884 = vmatmul.bf16.gmra.mxu0 %v10652
  %v10885 = vpop.f32.mrf.mxu0
  %v10886 = vadd.f32 %v10873, %v10885
  %v10887 = vpop.f32.mrf.mxu0
  %10888 = vdwg.mxu0
  %10889 = vmatpush.bf16.msra.mxu0 %v10817
  %10890 = vmatpush.bf16.msra.mxu0 %v10816
  %10891 = vmatpush.bf16.msra.mxu0 %v10815
  %10892 = vmatpush.bf16.msra.mxu0 %v10814
  %10893 = vmatpush.bf16.msra.mxu0 %v10813
  %10894 = vmatpush.bf16.msra.mxu0 %v10812
  %10895 = vmatpush.bf16.msra.mxu0 %v10811
  %10896 = vmatpush.bf16.msra.mxu0 %v10810
  %10897 = vmatmul.bf16.gmra.mxu0 %v10653
  %v10898 = vpop.f32.mrf.mxu0
  %v10899 = vadd.f32 %v10886, %v10898
  %v10900 = vpop.f32.mrf.mxu0
  %10901 = vdwg.mxu0
  %v10902 = vadd.f32 %v10576, %v10899
  %v10903 = vld [vmem:[%s6528] sm:$0xff]
  %v10904 = vld [vmem:[%s6528 + $0x8] sm:$0xff]
  %s10905 = scalar_lea.vmem %s4, 3072
  %v10906 = vld [vmem:[%s10905] sm:$0xf]
  %v10907 = vld [vmem:[%s10905 + $0x4] sm:$0xf]
  %v10908 = vld [vmem:[%s10905 + $0x8] sm:$0xf]
  %v10909 = vld [vmem:[%s10905 + $0xc] sm:$0xf]
  %v10910 = vld [vmem:[%s10905 + $0x10] sm:$0xf]
  %v10911 = vld [vmem:[%s10905 + $0x14] sm:$0xf]
  %v10912 = vld [vmem:[%s10905 + $0x18] sm:$0xf]
  %v10913 = vld [vmem:[%s10905 + $0x1c] sm:$0xf]
  %v10914 = vld [vmem:[%s10905 + $0x20] sm:$0xf]
  %v10915 = vld [vmem:[%s10905 + $0x24] sm:$0xf]
  %v10916 = vld [vmem:[%s10905 + $0x28] sm:$0xf]
  %v10917 = vld [vmem:[%s10905 + $0x2c] sm:$0xf]
  %v10918 = vld [vmem:[%s10905 + $0x30] sm:$0xf]
  %v10919 = vld [vmem:[%s10905 + $0x34] sm:$0xf]
  %v10920 = vld [vmem:[%s10905 + $0x38] sm:$0xf]
  %v10921 = vld [vmem:[%s10905 + $0x3c] sm:$0xf]
  %v10922 = vld [vmem:[%s10905 + $0x40] sm:$0xf]
  %v10923 = vld [vmem:[%s10905 + $0x44] sm:$0xf]
  %v10924 = vld [vmem:[%s10905 + $0x48] sm:$0xf]
  %v10925 = vld [vmem:[%s10905 + $0x4c] sm:$0xf]
  %v10926 = vld [vmem:[%s10905 + $0x50] sm:$0xf]
  %v10927 = vld [vmem:[%s10905 + $0x54] sm:$0xf]
  %v10928 = vld [vmem:[%s10905 + $0x58] sm:$0xf]
  %v10929 = vld [vmem:[%s10905 + $0x5c] sm:$0xf]
  %v10930 = vld [vmem:[%s10905 + $0x60] sm:$0xf]
  %v10931 = vld [vmem:[%s10905 + $0x64] sm:$0xf]
  %v10932 = vld [vmem:[%s10905 + $0x68] sm:$0xf]
  %v10933 = vld [vmem:[%s10905 + $0x6c] sm:$0xf]
  %v10934 = vld [vmem:[%s10905 + $0x70] sm:$0xf]
  %v10935 = vld [vmem:[%s10905 + $0x74] sm:$0xf]
  %v10936 = vld [vmem:[%s10905 + $0x78] sm:$0xf]
  %v10937 = vld [vmem:[%s10905 + $0x7c] sm:$0xf]
  %v10938 = vld [vmem:[%s10905 + $0x80] sm:$0xf]
  %v10939 = vld [vmem:[%s10905 + $0x84] sm:$0xf]
  %v10940 = vld [vmem:[%s10905 + $0x88] sm:$0xf]
  %v10941 = vld [vmem:[%s10905 + $0x8c] sm:$0xf]
  %v10942 = vld [vmem:[%s10905 + $0x90] sm:$0xf]
  %v10943 = vld [vmem:[%s10905 + $0x94] sm:$0xf]
  %v10944 = vld [vmem:[%s10905 + $0x98] sm:$0xf]
  %v10945 = vld [vmem:[%s10905 + $0x9c] sm:$0xf]
  %v10946 = vld [vmem:[%s10905 + $0xa0] sm:$0xf]
  %v10947 = vld [vmem:[%s10905 + $0xa4] sm:$0xf]
  %v10948 = vld [vmem:[%s10905 + $0xa8] sm:$0xf]
  %v10949 = vld [vmem:[%s10905 + $0xac] sm:$0xf]
  %v10950 = vld [vmem:[%s10905 + $0xb0] sm:$0xf]
  %v10951 = vld [vmem:[%s10905 + $0xb4] sm:$0xf]
  %v10952 = vld [vmem:[%s10905 + $0xb8] sm:$0xf]
  %v10953 = vld [vmem:[%s10905 + $0xbc] sm:$0xf]
  %v10954 = vld [vmem:[%s10905 + $0xc0] sm:$0xf]
  %v10955 = vld [vmem:[%s10905 + $0xc4] sm:$0xf]
  %v10956 = vld [vmem:[%s10905 + $0xc8] sm:$0xf]
  %v10957 = vld [vmem:[%s10905 + $0xcc] sm:$0xf]
  %v10958 = vld [vmem:[%s10905 + $0xd0] sm:$0xf]
  %v10959 = vld [vmem:[%s10905 + $0xd4] sm:$0xf]
  %v10960 = vld [vmem:[%s10905 + $0xd8] sm:$0xf]
  %v10961 = vld [vmem:[%s10905 + $0xdc] sm:$0xf]
  %v10962 = vld [vmem:[%s10905 + $0xe0] sm:$0xf]
  %v10963 = vld [vmem:[%s10905 + $0xe4] sm:$0xf]
  %v10964 = vld [vmem:[%s10905 + $0xe8] sm:$0xf]
  %v10965 = vld [vmem:[%s10905 + $0xec] sm:$0xf]
  %v10966 = vld [vmem:[%s10905 + $0xf0] sm:$0xf]
  %v10967 = vld [vmem:[%s10905 + $0xf4] sm:$0xf]
  %v10968 = vld [vmem:[%s10905 + $0xf8] sm:$0xf]
  %v10969 = vld [vmem:[%s10905 + $0xfc] sm:$0xf]
  %v10972 = vunpack.c.l.b16 %v10903
  %v10973 = vunpack.c.h.b16 %v10903
  %v10974 = vunpack.c.l.b16 %v10904
  %v10975 = vunpack.c.h.b16 %v10904
  %v10976 = vpack.c.b16 %v10972, %v10972
  %v10977 = vpack.c.b16 %v10973, %v10973
  %v10978 = vpack.c.b16 %v10974, %v10974
  %v10979 = vpack.c.b16 %v10975, %v10975
  %v11048 = vunpack.c.l.b16 %v10906
  %v11049 = vunpack.c.l.b16 %v10907
  %v11050 = vunpack.c.l.b16 %v10908
  %v11051 = vunpack.c.l.b16 %v10909
  %v11052 = vunpack.c.l.b16 %v10910
  %v11053 = vunpack.c.l.b16 %v10911
  %v11054 = vunpack.c.l.b16 %v10912
  %v11055 = vunpack.c.l.b16 %v10913
  %v11056 = vunpack.c.l.b16 %v10914
  %v11057 = vunpack.c.l.b16 %v10915
  %v11058 = vunpack.c.l.b16 %v10916
  %v11059 = vunpack.c.l.b16 %v10917
  %v11060 = vunpack.c.l.b16 %v10918
  %v11061 = vunpack.c.l.b16 %v10919
  %v11062 = vunpack.c.l.b16 %v10920
  %v11063 = vunpack.c.l.b16 %v10921
  %v11064 = vunpack.c.l.b16 %v10922
  %v11065 = vunpack.c.l.b16 %v10923
  %v11066 = vunpack.c.l.b16 %v10924
  %v11067 = vunpack.c.l.b16 %v10925
  %v11068 = vunpack.c.l.b16 %v10926
  %v11069 = vunpack.c.l.b16 %v10927
  %v11070 = vunpack.c.l.b16 %v10928
  %v11071 = vunpack.c.l.b16 %v10929
  %v11072 = vunpack.c.l.b16 %v10930
  %v11073 = vunpack.c.l.b16 %v10931
  %v11074 = vunpack.c.l.b16 %v10932
  %v11075 = vunpack.c.l.b16 %v10933
  %v11076 = vunpack.c.l.b16 %v10934
  %v11077 = vunpack.c.l.b16 %v10935
  %v11078 = vunpack.c.l.b16 %v10936
  %v11079 = vunpack.c.l.b16 %v10937
  %v11080 = vunpack.c.l.b16 %v10938
  %v11081 = vunpack.c.l.b16 %v10939
  %v11082 = vunpack.c.l.b16 %v10940
  %v11083 = vunpack.c.l.b16 %v10941
  %v11084 = vunpack.c.l.b16 %v10942
  %v11085 = vunpack.c.l.b16 %v10943
  %v11086 = vunpack.c.l.b16 %v10944
  %v11087 = vunpack.c.l.b16 %v10945
  %v11088 = vunpack.c.l.b16 %v10946
  %v11089 = vunpack.c.l.b16 %v10947
  %v11090 = vunpack.c.l.b16 %v10948
  %v11091 = vunpack.c.l.b16 %v10949
  %v11092 = vunpack.c.l.b16 %v10950
  %v11093 = vunpack.c.l.b16 %v10951
  %v11094 = vunpack.c.l.b16 %v10952
  %v11095 = vunpack.c.l.b16 %v10953
  %v11096 = vunpack.c.l.b16 %v10954
  %v11097 = vunpack.c.l.b16 %v10955
  %v11098 = vunpack.c.l.b16 %v10956
  %v11099 = vunpack.c.l.b16 %v10957
  %v11100 = vunpack.c.l.b16 %v10958
  %v11101 = vunpack.c.l.b16 %v10959
  %v11102 = vunpack.c.l.b16 %v10960
  %v11103 = vunpack.c.l.b16 %v10961
  %v11104 = vunpack.c.l.b16 %v10962
  %v11105 = vunpack.c.l.b16 %v10963
  %v11106 = vunpack.c.l.b16 %v10964
  %v11107 = vunpack.c.l.b16 %v10965
  %v11108 = vunpack.c.l.b16 %v10966
  %v11109 = vunpack.c.l.b16 %v10967
  %v11110 = vunpack.c.l.b16 %v10968
  %v11111 = vunpack.c.l.b16 %v10969
  %v11112 = vpack.c.b16 %v11049, %v11048
  %v11113 = vpack.c.b16 %v11051, %v11050
  %v11114 = vpack.c.b16 %v11053, %v11052
  %v11115 = vpack.c.b16 %v11055, %v11054
  %v11116 = vpack.c.b16 %v11057, %v11056
  %v11117 = vpack.c.b16 %v11059, %v11058
  %v11118 = vpack.c.b16 %v11061, %v11060
  %v11119 = vpack.c.b16 %v11063, %v11062
  %v11120 = vpack.c.b16 %v11065, %v11064
  %v11121 = vpack.c.b16 %v11067, %v11066
  %v11122 = vpack.c.b16 %v11069, %v11068
  %v11123 = vpack.c.b16 %v11071, %v11070
  %v11124 = vpack.c.b16 %v11073, %v11072
  %v11125 = vpack.c.b16 %v11075, %v11074
  %v11126 = vpack.c.b16 %v11077, %v11076
  %v11127 = vpack.c.b16 %v11079, %v11078
  %v11128 = vpack.c.b16 %v11081, %v11080
  %v11129 = vpack.c.b16 %v11083, %v11082
  %v11130 = vpack.c.b16 %v11085, %v11084
  %v11131 = vpack.c.b16 %v11087, %v11086
  %v11132 = vpack.c.b16 %v11089, %v11088
  %v11133 = vpack.c.b16 %v11091, %v11090
  %v11134 = vpack.c.b16 %v11093, %v11092
  %v11135 = vpack.c.b16 %v11095, %v11094
  %v11136 = vpack.c.b16 %v11097, %v11096
  %v11137 = vpack.c.b16 %v11099, %v11098
  %v11138 = vpack.c.b16 %v11101, %v11100
  %v11139 = vpack.c.b16 %v11103, %v11102
  %v11140 = vpack.c.b16 %v11105, %v11104
  %v11141 = vpack.c.b16 %v11107, %v11106
  %v11142 = vpack.c.b16 %v11109, %v11108
  %v11143 = vpack.c.b16 %v11111, %v11110
  %11176 = vmatpush.bf16.msra.mxu0 %v11119
  %11177 = vmatpush.bf16.msra.mxu0 %v11118
  %11178 = vmatpush.bf16.msra.mxu0 %v11117
  %11179 = vmatpush.bf16.msra.mxu0 %v11116
  %11180 = vmatpush.bf16.msra.mxu0 %v11115
  %11181 = vmatpush.bf16.msra.mxu0 %v11114
  %11182 = vmatpush.bf16.msra.mxu0 %v11113
  %11183 = vmatpush.bf16.msra.mxu0 %v11112
  %11184 = vmatmul.bf16.gmra.mxu0 %v10976
  %v11185 = vpop.f32.mrf.mxu0
  %v11186 = vadd.f32 0.0, %v11185
  %v11187 = vpop.f32.mrf.mxu0
  %11188 = vdwg.mxu0
  %11189 = vmatpush.bf16.msra.mxu0 %v11127
  %11190 = vmatpush.bf16.msra.mxu0 %v11126
  %11191 = vmatpush.bf16.msra.mxu0 %v11125
  %11192 = vmatpush.bf16.msra.mxu0 %v11124
  %11193 = vmatpush.bf16.msra.mxu0 %v11123
  %11194 = vmatpush.bf16.msra.mxu0 %v11122
  %11195 = vmatpush.bf16.msra.mxu0 %v11121
  %11196 = vmatpush.bf16.msra.mxu0 %v11120
  %11197 = vmatmul.bf16.gmra.mxu0 %v10977
  %v11198 = vpop.f32.mrf.mxu0
  %v11199 = vadd.f32 %v11186, %v11198
  %v11200 = vpop.f32.mrf.mxu0
  %11201 = vdwg.mxu0
  %11202 = vmatpush.bf16.msra.mxu0 %v11135
  %11203 = vmatpush.bf16.msra.mxu0 %v11134
  %11204 = vmatpush.bf16.msra.mxu0 %v11133
  %11205 = vmatpush.bf16.msra.mxu0 %v11132
  %11206 = vmatpush.bf16.msra.mxu0 %v11131
  %11207 = vmatpush.bf16.msra.mxu0 %v11130
  %11208 = vmatpush.bf16.msra.mxu0 %v11129
  %11209 = vmatpush.bf16.msra.mxu0 %v11128
  %11210 = vmatmul.bf16.gmra.mxu0 %v10978
  %v11211 = vpop.f32.mrf.mxu0
  %v11212 = vadd.f32 %v11199, %v11211
  %v11213 = vpop.f32.mrf.mxu0
  %11214 = vdwg.mxu0
  %11215 = vmatpush.bf16.msra.mxu0 %v11143
  %11216 = vmatpush.bf16.msra.mxu0 %v11142
  %11217 = vmatpush.bf16.msra.mxu0 %v11141
  %11218 = vmatpush.bf16.msra.mxu0 %v11140
  %11219 = vmatpush.bf16.msra.mxu0 %v11139
  %11220 = vmatpush.bf16.msra.mxu0 %v11138
  %11221 = vmatpush.bf16.msra.mxu0 %v11137
  %11222 = vmatpush.bf16.msra.mxu0 %v11136
  %11223 = vmatmul.bf16.gmra.mxu0 %v10979
  %v11224 = vpop.f32.mrf.mxu0
  %v11225 = vadd.f32 %v11212, %v11224
  %v11226 = vpop.f32.mrf.mxu0
  %11227 = vdwg.mxu0
  %v11228 = vadd.f32 %v10902, %v11225
  %v11229 = vld [vmem:[%s6991] sm:$0xff]
  %v11230 = vld [vmem:[%s6991 + $0x8] sm:$0xff]
  %s11231 = scalar_lea.vmem %s4, 3328
  %v11232 = vld [vmem:[%s11231] sm:$0xf]
  %v11233 = vld [vmem:[%s11231 + $0x4] sm:$0xf]
  %v11234 = vld [vmem:[%s11231 + $0x8] sm:$0xf]
  %v11235 = vld [vmem:[%s11231 + $0xc] sm:$0xf]
  %v11236 = vld [vmem:[%s11231 + $0x10] sm:$0xf]
  %v11237 = vld [vmem:[%s11231 + $0x14] sm:$0xf]
  %v11238 = vld [vmem:[%s11231 + $0x18] sm:$0xf]
  %v11239 = vld [vmem:[%s11231 + $0x1c] sm:$0xf]
  %v11240 = vld [vmem:[%s11231 + $0x20] sm:$0xf]
  %v11241 = vld [vmem:[%s11231 + $0x24] sm:$0xf]
  %v11242 = vld [vmem:[%s11231 + $0x28] sm:$0xf]
  %v11243 = vld [vmem:[%s11231 + $0x2c] sm:$0xf]
  %v11244 = vld [vmem:[%s11231 + $0x30] sm:$0xf]
  %v11245 = vld [vmem:[%s11231 + $0x34] sm:$0xf]
  %v11246 = vld [vmem:[%s11231 + $0x38] sm:$0xf]
  %v11247 = vld [vmem:[%s11231 + $0x3c] sm:$0xf]
  %v11248 = vld [vmem:[%s11231 + $0x40] sm:$0xf]
  %v11249 = vld [vmem:[%s11231 + $0x44] sm:$0xf]
  %v11250 = vld [vmem:[%s11231 + $0x48] sm:$0xf]
  %v11251 = vld [vmem:[%s11231 + $0x4c] sm:$0xf]
  %v11252 = vld [vmem:[%s11231 + $0x50] sm:$0xf]
  %v11253 = vld [vmem:[%s11231 + $0x54] sm:$0xf]
  %v11254 = vld [vmem:[%s11231 + $0x58] sm:$0xf]
  %v11255 = vld [vmem:[%s11231 + $0x5c] sm:$0xf]
  %v11256 = vld [vmem:[%s11231 + $0x60] sm:$0xf]
  %v11257 = vld [vmem:[%s11231 + $0x64] sm:$0xf]
  %v11258 = vld [vmem:[%s11231 + $0x68] sm:$0xf]
  %v11259 = vld [vmem:[%s11231 + $0x6c] sm:$0xf]
  %v11260 = vld [vmem:[%s11231 + $0x70] sm:$0xf]
  %v11261 = vld [vmem:[%s11231 + $0x74] sm:$0xf]
  %v11262 = vld [vmem:[%s11231 + $0x78] sm:$0xf]
  %v11263 = vld [vmem:[%s11231 + $0x7c] sm:$0xf]
  %v11264 = vld [vmem:[%s11231 + $0x80] sm:$0xf]
  %v11265 = vld [vmem:[%s11231 + $0x84] sm:$0xf]
  %v11266 = vld [vmem:[%s11231 + $0x88] sm:$0xf]
  %v11267 = vld [vmem:[%s11231 + $0x8c] sm:$0xf]
  %v11268 = vld [vmem:[%s11231 + $0x90] sm:$0xf]
  %v11269 = vld [vmem:[%s11231 + $0x94] sm:$0xf]
  %v11270 = vld [vmem:[%s11231 + $0x98] sm:$0xf]
  %v11271 = vld [vmem:[%s11231 + $0x9c] sm:$0xf]
  %v11272 = vld [vmem:[%s11231 + $0xa0] sm:$0xf]
  %v11273 = vld [vmem:[%s11231 + $0xa4] sm:$0xf]
  %v11274 = vld [vmem:[%s11231 + $0xa8] sm:$0xf]
  %v11275 = vld [vmem:[%s11231 + $0xac] sm:$0xf]
  %v11276 = vld [vmem:[%s11231 + $0xb0] sm:$0xf]
  %v11277 = vld [vmem:[%s11231 + $0xb4] sm:$0xf]
  %v11278 = vld [vmem:[%s11231 + $0xb8] sm:$0xf]
  %v11279 = vld [vmem:[%s11231 + $0xbc] sm:$0xf]
  %v11280 = vld [vmem:[%s11231 + $0xc0] sm:$0xf]
  %v11281 = vld [vmem:[%s11231 + $0xc4] sm:$0xf]
  %v11282 = vld [vmem:[%s11231 + $0xc8] sm:$0xf]
  %v11283 = vld [vmem:[%s11231 + $0xcc] sm:$0xf]
  %v11284 = vld [vmem:[%s11231 + $0xd0] sm:$0xf]
  %v11285 = vld [vmem:[%s11231 + $0xd4] sm:$0xf]
  %v11286 = vld [vmem:[%s11231 + $0xd8] sm:$0xf]
  %v11287 = vld [vmem:[%s11231 + $0xdc] sm:$0xf]
  %v11288 = vld [vmem:[%s11231 + $0xe0] sm:$0xf]
  %v11289 = vld [vmem:[%s11231 + $0xe4] sm:$0xf]
  %v11290 = vld [vmem:[%s11231 + $0xe8] sm:$0xf]
  %v11291 = vld [vmem:[%s11231 + $0xec] sm:$0xf]
  %v11292 = vld [vmem:[%s11231 + $0xf0] sm:$0xf]
  %v11293 = vld [vmem:[%s11231 + $0xf4] sm:$0xf]
  %v11294 = vld [vmem:[%s11231 + $0xf8] sm:$0xf]
  %v11295 = vld [vmem:[%s11231 + $0xfc] sm:$0xf]
  %v11298 = vunpack.c.l.b16 %v11229
  %v11299 = vunpack.c.h.b16 %v11229
  %v11300 = vunpack.c.l.b16 %v11230
  %v11301 = vunpack.c.h.b16 %v11230
  %v11302 = vpack.c.b16 %v11298, %v11298
  %v11303 = vpack.c.b16 %v11299, %v11299
  %v11304 = vpack.c.b16 %v11300, %v11300
  %v11305 = vpack.c.b16 %v11301, %v11301
  %v11374 = vunpack.c.l.b16 %v11232
  %v11375 = vunpack.c.l.b16 %v11233
  %v11376 = vunpack.c.l.b16 %v11234
  %v11377 = vunpack.c.l.b16 %v11235
  %v11378 = vunpack.c.l.b16 %v11236
  %v11379 = vunpack.c.l.b16 %v11237
  %v11380 = vunpack.c.l.b16 %v11238
  %v11381 = vunpack.c.l.b16 %v11239
  %v11382 = vunpack.c.l.b16 %v11240
  %v11383 = vunpack.c.l.b16 %v11241
  %v11384 = vunpack.c.l.b16 %v11242
  %v11385 = vunpack.c.l.b16 %v11243
  %v11386 = vunpack.c.l.b16 %v11244
  %v11387 = vunpack.c.l.b16 %v11245
  %v11388 = vunpack.c.l.b16 %v11246
  %v11389 = vunpack.c.l.b16 %v11247
  %v11390 = vunpack.c.l.b16 %v11248
  %v11391 = vunpack.c.l.b16 %v11249
  %v11392 = vunpack.c.l.b16 %v11250
  %v11393 = vunpack.c.l.b16 %v11251
  %v11394 = vunpack.c.l.b16 %v11252
  %v11395 = vunpack.c.l.b16 %v11253
  %v11396 = vunpack.c.l.b16 %v11254
  %v11397 = vunpack.c.l.b16 %v11255
  %v11398 = vunpack.c.l.b16 %v11256
  %v11399 = vunpack.c.l.b16 %v11257
  %v11400 = vunpack.c.l.b16 %v11258
  %v11401 = vunpack.c.l.b16 %v11259
  %v11402 = vunpack.c.l.b16 %v11260
  %v11403 = vunpack.c.l.b16 %v11261
  %v11404 = vunpack.c.l.b16 %v11262
  %v11405 = vunpack.c.l.b16 %v11263
  %v11406 = vunpack.c.l.b16 %v11264
  %v11407 = vunpack.c.l.b16 %v11265
  %v11408 = vunpack.c.l.b16 %v11266
  %v11409 = vunpack.c.l.b16 %v11267
  %v11410 = vunpack.c.l.b16 %v11268
  %v11411 = vunpack.c.l.b16 %v11269
  %v11412 = vunpack.c.l.b16 %v11270
  %v11413 = vunpack.c.l.b16 %v11271
  %v11414 = vunpack.c.l.b16 %v11272
  %v11415 = vunpack.c.l.b16 %v11273
  %v11416 = vunpack.c.l.b16 %v11274
  %v11417 = vunpack.c.l.b16 %v11275
  %v11418 = vunpack.c.l.b16 %v11276
  %v11419 = vunpack.c.l.b16 %v11277
  %v11420 = vunpack.c.l.b16 %v11278
  %v11421 = vunpack.c.l.b16 %v11279
  %v11422 = vunpack.c.l.b16 %v11280
  %v11423 = vunpack.c.l.b16 %v11281
  %v11424 = vunpack.c.l.b16 %v11282
  %v11425 = vunpack.c.l.b16 %v11283
  %v11426 = vunpack.c.l.b16 %v11284
  %v11427 = vunpack.c.l.b16 %v11285
  %v11428 = vunpack.c.l.b16 %v11286
  %v11429 = vunpack.c.l.b16 %v11287
  %v11430 = vunpack.c.l.b16 %v11288
  %v11431 = vunpack.c.l.b16 %v11289
  %v11432 = vunpack.c.l.b16 %v11290
  %v11433 = vunpack.c.l.b16 %v11291
  %v11434 = vunpack.c.l.b16 %v11292
  %v11435 = vunpack.c.l.b16 %v11293
  %v11436 = vunpack.c.l.b16 %v11294
  %v11437 = vunpack.c.l.b16 %v11295
  %v11438 = vpack.c.b16 %v11375, %v11374
  %v11439 = vpack.c.b16 %v11377, %v11376
  %v11440 = vpack.c.b16 %v11379, %v11378
  %v11441 = vpack.c.b16 %v11381, %v11380
  %v11442 = vpack.c.b16 %v11383, %v11382
  %v11443 = vpack.c.b16 %v11385, %v11384
  %v11444 = vpack.c.b16 %v11387, %v11386
  %v11445 = vpack.c.b16 %v11389, %v11388
  %v11446 = vpack.c.b16 %v11391, %v11390
  %v11447 = vpack.c.b16 %v11393, %v11392
  %v11448 = vpack.c.b16 %v11395, %v11394
  %v11449 = vpack.c.b16 %v11397, %v11396
  %v11450 = vpack.c.b16 %v11399, %v11398
  %v11451 = vpack.c.b16 %v11401, %v11400
  %v11452 = vpack.c.b16 %v11403, %v11402
  %v11453 = vpack.c.b16 %v11405, %v11404
  %v11454 = vpack.c.b16 %v11407, %v11406
  %v11455 = vpack.c.b16 %v11409, %v11408
  %v11456 = vpack.c.b16 %v11411, %v11410
  %v11457 = vpack.c.b16 %v11413, %v11412
  %v11458 = vpack.c.b16 %v11415, %v11414
  %v11459 = vpack.c.b16 %v11417, %v11416
  %v11460 = vpack.c.b16 %v11419, %v11418
  %v11461 = vpack.c.b16 %v11421, %v11420
  %v11462 = vpack.c.b16 %v11423, %v11422
  %v11463 = vpack.c.b16 %v11425, %v11424
  %v11464 = vpack.c.b16 %v11427, %v11426
  %v11465 = vpack.c.b16 %v11429, %v11428
  %v11466 = vpack.c.b16 %v11431, %v11430
  %v11467 = vpack.c.b16 %v11433, %v11432
  %v11468 = vpack.c.b16 %v11435, %v11434
  %v11469 = vpack.c.b16 %v11437, %v11436
  %11502 = vmatpush.bf16.msra.mxu0 %v11445
  %11503 = vmatpush.bf16.msra.mxu0 %v11444
  %11504 = vmatpush.bf16.msra.mxu0 %v11443
  %11505 = vmatpush.bf16.msra.mxu0 %v11442
  %11506 = vmatpush.bf16.msra.mxu0 %v11441
  %11507 = vmatpush.bf16.msra.mxu0 %v11440
  %11508 = vmatpush.bf16.msra.mxu0 %v11439
  %11509 = vmatpush.bf16.msra.mxu0 %v11438
  %11510 = vmatmul.bf16.gmra.mxu0 %v11302
  %v11511 = vpop.f32.mrf.mxu0
  %v11512 = vadd.f32 0.0, %v11511
  %v11513 = vpop.f32.mrf.mxu0
  %11514 = vdwg.mxu0
  %11515 = vmatpush.bf16.msra.mxu0 %v11453
  %11516 = vmatpush.bf16.msra.mxu0 %v11452
  %11517 = vmatpush.bf16.msra.mxu0 %v11451
  %11518 = vmatpush.bf16.msra.mxu0 %v11450
  %11519 = vmatpush.bf16.msra.mxu0 %v11449
  %11520 = vmatpush.bf16.msra.mxu0 %v11448
  %11521 = vmatpush.bf16.msra.mxu0 %v11447
  %11522 = vmatpush.bf16.msra.mxu0 %v11446
  %11523 = vmatmul.bf16.gmra.mxu0 %v11303
  %v11524 = vpop.f32.mrf.mxu0
  %v11525 = vadd.f32 %v11512, %v11524
  %v11526 = vpop.f32.mrf.mxu0
  %11527 = vdwg.mxu0
  %11528 = vmatpush.bf16.msra.mxu0 %v11461
  %11529 = vmatpush.bf16.msra.mxu0 %v11460
  %11530 = vmatpush.bf16.msra.mxu0 %v11459
  %11531 = vmatpush.bf16.msra.mxu0 %v11458
  %11532 = vmatpush.bf16.msra.mxu0 %v11457
  %11533 = vmatpush.bf16.msra.mxu0 %v11456
  %11534 = vmatpush.bf16.msra.mxu0 %v11455
  %11535 = vmatpush.bf16.msra.mxu0 %v11454
  %11536 = vmatmul.bf16.gmra.mxu0 %v11304
  %v11537 = vpop.f32.mrf.mxu0
  %v11538 = vadd.f32 %v11525, %v11537
  %v11539 = vpop.f32.mrf.mxu0
  %11540 = vdwg.mxu0
  %11541 = vmatpush.bf16.msra.mxu0 %v11469
  %11542 = vmatpush.bf16.msra.mxu0 %v11468
  %11543 = vmatpush.bf16.msra.mxu0 %v11467
  %11544 = vmatpush.bf16.msra.mxu0 %v11466
  %11545 = vmatpush.bf16.msra.mxu0 %v11465
  %11546 = vmatpush.bf16.msra.mxu0 %v11464
  %11547 = vmatpush.bf16.msra.mxu0 %v11463
  %11548 = vmatpush.bf16.msra.mxu0 %v11462
  %11549 = vmatmul.bf16.gmra.mxu0 %v11305
  %v11550 = vpop.f32.mrf.mxu0
  %v11551 = vadd.f32 %v11538, %v11550
  %v11552 = vpop.f32.mrf.mxu0
  %11553 = vdwg.mxu0
  %v11554 = vadd.f32 %v11228, %v11551
  %v11555 = vld [vmem:[%s5] sm:$0x1]
  %v11557 = vperm.slane %v11555, 0
  %v11559 = vadd.f32 %v11554, %v11557
  %11560 = vst [vmem:[%s6] sm:$0xff] %v11559
  // Predicated region
  $region26: #{cnn_forward.1} parent=0 // pred_check
    _
  $region27: #{cnn_forward.1} parent=0 // pred_check_branch
    %11562 = sbr.rel (0) target = $region29
  $region28: #{cnn_forward.1} parent=0 // pred_region
    _
  $region29: #{cnn_forward.1} parent=0 // pred_fallthru
    _
  // Predicated region
  $region30: #{cnn_forward.1} parent=0 // pred_check
    _
  $region31: #{cnn_forward.1} parent=0 // pred_check_branch
    %11564 = sbr.rel (0) target = $region33
  $region32: #{cnn_forward.1} parent=0 // pred_region
    _
  $region33: #{cnn_forward.1} parent=0 // pred_fallthru
    _

</llo_original>
